<compile_context>
chip_gen: v7x
topology: tpu7x:2x2x1
jax: 0.10.0
libtpu: 0.0.40
codegen_flags: <defaults>
</compile_context>

<pallas_src>
import functools
import math

import jax
import jax.numpy as jnp
import numpy as np
from jax import lax
from jax.experimental import pallas as pl
from jax.experimental.pallas import tpu as pltpu


def _attention_block_kernel(x_ref, gamma_ref, beta_ref, wqkv_ref, bqkv_ref,
                            wproj_ref, bproj_ref, out_ref, *,
                            num_heads, num_groups, eps, exp_dtype):
    # x_ref: (Bblk, C, T) block; params are full, grid-invariant arrays.
    bblk, C, T = x_ref.shape
    gsize = C // num_groups
    ch = C // num_heads

    gamma = gamma_ref[...]        # (C, 1) f32
    beta = beta_ref[...]          # (C, 1) f32
    wqkv = wqkv_ref[...]          # (3C, C) bf16, [q|k|v] blocks, scale folded
    bqkv = bqkv_ref[...]          # (3C, 1) f32
    wproj = wproj_ref[...]        # (C, C) bf16
    bproj = bproj_ref[...]        # (C, 1) f32

    inv_n = 1.0 / float(gsize * T)

    # Small static unroll over the batch-block; every intermediate stays <= 4-D.
    for bb in range(bblk):
        x = x_ref[bb].astype(jnp.float32)                    # (C, T)

        # ---- GroupNorm: two-stage reduction, no (C,T) relayout ----
        s1 = jnp.sum(x, axis=-1, keepdims=True)              # (C, 1)
        s2 = jnp.sum(x * x, axis=-1, keepdims=True)          # (C, 1)
        g1 = jnp.sum(s1.reshape(num_groups, gsize), axis=-1, keepdims=True)
        g2 = jnp.sum(s2.reshape(num_groups, gsize), axis=-1, keepdims=True)
        mean = g1 * inv_n
        var = jnp.maximum(g2 * inv_n - mean * mean, 0.0)     # clamp cancellation
        rstd = lax.rsqrt(var + eps)
        mean_c = jnp.broadcast_to(mean, (num_groups, gsize)).reshape(C, 1)
        rstd_c = jnp.broadcast_to(rstd, (num_groups, gsize)).reshape(C, 1)
        a_c = rstd_c * gamma
        b_c = beta - mean_c * a_c
        xn = (x * a_c + b_c).astype(jnp.bfloat16)            # bf16 only at MXU

        # ---- qkv 1x1 conv (pre-reordered / pre-scaled weights) ----
        qkv = jnp.dot(wqkv, xn,
                      preferred_element_type=jnp.float32) + bqkv   # (3C, T) f32
        qkv4 = qkv.reshape(3, num_heads, ch, T)
        q = qkv4[0].astype(jnp.bfloat16)                     # (H, ch, T)
        k = qkv4[1].astype(jnp.bfloat16)                     # (H, ch, T)
        v = qkv4[2].astype(jnp.bfloat16)                     # (H, ch, T)

        # ---- attention, key-major scores: w[h,s,t] = sum_c k[h,c,s] q[h,c,t] ----
        w = jnp.einsum('hcs,hct->hst', k, q,
                       preferred_element_type=jnp.float32)   # (H, S, T) f32
        w_max = jnp.max(w, axis=-2, keepdims=True)           # (H, 1, T)
        wm = w - w_max
        if exp_dtype != jnp.float32:
            wm = wm.astype(exp_dtype)                        # bf16 exp on v6e/v7x
        e = jnp.exp(wm)                                      # (H, S, T)
        # denominator reduction stays f32
        denom = jnp.sum(e.astype(jnp.float32), axis=-2, keepdims=True)  # (H,1,T)
        # PV matmul on UN-normalized probabilities (MXU-natural orientation)
        att = jnp.einsum('hcs,hst->hct', v, e.astype(jnp.bfloat16),
                         preferred_element_type=jnp.float32)  # (H, ch, T) f32
        # post-PV normalization: H*ch*T multiplies instead of H*T*T
        att = att * pl.reciprocal(denom, approx=True)
        h_cat = att.reshape(C, T).astype(jnp.bfloat16)        # heads contiguous

        # ---- proj_out 1x1 conv + residual (f32) ----
        h_proj = jnp.dot(wproj, h_cat,
                         preferred_element_type=jnp.float32) + bproj
        out_ref[bb] = (x + h_proj).astype(out_ref.dtype)


def prepare_params(params, *, num_heads):
    """One-time transform: reorder qkv rows so q/k/v are contiguous C-sized
    blocks (head-major inside each block), fold the 1/sqrt(sqrt(ch)) scale into
    the q and k rows, and cast matmul weights to bf16."""
    w_qkv = params["w_qkv"]            # (3C, C), PyTorch channel order
    b_qkv = params["b_qkv"]            # (3C, 1)
    C = w_qkv.shape[1]
    ch = C // num_heads
    scale = 1.0 / math.sqrt(math.sqrt(ch))
    # old row = h*3*ch + p*ch + c   ->   new row = p*C + h*ch + c
    w_r = w_qkv.reshape(num_heads, 3, ch, C).transpose(1, 0, 2, 3).reshape(3 * C, C)
    b_r = b_qkv.reshape(num_heads, 3, ch, 1).transpose(1, 0, 2, 3).reshape(3 * C, 1)
    row_scale = jnp.concatenate(
        [jnp.full((2 * C, 1), scale, jnp.float32),      # q and k rows
         jnp.ones((C, 1), jnp.float32)], axis=0)        # v rows untouched
    w_r = w_r * row_scale
    b_r = b_r * row_scale
    return {
        "gamma": params["gamma"].astype(jnp.float32),
        "beta": params["beta"].astype(jnp.float32),
        "w_qkv": w_r.astype(jnp.bfloat16),
        "b_qkv": b_r.astype(jnp.float32),
        "w_proj": params["w_proj"].astype(jnp.bfloat16),
        "b_proj": params["b_proj"].astype(jnp.float32),
    }


def _softmax_exp_dtype():
    """bf16 exp only where the EUP supports bf16 (v6e / v7x); f32 on v5e & older."""
    try:
        kind = jax.devices()[0].device_kind.lower()
    except Exception:
        return jnp.float32
    if ("v6" in kind) or ("v7" in kind) or ("7x" in kind):
        return jnp.bfloat16
    return jnp.float32


def _pick_batch_block(B, C, T, num_heads, e_bytes,
                      budget_bytes=6 * 1024 * 1024):
    """Largest divisor of B whose working set fits a small budget, while keeping
    >= 2 grid steps when B >= 2 so both v7x TensorCores get work."""
    per_batch = C * T * 4 * 8 + num_heads * T * T * (8 + e_bytes)
    best = 1
    for bb in range(1, B + 1):
        if B % bb:
            continue
        if bb * per_batch > budget_bytes:
            continue
        if B >= 2 and (B // bb) < 2:
            continue
        best = bb
    return best


def _attention_pallas(x3, p, *, num_heads, num_groups, eps, batch_block,
                      exp_dtype, single_buffer_consts):
    B, C, T = x3.shape
    assert B % batch_block == 0

    kernel = functools.partial(_attention_block_kernel,
                               num_heads=num_heads, num_groups=num_groups,
                               eps=eps, exp_dtype=exp_dtype)

    def const_spec(shape):
        idx = lambda b: (0,) * len(shape)
        if single_buffer_consts:
            # grid-invariant params: single buffer is enough
            return pl.BlockSpec(shape, idx, pipeline_mode=pl.Buffered(1))
        return pl.BlockSpec(shape, idx)

    # VMEM budget from the actual working set (stay well under v7x's 64 MiB,
    # while still lifting v5e's 16 MiB scoped default).
    e_bytes = 2 if exp_dtype == jnp.bfloat16 else 4
    per_batch = C * T * 4 * 8 + num_heads * T * T * (8 + e_bytes)
    weight_bytes = 4 * C * C * 2 + 4 * C * 8
    ws = weight_bytes + batch_block * per_batch
    vmem_limit = int(min(max(3 * ws, 24 * 1024 * 1024), 48 * 1024 * 1024))

    return pl.pallas_call(
        kernel,
        out_shape=jax.ShapeDtypeStruct((B, C, T), x3.dtype),
        grid=(B // batch_block,),
        in_specs=[
            pl.BlockSpec((batch_block, C, T), lambda b: (b, 0, 0)),  # x
            const_spec((C, 1)),                                      # gamma
            const_spec((C, 1)),                                      # beta
            const_spec((3 * C, C)),                                  # w_qkv (bf16)
            const_spec((3 * C, 1)),                                  # b_qkv
            const_spec((C, C)),                                      # w_proj (bf16)
            const_spec((C, 1)),                                      # b_proj
        ],
        out_specs=pl.BlockSpec((batch_block, C, T), lambda b: (b, 0, 0)),
        compiler_params=pltpu.CompilerParams(
            dimension_semantics=("parallel",),
            vmem_limit_bytes=vmem_limit),
    )(x3, p["gamma"], p["beta"], p["w_qkv"], p["b_qkv"],
      p["w_proj"], p["b_proj"])


def attention_block(x, params, *, num_heads, num_groups=32, eps=1e-5):
    """x: [B, C, H, W] float32 (PyTorch NCHW). Returns [B, C, H, W]."""
    B, C, H, W = x.shape
    T = H * W
    x3 = x.reshape(B, C, T)
    p = prepare_params(params, num_heads=num_heads)
    exp_dtype = _softmax_exp_dtype()
    bblk = _pick_batch_block(B, C, T, num_heads,
                             e_bytes=2 if exp_dtype == jnp.bfloat16 else 4)
    common = dict(num_heads=num_heads, num_groups=num_groups, eps=eps,
                  batch_block=bblk, exp_dtype=exp_dtype)
    try:
        out = _attention_pallas(x3, p, single_buffer_consts=True, **common)
        out = jax.block_until_ready(out)
    except Exception:
        # pipeline_mode=pl.Buffered(1) not supported on this jax/libtpu combo ->
        # fall back to default (double-buffered) pipelining of the params.
        out = _attention_pallas(x3, p, single_buffer_consts=False, **common)
        out = jax.block_until_ready(out)
    return out.reshape(B, C, H, W)


def attention_block_ref(x, params, *, num_heads, num_groups=32, eps=1e-5):
    """Pure-JAX f32 reference mirroring the PyTorch module exactly."""
    B, C, H, W = x.shape
    T = H * W
    x3 = x.reshape(B, C, T)
    # GroupNorm
    xg = x3.reshape(B, num_groups, -1)
    mean = xg.mean(-1, keepdims=True)
    var = ((xg - mean) ** 2).mean(-1, keepdims=True)
    xn = ((xg - mean) / jnp.sqrt(var + eps)).reshape(B, C, T)
    xn = xn * params["gamma"][None] + params["beta"][None]
    # qkv 1x1 conv
    qkv = jnp.einsum("oc,bct->bot", params["w_qkv"], xn) + params["b_qkv"][None]
    # multi-head attention (exactly the torch reshape/split semantics)
    ch = C // num_heads
    qkv_h = qkv.reshape(B * num_heads, 3 * ch, T)
    q, k, v = jnp.split(qkv_h, 3, axis=1)
    scale = 1.0 / math.sqrt(math.sqrt(ch))
    w = jnp.einsum("bct,bcs->bts", q * scale, k * scale)
    w = jax.nn.softmax(w, axis=-1)
    h = jnp.einsum("bts,bcs->bct", w, v).reshape(B, C, T)
    # proj_out 1x1 conv
    h = jnp.einsum("oc,bct->bot", params["w_proj"], h) + params["b_proj"][None]
    return (x3 + h).reshape(B, C, H, W)


def make_params(key, channels, *, zero_proj=True):
    """Deterministic parameter init matching AttentionBlock.__init__ shapes."""
    k1, k2, k3, k4 = jax.random.split(key, 4)
    fan_in = channels  # 1x1 conv, kernel size 1
    bound = 1.0 / math.sqrt(fan_in)
    params = {
        "gamma": jnp.ones((channels, 1), jnp.float32),
        "beta": jnp.zeros((channels, 1), jnp.float32),
        "w_qkv": jax.random.uniform(k1, (3 * channels, channels),
                                    jnp.float32, -bound, bound),
        "b_qkv": jax.random.uniform(k2, (3 * channels, 1),
                                    jnp.float32, -bound, bound),
    }
    if zero_proj:
        # zero_module(conv_nd(1, channels, channels, 1)) -> all zeros
        params["w_proj"] = jnp.zeros((channels, channels), jnp.float32)
        params["b_proj"] = jnp.zeros((channels, 1), jnp.float32)
    else:
        params["w_proj"] = jax.random.uniform(k3, (channels, channels),
                                              jnp.float32, -bound, bound)
        params["b_proj"] = jax.random.uniform(k4, (channels, 1),
                                              jnp.float32, -bound, bound)
    return params


if __name__ == "__main__":
    # channels=32 so GroupNorm(32, C) is valid; H=W=16 -> T=256 (lane-dense)
    B, C, H, W = 2, 32, 16, 16
    NUM_HEADS = 4

    key = jax.random.PRNGKey(0)
    kx, kp = jax.random.split(key)
    x = jax.random.normal(kx, (B, C, H, W), jnp.float32)

    # Self-test with a NON-zero proj so the attention path is observable.
    # bf16 MXU inputs (+ bf16 exp on v6e/v7x) + approximate reciprocal
    # -> bf16-level tolerance vs the f32 reference.
    test_params = make_params(kp, C, zero_proj=False)
    out_test = jax.block_until_ready(
        attention_block(x, test_params, num_heads=NUM_HEADS))
    ref_test = attention_block_ref(x, test_params, num_heads=NUM_HEADS)
    np.testing.assert_allclose(np.asarray(out_test), np.asarray(ref_test),
                               rtol=3e-2, atol=8e-2)

    # Faithful module parameters: proj_out is zero-initialized (zero_module),
    # so the block is exactly identity at init -> exact match.
    params = make_params(kp, C, zero_proj=True)
    out = jax.block_until_ready(attention_block(x, params, num_heads=NUM_HEADS))
    ref = attention_block_ref(x, params, num_heads=NUM_HEADS)
    np.testing.assert_allclose(np.asarray(out), np.asarray(ref),
                               rtol=1e-6, atol=1e-6)
    assert out.shape == (B, C, H, W)

    print("KERNEL_OK")
</pallas_src>

<mosaic_0001>
module attributes {stable_mosaic.version = 11 : i64} {
  func.func @_attention_block_kernel(%arg0: i32, %arg1: memref<1x32x256xf32, #tpu.memory_space<vmem>>, %arg2: memref<32x1xf32, #tpu.memory_space<vmem>>, %arg3: memref<32x1xf32, #tpu.memory_space<vmem>>, %arg4: memref<96x32xbf16, #tpu.memory_space<vmem>>, %arg5: memref<96x1xf32, #tpu.memory_space<vmem>>, %arg6: memref<32x32xbf16, #tpu.memory_space<vmem>>, %arg7: memref<32x1xf32, #tpu.memory_space<vmem>>, %arg8: memref<1x32x256xf32, #tpu.memory_space<vmem>>) attributes {dimension_semantics = [#tpu.dimension_semantics<parallel>], iteration_bounds = array<i64: 2>, scalar_prefetch = 0 : i64, scratch_operands = 0 : i64, tpu.core_type = #tpu.core_type<tc>, window_params = [{transform_indices = @transform_0, window_bounds = array<i64: 1, 32, 256>}, {pipeline_mode = #tpu.pipeline_mode<synchronous>, transform_indices = @transform_1, window_bounds = array<i64: 32, 1>}, {pipeline_mode = #tpu.pipeline_mode<synchronous>, transform_indices = @transform_2, window_bounds = array<i64: 32, 1>}, {pipeline_mode = #tpu.pipeline_mode<synchronous>, transform_indices = @transform_3, window_bounds = array<i64: 96, 32>}, {pipeline_mode = #tpu.pipeline_mode<synchronous>, transform_indices = @transform_4, window_bounds = array<i64: 96, 1>}, {pipeline_mode = #tpu.pipeline_mode<synchronous>, transform_indices = @transform_5, window_bounds = array<i64: 32, 32>}, {pipeline_mode = #tpu.pipeline_mode<synchronous>, transform_indices = @transform_6, window_bounds = array<i64: 32, 1>}, {transform_indices = @transform_7, window_bounds = array<i64: 1, 32, 256>}]} {
    %c0 = arith.constant 0 : index
    %c0_0 = arith.constant 0 : index
    %0 = vector.load %arg2[%c0, %c0_0] : memref<32x1xf32, #tpu.memory_space<vmem>>, vector<32x1xf32>
    %c0_1 = arith.constant 0 : index
    %c0_2 = arith.constant 0 : index
    %1 = vector.load %arg3[%c0_1, %c0_2] : memref<32x1xf32, #tpu.memory_space<vmem>>, vector<32x1xf32>
    %c0_3 = arith.constant 0 : index
    %c0_4 = arith.constant 0 : index
    %2 = vector.load %arg4[%c0_3, %c0_4] : memref<96x32xbf16, #tpu.memory_space<vmem>>, vector<96x32xbf16>
    %c0_5 = arith.constant 0 : index
    %c0_6 = arith.constant 0 : index
    %3 = vector.load %arg5[%c0_5, %c0_6] : memref<96x1xf32, #tpu.memory_space<vmem>>, vector<96x1xf32>
    %c0_7 = arith.constant 0 : index
    %c0_8 = arith.constant 0 : index
    %4 = vector.load %arg6[%c0_7, %c0_8] : memref<32x32xbf16, #tpu.memory_space<vmem>>, vector<32x32xbf16>
    %c0_9 = arith.constant 0 : index
    %c0_10 = arith.constant 0 : index
    %5 = vector.load %arg7[%c0_9, %c0_10] : memref<32x1xf32, #tpu.memory_space<vmem>>, vector<32x1xf32>
    %c0_11 = arith.constant 0 : index
    %c0_12 = arith.constant 0 : index
    %c0_13 = arith.constant 0 : index
    %6 = vector.load %arg1[%c0_11, %c0_12, %c0_13] : memref<1x32x256xf32, #tpu.memory_space<vmem>>, vector<1x32x256xf32>
    %7 = vector.shape_cast %6 : vector<1x32x256xf32> to vector<32x256xf32>
    %cst = arith.constant dense<0.000000e+00> : vector<32xf32>
    %8 = vector.multi_reduction <add>, %7, %cst [1] : vector<32x256xf32> to vector<32xf32>
    %9 = vector.shape_cast %8 : vector<32xf32> to vector<32x1xf32>
    %10 = arith.mulf %7, %7 : vector<32x256xf32>
    %cst_14 = arith.constant dense<0.000000e+00> : vector<32xf32>
    %11 = vector.multi_reduction <add>, %10, %cst_14 [1] : vector<32x256xf32> to vector<32xf32>
    %12 = vector.shape_cast %11 : vector<32xf32> to vector<32x1xf32>
    %cst_15 = arith.constant dense<0.000000e+00> : vector<32xf32>
    %13 = vector.multi_reduction <add>, %9, %cst_15 [1] : vector<32x1xf32> to vector<32xf32>
    %14 = vector.shape_cast %13 : vector<32xf32> to vector<32x1xf32>
    %cst_16 = arith.constant dense<0.000000e+00> : vector<32xf32>
    %15 = vector.multi_reduction <add>, %12, %cst_16 [1] : vector<32x1xf32> to vector<32xf32>
    %16 = vector.shape_cast %15 : vector<32xf32> to vector<32x1xf32>
    %cst_17 = arith.constant 3.906250e-03 : f32
    %17 = vector.broadcast %cst_17 : f32 to vector<32x1xf32>
    %18 = arith.mulf %14, %17 : vector<32x1xf32>
    %cst_18 = arith.constant 3.906250e-03 : f32
    %19 = vector.broadcast %cst_18 : f32 to vector<32x1xf32>
    %20 = arith.mulf %16, %19 : vector<32x1xf32>
    %21 = arith.mulf %18, %18 : vector<32x1xf32>
    %22 = arith.subf %20, %21 : vector<32x1xf32>
    %cst_19 = arith.constant 0.000000e+00 : f32
    %23 = vector.broadcast %cst_19 : f32 to vector<32x1xf32>
    %24 = arith.maximumf %22, %23 : vector<32x1xf32>
    %cst_20 = arith.constant 9.99999974E-6 : f32
    %25 = vector.broadcast %cst_20 : f32 to vector<32x1xf32>
    %26 = arith.addf %24, %25 : vector<32x1xf32>
    %27 = math.rsqrt %26 : vector<32x1xf32>
    %28 = arith.mulf %27, %0 : vector<32x1xf32>
    %29 = arith.mulf %18, %28 : vector<32x1xf32>
    %30 = arith.subf %1, %29 : vector<32x1xf32>
    %31 = vector.broadcast %28 : vector<32x1xf32> to vector<32x256xf32>
    %32 = arith.mulf %7, %31 : vector<32x256xf32>
    %33 = vector.broadcast %30 : vector<32x1xf32> to vector<32x256xf32>
    %34 = arith.addf %32, %33 : vector<32x256xf32>
    %35 = arith.truncf %34 : vector<32x256xf32> to vector<32x256xbf16>
    %cst_21 = arith.constant dense<0.000000e+00> : vector<96x256xf32>
    %36 = tpu.matmul %2, %35, %cst_21 {dimension_numbers = #tpu.dot_dimension_numbers<[1], [0], [0], [1], [0, 0, 1, 1], [], []>} : vector<96x32xbf16>, vector<32x256xbf16>, vector<96x256xf32> -> vector<96x256xf32>
    %37 = vector.broadcast %3 : vector<96x1xf32> to vector<96x256xf32>
    %38 = arith.addf %36, %37 : vector<96x256xf32>
    %39 = vector.shape_cast %38 : vector<96x256xf32> to vector<3x4x8x256xf32>
    %40 = vector.extract_strided_slice %39 {offsets = [0, 0, 0, 0], sizes = [1, 4, 8, 256], strides = [1, 1, 1, 1]} : vector<3x4x8x256xf32> to vector<1x4x8x256xf32>
    %41 = vector.shape_cast %40 : vector<1x4x8x256xf32> to vector<4x8x256xf32>
    %42 = arith.truncf %41 : vector<4x8x256xf32> to vector<4x8x256xbf16>
    %43 = vector.extract_strided_slice %39 {offsets = [1, 0, 0, 0], sizes = [1, 4, 8, 256], strides = [1, 1, 1, 1]} : vector<3x4x8x256xf32> to vector<1x4x8x256xf32>
    %44 = vector.shape_cast %43 : vector<1x4x8x256xf32> to vector<4x8x256xf32>
    %45 = arith.truncf %44 : vector<4x8x256xf32> to vector<4x8x256xbf16>
    %46 = vector.extract_strided_slice %39 {offsets = [2, 0, 0, 0], sizes = [1, 4, 8, 256], strides = [1, 1, 1, 1]} : vector<3x4x8x256xf32> to vector<1x4x8x256xf32>
    %47 = vector.shape_cast %46 : vector<1x4x8x256xf32> to vector<4x8x256xf32>
    %48 = arith.truncf %47 : vector<4x8x256xf32> to vector<4x8x256xbf16>
    "tpu.trace_start"() <{level = 10 : i32, message = "hcs,hct->hst"}> : () -> ()
    %cst_22 = arith.constant dense<0.000000e+00> : vector<4x256x256xf32>
    %49 = tpu.matmul %45, %42, %cst_22 {dimension_numbers = #tpu.dot_dimension_numbers<[1], [1], [2], [2], [0, 0, 0, 2, 1, 2], [0], [0]>} : vector<4x8x256xbf16>, vector<4x8x256xbf16>, vector<4x256x256xf32> -> vector<4x256x256xf32>
    "tpu.trace_stop"() : () -> ()
    %cst_23 = arith.constant dense<0xFF800000> : vector<4x256xf32>
    %50 = vector.multi_reduction <maximumf>, %49, %cst_23 [1] : vector<4x256x256xf32> to vector<4x256xf32>
    %51 = vector.shape_cast %50 : vector<4x256xf32> to vector<4x1x256xf32>
    %52 = vector.broadcast %51 : vector<4x1x256xf32> to vector<4x256x256xf32>
    %53 = arith.subf %49, %52 : vector<4x256x256xf32>
    %54 = math.exp %53 : vector<4x256x256xf32>
    %cst_24 = arith.constant dense<0.000000e+00> : vector<4x256xf32>
    %55 = vector.multi_reduction <add>, %54, %cst_24 [1] : vector<4x256x256xf32> to vector<4x256xf32>
    %56 = vector.shape_cast %55 : vector<4x256xf32> to vector<4x1x256xf32>
    %57 = arith.truncf %54 : vector<4x256x256xf32> to vector<4x256x256xbf16>
    "tpu.trace_start"() <{level = 10 : i32, message = "hcs,hst->hct"}> : () -> ()
    %cst_25 = arith.constant dense<0.000000e+00> : vector<4x8x256xf32>
    %58 = tpu.matmul %48, %57, %cst_25 {dimension_numbers = #tpu.dot_dimension_numbers<[2], [1], [1], [2], [0, 0, 0, 1, 1, 2], [0], [0]>} : vector<4x8x256xbf16>, vector<4x256x256xbf16>, vector<4x8x256xf32> -> vector<4x8x256xf32>
    "tpu.trace_stop"() : () -> ()
    %59 = tpu.reciprocal %56 {approx = true} : vector<4x1x256xf32> -> vector<4x1x256xf32>
    %60 = vector.broadcast %59 : vector<4x1x256xf32> to vector<4x8x256xf32>
    %61 = arith.mulf %58, %60 : vector<4x8x256xf32>
    %62 = vector.shape_cast %61 : vector<4x8x256xf32> to vector<32x256xf32>
    %63 = arith.truncf %62 : vector<32x256xf32> to vector<32x256xbf16>
    %cst_26 = arith.constant dense<0.000000e+00> : vector<32x256xf32>
    %64 = tpu.matmul %4, %63, %cst_26 {dimension_numbers = #tpu.dot_dimension_numbers<[1], [0], [0], [1], [0, 0, 1, 1], [], []>} : vector<32x32xbf16>, vector<32x256xbf16>, vector<32x256xf32> -> vector<32x256xf32>
    %65 = vector.broadcast %5 : vector<32x1xf32> to vector<32x256xf32>
    %66 = arith.addf %64, %65 : vector<32x256xf32>
    %67 = arith.addf %7, %66 : vector<32x256xf32>
    %c0_27 = arith.constant 0 : index
    %c0_28 = arith.constant 0 : index
    %c0_29 = arith.constant 0 : index
    %68 = vector.load %arg8[%c0_27, %c0_28, %c0_29] : memref<1x32x256xf32, #tpu.memory_space<vmem>>, vector<1x32x256xf32>
    %69 = vector.shape_cast %68 : vector<1x32x256xf32> to vector<32x256xf32>
    %70 = vector.shape_cast %67 : vector<32x256xf32> to vector<1x32x256xf32>
    tpu.vector_store %arg8[%c0_27, %c0_28, %c0_29], %70 {strides = array<i32>} : memref<1x32x256xf32, #tpu.memory_space<vmem>>, vector<1x32x256xf32>,
    return
  }
  func.func @transform_0(%arg0: i32) -> (i32, i32, i32) {
    %c0_i32 = arith.constant 0 : i32
    %c0_i32_0 = arith.constant 0 : i32
    %c0_i32_1 = arith.constant 0 : i32
    return %arg0, %c0_i32, %c0_i32_0 : i32, i32, i32
  }
  func.func @transform_1(%arg0: i32) -> (i32, i32) {
    %c0_i32 = arith.constant 0 : i32
    %c0_i32_0 = arith.constant 0 : i32
    %c0_i32_1 = arith.constant 0 : i32
    return %c0_i32, %c0_i32_0 : i32, i32
  }
  func.func @transform_2(%arg0: i32) -> (i32, i32) {
    %c0_i32 = arith.constant 0 : i32
    %c0_i32_0 = arith.constant 0 : i32
    %c0_i32_1 = arith.constant 0 : i32
    return %c0_i32, %c0_i32_0 : i32, i32
  }
  func.func @transform_3(%arg0: i32) -> (i32, i32) {
    %c0_i32 = arith.constant 0 : i32
    %c0_i32_0 = arith.constant 0 : i32
    %c0_i32_1 = arith.constant 0 : i32
    return %c0_i32, %c0_i32_0 : i32, i32
  }
  func.func @transform_4(%arg0: i32) -> (i32, i32) {
    %c0_i32 = arith.constant 0 : i32
    %c0_i32_0 = arith.constant 0 : i32
    %c0_i32_1 = arith.constant 0 : i32
    return %c0_i32, %c0_i32_0 : i32, i32
  }
  func.func @transform_5(%arg0: i32) -> (i32, i32) {
    %c0_i32 = arith.constant 0 : i32
    %c0_i32_0 = arith.constant 0 : i32
    %c0_i32_1 = arith.constant 0 : i32
    return %c0_i32, %c0_i32_0 : i32, i32
  }
  func.func @transform_6(%arg0: i32) -> (i32, i32) {
    %c0_i32 = arith.constant 0 : i32
    %c0_i32_0 = arith.constant 0 : i32
    %c0_i32_1 = arith.constant 0 : i32
    return %c0_i32, %c0_i32_0 : i32, i32
  }
  func.func @transform_7(%arg0: i32) -> (i32, i32, i32) {
    %c0_i32 = arith.constant 0 : i32
    %c0_i32_0 = arith.constant 0 : i32
    %c0_i32_1 = arith.constant 0 : i32
    return %arg0, %c0_i32, %c0_i32_0 : i32, i32, i32
  }
}

module attributes {stable_mosaic.version = 11 : i64} {
  func.func @_attention_block_kernel(%arg0: i32, %arg1: memref<1x32x256xf32, #tpu.memory_space<vmem>>, %arg2: memref<32x1xf32, #tpu.memory_space<vmem>>, %arg3: memref<32x1xf32, #tpu.memory_space<vmem>>, %arg4: memref<96x32xbf16, #tpu.memory_space<vmem>>, %arg5: memref<96x1xf32, #tpu.memory_space<vmem>>, %arg6: memref<32x32xbf16, #tpu.memory_space<vmem>>, %arg7: memref<32x1xf32, #tpu.memory_space<vmem>>, %arg8: memref<1x32x256xf32, #tpu.memory_space<vmem>>) attributes {dimension_semantics = [#tpu.dimension_semantics<parallel>], iteration_bounds = array<i64: 2>, scalar_prefetch = 0 : i64, scratch_operands = 0 : i64, tpu.core_type = #tpu.core_type<tc>, window_params = [{transform_indices = @transform_0, window_bounds = array<i64: 1, 32, 256>}, {pipeline_mode = #tpu.pipeline_mode<synchronous>, transform_indices = @transform_1, window_bounds = array<i64: 32, 1>}, {pipeline_mode = #tpu.pipeline_mode<synchronous>, transform_indices = @transform_2, window_bounds = array<i64: 32, 1>}, {pipeline_mode = #tpu.pipeline_mode<synchronous>, transform_indices = @transform_3, window_bounds = array<i64: 96, 32>}, {pipeline_mode = #tpu.pipeline_mode<synchronous>, transform_indices = @transform_4, window_bounds = array<i64: 96, 1>}, {pipeline_mode = #tpu.pipeline_mode<synchronous>, transform_indices = @transform_5, window_bounds = array<i64: 32, 32>}, {pipeline_mode = #tpu.pipeline_mode<synchronous>, transform_indices = @transform_6, window_bounds = array<i64: 32, 1>}, {transform_indices = @transform_7, window_bounds = array<i64: 1, 32, 256>}]} {
    %c0 = arith.constant 0 : index
    %c0_0 = arith.constant 0 : index
    %0 = vector.load %arg2[%c0, %c0_0] : memref<32x1xf32, #tpu.memory_space<vmem>>, vector<32x1xf32>
    %c0_1 = arith.constant 0 : index
    %c0_2 = arith.constant 0 : index
    %1 = vector.load %arg3[%c0_1, %c0_2] : memref<32x1xf32, #tpu.memory_space<vmem>>, vector<32x1xf32>
    %c0_3 = arith.constant 0 : index
    %c0_4 = arith.constant 0 : index
    %2 = vector.load %arg4[%c0_3, %c0_4] : memref<96x32xbf16, #tpu.memory_space<vmem>>, vector<96x32xbf16>
    %c0_5 = arith.constant 0 : index
    %c0_6 = arith.constant 0 : index
    %3 = vector.load %arg5[%c0_5, %c0_6] : memref<96x1xf32, #tpu.memory_space<vmem>>, vector<96x1xf32>
    %c0_7 = arith.constant 0 : index
    %c0_8 = arith.constant 0 : index
    %4 = vector.load %arg6[%c0_7, %c0_8] : memref<32x32xbf16, #tpu.memory_space<vmem>>, vector<32x32xbf16>
    %c0_9 = arith.constant 0 : index
    %c0_10 = arith.constant 0 : index
    %5 = vector.load %arg7[%c0_9, %c0_10] : memref<32x1xf32, #tpu.memory_space<vmem>>, vector<32x1xf32>
    %c0_11 = arith.constant 0 : index
    %c0_12 = arith.constant 0 : index
    %c0_13 = arith.constant 0 : index
    %6 = vector.load %arg1[%c0_11, %c0_12, %c0_13] : memref<1x32x256xf32, #tpu.memory_space<vmem>>, vector<1x32x256xf32>
    %7 = vector.shape_cast %6 : vector<1x32x256xf32> to vector<32x256xf32>
    %cst = arith.constant dense<0.000000e+00> : vector<32xf32>
    %8 = vector.multi_reduction <add>, %7, %cst [1] : vector<32x256xf32> to vector<32xf32>
    %9 = vector.shape_cast %8 : vector<32xf32> to vector<32x1xf32>
    %10 = arith.mulf %7, %7 : vector<32x256xf32>
    %cst_14 = arith.constant dense<0.000000e+00> : vector<32xf32>
    %11 = vector.multi_reduction <add>, %10, %cst_14 [1] : vector<32x256xf32> to vector<32xf32>
    %12 = vector.shape_cast %11 : vector<32xf32> to vector<32x1xf32>
    %cst_15 = arith.constant dense<0.000000e+00> : vector<32xf32>
    %13 = vector.multi_reduction <add>, %9, %cst_15 [1] : vector<32x1xf32> to vector<32xf32>
    %14 = vector.shape_cast %13 : vector<32xf32> to vector<32x1xf32>
    %cst_16 = arith.constant dense<0.000000e+00> : vector<32xf32>
    %15 = vector.multi_reduction <add>, %12, %cst_16 [1] : vector<32x1xf32> to vector<32xf32>
    %16 = vector.shape_cast %15 : vector<32xf32> to vector<32x1xf32>
    %cst_17 = arith.constant 3.906250e-03 : f32
    %17 = vector.broadcast %cst_17 : f32 to vector<32x1xf32>
    %18 = arith.mulf %14, %17 : vector<32x1xf32>
    %cst_18 = arith.constant 3.906250e-03 : f32
    %19 = vector.broadcast %cst_18 : f32 to vector<32x1xf32>
    %20 = arith.mulf %16, %19 : vector<32x1xf32>
    %21 = arith.mulf %18, %18 : vector<32x1xf32>
    %22 = arith.subf %20, %21 : vector<32x1xf32>
    %cst_19 = arith.constant 0.000000e+00 : f32
    %23 = vector.broadcast %cst_19 : f32 to vector<32x1xf32>
    %24 = arith.maximumf %22, %23 : vector<32x1xf32>
    %cst_20 = arith.constant 9.99999974E-6 : f32
    %25 = vector.broadcast %cst_20 : f32 to vector<32x1xf32>
    %26 = arith.addf %24, %25 : vector<32x1xf32>
    %27 = math.rsqrt %26 : vector<32x1xf32>
    %28 = arith.mulf %27, %0 : vector<32x1xf32>
    %29 = arith.mulf %18, %28 : vector<32x1xf32>
    %30 = arith.subf %1, %29 : vector<32x1xf32>
    %31 = vector.broadcast %28 : vector<32x1xf32> to vector<32x256xf32>
    %32 = arith.mulf %7, %31 : vector<32x256xf32>
    %33 = vector.broadcast %30 : vector<32x1xf32> to vector<32x256xf32>
    %34 = arith.addf %32, %33 : vector<32x256xf32>
    %35 = arith.truncf %34 : vector<32x256xf32> to vector<32x256xbf16>
    %cst_21 = arith.constant dense<0.000000e+00> : vector<96x256xf32>
    %36 = tpu.matmul %2, %35, %cst_21 {dimension_numbers = #tpu.dot_dimension_numbers<[1], [0], [0], [1], [0, 0, 1, 1], [], []>} : vector<96x32xbf16>, vector<32x256xbf16>, vector<96x256xf32> -> vector<96x256xf32>
    %37 = vector.broadcast %3 : vector<96x1xf32> to vector<96x256xf32>
    %38 = arith.addf %36, %37 : vector<96x256xf32>
    %39 = vector.shape_cast %38 : vector<96x256xf32> to vector<3x4x8x256xf32>
    %40 = vector.extract_strided_slice %39 {offsets = [0, 0, 0, 0], sizes = [1, 4, 8, 256], strides = [1, 1, 1, 1]} : vector<3x4x8x256xf32> to vector<1x4x8x256xf32>
    %41 = vector.shape_cast %40 : vector<1x4x8x256xf32> to vector<4x8x256xf32>
    %42 = arith.truncf %41 : vector<4x8x256xf32> to vector<4x8x256xbf16>
    %43 = vector.extract_strided_slice %39 {offsets = [1, 0, 0, 0], sizes = [1, 4, 8, 256], strides = [1, 1, 1, 1]} : vector<3x4x8x256xf32> to vector<1x4x8x256xf32>
    %44 = vector.shape_cast %43 : vector<1x4x8x256xf32> to vector<4x8x256xf32>
    %45 = arith.truncf %44 : vector<4x8x256xf32> to vector<4x8x256xbf16>
    %46 = vector.extract_strided_slice %39 {offsets = [2, 0, 0, 0], sizes = [1, 4, 8, 256], strides = [1, 1, 1, 1]} : vector<3x4x8x256xf32> to vector<1x4x8x256xf32>
    %47 = vector.shape_cast %46 : vector<1x4x8x256xf32> to vector<4x8x256xf32>
    %48 = arith.truncf %47 : vector<4x8x256xf32> to vector<4x8x256xbf16>
    "tpu.trace_start"() <{level = 10 : i32, message = "hcs,hct->hst"}> : () -> ()
    %cst_22 = arith.constant dense<0.000000e+00> : vector<4x256x256xf32>
    %49 = tpu.matmul %45, %42, %cst_22 {dimension_numbers = #tpu.dot_dimension_numbers<[1], [1], [2], [2], [0, 0, 0, 2, 1, 2], [0], [0]>} : vector<4x8x256xbf16>, vector<4x8x256xbf16>, vector<4x256x256xf32> -> vector<4x256x256xf32>
    "tpu.trace_stop"() : () -> ()
    %cst_23 = arith.constant dense<0xFF800000> : vector<4x256xf32>
    %50 = vector.multi_reduction <maximumf>, %49, %cst_23 [1] : vector<4x256x256xf32> to vector<4x256xf32>
    %51 = vector.shape_cast %50 : vector<4x256xf32> to vector<4x1x256xf32>
    %52 = vector.broadcast %51 : vector<4x1x256xf32> to vector<4x256x256xf32>
    %53 = arith.subf %49, %52 : vector<4x256x256xf32>
    %54 = math.exp %53 : vector<4x256x256xf32>
    %cst_24 = arith.constant dense<0.000000e+00> : vector<4x256xf32>
    %55 = vector.multi_reduction <add>, %54, %cst_24 [1] : vector<4x256x256xf32> to vector<4x256xf32>
    %56 = vector.shape_cast %55 : vector<4x256xf32> to vector<4x1x256xf32>
    %57 = arith.truncf %54 : vector<4x256x256xf32> to vector<4x256x256xbf16>
    "tpu.trace_start"() <{level = 10 : i32, message = "hcs,hst->hct"}> : () -> ()
    %cst_25 = arith.constant dense<0.000000e+00> : vector<4x8x256xf32>
    %58 = tpu.matmul %48, %57, %cst_25 {dimension_numbers = #tpu.dot_dimension_numbers<[2], [1], [1], [2], [0, 0, 0, 1, 1, 2], [0], [0]>} : vector<4x8x256xbf16>, vector<4x256x256xbf16>, vector<4x8x256xf32> -> vector<4x8x256xf32>
    "tpu.trace_stop"() : () -> ()
    %59 = tpu.reciprocal %56 {approx = true} : vector<4x1x256xf32> -> vector<4x1x256xf32>
    %60 = vector.broadcast %59 : vector<4x1x256xf32> to vector<4x8x256xf32>
    %61 = arith.mulf %58, %60 : vector<4x8x256xf32>
    %62 = vector.shape_cast %61 : vector<4x8x256xf32> to vector<32x256xf32>
    %63 = arith.truncf %62 : vector<32x256xf32> to vector<32x256xbf16>
    %cst_26 = arith.constant dense<0.000000e+00> : vector<32x256xf32>
    %64 = tpu.matmul %4, %63, %cst_26 {dimension_numbers = #tpu.dot_dimension_numbers<[1], [0], [0], [1], [0, 0, 1, 1], [], []>} : vector<32x32xbf16>, vector<32x256xbf16>, vector<32x256xf32> -> vector<32x256xf32>
    %65 = vector.broadcast %5 : vector<32x1xf32> to vector<32x256xf32>
    %66 = arith.addf %64, %65 : vector<32x256xf32>
    %67 = arith.addf %7, %66 : vector<32x256xf32>
    %c0_27 = arith.constant 0 : index
    %c0_28 = arith.constant 0 : index
    %c0_29 = arith.constant 0 : index
    %68 = vector.load %arg8[%c0_27, %c0_28, %c0_29] : memref<1x32x256xf32, #tpu.memory_space<vmem>>, vector<1x32x256xf32>
    %69 = vector.shape_cast %68 : vector<1x32x256xf32> to vector<32x256xf32>
    %70 = vector.shape_cast %67 : vector<32x256xf32> to vector<1x32x256xf32>
    tpu.vector_store %arg8[%c0_27, %c0_28, %c0_29], %70 {strides = array<i32>} : memref<1x32x256xf32, #tpu.memory_space<vmem>>, vector<1x32x256xf32>,
    return
  }
  func.func @transform_0(%arg0: i32) -> (i32, i32, i32) {
    %c0_i32 = arith.constant 0 : i32
    %c0_i32_0 = arith.constant 0 : i32
    %c0_i32_1 = arith.constant 0 : i32
    return %arg0, %c0_i32, %c0_i32_0 : i32, i32, i32
  }
  func.func @transform_1(%arg0: i32) -> (i32, i32) {
    %c0_i32 = arith.constant 0 : i32
    %c0_i32_0 = arith.constant 0 : i32
    %c0_i32_1 = arith.constant 0 : i32
    return %c0_i32, %c0_i32_0 : i32, i32
  }
  func.func @transform_2(%arg0: i32) -> (i32, i32) {
    %c0_i32 = arith.constant 0 : i32
    %c0_i32_0 = arith.constant 0 : i32
    %c0_i32_1 = arith.constant 0 : i32
    return %c0_i32, %c0_i32_0 : i32, i32
  }
  func.func @transform_3(%arg0: i32) -> (i32, i32) {
    %c0_i32 = arith.constant 0 : i32
    %c0_i32_0 = arith.constant 0 : i32
    %c0_i32_1 = arith.constant 0 : i32
    return %c0_i32, %c0_i32_0 : i32, i32
  }
  func.func @transform_4(%arg0: i32) -> (i32, i32) {
    %c0_i32 = arith.constant 0 : i32
    %c0_i32_0 = arith.constant 0 : i32
    %c0_i32_1 = arith.constant 0 : i32
    return %c0_i32, %c0_i32_0 : i32, i32
  }
  func.func @transform_5(%arg0: i32) -> (i32, i32) {
    %c0_i32 = arith.constant 0 : i32
    %c0_i32_0 = arith.constant 0 : i32
    %c0_i32_1 = arith.constant 0 : i32
    return %c0_i32, %c0_i32_0 : i32, i32
  }
  func.func @transform_6(%arg0: i32) -> (i32, i32) {
    %c0_i32 = arith.constant 0 : i32
    %c0_i32_0 = arith.constant 0 : i32
    %c0_i32_1 = arith.constant 0 : i32
    return %c0_i32, %c0_i32_0 : i32, i32
  }
  func.func @transform_7(%arg0: i32) -> (i32, i32, i32) {
    %c0_i32 = arith.constant 0 : i32
    %c0_i32_0 = arith.constant 0 : i32
    %c0_i32_1 = arith.constant 0 : i32
    return %arg0, %c0_i32, %c0_i32_0 : i32, i32, i32
  }
}

</mosaic_0001>

<llo_original>
// kernel: tpu_custom_call.1
$region0: #{tpu_custom_call.1}
  #allocation0 [shape = 'u32[]', space=smem, size = 0x4, offset = 0x4, fixed_abs, tag = 'smem constant byte address 0x4 - core index']
  #allocation1 [shape = 'u32[144,128]{1,0:T(1,128)}', space=vmem, size = 0x12000, scoped, tag = 'internal scratch']
  %s0 = inlined_call_operand.vmem [shape: f32[2,32,256], index: 0, kind: input, shape index: {}]
  %s1 = inlined_call_operand.vmem [shape: f32[32,1], index: 1, kind: input, shape index: {}]
  %s2 = inlined_call_operand.vmem [shape: f32[32,1], index: 2, kind: input, shape index: {}]
  %s3 = inlined_call_operand.vmem [shape: bf16[96,32], index: 3, kind: input, shape index: {}]
  %s4 = inlined_call_operand.vmem [shape: f32[96,1], index: 4, kind: input, shape index: {}]
  %s5 = inlined_call_operand.vmem [shape: bf16[32,32], index: 5, kind: input, shape index: {}]
  %s6 = inlined_call_operand.vmem [shape: f32[32,1], index: 6, kind: input, shape index: {}]
  %s7 = inlined_call_operand.hbm [shape: f32[2,32,256], index: 7, kind: output, shape index: {}]
  %s8 = sld [smem:[#allocation0]]
  $region61: #{tpu_custom_call.1} parent=0
    _
  %s10 = ssub.s32 1, %s8
  %s11 = scalar_select 0, %s10, %s8
  $region1: #{tpu_custom_call.1} parent=0
    #allocation2 [shape = 'u8[65536]{0}', space=vmem, size = 0x10000, scoped, tag = 'output window, operand 0']
    #allocation3 [shape = 's32[2]{0}', space=sflag, size = 0x8, scoped, tag = 'scoped memory for tpu_custom_call.1']
    %12 = vsyncpa [#allocation3], 0
    %s13 = scalar_lea.sflag [#allocation3], 1
    %14 = vsyncpa %s13, 0
    loop: start=0, step=1, limit=4
    $region2: #{tpu_custom_call.1} parent=1 // loop_pre_header
      _
    $region3: #{tpu_custom_call.1} parent=1 // loop_header
      %s16 = sphi 0, %s20
      %p17 = scmp.ge.s32.totalorder %s16, 4
      %s26 = sphi 0, %s28
      %s29 = sphi 0, %s26
      %s30 = sphi 0, %s29
      %s46 = sphi 0, %s30
      %s50 = sphi 0, %s50
      %s52 = sphi 0, %s50
      %s53 = sphi 0, %s52
      %s67 = sphi 0, %s53
      %s71 = sphi 0, %s71
      %s73 = sphi 0, %s71
      %s74 = sphi 0, %s73
      %s88 = sphi 0, %s74
      %s92 = sphi 0, %s92
      %s94 = sphi 0, %s92
      %s95 = sphi 0, %s94
      %s109 = sphi 0, %s95
      %s113 = sphi 0, %s113
      %s115 = sphi 0, %s113
      %s116 = sphi 0, %s115
      %s130 = sphi 0, %s116
      %s134 = sphi 0, %s134
      %s136 = sphi 0, %s134
      %s137 = sphi 0, %s136
      %s151 = sphi 0, %s137
      %s155 = sphi 0, %s155
      %s157 = sphi 0, %s155
      %s158 = sphi 0, %s157
      %s172 = sphi 0, %s158
      %s178 = sphi 0, %s180
      %s181 = sphi 0, %s178
      %s182 = sphi 0, %s181
      %s198 = sphi 0, %s182
    $region4: #{tpu_custom_call.1} parent=1 // loop_header_branch
      %19 = sbr.rel (%p17) target = $region8
    $region5: #{tpu_custom_call.1} parent=1 // loop_body
      %s21 = ssub.s32 %s16, 1
      %s22 = ssub.s32 %s16, 2
      %s23 = sadd.s32 %s16, 1
      %s24 = ssub.s32 %s16, %s23
      %p25 = scmp.eq.s32.totalorder %s24, 0
      %s27 = sadd.s32 %s26, 1
      %s28 = scalar_select %p25, %s26, %s27
      %p31 = pneg %p25
      %p32 = scmp.eq.s32.totalorder %s16, 1
      %p33 = por %p31, %p32
      %p34 = scmp.ne.s32.totalorder %s26, %s29
      %p35 = scmp.eq.s32.totalorder %s16, 0
      %p36 = por %p34, %p35
      %p37 = scmp.ne.s32.totalorder %s26, %s29
      %p38 = scmp.eq.s32.totalorder %s21, 1
      %p39 = por %p37, %p38
      %p40 = scmp.ne.s32.totalorder %s29, %s30
      %p41 = scmp.eq.s32.totalorder %s21, 0
      %p42 = por %p40, %p41
      %p43 = scmp.ne.s32.totalorder %s29, %s30
      %p44 = scmp.eq.s32.totalorder %s22, 1
      %p45 = por %p43, %p44
      %p47 = scmp.ne.s32.totalorder %s30, %s46
      %p48 = scmp.eq.s32.totalorder %s22, 0
      %p49 = por %p47, %p48
      %s51 = sadd.s32 %s50, 1
      %p54 = scmp.eq.s32.totalorder %s16, 1
      %p55 = scmp.ne.s32.totalorder %s50, %s52
      %p56 = scmp.eq.s32.totalorder %s16, 0
      %p57 = por %p55, %p56
      %p58 = scmp.ne.s32.totalorder %s50, %s52
      %p59 = scmp.eq.s32.totalorder %s21, 1
      %p60 = por %p58, %p59
      %p61 = scmp.ne.s32.totalorder %s52, %s53
      %p62 = scmp.eq.s32.totalorder %s21, 0
      %p63 = por %p61, %p62
      %p64 = scmp.ne.s32.totalorder %s52, %s53
      %p65 = scmp.eq.s32.totalorder %s22, 1
      %p66 = por %p64, %p65
      %p68 = scmp.ne.s32.totalorder %s53, %s67
      %p69 = scmp.eq.s32.totalorder %s22, 0
      %p70 = por %p68, %p69
      %s72 = sadd.s32 %s71, 1
      %p75 = scmp.eq.s32.totalorder %s16, 1
      %p76 = scmp.ne.s32.totalorder %s71, %s73
      %p77 = scmp.eq.s32.totalorder %s16, 0
      %p78 = por %p76, %p77
      %p79 = scmp.ne.s32.totalorder %s71, %s73
      %p80 = scmp.eq.s32.totalorder %s21, 1
      %p81 = por %p79, %p80
      %p82 = scmp.ne.s32.totalorder %s73, %s74
      %p83 = scmp.eq.s32.totalorder %s21, 0
      %p84 = por %p82, %p83
      %p85 = scmp.ne.s32.totalorder %s73, %s74
      %p86 = scmp.eq.s32.totalorder %s22, 1
      %p87 = por %p85, %p86
      %p89 = scmp.ne.s32.totalorder %s74, %s88
      %p90 = scmp.eq.s32.totalorder %s22, 0
      %p91 = por %p89, %p90
      %s93 = sadd.s32 %s92, 1
      %p96 = scmp.eq.s32.totalorder %s16, 1
      %p97 = scmp.ne.s32.totalorder %s92, %s94
      %p98 = scmp.eq.s32.totalorder %s16, 0
      %p99 = por %p97, %p98
      %p100 = scmp.ne.s32.totalorder %s92, %s94
      %p101 = scmp.eq.s32.totalorder %s21, 1
      %p102 = por %p100, %p101
      %p103 = scmp.ne.s32.totalorder %s94, %s95
      %p104 = scmp.eq.s32.totalorder %s21, 0
      %p105 = por %p103, %p104
      %p106 = scmp.ne.s32.totalorder %s94, %s95
      %p107 = scmp.eq.s32.totalorder %s22, 1
      %p108 = por %p106, %p107
      %p110 = scmp.ne.s32.totalorder %s95, %s109
      %p111 = scmp.eq.s32.totalorder %s22, 0
      %p112 = por %p110, %p111
      %s114 = sadd.s32 %s113, 1
      %p117 = scmp.eq.s32.totalorder %s16, 1
      %p118 = scmp.ne.s32.totalorder %s113, %s115
      %p119 = scmp.eq.s32.totalorder %s16, 0
      %p120 = por %p118, %p119
      %p121 = scmp.ne.s32.totalorder %s113, %s115
      %p122 = scmp.eq.s32.totalorder %s21, 1
      %p123 = por %p121, %p122
      %p124 = scmp.ne.s32.totalorder %s115, %s116
      %p125 = scmp.eq.s32.totalorder %s21, 0
      %p126 = por %p124, %p125
      %p127 = scmp.ne.s32.totalorder %s115, %s116
      %p128 = scmp.eq.s32.totalorder %s22, 1
      %p129 = por %p127, %p128
      %p131 = scmp.ne.s32.totalorder %s116, %s130
      %p132 = scmp.eq.s32.totalorder %s22, 0
      %p133 = por %p131, %p132
      %s135 = sadd.s32 %s134, 1
      %p138 = scmp.eq.s32.totalorder %s16, 1
      %p139 = scmp.ne.s32.totalorder %s134, %s136
      %p140 = scmp.eq.s32.totalorder %s16, 0
      %p141 = por %p139, %p140
      %p142 = scmp.ne.s32.totalorder %s134, %s136
      %p143 = scmp.eq.s32.totalorder %s21, 1
      %p144 = por %p142, %p143
      %p145 = scmp.ne.s32.totalorder %s136, %s137
      %p146 = scmp.eq.s32.totalorder %s21, 0
      %p147 = por %p145, %p146
      %p148 = scmp.ne.s32.totalorder %s136, %s137
      %p149 = scmp.eq.s32.totalorder %s22, 1
      %p150 = por %p148, %p149
      %p152 = scmp.ne.s32.totalorder %s137, %s151
      %p153 = scmp.eq.s32.totalorder %s22, 0
      %p154 = por %p152, %p153
      %s156 = sadd.s32 %s155, 1
      %p159 = scmp.eq.s32.totalorder %s16, 1
      %p160 = scmp.ne.s32.totalorder %s155, %s157
      %p161 = scmp.eq.s32.totalorder %s16, 0
      %p162 = por %p160, %p161
      %p163 = scmp.ne.s32.totalorder %s155, %s157
      %p164 = scmp.eq.s32.totalorder %s21, 1
      %p165 = por %p163, %p164
      %p166 = scmp.ne.s32.totalorder %s157, %s158
      %p167 = scmp.eq.s32.totalorder %s21, 0
      %p168 = por %p166, %p167
      %p169 = scmp.ne.s32.totalorder %s157, %s158
      %p170 = scmp.eq.s32.totalorder %s22, 1
      %p171 = por %p169, %p170
      %p173 = scmp.ne.s32.totalorder %s158, %s172
      %p174 = scmp.eq.s32.totalorder %s22, 0
      %p175 = por %p173, %p174
      %s176 = ssub.s32 %s16, %s23
      %p177 = scmp.eq.s32.totalorder %s176, 0
      %s179 = sadd.s32 %s178, 1
      %s180 = scalar_select %p177, %s178, %s179
      %p183 = pneg %p177
      %p184 = scmp.eq.s32.totalorder %s16, 1
      %p185 = por %p183, %p184
      %p186 = scmp.ne.s32.totalorder %s178, %s181
      %p187 = scmp.eq.s32.totalorder %s16, 0
      %p188 = por %p186, %p187
      %p189 = scmp.ne.s32.totalorder %s178, %s181
      %p190 = scmp.eq.s32.totalorder %s21, 1
      %p191 = por %p189, %p190
      %p192 = scmp.ne.s32.totalorder %s181, %s182
      %p193 = scmp.eq.s32.totalorder %s21, 0
      %p194 = por %p192, %p193
      %p195 = scmp.ne.s32.totalorder %s181, %s182
      %p196 = scmp.eq.s32.totalorder %s22, 1
      %p197 = por %p195, %p196
      %p199 = scmp.ne.s32.totalorder %s182, %s198
      %p200 = scmp.eq.s32.totalorder %s22, 0
      %p201 = por %p199, %p200
      %p202 = scmp.le.s32.totalorder 1, %s16
      %p203 = scmp.lt.s32.totalorder %s16, 3
      %p204 = pnand %p202, %p203
      %p205 = pneg %p204
      // Predicated region
      $region9: #{tpu_custom_call.1} parent=5 // pred_check
        _
      $region10: #{tpu_custom_call.1} parent=5 // pred_check_branch
        %207 = sbr.rel (%p204) target = $region12
      $region11: #{tpu_custom_call.1} parent=5 // pred_region
        %s208 = ssub.s32 %s16, 1
        // Predicated region
        $region13: #{tpu_custom_call.1} parent=11 // pred_check
          %p209 = pneg %p63
        $region14: #{tpu_custom_call.1} parent=11 // pred_check_branch
          %211 = sbr.rel (%p209) target = $region16
        $region15: #{tpu_custom_call.1} parent=11 // pred_region
          _
        $region16: #{tpu_custom_call.1} parent=11 // pred_fallthru
          _
        // Predicated region
        $region17: #{tpu_custom_call.1} parent=11 // pred_check
          %p212 = pneg %p84
        $region18: #{tpu_custom_call.1} parent=11 // pred_check_branch
          %214 = sbr.rel (%p212) target = $region20
        $region19: #{tpu_custom_call.1} parent=11 // pred_region
          _
        $region20: #{tpu_custom_call.1} parent=11 // pred_fallthru
          _
        // Predicated region
        $region21: #{tpu_custom_call.1} parent=11 // pred_check
          %p215 = pneg %p105
        $region22: #{tpu_custom_call.1} parent=11 // pred_check_branch
          %217 = sbr.rel (%p215) target = $region24
        $region23: #{tpu_custom_call.1} parent=11 // pred_region
          _
        $region24: #{tpu_custom_call.1} parent=11 // pred_fallthru
          _
        // Predicated region
        $region25: #{tpu_custom_call.1} parent=11 // pred_check
          %p218 = pneg %p126
        $region26: #{tpu_custom_call.1} parent=11 // pred_check_branch
          %220 = sbr.rel (%p218) target = $region28
        $region27: #{tpu_custom_call.1} parent=11 // pred_region
          _
        $region28: #{tpu_custom_call.1} parent=11 // pred_fallthru
          _
        // Predicated region
        $region29: #{tpu_custom_call.1} parent=11 // pred_check
          %p221 = pneg %p147
        $region30: #{tpu_custom_call.1} parent=11 // pred_check_branch
          %223 = sbr.rel (%p221) target = $region32
        $region31: #{tpu_custom_call.1} parent=11 // pred_region
          _
        $region32: #{tpu_custom_call.1} parent=11 // pred_fallthru
          _
        // Predicated region
        $region33: #{tpu_custom_call.1} parent=11 // pred_check
          %p224 = pneg %p168
        $region34: #{tpu_custom_call.1} parent=11 // pred_check_branch
          %226 = sbr.rel (%p224) target = $region36
        $region35: #{tpu_custom_call.1} parent=11 // pred_region
          _
        $region36: #{tpu_custom_call.1} parent=11 // pred_fallthru
          _
      $region12: #{tpu_custom_call.1} parent=5 // pred_fallthru
        _
      %p227 = scmp.lt.s32.totalorder %s16, 2
      // Predicated region
      $region37: #{tpu_custom_call.1} parent=5 // pred_check
        %p228 = pneg %p227
      $region38: #{tpu_custom_call.1} parent=5 // pred_check_branch
        %230 = sbr.rel (%p228) target = $region40
      $region39: #{tpu_custom_call.1} parent=5 // pred_region
        // Predicated region
        $region41: #{tpu_custom_call.1} parent=39 // pred_check
          %p231 = pneg %p36
        $region42: #{tpu_custom_call.1} parent=39 // pred_check_branch
          %233 = sbr.rel (%p231) target = $region44
        $region43: #{tpu_custom_call.1} parent=39 // pred_region
          %p234 = scmp.lt.s32.totalorder %s16, 1
          %s235 = scalar_select %p234, %s16, 1
          %s236 = smul.addr %s235, 8
          %s237 = smul.addr %s236, 8
          %s238 = scalar_lea.vmem %s0, %s237
        $region44: #{tpu_custom_call.1} parent=39 // pred_fallthru
          _
      $region40: #{tpu_custom_call.1} parent=5 // pred_fallthru
        _
      %p239 = scmp.le.s32.totalorder 1, %s16
      %p240 = scmp.lt.s32.totalorder %s16, 3
      %p241 = pnand %p239, %p240
      %p242 = pneg %p241
      // Predicated region
      $region45: #{tpu_custom_call.1} parent=5 // pred_check
        _
      $region46: #{tpu_custom_call.1} parent=5 // pred_check_branch
        %244 = sbr.rel (%p241) target = $region48
      $region47: #{tpu_custom_call.1} parent=5 // pred_region
        %s245 = ssub.s32 %s16, 1
        %p246 = scmp.lt.s32.totalorder %s21, 1
        %s247 = scalar_select %p246, %s21, 1
        %s248 = smul.addr %s247, 8
        %s249 = smul.addr %s248, 8
        %s250 = scalar_lea.vmem %s0, %s249
        %p251 = pneg %p42
        %p252 = pneg %p39
        %p253 = pneg %p63
        %p254 = pneg %p60
        %p255 = pneg %p84
        %p256 = pneg %p81
        %p257 = pneg %p105
        %p258 = pneg %p102
        %p259 = pneg %p126
        %p260 = pneg %p123
        %p261 = pneg %p147
        %p262 = pneg %p144
        %p263 = pneg %p168
        %p264 = pneg %p165
        %p265 = pneg %p194
        %p266 = pneg %p191
        %s267 = sand.u32 %s181, 1
        %s268 = scalar_lea.sflag [#allocation3], %s267
        %s269 = sand.u32 %s181, 1
        %s270 = smul.addr %s269, 64
        %s271 = scalar_lea.vmem [#allocation2], %s270
        %p272 = scmp.lt.s32.totalorder %s21, 1
        %s273 = scalar_select %p272, %s21, 1
        %s274 = smul.addr %s273, 8
        %s275 = smul.addr %s274, 8
        %s276 = scalar_lea.vmem %s0, %s275
        %v278 = vld [vmem:[%s1] sm:$0xff]
        %v279 = vld [vmem:[%s1 + $0x8] sm:$0xff]
        %v280 = vld [vmem:[%s1 + $0x10] sm:$0xff]
        %v281 = vld [vmem:[%s1 + $0x18] sm:$0xff]
        %v282 = vld [vmem:[%s2] sm:$0xff]
        %v283 = vld [vmem:[%s2 + $0x8] sm:$0xff]
        %v284 = vld [vmem:[%s2 + $0x10] sm:$0xff]
        %v285 = vld [vmem:[%s2 + $0x18] sm:$0xff]
        %v286 = vld [vmem:[%s3] sm:$0xf]
        %v287 = vld [vmem:[%s3 + $0x4] sm:$0xf]
        %v288 = vld [vmem:[%s3 + $0x8] sm:$0xf]
        %v289 = vld [vmem:[%s3 + $0xc] sm:$0xf]
        %v290 = vld [vmem:[%s3 + $0x10] sm:$0xf]
        %v291 = vld [vmem:[%s3 + $0x14] sm:$0xf]
        %v292 = vld [vmem:[%s3 + $0x18] sm:$0xf]
        %v293 = vld [vmem:[%s3 + $0x1c] sm:$0xf]
        %v294 = vld [vmem:[%s3 + $0x20] sm:$0xf]
        %v295 = vld [vmem:[%s3 + $0x24] sm:$0xf]
        %v296 = vld [vmem:[%s3 + $0x28] sm:$0xf]
        %v297 = vld [vmem:[%s3 + $0x2c] sm:$0xf]
        %v298 = vld [vmem:[%s4] sm:$0xff]
        %v299 = vld [vmem:[%s4 + $0x8] sm:$0xff]
        %v300 = vld [vmem:[%s4 + $0x10] sm:$0xff]
        %v301 = vld [vmem:[%s4 + $0x18] sm:$0xff]
        %v302 = vld [vmem:[%s4 + $0x20] sm:$0xff]
        %v303 = vld [vmem:[%s4 + $0x28] sm:$0xff]
        %v304 = vld [vmem:[%s4 + $0x30] sm:$0xff]
        %v305 = vld [vmem:[%s4 + $0x38] sm:$0xff]
        %v306 = vld [vmem:[%s4 + $0x40] sm:$0xff]
        %v307 = vld [vmem:[%s4 + $0x48] sm:$0xff]
        %v308 = vld [vmem:[%s4 + $0x50] sm:$0xff]
        %v309 = vld [vmem:[%s4 + $0x58] sm:$0xff]
        %v310 = vld [vmem:[%s5] sm:$0xf]
        %v311 = vld [vmem:[%s5 + $0x4] sm:$0xf]
        %v312 = vld [vmem:[%s5 + $0x8] sm:$0xf]
        %v313 = vld [vmem:[%s5 + $0xc] sm:$0xf]
        %v314 = vld [vmem:[%s6] sm:$0xff]
        %v315 = vld [vmem:[%s6 + $0x8] sm:$0xff]
        %v316 = vld [vmem:[%s6 + $0x10] sm:$0xff]
        %v317 = vld [vmem:[%s6 + $0x18] sm:$0xff]
        %v318 = vld [vmem:[%s276] sm:$0xff]
        %v319 = vld [vmem:[%s276 + $0x8] sm:$0xff]
        %v320 = vld [vmem:[%s276 + $0x10] sm:$0xff]
        %v321 = vld [vmem:[%s276 + $0x18] sm:$0xff]
        %v322 = vld [vmem:[%s276 + $0x20] sm:$0xff]
        %v323 = vld [vmem:[%s276 + $0x28] sm:$0xff]
        %v324 = vld [vmem:[%s276 + $0x30] sm:$0xff]
        %v325 = vld [vmem:[%s276 + $0x38] sm:$0xff]
        %v326 = vadd.f32 %v318, %v319
        %327 = vadd.xlane.f32.xlu0 %v326
        %v328 = vpop.xlane.xlu0 %327
        %v329 = vadd.f32 %v320, %v321
        %330 = vadd.xlane.f32.xlu0 %v329
        %v331 = vpop.xlane.xlu0 %330
        %v332 = vadd.f32 %v322, %v323
        %333 = vadd.xlane.f32.xlu0 %v332
        %v334 = vpop.xlane.xlu0 %333
        %v335 = vadd.f32 %v324, %v325
        %336 = vadd.xlane.f32.xlu0 %v335
        %v337 = vpop.xlane.xlu0 %336
        %v338 = vmul.f32 %v318, %v318
        %v339 = vmul.f32 %v319, %v319
        %v340 = vmul.f32 %v320, %v320
        %v341 = vmul.f32 %v321, %v321
        %v342 = vmul.f32 %v322, %v322
        %v343 = vmul.f32 %v323, %v323
        %v344 = vmul.f32 %v324, %v324
        %v345 = vmul.f32 %v325, %v325
        %v346 = vadd.f32 %v338, %v339
        %347 = vadd.xlane.f32.xlu0 %v346
        %v348 = vpop.xlane.xlu0 %347
        %v349 = vadd.f32 %v340, %v341
        %350 = vadd.xlane.f32.xlu0 %v349
        %v351 = vpop.xlane.xlu0 %350
        %v352 = vadd.f32 %v342, %v343
        %353 = vadd.xlane.f32.xlu0 %v352
        %v354 = vpop.xlane.xlu0 %353
        %v355 = vadd.f32 %v344, %v345
        %356 = vadd.xlane.f32.xlu0 %v355
        %v357 = vpop.xlane.xlu0 %356
        %v358 = vadd.f32 %v328, 0.0
        %v359 = vadd.f32 %v331, 0.0
        %v360 = vadd.f32 %v334, 0.0
        %v361 = vadd.f32 %v337, 0.0
        %v362 = vadd.f32 %v348, 0.0
        %v363 = vadd.f32 %v351, 0.0
        %v364 = vadd.f32 %v354, 0.0
        %v365 = vadd.f32 %v357, 0.0
        %v366 = vmul.f32 %v358, 0.00390625
        %v367 = vmul.f32 %v359, 0.00390625
        %v368 = vmul.f32 %v360, 0.00390625
        %v369 = vmul.f32 %v361, 0.00390625
        %v370 = vmul.f32 %v362, 0.00390625
        %v371 = vmul.f32 %v363, 0.00390625
        %v372 = vmul.f32 %v364, 0.00390625
        %v373 = vmul.f32 %v365, 0.00390625
        %v374 = vmul.f32 %v366, %v366
        %v375 = vmul.f32 %v367, %v367
        %v376 = vmul.f32 %v368, %v368
        %v377 = vmul.f32 %v369, %v369
        %v378 = vsub.f32 %v370, %v374
        %v379 = vsub.f32 %v371, %v375
        %v380 = vsub.f32 %v372, %v376
        %v381 = vsub.f32 %v373, %v377
        %v382 = vmax.f32 %v378, 0.0
        %v383 = vmax.f32 %v379, 0.0
        %v384 = vmax.f32 %v380, 0.0
        %v385 = vmax.f32 %v381, 0.0
        %v386 = vadd.f32 %v382, 1e-05
        %v387 = vadd.f32 %v383, 1e-05
        %v388 = vadd.f32 %v384, 1e-05
        %v389 = vadd.f32 %v385, 1e-05
        %v390 = vrsqrt.pop %v386
        %v391 = vrsqrt.pop %v387
        %v392 = vrsqrt.pop %v388
        %v393 = vrsqrt.pop %v389
        %v394 = vmul.f32 %v390, %v278
        %v395 = vmul.f32 %v391, %v279
        %v396 = vmul.f32 %v392, %v280
        %v397 = vmul.f32 %v393, %v281
        %v398 = vmul.f32 %v366, %v394
        %v399 = vmul.f32 %v367, %v395
        %v400 = vmul.f32 %v368, %v396
        %v401 = vmul.f32 %v369, %v397
        %v402 = vsub.f32 %v282, %v398
        %v403 = vsub.f32 %v283, %v399
        %v404 = vsub.f32 %v284, %v400
        %v405 = vsub.f32 %v285, %v401
        %407 = vset.pattern.permute.xlu0 0
        %408 = vperm.xlu0 %407, %v394
        %v409 = vpop.permute.xlu0 %408
        %412 = vset.pattern.permute.xlu0 0
        %413 = vperm.xlu0 %412, %v395
        %v414 = vpop.permute.xlu0 %413
        %417 = vset.pattern.permute.xlu0 0
        %418 = vperm.xlu0 %417, %v396
        %v419 = vpop.permute.xlu0 %418
        %422 = vset.pattern.permute.xlu0 0
        %423 = vperm.xlu0 %422, %v397
        %v424 = vpop.permute.xlu0 %423
        %v426 = vmul.f32 %v318, %v409
        %v427 = vmul.f32 %v319, %v409
        %v428 = vmul.f32 %v320, %v414
        %v429 = vmul.f32 %v321, %v414
        %v430 = vmul.f32 %v322, %v419
        %v431 = vmul.f32 %v323, %v419
        %v432 = vmul.f32 %v324, %v424
        %v433 = vmul.f32 %v325, %v424
        %435 = vset.pattern.permute.xlu0 0
        %436 = vperm.xlu0 %435, %v402
        %v437 = vpop.permute.xlu0 %436
        %440 = vset.pattern.permute.xlu0 0
        %441 = vperm.xlu0 %440, %v403
        %v442 = vpop.permute.xlu0 %441
        %445 = vset.pattern.permute.xlu0 0
        %446 = vperm.xlu0 %445, %v404
        %v447 = vpop.permute.xlu0 %446
        %450 = vset.pattern.permute.xlu0 0
        %451 = vperm.xlu0 %450, %v405
        %v452 = vpop.permute.xlu0 %451
        %v454 = vadd.f32 %v426, %v437
        %v455 = vadd.f32 %v427, %v437
        %v456 = vadd.f32 %v428, %v442
        %v457 = vadd.f32 %v429, %v442
        %v458 = vadd.f32 %v430, %v447
        %v459 = vadd.f32 %v431, %v447
        %v460 = vadd.f32 %v432, %v452
        %v461 = vadd.f32 %v433, %v452
        %v462 = vpack.c.bf16 %v456, %v454
        %v463 = vpack.c.bf16 %v457, %v455
        %v464 = vpack.c.bf16 %v460, %v458
        %v465 = vpack.c.bf16 %v461, %v459
        %467 = vset.pattern.permute.xlu0 0
        %468 = vperm.xlu0 %467, %v298
        %v469 = vpop.permute.xlu0 %468
        %472 = vset.pattern.permute.xlu0 0
        %473 = vperm.xlu0 %472, %v299
        %v474 = vpop.permute.xlu0 %473
        %477 = vset.pattern.permute.xlu0 0
        %478 = vperm.xlu0 %477, %v300
        %v479 = vpop.permute.xlu0 %478
        %482 = vset.pattern.permute.xlu0 0
        %483 = vperm.xlu0 %482, %v301
        %v484 = vpop.permute.xlu0 %483
        %487 = vset.pattern.permute.xlu0 0
        %488 = vperm.xlu0 %487, %v302
        %v489 = vpop.permute.xlu0 %488
        %492 = vset.pattern.permute.xlu0 0
        %493 = vperm.xlu0 %492, %v303
        %v494 = vpop.permute.xlu0 %493
        %497 = vset.pattern.permute.xlu0 0
        %498 = vperm.xlu0 %497, %v304
        %v499 = vpop.permute.xlu0 %498
        %502 = vset.pattern.permute.xlu0 0
        %503 = vperm.xlu0 %502, %v305
        %v504 = vpop.permute.xlu0 %503
        %507 = vset.pattern.permute.xlu0 0
        %508 = vperm.xlu0 %507, %v306
        %v509 = vpop.permute.xlu0 %508
        %512 = vset.pattern.permute.xlu0 0
        %513 = vperm.xlu0 %512, %v307
        %v514 = vpop.permute.xlu0 %513
        %517 = vset.pattern.permute.xlu0 0
        %518 = vperm.xlu0 %517, %v308
        %v519 = vpop.permute.xlu0 %518
        %522 = vset.pattern.permute.xlu0 0
        %523 = vperm.xlu0 %522, %v309
        %v524 = vpop.permute.xlu0 %523
        %v538 = vunpack.c.l.b16 %v286
        %v539 = vunpack.c.l.b16 %v287
        %v540 = vunpack.c.l.b16 %v288
        %v541 = vunpack.c.l.b16 %v289
        %v542 = vunpack.c.l.b16 %v290
        %v543 = vunpack.c.l.b16 %v291
        %v544 = vunpack.c.l.b16 %v292
        %v545 = vunpack.c.l.b16 %v293
        %v546 = vunpack.c.l.b16 %v294
        %v547 = vunpack.c.l.b16 %v295
        %v548 = vunpack.c.l.b16 %v296
        %v549 = vunpack.c.l.b16 %v297
        %v550 = vpack.c.b16 %v539, %v538
        %v551 = vpack.c.b16 %v541, %v540
        %v552 = vpack.c.b16 %v543, %v542
        %v553 = vpack.c.b16 %v545, %v544
        %v554 = vpack.c.b16 %v547, %v546
        %v555 = vpack.c.b16 %v549, %v548
        %vm556 = vcmask 261120
        %v558 = vsel %vm556, %v550, 0
        %v561 = vsel %vm556, %v551, 0
        %v564 = vsel %vm556, %v552, 0
        %v567 = vsel %vm556, %v553, 0
        %v570 = vsel %vm556, %v554, 0
        %v573 = vsel %vm556, %v555, 0
        %575 = vmatprep.subr.bf16.mxu0 %v463
        %576 = vmatpush1.bf16.msra.mxu0 %v462
        %577 = vmatprep.subr.bf16.mxu0 %v465
        %578 = vmatpush1.bf16.msra.mxu0 %v464
        %579 = vmatprep.subr.bf16.mxu0 0
        %580 = vmatpush1.bf16.msra.mxu0 0
        %581 = vmatprep.subr.bf16.mxu0 0
        %582 = vmatpush1.bf16.msra.mxu0 0
        %583 = vmatprep.subr.bf16.mxu0 0
        %584 = vmatpush1.bf16.msra.mxu0 0
        %585 = vmatprep.subr.bf16.mxu0 0
        %586 = vmatpush1.bf16.msra.mxu0 0
        %587 = vmatprep.subr.bf16.mxu0 0
        %588 = vmatpush1.bf16.msra.mxu0 0
        %589 = vmatprep.subr.bf16.mxu0 0
        %590 = vmatpush1.bf16.msra.mxu0 0
        %591 = vmatprep.subr.bf16.mxu0 0
        %592 = vmatpush1.bf16.msra.mxu0 0
        %593 = vmatprep.subr.bf16.mxu0 0
        %594 = vmatpush1.bf16.msra.mxu0 0
        %595 = vmatprep.subr.bf16.mxu0 0
        %596 = vmatpush1.bf16.msra.mxu0 0
        %597 = vmatprep.subr.bf16.mxu0 0
        %598 = vmatpush1.bf16.msra.mxu0 0
        %599 = vmatprep.subr.bf16.mxu0 0
        %600 = vmatpush1.bf16.msra.mxu0 0
        %601 = vmatprep.subr.bf16.mxu0 0
        %602 = vmatpush1.bf16.msra.mxu0 0
        %603 = vmatprep.subr.bf16.mxu0 0
        %604 = vmatpush1.bf16.msra.mxu0 0
        %605 = vmatprep.subr.bf16.mxu0 0
        %606 = vmatpush1.bf16.msra.mxu0 0
        %607 = vmatprep.mubr.bf16.mxu0 0
        %608 = vmatmul.mubr.bf16.gmra.mrb[0].mxu0 %v558
        %v609 = vpop.f32.mrb[0].mxu0
        %v610 = vadd.f32 %v469, %v609
        %v611 = vpop.f32.mrb[0].mxu0
        %v612 = vadd.f32 %v469, %v611
        %v613 = vpop.f32.mrb[0].mxu0
        %v614 = vadd.f32 %v474, %v613
        %v615 = vpop.f32.mrb[0].mxu0
        %v616 = vadd.f32 %v474, %v615
        %617 = vmatprep.mubr.bf16.mxu0 0
        %618 = vmatmul.mubr.bf16.gmra.mrb[0].mxu0 %v561
        %v619 = vpop.f32.mrb[0].mxu0
        %v620 = vadd.f32 %v479, %v619
        %v621 = vpop.f32.mrb[0].mxu0
        %v622 = vadd.f32 %v479, %v621
        %v623 = vpop.f32.mrb[0].mxu0
        %v624 = vadd.f32 %v484, %v623
        %v625 = vpop.f32.mrb[0].mxu0
        %v626 = vadd.f32 %v484, %v625
        %627 = vmatprep.mubr.bf16.mxu0 0
        %628 = vmatmul.mubr.bf16.gmra.mrb[0].mxu0 %v564
        %v629 = vpop.f32.mrb[0].mxu0
        %v630 = vadd.f32 %v489, %v629
        %v631 = vpop.f32.mrb[0].mxu0
        %v632 = vadd.f32 %v489, %v631
        %v633 = vpop.f32.mrb[0].mxu0
        %v634 = vadd.f32 %v494, %v633
        %v635 = vpop.f32.mrb[0].mxu0
        %v636 = vadd.f32 %v494, %v635
        %637 = vmatprep.mubr.bf16.mxu0 0
        %638 = vmatmul.mubr.bf16.gmra.mrb[0].mxu0 %v567
        %v639 = vpop.f32.mrb[0].mxu0
        %v640 = vadd.f32 %v499, %v639
        %v641 = vpop.f32.mrb[0].mxu0
        %v642 = vadd.f32 %v499, %v641
        %v643 = vpop.f32.mrb[0].mxu0
        %v644 = vadd.f32 %v504, %v643
        %v645 = vpop.f32.mrb[0].mxu0
        %v646 = vadd.f32 %v504, %v645
        %647 = vmatprep.mubr.bf16.mxu0 0
        %648 = vmatmul.mubr.bf16.gmra.mrb[0].mxu0 %v570
        %v649 = vpop.f32.mrb[0].mxu0
        %v650 = vadd.f32 %v509, %v649
        %v651 = vpop.f32.mrb[0].mxu0
        %v652 = vadd.f32 %v509, %v651
        %v653 = vpop.f32.mrb[0].mxu0
        %v654 = vadd.f32 %v514, %v653
        %v655 = vpop.f32.mrb[0].mxu0
        %v656 = vadd.f32 %v514, %v655
        %657 = vmatprep.mubr.bf16.mxu0 0
        %658 = vmatmul.mubr.bf16.gmra.mrb[0].mxu0 %v573
        %v659 = vpop.f32.mrb[0].mxu0
        %v660 = vadd.f32 %v519, %v659
        %v661 = vpop.f32.mrb[0].mxu0
        %v662 = vadd.f32 %v519, %v661
        %v663 = vpop.f32.mrb[0].mxu0
        %v664 = vadd.f32 %v524, %v663
        %v665 = vpop.f32.mrb[0].mxu0
        %v666 = vadd.f32 %v524, %v665
        %667 = vdwg.mxu0
        %v668 = vpack.c.bf16 %v610, %v610
        %v669 = vpack.c.bf16 %v612, %v612
        %v670 = vpack.c.bf16 %v614, %v614
        %v671 = vpack.c.bf16 %v616, %v616
        %v672 = vpack.c.bf16 %v620, %v620
        %v673 = vpack.c.bf16 %v622, %v622
        %v674 = vpack.c.bf16 %v624, %v624
        %v675 = vpack.c.bf16 %v626, %v626
        %v676 = vpack.c.bf16 %v630, %v630
        %v677 = vpack.c.bf16 %v632, %v632
        %v678 = vpack.c.bf16 %v634, %v634
        %v679 = vpack.c.bf16 %v636, %v636
        %v680 = vpack.c.bf16 %v640, %v640
        %v681 = vpack.c.bf16 %v642, %v642
        %v682 = vpack.c.bf16 %v644, %v644
        %v683 = vpack.c.bf16 %v646, %v646
        %v684 = vpack.c.bf16 %v650, %v650
        %v685 = vpack.c.bf16 %v652, %v652
        %v686 = vpack.c.bf16 %v654, %v654
        %v687 = vpack.c.bf16 %v656, %v656
        %v688 = vpack.c.bf16 %v660, %v660
        %v689 = vpack.c.bf16 %v662, %v662
        %v690 = vpack.c.bf16 %v664, %v664
        %v691 = vpack.c.bf16 %v666, %v666
        %692 = vxpose.xlu0.c.b16.start [1/8] %v676, 128
        %693 = vxpose.xlu0.c.b16.cont [2/8] 0, 128
        %694 = vxpose.xlu0.c.b16.cont [3/8] 0, 128
        %695 = vxpose.xlu0.c.b16.cont [4/8] 0, 128
        %696 = vxpose.xlu0.c.b16.cont [5/8] 0, 128
        %697 = vxpose.xlu0.c.b16.cont [6/8] 0, 128
        %698 = vxpose.xlu0.c.b16.cont [7/8] 0, 128
        %699 = vxpose.xlu0.c.b16.end [8/8] 0, 128
        %v700 = vpop.trf.xlu0
        %v701 = vpop.trf.xlu0
        %v702 = vpop.trf.xlu0
        %v703 = vpop.trf.xlu0
        %v704 = vpop.trf.xlu0
        %v705 = vpop.trf.xlu0
        %v706 = vpop.trf.xlu0
        %v707 = vpop.trf.xlu0
        %708 = vxpose.xlu0.c.b16.start [1/8] %v677, 128
        %709 = vxpose.xlu0.c.b16.cont [2/8] 0, 128
        %710 = vxpose.xlu0.c.b16.cont [3/8] 0, 128
        %711 = vxpose.xlu0.c.b16.cont [4/8] 0, 128
        %712 = vxpose.xlu0.c.b16.cont [5/8] 0, 128
        %713 = vxpose.xlu0.c.b16.cont [6/8] 0, 128
        %714 = vxpose.xlu0.c.b16.cont [7/8] 0, 128
        %715 = vxpose.xlu0.c.b16.end [8/8] 0, 128
        %v716 = vpop.trf.xlu0
        %v717 = vpop.trf.xlu0
        %v718 = vpop.trf.xlu0
        %v719 = vpop.trf.xlu0
        %v720 = vpop.trf.xlu0
        %v721 = vpop.trf.xlu0
        %v722 = vpop.trf.xlu0
        %v723 = vpop.trf.xlu0
        %vm724 = vcmask 64512
        %v726 = vsel %vm724, %v700, 0
        %v729 = vsel %vm724, %v701, 0
        %v732 = vsel %vm724, %v702, 0
        %v735 = vsel %vm724, %v703, 0
        %v738 = vsel %vm724, %v704, 0
        %v741 = vsel %vm724, %v705, 0
        %v744 = vsel %vm724, %v706, 0
        %v747 = vsel %vm724, %v707, 0
        %v750 = vsel %vm724, %v716, 0
        %v753 = vsel %vm724, %v717, 0
        %v756 = vsel %vm724, %v718, 0
        %v759 = vsel %vm724, %v719, 0
        %v762 = vsel %vm724, %v720, 0
        %v765 = vsel %vm724, %v721, 0
        %v768 = vsel %vm724, %v722, 0
        %v771 = vsel %vm724, %v723, 0
        %vm773 = vcmask 1043456
        %v775 = vsel %vm773, %v668, 0
        %v778 = vsel %vm773, %v669, 0
        %780 = vmatprep.subr.bf16.mxu0 %v778
        %781 = vmatpush1.bf16.msra.mxu0 %v775
        %782 = vmatprep.subr.bf16.mxu0 0
        %783 = vmatpush1.bf16.msra.mxu0 0
        %784 = vmatprep.subr.bf16.mxu0 0
        %785 = vmatpush1.bf16.msra.mxu0 0
        %786 = vmatprep.subr.bf16.mxu0 0
        %787 = vmatpush1.bf16.msra.mxu0 0
        %788 = vmatprep.subr.bf16.mxu0 0
        %789 = vmatpush1.bf16.msra.mxu0 0
        %790 = vmatprep.subr.bf16.mxu0 0
        %791 = vmatpush1.bf16.msra.mxu0 0
        %792 = vmatprep.subr.bf16.mxu0 0
        %793 = vmatpush1.bf16.msra.mxu0 0
        %794 = vmatprep.subr.bf16.mxu0 0
        %795 = vmatpush1.bf16.msra.mxu0 0
        %796 = vmatprep.subr.bf16.mxu0 0
        %797 = vmatpush1.bf16.msra.mxu0 0
        %798 = vmatprep.subr.bf16.mxu0 0
        %799 = vmatpush1.bf16.msra.mxu0 0
        %800 = vmatprep.subr.bf16.mxu0 0
        %801 = vmatpush1.bf16.msra.mxu0 0
        %802 = vmatprep.subr.bf16.mxu0 0
        %803 = vmatpush1.bf16.msra.mxu0 0
        %804 = vmatprep.subr.bf16.mxu0 0
        %805 = vmatpush1.bf16.msra.mxu0 0
        %806 = vmatprep.subr.bf16.mxu0 0
        %807 = vmatpush1.bf16.msra.mxu0 0
        %808 = vmatprep.subr.bf16.mxu0 0
        %809 = vmatpush1.bf16.msra.mxu0 0
        %810 = vmatprep.subr.bf16.mxu0 0
        %811 = vmatpush1.bf16.msra.mxu0 0
        %812 = vmatprep.mubr.bf16.mxu0 0
        %813 = vmatmul.mubr.bf16.gmra.mrb[0].mxu0 %v726
        %v814 = vpop.f32.mrb[0].mxu0
        %v815 = vadd.f32 0.0, %v814
        %v816 = vpop.f32.mrb[0].mxu0
        %v817 = vadd.f32 0.0, %v816
        %v818 = vpop.f32.mrb[0].mxu0
        %v819 = vadd.f32 0.0, %v818
        %v820 = vpop.f32.mrb[0].mxu0
        %v821 = vadd.f32 0.0, %v820
        %822 = vmatprep.mubr.bf16.mxu0 0
        %823 = vmatmul.mubr.bf16.gmra.mrb[0].mxu0 %v729
        %v824 = vpop.f32.mrb[0].mxu0
        %v825 = vadd.f32 0.0, %v824
        %v826 = vpop.f32.mrb[0].mxu0
        %v827 = vadd.f32 0.0, %v826
        %v828 = vpop.f32.mrb[0].mxu0
        %v829 = vadd.f32 0.0, %v828
        %v830 = vpop.f32.mrb[0].mxu0
        %v831 = vadd.f32 0.0, %v830
        %832 = vmatprep.mubr.bf16.mxu0 0
        %833 = vmatmul.mubr.bf16.gmra.mrb[0].mxu0 %v732
        %v834 = vpop.f32.mrb[0].mxu0
        %v835 = vadd.f32 0.0, %v834
        %v836 = vpop.f32.mrb[0].mxu0
        %v837 = vadd.f32 0.0, %v836
        %v838 = vpop.f32.mrb[0].mxu0
        %v839 = vadd.f32 0.0, %v838
        %v840 = vpop.f32.mrb[0].mxu0
        %v841 = vadd.f32 0.0, %v840
        %842 = vmatprep.mubr.bf16.mxu0 0
        %843 = vmatmul.mubr.bf16.gmra.mrb[0].mxu0 %v735
        %v844 = vpop.f32.mrb[0].mxu0
        %v845 = vadd.f32 0.0, %v844
        %v846 = vpop.f32.mrb[0].mxu0
        %v847 = vadd.f32 0.0, %v846
        %v848 = vpop.f32.mrb[0].mxu0
        %v849 = vadd.f32 0.0, %v848
        %v850 = vpop.f32.mrb[0].mxu0
        %v851 = vadd.f32 0.0, %v850
        %852 = vmatprep.mubr.bf16.mxu0 0
        %853 = vmatmul.mubr.bf16.gmra.mrb[0].mxu0 %v738
        %v854 = vpop.f32.mrb[0].mxu0
        %v855 = vadd.f32 0.0, %v854
        %v856 = vpop.f32.mrb[0].mxu0
        %v857 = vadd.f32 0.0, %v856
        %v858 = vpop.f32.mrb[0].mxu0
        %v859 = vadd.f32 0.0, %v858
        %v860 = vpop.f32.mrb[0].mxu0
        %v861 = vadd.f32 0.0, %v860
        %862 = vmatprep.mubr.bf16.mxu0 0
        %863 = vmatmul.mubr.bf16.gmra.mrb[0].mxu0 %v741
        %v864 = vpop.f32.mrb[0].mxu0
        %v865 = vadd.f32 0.0, %v864
        %v866 = vpop.f32.mrb[0].mxu0
        %v867 = vadd.f32 0.0, %v866
        %v868 = vpop.f32.mrb[0].mxu0
        %v869 = vadd.f32 0.0, %v868
        %v870 = vpop.f32.mrb[0].mxu0
        %v871 = vadd.f32 0.0, %v870
        %872 = vmatprep.mubr.bf16.mxu0 0
        %873 = vmatmul.mubr.bf16.gmra.mrb[0].mxu0 %v744
        %v874 = vpop.f32.mrb[0].mxu0
        %v875 = vadd.f32 0.0, %v874
        %v876 = vpop.f32.mrb[0].mxu0
        %v877 = vadd.f32 0.0, %v876
        %v878 = vpop.f32.mrb[0].mxu0
        %v879 = vadd.f32 0.0, %v878
        %v880 = vpop.f32.mrb[0].mxu0
        %v881 = vadd.f32 0.0, %v880
        %882 = vmatprep.mubr.bf16.mxu0 0
        %883 = vmatmul.mubr.bf16.gmra.mrb[0].mxu0 %v747
        %v884 = vpop.f32.mrb[0].mxu0
        %v885 = vadd.f32 0.0, %v884
        %v886 = vpop.f32.mrb[0].mxu0
        %v887 = vadd.f32 0.0, %v886
        %v888 = vpop.f32.mrb[0].mxu0
        %v889 = vadd.f32 0.0, %v888
        %v890 = vpop.f32.mrb[0].mxu0
        %v891 = vadd.f32 0.0, %v890
        %892 = vmatprep.mubr.bf16.mxu0 0
        %893 = vmatmul.mubr.bf16.gmra.mrb[0].mxu0 %v750
        %v894 = vpop.f32.mrb[0].mxu0
        %v895 = vadd.f32 0.0, %v894
        %v896 = vpop.f32.mrb[0].mxu0
        %v897 = vadd.f32 0.0, %v896
        %v898 = vpop.f32.mrb[0].mxu0
        %v899 = vadd.f32 0.0, %v898
        %v900 = vpop.f32.mrb[0].mxu0
        %v901 = vadd.f32 0.0, %v900
        %902 = vmatprep.mubr.bf16.mxu0 0
        %903 = vmatmul.mubr.bf16.gmra.mrb[0].mxu0 %v753
        %v904 = vpop.f32.mrb[0].mxu0
        %v905 = vadd.f32 0.0, %v904
        %v906 = vpop.f32.mrb[0].mxu0
        %v907 = vadd.f32 0.0, %v906
        %v908 = vpop.f32.mrb[0].mxu0
        %v909 = vadd.f32 0.0, %v908
        %v910 = vpop.f32.mrb[0].mxu0
        %v911 = vadd.f32 0.0, %v910
        %912 = vmatprep.mubr.bf16.mxu0 0
        %913 = vmatmul.mubr.bf16.gmra.mrb[0].mxu0 %v756
        %v914 = vpop.f32.mrb[0].mxu0
        %v915 = vadd.f32 0.0, %v914
        %v916 = vpop.f32.mrb[0].mxu0
        %v917 = vadd.f32 0.0, %v916
        %v918 = vpop.f32.mrb[0].mxu0
        %v919 = vadd.f32 0.0, %v918
        %v920 = vpop.f32.mrb[0].mxu0
        %v921 = vadd.f32 0.0, %v920
        %922 = vmatprep.mubr.bf16.mxu0 0
        %923 = vmatmul.mubr.bf16.gmra.mrb[0].mxu0 %v759
        %v924 = vpop.f32.mrb[0].mxu0
        %v925 = vadd.f32 0.0, %v924
        %v926 = vpop.f32.mrb[0].mxu0
        %v927 = vadd.f32 0.0, %v926
        %v928 = vpop.f32.mrb[0].mxu0
        %v929 = vadd.f32 0.0, %v928
        %v930 = vpop.f32.mrb[0].mxu0
        %v931 = vadd.f32 0.0, %v930
        %932 = vmatprep.mubr.bf16.mxu0 0
        %933 = vmatmul.mubr.bf16.gmra.mrb[0].mxu0 %v762
        %v934 = vpop.f32.mrb[0].mxu0
        %v935 = vadd.f32 0.0, %v934
        %v936 = vpop.f32.mrb[0].mxu0
        %v937 = vadd.f32 0.0, %v936
        %v938 = vpop.f32.mrb[0].mxu0
        %v939 = vadd.f32 0.0, %v938
        %v940 = vpop.f32.mrb[0].mxu0
        %v941 = vadd.f32 0.0, %v940
        %942 = vmatprep.mubr.bf16.mxu0 0
        %943 = vmatmul.mubr.bf16.gmra.mrb[0].mxu0 %v765
        %v944 = vpop.f32.mrb[0].mxu0
        %v945 = vadd.f32 0.0, %v944
        %v946 = vpop.f32.mrb[0].mxu0
        %v947 = vadd.f32 0.0, %v946
        %v948 = vpop.f32.mrb[0].mxu0
        %v949 = vadd.f32 0.0, %v948
        %v950 = vpop.f32.mrb[0].mxu0
        %v951 = vadd.f32 0.0, %v950
        %952 = vmatprep.mubr.bf16.mxu0 0
        %953 = vmatmul.mubr.bf16.gmra.mrb[0].mxu0 %v768
        %v954 = vpop.f32.mrb[0].mxu0
        %v955 = vadd.f32 0.0, %v954
        %v956 = vpop.f32.mrb[0].mxu0
        %v957 = vadd.f32 0.0, %v956
        %v958 = vpop.f32.mrb[0].mxu0
        %v959 = vadd.f32 0.0, %v958
        %v960 = vpop.f32.mrb[0].mxu0
        %v961 = vadd.f32 0.0, %v960
        %962 = vmatprep.mubr.bf16.mxu0 0
        %963 = vmatmul.mubr.bf16.gmra.mrb[0].mxu0 %v771
        %v964 = vpop.f32.mrb[0].mxu0
        %v965 = vadd.f32 0.0, %v964
        %v966 = vpop.f32.mrb[0].mxu0
        %v967 = vadd.f32 0.0, %v966
        %v968 = vpop.f32.mrb[0].mxu0
        %v969 = vadd.f32 0.0, %v968
        %v970 = vpop.f32.mrb[0].mxu0
        %v971 = vadd.f32 0.0, %v970
        %972 = vdwg.mxu0
        %973 = vxpose.xlu0.c.b16.start [1/8] %v678, 128
        %974 = vxpose.xlu0.c.b16.cont [2/8] 0, 128
        %975 = vxpose.xlu0.c.b16.cont [3/8] 0, 128
        %976 = vxpose.xlu0.c.b16.cont [4/8] 0, 128
        %977 = vxpose.xlu0.c.b16.cont [5/8] 0, 128
        %978 = vxpose.xlu0.c.b16.cont [6/8] 0, 128
        %979 = vxpose.xlu0.c.b16.cont [7/8] 0, 128
        %980 = vxpose.xlu0.c.b16.end [8/8] 0, 128
        %v981 = vpop.trf.xlu0
        %v982 = vpop.trf.xlu0
        %v983 = vpop.trf.xlu0
        %v984 = vpop.trf.xlu0
        %v985 = vpop.trf.xlu0
        %v986 = vpop.trf.xlu0
        %v987 = vpop.trf.xlu0
        %v988 = vpop.trf.xlu0
        %989 = vxpose.xlu0.c.b16.start [1/8] %v679, 128
        %990 = vxpose.xlu0.c.b16.cont [2/8] 0, 128
        %991 = vxpose.xlu0.c.b16.cont [3/8] 0, 128
        %992 = vxpose.xlu0.c.b16.cont [4/8] 0, 128
        %993 = vxpose.xlu0.c.b16.cont [5/8] 0, 128
        %994 = vxpose.xlu0.c.b16.cont [6/8] 0, 128
        %995 = vxpose.xlu0.c.b16.cont [7/8] 0, 128
        %996 = vxpose.xlu0.c.b16.end [8/8] 0, 128
        %v997 = vpop.trf.xlu0
        %v998 = vpop.trf.xlu0
        %v999 = vpop.trf.xlu0
        %v1000 = vpop.trf.xlu0
        %v1001 = vpop.trf.xlu0
        %v1002 = vpop.trf.xlu0
        %v1003 = vpop.trf.xlu0
        %v1004 = vpop.trf.xlu0
        %v1006 = vsel %vm724, %v981, 0
        %v1009 = vsel %vm724, %v982, 0
        %v1012 = vsel %vm724, %v983, 0
        %v1015 = vsel %vm724, %v984, 0
        %v1018 = vsel %vm724, %v985, 0
        %v1021 = vsel %vm724, %v986, 0
        %v1024 = vsel %vm724, %v987, 0
        %v1027 = vsel %vm724, %v988, 0
        %v1030 = vsel %vm724, %v997, 0
        %v1033 = vsel %vm724, %v998, 0
        %v1036 = vsel %vm724, %v999, 0
        %v1039 = vsel %vm724, %v1000, 0
        %v1042 = vsel %vm724, %v1001, 0
        %v1045 = vsel %vm724, %v1002, 0
        %v1048 = vsel %vm724, %v1003, 0
        %v1051 = vsel %vm724, %v1004, 0
        %v1054 = vsel %vm773, %v670, 0
        %v1057 = vsel %vm773, %v671, 0
        %1059 = vmatprep.subr.bf16.mxu0 %v1057
        %1060 = vmatpush1.bf16.msra.mxu0 %v1054
        %1061 = vmatprep.subr.bf16.mxu0 0
        %1062 = vmatpush1.bf16.msra.mxu0 0
        %1063 = vmatprep.subr.bf16.mxu0 0
        %1064 = vmatpush1.bf16.msra.mxu0 0
        %1065 = vmatprep.subr.bf16.mxu0 0
        %1066 = vmatpush1.bf16.msra.mxu0 0
        %1067 = vmatprep.subr.bf16.mxu0 0
        %1068 = vmatpush1.bf16.msra.mxu0 0
        %1069 = vmatprep.subr.bf16.mxu0 0
        %1070 = vmatpush1.bf16.msra.mxu0 0
        %1071 = vmatprep.subr.bf16.mxu0 0
        %1072 = vmatpush1.bf16.msra.mxu0 0
        %1073 = vmatprep.subr.bf16.mxu0 0
        %1074 = vmatpush1.bf16.msra.mxu0 0
        %1075 = vmatprep.subr.bf16.mxu0 0
        %1076 = vmatpush1.bf16.msra.mxu0 0
        %1077 = vmatprep.subr.bf16.mxu0 0
        %1078 = vmatpush1.bf16.msra.mxu0 0
        %1079 = vmatprep.subr.bf16.mxu0 0
        %1080 = vmatpush1.bf16.msra.mxu0 0
        %1081 = vmatprep.subr.bf16.mxu0 0
        %1082 = vmatpush1.bf16.msra.mxu0 0
        %1083 = vmatprep.subr.bf16.mxu0 0
        %1084 = vmatpush1.bf16.msra.mxu0 0
        %1085 = vmatprep.subr.bf16.mxu0 0
        %1086 = vmatpush1.bf16.msra.mxu0 0
        %1087 = vmatprep.subr.bf16.mxu0 0
        %1088 = vmatpush1.bf16.msra.mxu0 0
        %1089 = vmatprep.subr.bf16.mxu0 0
        %1090 = vmatpush1.bf16.msra.mxu0 0
        %1091 = vmatprep.mubr.bf16.mxu0 0
        %1092 = vmatmul.mubr.bf16.gmra.mrb[0].mxu0 %v1006
        %v1093 = vpop.f32.mrb[0].mxu0
        %v1094 = vadd.f32 0.0, %v1093
        %v1095 = vpop.f32.mrb[0].mxu0
        %v1096 = vadd.f32 0.0, %v1095
        %v1097 = vpop.f32.mrb[0].mxu0
        %v1098 = vadd.f32 0.0, %v1097
        %v1099 = vpop.f32.mrb[0].mxu0
        %v1100 = vadd.f32 0.0, %v1099
        %1101 = vmatprep.mubr.bf16.mxu0 0
        %1102 = vmatmul.mubr.bf16.gmra.mrb[0].mxu0 %v1009
        %v1103 = vpop.f32.mrb[0].mxu0
        %v1104 = vadd.f32 0.0, %v1103
        %v1105 = vpop.f32.mrb[0].mxu0
        %v1106 = vadd.f32 0.0, %v1105
        %v1107 = vpop.f32.mrb[0].mxu0
        %v1108 = vadd.f32 0.0, %v1107
        %v1109 = vpop.f32.mrb[0].mxu0
        %v1110 = vadd.f32 0.0, %v1109
        %1111 = vmatprep.mubr.bf16.mxu0 0
        %1112 = vmatmul.mubr.bf16.gmra.mrb[0].mxu0 %v1012
        %v1113 = vpop.f32.mrb[0].mxu0
        %v1114 = vadd.f32 0.0, %v1113
        %v1115 = vpop.f32.mrb[0].mxu0
        %v1116 = vadd.f32 0.0, %v1115
        %v1117 = vpop.f32.mrb[0].mxu0
        %v1118 = vadd.f32 0.0, %v1117
        %v1119 = vpop.f32.mrb[0].mxu0
        %v1120 = vadd.f32 0.0, %v1119
        %1121 = vmatprep.mubr.bf16.mxu0 0
        %1122 = vmatmul.mubr.bf16.gmra.mrb[0].mxu0 %v1015
        %v1123 = vpop.f32.mrb[0].mxu0
        %v1124 = vadd.f32 0.0, %v1123
        %v1125 = vpop.f32.mrb[0].mxu0
        %v1126 = vadd.f32 0.0, %v1125
        %v1127 = vpop.f32.mrb[0].mxu0
        %v1128 = vadd.f32 0.0, %v1127
        %v1129 = vpop.f32.mrb[0].mxu0
        %v1130 = vadd.f32 0.0, %v1129
        %1131 = vmatprep.mubr.bf16.mxu0 0
        %1132 = vmatmul.mubr.bf16.gmra.mrb[0].mxu0 %v1018
        %v1133 = vpop.f32.mrb[0].mxu0
        %v1134 = vadd.f32 0.0, %v1133
        %v1135 = vpop.f32.mrb[0].mxu0
        %v1136 = vadd.f32 0.0, %v1135
        %v1137 = vpop.f32.mrb[0].mxu0
        %v1138 = vadd.f32 0.0, %v1137
        %v1139 = vpop.f32.mrb[0].mxu0
        %v1140 = vadd.f32 0.0, %v1139
        %1141 = vmatprep.mubr.bf16.mxu0 0
        %1142 = vmatmul.mubr.bf16.gmra.mrb[0].mxu0 %v1021
        %v1143 = vpop.f32.mrb[0].mxu0
        %v1144 = vadd.f32 0.0, %v1143
        %v1145 = vpop.f32.mrb[0].mxu0
        %v1146 = vadd.f32 0.0, %v1145
        %v1147 = vpop.f32.mrb[0].mxu0
        %v1148 = vadd.f32 0.0, %v1147
        %v1149 = vpop.f32.mrb[0].mxu0
        %v1150 = vadd.f32 0.0, %v1149
        %1151 = vmatprep.mubr.bf16.mxu0 0
        %1152 = vmatmul.mubr.bf16.gmra.mrb[0].mxu0 %v1024
        %v1153 = vpop.f32.mrb[0].mxu0
        %v1154 = vadd.f32 0.0, %v1153
        %v1155 = vpop.f32.mrb[0].mxu0
        %v1156 = vadd.f32 0.0, %v1155
        %v1157 = vpop.f32.mrb[0].mxu0
        %v1158 = vadd.f32 0.0, %v1157
        %v1159 = vpop.f32.mrb[0].mxu0
        %v1160 = vadd.f32 0.0, %v1159
        %1161 = vmatprep.mubr.bf16.mxu0 0
        %1162 = vmatmul.mubr.bf16.gmra.mrb[0].mxu0 %v1027
        %v1163 = vpop.f32.mrb[0].mxu0
        %v1164 = vadd.f32 0.0, %v1163
        %v1165 = vpop.f32.mrb[0].mxu0
        %v1166 = vadd.f32 0.0, %v1165
        %v1167 = vpop.f32.mrb[0].mxu0
        %v1168 = vadd.f32 0.0, %v1167
        %v1169 = vpop.f32.mrb[0].mxu0
        %v1170 = vadd.f32 0.0, %v1169
        %1171 = vmatprep.mubr.bf16.mxu0 0
        %1172 = vmatmul.mubr.bf16.gmra.mrb[0].mxu0 %v1030
        %v1173 = vpop.f32.mrb[0].mxu0
        %v1174 = vadd.f32 0.0, %v1173
        %v1175 = vpop.f32.mrb[0].mxu0
        %v1176 = vadd.f32 0.0, %v1175
        %v1177 = vpop.f32.mrb[0].mxu0
        %v1178 = vadd.f32 0.0, %v1177
        %v1179 = vpop.f32.mrb[0].mxu0
        %v1180 = vadd.f32 0.0, %v1179
        %1181 = vmatprep.mubr.bf16.mxu0 0
        %1182 = vmatmul.mubr.bf16.gmra.mrb[0].mxu0 %v1033
        %v1183 = vpop.f32.mrb[0].mxu0
        %v1184 = vadd.f32 0.0, %v1183
        %v1185 = vpop.f32.mrb[0].mxu0
        %v1186 = vadd.f32 0.0, %v1185
        %v1187 = vpop.f32.mrb[0].mxu0
        %v1188 = vadd.f32 0.0, %v1187
        %v1189 = vpop.f32.mrb[0].mxu0
        %v1190 = vadd.f32 0.0, %v1189
        %1191 = vmatprep.mubr.bf16.mxu0 0
        %1192 = vmatmul.mubr.bf16.gmra.mrb[0].mxu0 %v1036
        %v1193 = vpop.f32.mrb[0].mxu0
        %v1194 = vadd.f32 0.0, %v1193
        %v1195 = vpop.f32.mrb[0].mxu0
        %v1196 = vadd.f32 0.0, %v1195
        %v1197 = vpop.f32.mrb[0].mxu0
        %v1198 = vadd.f32 0.0, %v1197
        %v1199 = vpop.f32.mrb[0].mxu0
        %v1200 = vadd.f32 0.0, %v1199
        %1201 = vmatprep.mubr.bf16.mxu0 0
        %1202 = vmatmul.mubr.bf16.gmra.mrb[0].mxu0 %v1039
        %v1203 = vpop.f32.mrb[0].mxu0
        %v1204 = vadd.f32 0.0, %v1203
        %v1205 = vpop.f32.mrb[0].mxu0
        %v1206 = vadd.f32 0.0, %v1205
        %v1207 = vpop.f32.mrb[0].mxu0
        %v1208 = vadd.f32 0.0, %v1207
        %v1209 = vpop.f32.mrb[0].mxu0
        %v1210 = vadd.f32 0.0, %v1209
        %1211 = vmatprep.mubr.bf16.mxu0 0
        %1212 = vmatmul.mubr.bf16.gmra.mrb[0].mxu0 %v1042
        %v1213 = vpop.f32.mrb[0].mxu0
        %v1214 = vadd.f32 0.0, %v1213
        %v1215 = vpop.f32.mrb[0].mxu0
        %v1216 = vadd.f32 0.0, %v1215
        %v1217 = vpop.f32.mrb[0].mxu0
        %v1218 = vadd.f32 0.0, %v1217
        %v1219 = vpop.f32.mrb[0].mxu0
        %v1220 = vadd.f32 0.0, %v1219
        %1221 = vmatprep.mubr.bf16.mxu0 0
        %1222 = vmatmul.mubr.bf16.gmra.mrb[0].mxu0 %v1045
        %v1223 = vpop.f32.mrb[0].mxu0
        %v1224 = vadd.f32 0.0, %v1223
        %v1225 = vpop.f32.mrb[0].mxu0
        %v1226 = vadd.f32 0.0, %v1225
        %v1227 = vpop.f32.mrb[0].mxu0
        %v1228 = vadd.f32 0.0, %v1227
        %v1229 = vpop.f32.mrb[0].mxu0
        %v1230 = vadd.f32 0.0, %v1229
        %1231 = vmatprep.mubr.bf16.mxu0 0
        %1232 = vmatmul.mubr.bf16.gmra.mrb[0].mxu0 %v1048
        %v1233 = vpop.f32.mrb[0].mxu0
        %v1234 = vadd.f32 0.0, %v1233
        %v1235 = vpop.f32.mrb[0].mxu0
        %v1236 = vadd.f32 0.0, %v1235
        %v1237 = vpop.f32.mrb[0].mxu0
        %v1238 = vadd.f32 0.0, %v1237
        %v1239 = vpop.f32.mrb[0].mxu0
        %v1240 = vadd.f32 0.0, %v1239
        %1241 = vmatprep.mubr.bf16.mxu0 0
        %1242 = vmatmul.mubr.bf16.gmra.mrb[0].mxu0 %v1051
        %v1243 = vpop.f32.mrb[0].mxu0
        %v1244 = vadd.f32 0.0, %v1243
        %v1245 = vpop.f32.mrb[0].mxu0
        %v1246 = vadd.f32 0.0, %v1245
        %v1247 = vpop.f32.mrb[0].mxu0
        %v1248 = vadd.f32 0.0, %v1247
        %v1249 = vpop.f32.mrb[0].mxu0
        %v1250 = vadd.f32 0.0, %v1249
        %1251 = vdwg.mxu0
        %1252 = vxpose.xlu0.c.b16.start [1/8] %v680, 128
        %1253 = vxpose.xlu0.c.b16.cont [2/8] 0, 128
        %1254 = vxpose.xlu0.c.b16.cont [3/8] 0, 128
        %1255 = vxpose.xlu0.c.b16.cont [4/8] 0, 128
        %1256 = vxpose.xlu0.c.b16.cont [5/8] 0, 128
        %1257 = vxpose.xlu0.c.b16.cont [6/8] 0, 128
        %1258 = vxpose.xlu0.c.b16.cont [7/8] 0, 128
        %1259 = vxpose.xlu0.c.b16.end [8/8] 0, 128
        %v1260 = vpop.trf.xlu0
        %v1261 = vpop.trf.xlu0
        %v1262 = vpop.trf.xlu0
        %v1263 = vpop.trf.xlu0
        %v1264 = vpop.trf.xlu0
        %v1265 = vpop.trf.xlu0
        %v1266 = vpop.trf.xlu0
        %v1267 = vpop.trf.xlu0
        %1268 = vxpose.xlu0.c.b16.start [1/8] %v681, 128
        %1269 = vxpose.xlu0.c.b16.cont [2/8] 0, 128
        %1270 = vxpose.xlu0.c.b16.cont [3/8] 0, 128
        %1271 = vxpose.xlu0.c.b16.cont [4/8] 0, 128
        %1272 = vxpose.xlu0.c.b16.cont [5/8] 0, 128
        %1273 = vxpose.xlu0.c.b16.cont [6/8] 0, 128
        %1274 = vxpose.xlu0.c.b16.cont [7/8] 0, 128
        %1275 = vxpose.xlu0.c.b16.end [8/8] 0, 128
        %v1276 = vpop.trf.xlu0
        %v1277 = vpop.trf.xlu0
        %v1278 = vpop.trf.xlu0
        %v1279 = vpop.trf.xlu0
        %v1280 = vpop.trf.xlu0
        %v1281 = vpop.trf.xlu0
        %v1282 = vpop.trf.xlu0
        %v1283 = vpop.trf.xlu0
        %v1285 = vsel %vm724, %v1260, 0
        %v1288 = vsel %vm724, %v1261, 0
        %v1291 = vsel %vm724, %v1262, 0
        %v1294 = vsel %vm724, %v1263, 0
        %v1297 = vsel %vm724, %v1264, 0
        %v1300 = vsel %vm724, %v1265, 0
        %v1303 = vsel %vm724, %v1266, 0
        %v1306 = vsel %vm724, %v1267, 0
        %v1309 = vsel %vm724, %v1276, 0
        %v1312 = vsel %vm724, %v1277, 0
        %v1315 = vsel %vm724, %v1278, 0
        %v1318 = vsel %vm724, %v1279, 0
        %v1321 = vsel %vm724, %v1280, 0
        %v1324 = vsel %vm724, %v1281, 0
        %v1327 = vsel %vm724, %v1282, 0
        %v1330 = vsel %vm724, %v1283, 0
        %v1333 = vsel %vm773, %v672, 0
        %v1336 = vsel %vm773, %v673, 0
        %1338 = vmatprep.subr.bf16.mxu0 %v1336
        %1339 = vmatpush1.bf16.msra.mxu0 %v1333
        %1340 = vmatprep.subr.bf16.mxu0 0
        %1341 = vmatpush1.bf16.msra.mxu0 0
        %1342 = vmatprep.subr.bf16.mxu0 0
        %1343 = vmatpush1.bf16.msra.mxu0 0
        %1344 = vmatprep.subr.bf16.mxu0 0
        %1345 = vmatpush1.bf16.msra.mxu0 0
        %1346 = vmatprep.subr.bf16.mxu0 0
        %1347 = vmatpush1.bf16.msra.mxu0 0
        %1348 = vmatprep.subr.bf16.mxu0 0
        %1349 = vmatpush1.bf16.msra.mxu0 0
        %1350 = vmatprep.subr.bf16.mxu0 0
        %1351 = vmatpush1.bf16.msra.mxu0 0
        %1352 = vmatprep.subr.bf16.mxu0 0
        %1353 = vmatpush1.bf16.msra.mxu0 0
        %1354 = vmatprep.subr.bf16.mxu0 0
        %1355 = vmatpush1.bf16.msra.mxu0 0
        %1356 = vmatprep.subr.bf16.mxu0 0
        %1357 = vmatpush1.bf16.msra.mxu0 0
        %1358 = vmatprep.subr.bf16.mxu0 0
        %1359 = vmatpush1.bf16.msra.mxu0 0
        %1360 = vmatprep.subr.bf16.mxu0 0
        %1361 = vmatpush1.bf16.msra.mxu0 0
        %1362 = vmatprep.subr.bf16.mxu0 0
        %1363 = vmatpush1.bf16.msra.mxu0 0
        %1364 = vmatprep.subr.bf16.mxu0 0
        %1365 = vmatpush1.bf16.msra.mxu0 0
        %1366 = vmatprep.subr.bf16.mxu0 0
        %1367 = vmatpush1.bf16.msra.mxu0 0
        %1368 = vmatprep.subr.bf16.mxu0 0
        %1369 = vmatpush1.bf16.msra.mxu0 0
        %1370 = vmatprep.mubr.bf16.mxu0 0
        %1371 = vmatmul.mubr.bf16.gmra.mrb[0].mxu0 %v1285
        %v1372 = vpop.f32.mrb[0].mxu0
        %v1373 = vadd.f32 0.0, %v1372
        %v1374 = vpop.f32.mrb[0].mxu0
        %v1375 = vadd.f32 0.0, %v1374
        %v1376 = vpop.f32.mrb[0].mxu0
        %v1377 = vadd.f32 0.0, %v1376
        %v1378 = vpop.f32.mrb[0].mxu0
        %v1379 = vadd.f32 0.0, %v1378
        %1380 = vmatprep.mubr.bf16.mxu0 0
        %1381 = vmatmul.mubr.bf16.gmra.mrb[0].mxu0 %v1288
        %v1382 = vpop.f32.mrb[0].mxu0
        %v1383 = vadd.f32 0.0, %v1382
        %v1384 = vpop.f32.mrb[0].mxu0
        %v1385 = vadd.f32 0.0, %v1384
        %v1386 = vpop.f32.mrb[0].mxu0
        %v1387 = vadd.f32 0.0, %v1386
        %v1388 = vpop.f32.mrb[0].mxu0
        %v1389 = vadd.f32 0.0, %v1388
        %1390 = vmatprep.mubr.bf16.mxu0 0
        %1391 = vmatmul.mubr.bf16.gmra.mrb[0].mxu0 %v1291
        %v1392 = vpop.f32.mrb[0].mxu0
        %v1393 = vadd.f32 0.0, %v1392
        %v1394 = vpop.f32.mrb[0].mxu0
        %v1395 = vadd.f32 0.0, %v1394
        %v1396 = vpop.f32.mrb[0].mxu0
        %v1397 = vadd.f32 0.0, %v1396
        %v1398 = vpop.f32.mrb[0].mxu0
        %v1399 = vadd.f32 0.0, %v1398
        %1400 = vmatprep.mubr.bf16.mxu0 0
        %1401 = vmatmul.mubr.bf16.gmra.mrb[0].mxu0 %v1294
        %v1402 = vpop.f32.mrb[0].mxu0
        %v1403 = vadd.f32 0.0, %v1402
        %v1404 = vpop.f32.mrb[0].mxu0
        %v1405 = vadd.f32 0.0, %v1404
        %v1406 = vpop.f32.mrb[0].mxu0
        %v1407 = vadd.f32 0.0, %v1406
        %v1408 = vpop.f32.mrb[0].mxu0
        %v1409 = vadd.f32 0.0, %v1408
        %1410 = vmatprep.mubr.bf16.mxu0 0
        %1411 = vmatmul.mubr.bf16.gmra.mrb[0].mxu0 %v1297
        %v1412 = vpop.f32.mrb[0].mxu0
        %v1413 = vadd.f32 0.0, %v1412
        %v1414 = vpop.f32.mrb[0].mxu0
        %v1415 = vadd.f32 0.0, %v1414
        %v1416 = vpop.f32.mrb[0].mxu0
        %v1417 = vadd.f32 0.0, %v1416
        %v1418 = vpop.f32.mrb[0].mxu0
        %v1419 = vadd.f32 0.0, %v1418
        %1420 = vmatprep.mubr.bf16.mxu0 0
        %1421 = vmatmul.mubr.bf16.gmra.mrb[0].mxu0 %v1300
        %v1422 = vpop.f32.mrb[0].mxu0
        %v1423 = vadd.f32 0.0, %v1422
        %v1424 = vpop.f32.mrb[0].mxu0
        %v1425 = vadd.f32 0.0, %v1424
        %v1426 = vpop.f32.mrb[0].mxu0
        %v1427 = vadd.f32 0.0, %v1426
        %v1428 = vpop.f32.mrb[0].mxu0
        %v1429 = vadd.f32 0.0, %v1428
        %1430 = vmatprep.mubr.bf16.mxu0 0
        %1431 = vmatmul.mubr.bf16.gmra.mrb[0].mxu0 %v1303
        %v1432 = vpop.f32.mrb[0].mxu0
        %v1433 = vadd.f32 0.0, %v1432
        %v1434 = vpop.f32.mrb[0].mxu0
        %v1435 = vadd.f32 0.0, %v1434
        %v1436 = vpop.f32.mrb[0].mxu0
        %v1437 = vadd.f32 0.0, %v1436
        %v1438 = vpop.f32.mrb[0].mxu0
        %v1439 = vadd.f32 0.0, %v1438
        %1440 = vmatprep.mubr.bf16.mxu0 0
        %1441 = vmatmul.mubr.bf16.gmra.mrb[0].mxu0 %v1306
        %v1442 = vpop.f32.mrb[0].mxu0
        %v1443 = vadd.f32 0.0, %v1442
        %v1444 = vpop.f32.mrb[0].mxu0
        %v1445 = vadd.f32 0.0, %v1444
        %v1446 = vpop.f32.mrb[0].mxu0
        %v1447 = vadd.f32 0.0, %v1446
        %v1448 = vpop.f32.mrb[0].mxu0
        %v1449 = vadd.f32 0.0, %v1448
        %1450 = vmatprep.mubr.bf16.mxu0 0
        %1451 = vmatmul.mubr.bf16.gmra.mrb[0].mxu0 %v1309
        %v1452 = vpop.f32.mrb[0].mxu0
        %v1453 = vadd.f32 0.0, %v1452
        %v1454 = vpop.f32.mrb[0].mxu0
        %v1455 = vadd.f32 0.0, %v1454
        %v1456 = vpop.f32.mrb[0].mxu0
        %v1457 = vadd.f32 0.0, %v1456
        %v1458 = vpop.f32.mrb[0].mxu0
        %v1459 = vadd.f32 0.0, %v1458
        %1460 = vmatprep.mubr.bf16.mxu0 0
        %1461 = vmatmul.mubr.bf16.gmra.mrb[0].mxu0 %v1312
        %v1462 = vpop.f32.mrb[0].mxu0
        %v1463 = vadd.f32 0.0, %v1462
        %v1464 = vpop.f32.mrb[0].mxu0
        %v1465 = vadd.f32 0.0, %v1464
        %v1466 = vpop.f32.mrb[0].mxu0
        %v1467 = vadd.f32 0.0, %v1466
        %v1468 = vpop.f32.mrb[0].mxu0
        %v1469 = vadd.f32 0.0, %v1468
        %1470 = vmatprep.mubr.bf16.mxu0 0
        %1471 = vmatmul.mubr.bf16.gmra.mrb[0].mxu0 %v1315
        %v1472 = vpop.f32.mrb[0].mxu0
        %v1473 = vadd.f32 0.0, %v1472
        %v1474 = vpop.f32.mrb[0].mxu0
        %v1475 = vadd.f32 0.0, %v1474
        %v1476 = vpop.f32.mrb[0].mxu0
        %v1477 = vadd.f32 0.0, %v1476
        %v1478 = vpop.f32.mrb[0].mxu0
        %v1479 = vadd.f32 0.0, %v1478
        %1480 = vmatprep.mubr.bf16.mxu0 0
        %1481 = vmatmul.mubr.bf16.gmra.mrb[0].mxu0 %v1318
        %v1482 = vpop.f32.mrb[0].mxu0
        %v1483 = vadd.f32 0.0, %v1482
        %v1484 = vpop.f32.mrb[0].mxu0
        %v1485 = vadd.f32 0.0, %v1484
        %v1486 = vpop.f32.mrb[0].mxu0
        %v1487 = vadd.f32 0.0, %v1486
        %v1488 = vpop.f32.mrb[0].mxu0
        %v1489 = vadd.f32 0.0, %v1488
        %1490 = vmatprep.mubr.bf16.mxu0 0
        %1491 = vmatmul.mubr.bf16.gmra.mrb[0].mxu0 %v1321
        %v1492 = vpop.f32.mrb[0].mxu0
        %v1493 = vadd.f32 0.0, %v1492
        %v1494 = vpop.f32.mrb[0].mxu0
        %v1495 = vadd.f32 0.0, %v1494
        %v1496 = vpop.f32.mrb[0].mxu0
        %v1497 = vadd.f32 0.0, %v1496
        %v1498 = vpop.f32.mrb[0].mxu0
        %v1499 = vadd.f32 0.0, %v1498
        %1500 = vmatprep.mubr.bf16.mxu0 0
        %1501 = vmatmul.mubr.bf16.gmra.mrb[0].mxu0 %v1324
        %v1502 = vpop.f32.mrb[0].mxu0
        %v1503 = vadd.f32 0.0, %v1502
        %v1504 = vpop.f32.mrb[0].mxu0
        %v1505 = vadd.f32 0.0, %v1504
        %v1506 = vpop.f32.mrb[0].mxu0
        %v1507 = vadd.f32 0.0, %v1506
        %v1508 = vpop.f32.mrb[0].mxu0
        %v1509 = vadd.f32 0.0, %v1508
        %1510 = vmatprep.mubr.bf16.mxu0 0
        %1511 = vmatmul.mubr.bf16.gmra.mrb[0].mxu0 %v1327
        %v1512 = vpop.f32.mrb[0].mxu0
        %v1513 = vadd.f32 0.0, %v1512
        %v1514 = vpop.f32.mrb[0].mxu0
        %v1515 = vadd.f32 0.0, %v1514
        %v1516 = vpop.f32.mrb[0].mxu0
        %v1517 = vadd.f32 0.0, %v1516
        %v1518 = vpop.f32.mrb[0].mxu0
        %v1519 = vadd.f32 0.0, %v1518
        %1520 = vmatprep.mubr.bf16.mxu0 0
        %1521 = vmatmul.mubr.bf16.gmra.mrb[0].mxu0 %v1330
        %v1522 = vpop.f32.mrb[0].mxu0
        %v1523 = vadd.f32 0.0, %v1522
        %v1524 = vpop.f32.mrb[0].mxu0
        %v1525 = vadd.f32 0.0, %v1524
        %v1526 = vpop.f32.mrb[0].mxu0
        %v1527 = vadd.f32 0.0, %v1526
        %v1528 = vpop.f32.mrb[0].mxu0
        %v1529 = vadd.f32 0.0, %v1528
        %1530 = vdwg.mxu0
        %1531 = vxpose.xlu0.c.b16.start [1/8] %v682, 128
        %1532 = vxpose.xlu0.c.b16.cont [2/8] 0, 128
        %1533 = vxpose.xlu0.c.b16.cont [3/8] 0, 128
        %1534 = vxpose.xlu0.c.b16.cont [4/8] 0, 128
        %1535 = vxpose.xlu0.c.b16.cont [5/8] 0, 128
        %1536 = vxpose.xlu0.c.b16.cont [6/8] 0, 128
        %1537 = vxpose.xlu0.c.b16.cont [7/8] 0, 128
        %1538 = vxpose.xlu0.c.b16.end [8/8] 0, 128
        %v1539 = vpop.trf.xlu0
        %v1540 = vpop.trf.xlu0
        %v1541 = vpop.trf.xlu0
        %v1542 = vpop.trf.xlu0
        %v1543 = vpop.trf.xlu0
        %v1544 = vpop.trf.xlu0
        %v1545 = vpop.trf.xlu0
        %v1546 = vpop.trf.xlu0
        %1547 = vxpose.xlu0.c.b16.start [1/8] %v683, 128
        %1548 = vxpose.xlu0.c.b16.cont [2/8] 0, 128
        %1549 = vxpose.xlu0.c.b16.cont [3/8] 0, 128
        %1550 = vxpose.xlu0.c.b16.cont [4/8] 0, 128
        %1551 = vxpose.xlu0.c.b16.cont [5/8] 0, 128
        %1552 = vxpose.xlu0.c.b16.cont [6/8] 0, 128
        %1553 = vxpose.xlu0.c.b16.cont [7/8] 0, 128
        %1554 = vxpose.xlu0.c.b16.end [8/8] 0, 128
        %v1555 = vpop.trf.xlu0
        %v1556 = vpop.trf.xlu0
        %v1557 = vpop.trf.xlu0
        %v1558 = vpop.trf.xlu0
        %v1559 = vpop.trf.xlu0
        %v1560 = vpop.trf.xlu0
        %v1561 = vpop.trf.xlu0
        %v1562 = vpop.trf.xlu0
        %v1564 = vsel %vm724, %v1539, 0
        %v1567 = vsel %vm724, %v1540, 0
        %v1570 = vsel %vm724, %v1541, 0
        %v1573 = vsel %vm724, %v1542, 0
        %v1576 = vsel %vm724, %v1543, 0
        %v1579 = vsel %vm724, %v1544, 0
        %v1582 = vsel %vm724, %v1545, 0
        %v1585 = vsel %vm724, %v1546, 0
        %v1588 = vsel %vm724, %v1555, 0
        %v1591 = vsel %vm724, %v1556, 0
        %v1594 = vsel %vm724, %v1557, 0
        %v1597 = vsel %vm724, %v1558, 0
        %v1600 = vsel %vm724, %v1559, 0
        %v1603 = vsel %vm724, %v1560, 0
        %v1606 = vsel %vm724, %v1561, 0
        %v1609 = vsel %vm724, %v1562, 0
        %v1612 = vsel %vm773, %v674, 0
        %v1615 = vsel %vm773, %v675, 0
        %1617 = vmatprep.subr.bf16.mxu0 %v1615
        %1618 = vmatpush1.bf16.msra.mxu0 %v1612
        %1619 = vmatprep.subr.bf16.mxu0 0
        %1620 = vmatpush1.bf16.msra.mxu0 0
        %1621 = vmatprep.subr.bf16.mxu0 0
        %1622 = vmatpush1.bf16.msra.mxu0 0
        %1623 = vmatprep.subr.bf16.mxu0 0
        %1624 = vmatpush1.bf16.msra.mxu0 0
        %1625 = vmatprep.subr.bf16.mxu0 0
        %1626 = vmatpush1.bf16.msra.mxu0 0
        %1627 = vmatprep.subr.bf16.mxu0 0
        %1628 = vmatpush1.bf16.msra.mxu0 0
        %1629 = vmatprep.subr.bf16.mxu0 0
        %1630 = vmatpush1.bf16.msra.mxu0 0
        %1631 = vmatprep.subr.bf16.mxu0 0
        %1632 = vmatpush1.bf16.msra.mxu0 0
        %1633 = vmatprep.subr.bf16.mxu0 0
        %1634 = vmatpush1.bf16.msra.mxu0 0
        %1635 = vmatprep.subr.bf16.mxu0 0
        %1636 = vmatpush1.bf16.msra.mxu0 0
        %1637 = vmatprep.subr.bf16.mxu0 0
        %1638 = vmatpush1.bf16.msra.mxu0 0
        %1639 = vmatprep.subr.bf16.mxu0 0
        %1640 = vmatpush1.bf16.msra.mxu0 0
        %1641 = vmatprep.subr.bf16.mxu0 0
        %1642 = vmatpush1.bf16.msra.mxu0 0
        %1643 = vmatprep.subr.bf16.mxu0 0
        %1644 = vmatpush1.bf16.msra.mxu0 0
        %1645 = vmatprep.subr.bf16.mxu0 0
        %1646 = vmatpush1.bf16.msra.mxu0 0
        %1647 = vmatprep.subr.bf16.mxu0 0
        %1648 = vmatpush1.bf16.msra.mxu0 0
        %1649 = vmatprep.mubr.bf16.mxu0 0
        %1650 = vmatmul.mubr.bf16.gmra.mrb[0].mxu0 %v1564
        %v1651 = vpop.f32.mrb[0].mxu0
        %v1652 = vadd.f32 0.0, %v1651
        %v1653 = vpop.f32.mrb[0].mxu0
        %v1654 = vadd.f32 0.0, %v1653
        %v1655 = vpop.f32.mrb[0].mxu0
        %v1656 = vadd.f32 0.0, %v1655
        %v1657 = vpop.f32.mrb[0].mxu0
        %v1658 = vadd.f32 0.0, %v1657
        %1659 = vmatprep.mubr.bf16.mxu0 0
        %1660 = vmatmul.mubr.bf16.gmra.mrb[0].mxu0 %v1567
        %v1661 = vpop.f32.mrb[0].mxu0
        %v1662 = vadd.f32 0.0, %v1661
        %v1663 = vpop.f32.mrb[0].mxu0
        %v1664 = vadd.f32 0.0, %v1663
        %v1665 = vpop.f32.mrb[0].mxu0
        %v1666 = vadd.f32 0.0, %v1665
        %v1667 = vpop.f32.mrb[0].mxu0
        %v1668 = vadd.f32 0.0, %v1667
        %1669 = vmatprep.mubr.bf16.mxu0 0
        %1670 = vmatmul.mubr.bf16.gmra.mrb[0].mxu0 %v1570
        %v1671 = vpop.f32.mrb[0].mxu0
        %v1672 = vadd.f32 0.0, %v1671
        %v1673 = vpop.f32.mrb[0].mxu0
        %v1674 = vadd.f32 0.0, %v1673
        %v1675 = vpop.f32.mrb[0].mxu0
        %v1676 = vadd.f32 0.0, %v1675
        %v1677 = vpop.f32.mrb[0].mxu0
        %v1678 = vadd.f32 0.0, %v1677
        %1679 = vmatprep.mubr.bf16.mxu0 0
        %1680 = vmatmul.mubr.bf16.gmra.mrb[0].mxu0 %v1573
        %v1681 = vpop.f32.mrb[0].mxu0
        %v1682 = vadd.f32 0.0, %v1681
        %v1683 = vpop.f32.mrb[0].mxu0
        %v1684 = vadd.f32 0.0, %v1683
        %v1685 = vpop.f32.mrb[0].mxu0
        %v1686 = vadd.f32 0.0, %v1685
        %v1687 = vpop.f32.mrb[0].mxu0
        %v1688 = vadd.f32 0.0, %v1687
        %1689 = vmatprep.mubr.bf16.mxu0 0
        %1690 = vmatmul.mubr.bf16.gmra.mrb[0].mxu0 %v1576
        %v1691 = vpop.f32.mrb[0].mxu0
        %v1692 = vadd.f32 0.0, %v1691
        %v1693 = vpop.f32.mrb[0].mxu0
        %v1694 = vadd.f32 0.0, %v1693
        %v1695 = vpop.f32.mrb[0].mxu0
        %v1696 = vadd.f32 0.0, %v1695
        %v1697 = vpop.f32.mrb[0].mxu0
        %v1698 = vadd.f32 0.0, %v1697
        %1699 = vmatprep.mubr.bf16.mxu0 0
        %1700 = vmatmul.mubr.bf16.gmra.mrb[0].mxu0 %v1579
        %v1701 = vpop.f32.mrb[0].mxu0
        %v1702 = vadd.f32 0.0, %v1701
        %v1703 = vpop.f32.mrb[0].mxu0
        %v1704 = vadd.f32 0.0, %v1703
        %v1705 = vpop.f32.mrb[0].mxu0
        %v1706 = vadd.f32 0.0, %v1705
        %v1707 = vpop.f32.mrb[0].mxu0
        %v1708 = vadd.f32 0.0, %v1707
        %1709 = vmatprep.mubr.bf16.mxu0 0
        %1710 = vmatmul.mubr.bf16.gmra.mrb[0].mxu0 %v1582
        %v1711 = vpop.f32.mrb[0].mxu0
        %v1712 = vadd.f32 0.0, %v1711
        %v1713 = vpop.f32.mrb[0].mxu0
        %v1714 = vadd.f32 0.0, %v1713
        %v1715 = vpop.f32.mrb[0].mxu0
        %v1716 = vadd.f32 0.0, %v1715
        %v1717 = vpop.f32.mrb[0].mxu0
        %v1718 = vadd.f32 0.0, %v1717
        %1719 = vmatprep.mubr.bf16.mxu0 0
        %1720 = vmatmul.mubr.bf16.gmra.mrb[0].mxu0 %v1585
        %v1721 = vpop.f32.mrb[0].mxu0
        %v1722 = vadd.f32 0.0, %v1721
        %v1723 = vpop.f32.mrb[0].mxu0
        %v1724 = vadd.f32 0.0, %v1723
        %v1725 = vpop.f32.mrb[0].mxu0
        %v1726 = vadd.f32 0.0, %v1725
        %v1727 = vpop.f32.mrb[0].mxu0
        %v1728 = vadd.f32 0.0, %v1727
        %1729 = vmatprep.mubr.bf16.mxu0 0
        %1730 = vmatmul.mubr.bf16.gmra.mrb[0].mxu0 %v1588
        %v1731 = vpop.f32.mrb[0].mxu0
        %v1732 = vadd.f32 0.0, %v1731
        %v1733 = vpop.f32.mrb[0].mxu0
        %v1734 = vadd.f32 0.0, %v1733
        %v1735 = vpop.f32.mrb[0].mxu0
        %v1736 = vadd.f32 0.0, %v1735
        %v1737 = vpop.f32.mrb[0].mxu0
        %v1738 = vadd.f32 0.0, %v1737
        %1739 = vmatprep.mubr.bf16.mxu0 0
        %1740 = vmatmul.mubr.bf16.gmra.mrb[0].mxu0 %v1591
        %v1741 = vpop.f32.mrb[0].mxu0
        %v1742 = vadd.f32 0.0, %v1741
        %v1743 = vpop.f32.mrb[0].mxu0
        %v1744 = vadd.f32 0.0, %v1743
        %v1745 = vpop.f32.mrb[0].mxu0
        %v1746 = vadd.f32 0.0, %v1745
        %v1747 = vpop.f32.mrb[0].mxu0
        %v1748 = vadd.f32 0.0, %v1747
        %1749 = vmatprep.mubr.bf16.mxu0 0
        %1750 = vmatmul.mubr.bf16.gmra.mrb[0].mxu0 %v1594
        %v1751 = vpop.f32.mrb[0].mxu0
        %v1752 = vadd.f32 0.0, %v1751
        %v1753 = vpop.f32.mrb[0].mxu0
        %v1754 = vadd.f32 0.0, %v1753
        %v1755 = vpop.f32.mrb[0].mxu0
        %v1756 = vadd.f32 0.0, %v1755
        %v1757 = vpop.f32.mrb[0].mxu0
        %v1758 = vadd.f32 0.0, %v1757
        %1759 = vmatprep.mubr.bf16.mxu0 0
        %1760 = vmatmul.mubr.bf16.gmra.mrb[0].mxu0 %v1597
        %v1761 = vpop.f32.mrb[0].mxu0
        %v1762 = vadd.f32 0.0, %v1761
        %v1763 = vpop.f32.mrb[0].mxu0
        %v1764 = vadd.f32 0.0, %v1763
        %v1765 = vpop.f32.mrb[0].mxu0
        %v1766 = vadd.f32 0.0, %v1765
        %v1767 = vpop.f32.mrb[0].mxu0
        %v1768 = vadd.f32 0.0, %v1767
        %1769 = vmatprep.mubr.bf16.mxu0 0
        %1770 = vmatmul.mubr.bf16.gmra.mrb[0].mxu0 %v1600
        %v1771 = vpop.f32.mrb[0].mxu0
        %v1772 = vadd.f32 0.0, %v1771
        %v1773 = vpop.f32.mrb[0].mxu0
        %v1774 = vadd.f32 0.0, %v1773
        %v1775 = vpop.f32.mrb[0].mxu0
        %v1776 = vadd.f32 0.0, %v1775
        %v1777 = vpop.f32.mrb[0].mxu0
        %v1778 = vadd.f32 0.0, %v1777
        %1779 = vmatprep.mubr.bf16.mxu0 0
        %1780 = vmatmul.mubr.bf16.gmra.mrb[0].mxu0 %v1603
        %v1781 = vpop.f32.mrb[0].mxu0
        %v1782 = vadd.f32 0.0, %v1781
        %v1783 = vpop.f32.mrb[0].mxu0
        %v1784 = vadd.f32 0.0, %v1783
        %v1785 = vpop.f32.mrb[0].mxu0
        %v1786 = vadd.f32 0.0, %v1785
        %v1787 = vpop.f32.mrb[0].mxu0
        %v1788 = vadd.f32 0.0, %v1787
        %1789 = vmatprep.mubr.bf16.mxu0 0
        %1790 = vmatmul.mubr.bf16.gmra.mrb[0].mxu0 %v1606
        %v1791 = vpop.f32.mrb[0].mxu0
        %v1792 = vadd.f32 0.0, %v1791
        %v1793 = vpop.f32.mrb[0].mxu0
        %v1794 = vadd.f32 0.0, %v1793
        %v1795 = vpop.f32.mrb[0].mxu0
        %v1796 = vadd.f32 0.0, %v1795
        %v1797 = vpop.f32.mrb[0].mxu0
        %v1798 = vadd.f32 0.0, %v1797
        %1799 = vmatprep.mubr.bf16.mxu0 0
        %1800 = vmatmul.mubr.bf16.gmra.mrb[0].mxu0 %v1609
        %v1801 = vpop.f32.mrb[0].mxu0
        %v1802 = vadd.f32 0.0, %v1801
        %v1803 = vpop.f32.mrb[0].mxu0
        %v1804 = vadd.f32 0.0, %v1803
        %v1805 = vpop.f32.mrb[0].mxu0
        %v1806 = vadd.f32 0.0, %v1805
        %v1807 = vpop.f32.mrb[0].mxu0
        %v1808 = vadd.f32 0.0, %v1807
        %1809 = vdwg.mxu0
        %v1810 = vmax.f32 %v815, %v819
        %v1811 = vmax.f32 %v1810, %v825
        %v1812 = vmax.f32 %v1811, %v829
        %v1813 = vmax.f32 %v1812, %v835
        %v1814 = vmax.f32 %v1813, %v839
        %v1815 = vmax.f32 %v1814, %v845
        %v1816 = vmax.f32 %v1815, %v849
        %v1817 = vmax.f32 %v1816, %v855
        %v1818 = vmax.f32 %v1817, %v859
        %v1819 = vmax.f32 %v1818, %v865
        %v1820 = vmax.f32 %v1819, %v869
        %v1821 = vmax.f32 %v1820, %v875
        %v1822 = vmax.f32 %v1821, %v879
        %v1823 = vmax.f32 %v1822, %v885
        %v1824 = vmax.f32 %v1823, %v889
        %v1825 = vmax.f32 %v1824, %v895
        %v1826 = vmax.f32 %v1825, %v899
        %v1827 = vmax.f32 %v1826, %v905
        %v1828 = vmax.f32 %v1827, %v909
        %v1829 = vmax.f32 %v1828, %v915
        %v1830 = vmax.f32 %v1829, %v919
        %v1831 = vmax.f32 %v1830, %v925
        %v1832 = vmax.f32 %v1831, %v929
        %v1833 = vmax.f32 %v1832, %v935
        %v1834 = vmax.f32 %v1833, %v939
        %v1835 = vmax.f32 %v1834, %v945
        %v1836 = vmax.f32 %v1835, %v949
        %v1837 = vmax.f32 %v1836, %v955
        %v1838 = vmax.f32 %v1837, %v959
        %v1839 = vmax.f32 %v1838, %v965
        %v1840 = vmax.f32 %v1839, %v969
        %v1841 = vrot.slane %v1840, 4
        %v1842 = vmax.f32 %v1840, %v1841
        %v1843 = vrot.slane %v1842, 2
        %v1844 = vmax.f32 %v1842, %v1843
        %v1845 = vrot.slane %v1844, 1
        %v1846 = vmax.f32 %v1844, %v1845
        %v1847 = vmax.f32 %v817, %v821
        %v1848 = vmax.f32 %v1847, %v827
        %v1849 = vmax.f32 %v1848, %v831
        %v1850 = vmax.f32 %v1849, %v837
        %v1851 = vmax.f32 %v1850, %v841
        %v1852 = vmax.f32 %v1851, %v847
        %v1853 = vmax.f32 %v1852, %v851
        %v1854 = vmax.f32 %v1853, %v857
        %v1855 = vmax.f32 %v1854, %v861
        %v1856 = vmax.f32 %v1855, %v867
        %v1857 = vmax.f32 %v1856, %v871
        %v1858 = vmax.f32 %v1857, %v877
        %v1859 = vmax.f32 %v1858, %v881
        %v1860 = vmax.f32 %v1859, %v887
        %v1861 = vmax.f32 %v1860, %v891
        %v1862 = vmax.f32 %v1861, %v897
        %v1863 = vmax.f32 %v1862, %v901
        %v1864 = vmax.f32 %v1863, %v907
        %v1865 = vmax.f32 %v1864, %v911
        %v1866 = vmax.f32 %v1865, %v917
        %v1867 = vmax.f32 %v1866, %v921
        %v1868 = vmax.f32 %v1867, %v927
        %v1869 = vmax.f32 %v1868, %v931
        %v1870 = vmax.f32 %v1869, %v937
        %v1871 = vmax.f32 %v1870, %v941
        %v1872 = vmax.f32 %v1871, %v947
        %v1873 = vmax.f32 %v1872, %v951
        %v1874 = vmax.f32 %v1873, %v957
        %v1875 = vmax.f32 %v1874, %v961
        %v1876 = vmax.f32 %v1875, %v967
        %v1877 = vmax.f32 %v1876, %v971
        %v1878 = vrot.slane %v1877, 4
        %v1879 = vmax.f32 %v1877, %v1878
        %v1880 = vrot.slane %v1879, 2
        %v1881 = vmax.f32 %v1879, %v1880
        %v1882 = vrot.slane %v1881, 1
        %v1883 = vmax.f32 %v1881, %v1882
        %v1884 = vmax.f32 %v1094, %v1098
        %v1885 = vmax.f32 %v1884, %v1104
        %v1886 = vmax.f32 %v1885, %v1108
        %v1887 = vmax.f32 %v1886, %v1114
        %v1888 = vmax.f32 %v1887, %v1118
        %v1889 = vmax.f32 %v1888, %v1124
        %v1890 = vmax.f32 %v1889, %v1128
        %v1891 = vmax.f32 %v1890, %v1134
        %v1892 = vmax.f32 %v1891, %v1138
        %v1893 = vmax.f32 %v1892, %v1144
        %v1894 = vmax.f32 %v1893, %v1148
        %v1895 = vmax.f32 %v1894, %v1154
        %v1896 = vmax.f32 %v1895, %v1158
        %v1897 = vmax.f32 %v1896, %v1164
        %v1898 = vmax.f32 %v1897, %v1168
        %v1899 = vmax.f32 %v1898, %v1174
        %v1900 = vmax.f32 %v1899, %v1178
        %v1901 = vmax.f32 %v1900, %v1184
        %v1902 = vmax.f32 %v1901, %v1188
        %v1903 = vmax.f32 %v1902, %v1194
        %v1904 = vmax.f32 %v1903, %v1198
        %v1905 = vmax.f32 %v1904, %v1204
        %v1906 = vmax.f32 %v1905, %v1208
        %v1907 = vmax.f32 %v1906, %v1214
        %v1908 = vmax.f32 %v1907, %v1218
        %v1909 = vmax.f32 %v1908, %v1224
        %v1910 = vmax.f32 %v1909, %v1228
        %v1911 = vmax.f32 %v1910, %v1234
        %v1912 = vmax.f32 %v1911, %v1238
        %v1913 = vmax.f32 %v1912, %v1244
        %v1914 = vmax.f32 %v1913, %v1248
        %v1915 = vrot.slane %v1914, 4
        %v1916 = vmax.f32 %v1914, %v1915
        %v1917 = vrot.slane %v1916, 2
        %v1918 = vmax.f32 %v1916, %v1917
        %v1919 = vrot.slane %v1918, 1
        %v1920 = vmax.f32 %v1918, %v1919
        %v1921 = vmax.f32 %v1096, %v1100
        %v1922 = vmax.f32 %v1921, %v1106
        %v1923 = vmax.f32 %v1922, %v1110
        %v1924 = vmax.f32 %v1923, %v1116
        %v1925 = vmax.f32 %v1924, %v1120
        %v1926 = vmax.f32 %v1925, %v1126
        %v1927 = vmax.f32 %v1926, %v1130
        %v1928 = vmax.f32 %v1927, %v1136
        %v1929 = vmax.f32 %v1928, %v1140
        %v1930 = vmax.f32 %v1929, %v1146
        %v1931 = vmax.f32 %v1930, %v1150
        %v1932 = vmax.f32 %v1931, %v1156
        %v1933 = vmax.f32 %v1932, %v1160
        %v1934 = vmax.f32 %v1933, %v1166
        %v1935 = vmax.f32 %v1934, %v1170
        %v1936 = vmax.f32 %v1935, %v1176
        %v1937 = vmax.f32 %v1936, %v1180
        %v1938 = vmax.f32 %v1937, %v1186
        %v1939 = vmax.f32 %v1938, %v1190
        %v1940 = vmax.f32 %v1939, %v1196
        %v1941 = vmax.f32 %v1940, %v1200
        %v1942 = vmax.f32 %v1941, %v1206
        %v1943 = vmax.f32 %v1942, %v1210
        %v1944 = vmax.f32 %v1943, %v1216
        %v1945 = vmax.f32 %v1944, %v1220
        %v1946 = vmax.f32 %v1945, %v1226
        %v1947 = vmax.f32 %v1946, %v1230
        %v1948 = vmax.f32 %v1947, %v1236
        %v1949 = vmax.f32 %v1948, %v1240
        %v1950 = vmax.f32 %v1949, %v1246
        %v1951 = vmax.f32 %v1950, %v1250
        %v1952 = vrot.slane %v1951, 4
        %v1953 = vmax.f32 %v1951, %v1952
        %v1954 = vrot.slane %v1953, 2
        %v1955 = vmax.f32 %v1953, %v1954
        %v1956 = vrot.slane %v1955, 1
        %v1957 = vmax.f32 %v1955, %v1956
        %v1958 = vmax.f32 %v1373, %v1377
        %v1959 = vmax.f32 %v1958, %v1383
        %v1960 = vmax.f32 %v1959, %v1387
        %v1961 = vmax.f32 %v1960, %v1393
        %v1962 = vmax.f32 %v1961, %v1397
        %v1963 = vmax.f32 %v1962, %v1403
        %v1964 = vmax.f32 %v1963, %v1407
        %v1965 = vmax.f32 %v1964, %v1413
        %v1966 = vmax.f32 %v1965, %v1417
        %v1967 = vmax.f32 %v1966, %v1423
        %v1968 = vmax.f32 %v1967, %v1427
        %v1969 = vmax.f32 %v1968, %v1433
        %v1970 = vmax.f32 %v1969, %v1437
        %v1971 = vmax.f32 %v1970, %v1443
        %v1972 = vmax.f32 %v1971, %v1447
        %v1973 = vmax.f32 %v1972, %v1453
        %v1974 = vmax.f32 %v1973, %v1457
        %v1975 = vmax.f32 %v1974, %v1463
        %v1976 = vmax.f32 %v1975, %v1467
        %v1977 = vmax.f32 %v1976, %v1473
        %v1978 = vmax.f32 %v1977, %v1477
        %v1979 = vmax.f32 %v1978, %v1483
        %v1980 = vmax.f32 %v1979, %v1487
        %v1981 = vmax.f32 %v1980, %v1493
        %v1982 = vmax.f32 %v1981, %v1497
        %v1983 = vmax.f32 %v1982, %v1503
        %v1984 = vmax.f32 %v1983, %v1507
        %v1985 = vmax.f32 %v1984, %v1513
        %v1986 = vmax.f32 %v1985, %v1517
        %v1987 = vmax.f32 %v1986, %v1523
        %v1988 = vmax.f32 %v1987, %v1527
        %v1989 = vrot.slane %v1988, 4
        %v1990 = vmax.f32 %v1988, %v1989
        %v1991 = vrot.slane %v1990, 2
        %v1992 = vmax.f32 %v1990, %v1991
        %v1993 = vrot.slane %v1992, 1
        %v1994 = vmax.f32 %v1992, %v1993
        %v1995 = vmax.f32 %v1375, %v1379
        %v1996 = vmax.f32 %v1995, %v1385
        %v1997 = vmax.f32 %v1996, %v1389
        %v1998 = vmax.f32 %v1997, %v1395
        %v1999 = vmax.f32 %v1998, %v1399
        %v2000 = vmax.f32 %v1999, %v1405
        %v2001 = vmax.f32 %v2000, %v1409
        %v2002 = vmax.f32 %v2001, %v1415
        %v2003 = vmax.f32 %v2002, %v1419
        %v2004 = vmax.f32 %v2003, %v1425
        %v2005 = vmax.f32 %v2004, %v1429
        %v2006 = vmax.f32 %v2005, %v1435
        %v2007 = vmax.f32 %v2006, %v1439
        %v2008 = vmax.f32 %v2007, %v1445
        %v2009 = vmax.f32 %v2008, %v1449
        %v2010 = vmax.f32 %v2009, %v1455
        %v2011 = vmax.f32 %v2010, %v1459
        %v2012 = vmax.f32 %v2011, %v1465
        %v2013 = vmax.f32 %v2012, %v1469
        %v2014 = vmax.f32 %v2013, %v1475
        %v2015 = vmax.f32 %v2014, %v1479
        %v2016 = vmax.f32 %v2015, %v1485
        %v2017 = vmax.f32 %v2016, %v1489
        %v2018 = vmax.f32 %v2017, %v1495
        %v2019 = vmax.f32 %v2018, %v1499
        %v2020 = vmax.f32 %v2019, %v1505
        %v2021 = vmax.f32 %v2020, %v1509
        %v2022 = vmax.f32 %v2021, %v1515
        %v2023 = vmax.f32 %v2022, %v1519
        %v2024 = vmax.f32 %v2023, %v1525
        %v2025 = vmax.f32 %v2024, %v1529
        %v2026 = vrot.slane %v2025, 4
        %v2027 = vmax.f32 %v2025, %v2026
        %v2028 = vrot.slane %v2027, 2
        %v2029 = vmax.f32 %v2027, %v2028
        %v2030 = vrot.slane %v2029, 1
        %v2031 = vmax.f32 %v2029, %v2030
        %v2032 = vmax.f32 %v1652, %v1656
        %v2033 = vmax.f32 %v2032, %v1662
        %v2034 = vmax.f32 %v2033, %v1666
        %v2035 = vmax.f32 %v2034, %v1672
        %v2036 = vmax.f32 %v2035, %v1676
        %v2037 = vmax.f32 %v2036, %v1682
        %v2038 = vmax.f32 %v2037, %v1686
        %v2039 = vmax.f32 %v2038, %v1692
        %v2040 = vmax.f32 %v2039, %v1696
        %v2041 = vmax.f32 %v2040, %v1702
        %v2042 = vmax.f32 %v2041, %v1706
        %v2043 = vmax.f32 %v2042, %v1712
        %v2044 = vmax.f32 %v2043, %v1716
        %v2045 = vmax.f32 %v2044, %v1722
        %v2046 = vmax.f32 %v2045, %v1726
        %v2047 = vmax.f32 %v2046, %v1732
        %v2048 = vmax.f32 %v2047, %v1736
        %v2049 = vmax.f32 %v2048, %v1742
        %v2050 = vmax.f32 %v2049, %v1746
        %v2051 = vmax.f32 %v2050, %v1752
        %v2052 = vmax.f32 %v2051, %v1756
        %v2053 = vmax.f32 %v2052, %v1762
        %v2054 = vmax.f32 %v2053, %v1766
        %v2055 = vmax.f32 %v2054, %v1772
        %v2056 = vmax.f32 %v2055, %v1776
        %v2057 = vmax.f32 %v2056, %v1782
        %v2058 = vmax.f32 %v2057, %v1786
        %v2059 = vmax.f32 %v2058, %v1792
        %v2060 = vmax.f32 %v2059, %v1796
        %v2061 = vmax.f32 %v2060, %v1802
        %v2062 = vmax.f32 %v2061, %v1806
        %v2063 = vrot.slane %v2062, 4
        %v2064 = vmax.f32 %v2062, %v2063
        %v2065 = vrot.slane %v2064, 2
        %v2066 = vmax.f32 %v2064, %v2065
        %v2067 = vrot.slane %v2066, 1
        %v2068 = vmax.f32 %v2066, %v2067
        %v2069 = vmax.f32 %v1654, %v1658
        %v2070 = vmax.f32 %v2069, %v1664
        %v2071 = vmax.f32 %v2070, %v1668
        %v2072 = vmax.f32 %v2071, %v1674
        %v2073 = vmax.f32 %v2072, %v1678
        %v2074 = vmax.f32 %v2073, %v1684
        %v2075 = vmax.f32 %v2074, %v1688
        %v2076 = vmax.f32 %v2075, %v1694
        %v2077 = vmax.f32 %v2076, %v1698
        %v2078 = vmax.f32 %v2077, %v1704
        %v2079 = vmax.f32 %v2078, %v1708
        %v2080 = vmax.f32 %v2079, %v1714
        %v2081 = vmax.f32 %v2080, %v1718
        %v2082 = vmax.f32 %v2081, %v1724
        %v2083 = vmax.f32 %v2082, %v1728
        %v2084 = vmax.f32 %v2083, %v1734
        %v2085 = vmax.f32 %v2084, %v1738
        %v2086 = vmax.f32 %v2085, %v1744
        %v2087 = vmax.f32 %v2086, %v1748
        %v2088 = vmax.f32 %v2087, %v1754
        %v2089 = vmax.f32 %v2088, %v1758
        %v2090 = vmax.f32 %v2089, %v1764
        %v2091 = vmax.f32 %v2090, %v1768
        %v2092 = vmax.f32 %v2091, %v1774
        %v2093 = vmax.f32 %v2092, %v1778
        %v2094 = vmax.f32 %v2093, %v1784
        %v2095 = vmax.f32 %v2094, %v1788
        %v2096 = vmax.f32 %v2095, %v1794
        %v2097 = vmax.f32 %v2096, %v1798
        %v2098 = vmax.f32 %v2097, %v1804
        %v2099 = vmax.f32 %v2098, %v1808
        %v2100 = vrot.slane %v2099, 4
        %v2101 = vmax.f32 %v2099, %v2100
        %v2102 = vrot.slane %v2101, 2
        %v2103 = vmax.f32 %v2101, %v2102
        %v2104 = vrot.slane %v2103, 1
        %v2105 = vmax.f32 %v2103, %v2104
        %v2106 = vsub.f32 %v815, %v1846
        %v2107 = vsub.f32 %v817, %v1883
        %v2108 = vsub.f32 %v819, %v1846
        %v2109 = vsub.f32 %v821, %v1883
        %v2110 = vsub.f32 %v825, %v1846
        %v2111 = vsub.f32 %v827, %v1883
        %v2112 = vsub.f32 %v829, %v1846
        %v2113 = vsub.f32 %v831, %v1883
        %v2114 = vsub.f32 %v835, %v1846
        %v2115 = vsub.f32 %v837, %v1883
        %v2116 = vsub.f32 %v839, %v1846
        %v2117 = vsub.f32 %v841, %v1883
        %v2118 = vsub.f32 %v845, %v1846
        %v2119 = vsub.f32 %v847, %v1883
        %v2120 = vsub.f32 %v849, %v1846
        %v2121 = vsub.f32 %v851, %v1883
        %v2122 = vsub.f32 %v855, %v1846
        %v2123 = vsub.f32 %v857, %v1883
        %v2124 = vsub.f32 %v859, %v1846
        %v2125 = vsub.f32 %v861, %v1883
        %v2126 = vsub.f32 %v865, %v1846
        %v2127 = vsub.f32 %v867, %v1883
        %v2128 = vsub.f32 %v869, %v1846
        %v2129 = vsub.f32 %v871, %v1883
        %v2130 = vsub.f32 %v875, %v1846
        %v2131 = vsub.f32 %v877, %v1883
        %v2132 = vsub.f32 %v879, %v1846
        %v2133 = vsub.f32 %v881, %v1883
        %v2134 = vsub.f32 %v885, %v1846
        %v2135 = vsub.f32 %v887, %v1883
        %v2136 = vsub.f32 %v889, %v1846
        %v2137 = vsub.f32 %v891, %v1883
        %v2138 = vsub.f32 %v895, %v1846
        %v2139 = vsub.f32 %v897, %v1883
        %v2140 = vsub.f32 %v899, %v1846
        %v2141 = vsub.f32 %v901, %v1883
        %v2142 = vsub.f32 %v905, %v1846
        %v2143 = vsub.f32 %v907, %v1883
        %v2144 = vsub.f32 %v909, %v1846
        %v2145 = vsub.f32 %v911, %v1883
        %v2146 = vsub.f32 %v915, %v1846
        %v2147 = vsub.f32 %v917, %v1883
        %v2148 = vsub.f32 %v919, %v1846
        %v2149 = vsub.f32 %v921, %v1883
        %v2150 = vsub.f32 %v925, %v1846
        %v2151 = vsub.f32 %v927, %v1883
        %v2152 = vsub.f32 %v929, %v1846
        %v2153 = vsub.f32 %v931, %v1883
        %v2154 = vsub.f32 %v935, %v1846
        %v2155 = vsub.f32 %v937, %v1883
        %v2156 = vsub.f32 %v939, %v1846
        %v2157 = vsub.f32 %v941, %v1883
        %v2158 = vsub.f32 %v945, %v1846
        %v2159 = vsub.f32 %v947, %v1883
        %v2160 = vsub.f32 %v949, %v1846
        %v2161 = vsub.f32 %v951, %v1883
        %v2162 = vsub.f32 %v955, %v1846
        %v2163 = vsub.f32 %v957, %v1883
        %v2164 = vsub.f32 %v959, %v1846
        %v2165 = vsub.f32 %v961, %v1883
        %v2166 = vsub.f32 %v965, %v1846
        %v2167 = vsub.f32 %v967, %v1883
        %v2168 = vsub.f32 %v969, %v1846
        %v2169 = vsub.f32 %v971, %v1883
        %v2170 = vsub.f32 %v1094, %v1920
        %v2171 = vsub.f32 %v1096, %v1957
        %v2172 = vsub.f32 %v1098, %v1920
        %v2173 = vsub.f32 %v1100, %v1957
        %v2174 = vsub.f32 %v1104, %v1920
        %v2175 = vsub.f32 %v1106, %v1957
        %v2176 = vsub.f32 %v1108, %v1920
        %v2177 = vsub.f32 %v1110, %v1957
        %v2178 = vsub.f32 %v1114, %v1920
        %v2179 = vsub.f32 %v1116, %v1957
        %v2180 = vsub.f32 %v1118, %v1920
        %v2181 = vsub.f32 %v1120, %v1957
        %v2182 = vsub.f32 %v1124, %v1920
        %v2183 = vsub.f32 %v1126, %v1957
        %v2184 = vsub.f32 %v1128, %v1920
        %v2185 = vsub.f32 %v1130, %v1957
        %v2186 = vsub.f32 %v1134, %v1920
        %v2187 = vsub.f32 %v1136, %v1957
        %v2188 = vsub.f32 %v1138, %v1920
        %v2189 = vsub.f32 %v1140, %v1957
        %v2190 = vsub.f32 %v1144, %v1920
        %v2191 = vsub.f32 %v1146, %v1957
        %v2192 = vsub.f32 %v1148, %v1920
        %v2193 = vsub.f32 %v1150, %v1957
        %v2194 = vsub.f32 %v1154, %v1920
        %v2195 = vsub.f32 %v1156, %v1957
        %v2196 = vsub.f32 %v1158, %v1920
        %v2197 = vsub.f32 %v1160, %v1957
        %v2198 = vsub.f32 %v1164, %v1920
        %v2199 = vsub.f32 %v1166, %v1957
        %v2200 = vsub.f32 %v1168, %v1920
        %v2201 = vsub.f32 %v1170, %v1957
        %v2202 = vsub.f32 %v1174, %v1920
        %v2203 = vsub.f32 %v1176, %v1957
        %v2204 = vsub.f32 %v1178, %v1920
        %v2205 = vsub.f32 %v1180, %v1957
        %v2206 = vsub.f32 %v1184, %v1920
        %v2207 = vsub.f32 %v1186, %v1957
        %v2208 = vsub.f32 %v1188, %v1920
        %v2209 = vsub.f32 %v1190, %v1957
        %v2210 = vsub.f32 %v1194, %v1920
        %v2211 = vsub.f32 %v1196, %v1957
        %v2212 = vsub.f32 %v1198, %v1920
        %v2213 = vsub.f32 %v1200, %v1957
        %v2214 = vsub.f32 %v1204, %v1920
        %v2215 = vsub.f32 %v1206, %v1957
        %v2216 = vsub.f32 %v1208, %v1920
        %v2217 = vsub.f32 %v1210, %v1957
        %v2218 = vsub.f32 %v1214, %v1920
        %v2219 = vsub.f32 %v1216, %v1957
        %v2220 = vsub.f32 %v1218, %v1920
        %v2221 = vsub.f32 %v1220, %v1957
        %v2222 = vsub.f32 %v1224, %v1920
        %v2223 = vsub.f32 %v1226, %v1957
        %v2224 = vsub.f32 %v1228, %v1920
        %v2225 = vsub.f32 %v1230, %v1957
        %v2226 = vsub.f32 %v1234, %v1920
        %v2227 = vsub.f32 %v1236, %v1957
        %v2228 = vsub.f32 %v1238, %v1920
        %v2229 = vsub.f32 %v1240, %v1957
        %v2230 = vsub.f32 %v1244, %v1920
        %v2231 = vsub.f32 %v1246, %v1957
        %v2232 = vsub.f32 %v1248, %v1920
        %v2233 = vsub.f32 %v1250, %v1957
        %v2234 = vsub.f32 %v1373, %v1994
        %v2235 = vsub.f32 %v1375, %v2031
        %v2236 = vsub.f32 %v1377, %v1994
        %v2237 = vsub.f32 %v1379, %v2031
        %v2238 = vsub.f32 %v1383, %v1994
        %v2239 = vsub.f32 %v1385, %v2031
        %v2240 = vsub.f32 %v1387, %v1994
        %v2241 = vsub.f32 %v1389, %v2031
        %v2242 = vsub.f32 %v1393, %v1994
        %v2243 = vsub.f32 %v1395, %v2031
        %v2244 = vsub.f32 %v1397, %v1994
        %v2245 = vsub.f32 %v1399, %v2031
        %v2246 = vsub.f32 %v1403, %v1994
        %v2247 = vsub.f32 %v1405, %v2031
        %v2248 = vsub.f32 %v1407, %v1994
        %v2249 = vsub.f32 %v1409, %v2031
        %v2250 = vsub.f32 %v1413, %v1994
        %v2251 = vsub.f32 %v1415, %v2031
        %v2252 = vsub.f32 %v1417, %v1994
        %v2253 = vsub.f32 %v1419, %v2031
        %v2254 = vsub.f32 %v1423, %v1994
        %v2255 = vsub.f32 %v1425, %v2031
        %v2256 = vsub.f32 %v1427, %v1994
        %v2257 = vsub.f32 %v1429, %v2031
        %v2258 = vsub.f32 %v1433, %v1994
        %v2259 = vsub.f32 %v1435, %v2031
        %v2260 = vsub.f32 %v1437, %v1994
        %v2261 = vsub.f32 %v1439, %v2031
        %v2262 = vsub.f32 %v1443, %v1994
        %v2263 = vsub.f32 %v1445, %v2031
        %v2264 = vsub.f32 %v1447, %v1994
        %v2265 = vsub.f32 %v1449, %v2031
        %v2266 = vsub.f32 %v1453, %v1994
        %v2267 = vsub.f32 %v1455, %v2031
        %v2268 = vsub.f32 %v1457, %v1994
        %v2269 = vsub.f32 %v1459, %v2031
        %v2270 = vsub.f32 %v1463, %v1994
        %v2271 = vsub.f32 %v1465, %v2031
        %v2272 = vsub.f32 %v1467, %v1994
        %v2273 = vsub.f32 %v1469, %v2031
        %v2274 = vsub.f32 %v1473, %v1994
        %v2275 = vsub.f32 %v1475, %v2031
        %v2276 = vsub.f32 %v1477, %v1994
        %v2277 = vsub.f32 %v1479, %v2031
        %v2278 = vsub.f32 %v1483, %v1994
        %v2279 = vsub.f32 %v1485, %v2031
        %v2280 = vsub.f32 %v1487, %v1994
        %v2281 = vsub.f32 %v1489, %v2031
        %v2282 = vsub.f32 %v1493, %v1994
        %v2283 = vsub.f32 %v1495, %v2031
        %v2284 = vsub.f32 %v1497, %v1994
        %v2285 = vsub.f32 %v1499, %v2031
        %v2286 = vsub.f32 %v1503, %v1994
        %v2287 = vsub.f32 %v1505, %v2031
        %v2288 = vsub.f32 %v1507, %v1994
        %v2289 = vsub.f32 %v1509, %v2031
        %v2290 = vsub.f32 %v1513, %v1994
        %v2291 = vsub.f32 %v1515, %v2031
        %v2292 = vsub.f32 %v1517, %v1994
        %v2293 = vsub.f32 %v1519, %v2031
        %v2294 = vsub.f32 %v1523, %v1994
        %v2295 = vsub.f32 %v1525, %v2031
        %v2296 = vsub.f32 %v1527, %v1994
        %v2297 = vsub.f32 %v1529, %v2031
        %v2298 = vsub.f32 %v1652, %v2068
        %v2299 = vsub.f32 %v1654, %v2105
        %v2300 = vsub.f32 %v1656, %v2068
        %v2301 = vsub.f32 %v1658, %v2105
        %v2302 = vsub.f32 %v1662, %v2068
        %v2303 = vsub.f32 %v1664, %v2105
        %v2304 = vsub.f32 %v1666, %v2068
        %v2305 = vsub.f32 %v1668, %v2105
        %v2306 = vsub.f32 %v1672, %v2068
        %v2307 = vsub.f32 %v1674, %v2105
        %v2308 = vsub.f32 %v1676, %v2068
        %v2309 = vsub.f32 %v1678, %v2105
        %v2310 = vsub.f32 %v1682, %v2068
        %v2311 = vsub.f32 %v1684, %v2105
        %v2312 = vsub.f32 %v1686, %v2068
        %v2313 = vsub.f32 %v1688, %v2105
        %v2314 = vsub.f32 %v1692, %v2068
        %v2315 = vsub.f32 %v1694, %v2105
        %v2316 = vsub.f32 %v1696, %v2068
        %v2317 = vsub.f32 %v1698, %v2105
        %v2318 = vsub.f32 %v1702, %v2068
        %v2319 = vsub.f32 %v1704, %v2105
        %v2320 = vsub.f32 %v1706, %v2068
        %v2321 = vsub.f32 %v1708, %v2105
        %v2322 = vsub.f32 %v1712, %v2068
        %v2323 = vsub.f32 %v1714, %v2105
        %v2324 = vsub.f32 %v1716, %v2068
        %v2325 = vsub.f32 %v1718, %v2105
        %v2326 = vsub.f32 %v1722, %v2068
        %v2327 = vsub.f32 %v1724, %v2105
        %v2328 = vsub.f32 %v1726, %v2068
        %v2329 = vsub.f32 %v1728, %v2105
        %v2330 = vsub.f32 %v1732, %v2068
        %v2331 = vsub.f32 %v1734, %v2105
        %v2332 = vsub.f32 %v1736, %v2068
        %v2333 = vsub.f32 %v1738, %v2105
        %v2334 = vsub.f32 %v1742, %v2068
        %v2335 = vsub.f32 %v1744, %v2105
        %v2336 = vsub.f32 %v1746, %v2068
        %v2337 = vsub.f32 %v1748, %v2105
        %v2338 = vsub.f32 %v1752, %v2068
        %v2339 = vsub.f32 %v1754, %v2105
        %v2340 = vsub.f32 %v1756, %v2068
        %v2341 = vsub.f32 %v1758, %v2105
        %v2342 = vsub.f32 %v1762, %v2068
        %v2343 = vsub.f32 %v1764, %v2105
        %v2344 = vsub.f32 %v1766, %v2068
        %v2345 = vsub.f32 %v1768, %v2105
        %v2346 = vsub.f32 %v1772, %v2068
        %v2347 = vsub.f32 %v1774, %v2105
        %v2348 = vsub.f32 %v1776, %v2068
        %v2349 = vsub.f32 %v1778, %v2105
        %v2350 = vsub.f32 %v1782, %v2068
        %v2351 = vsub.f32 %v1784, %v2105
        %v2352 = vsub.f32 %v1786, %v2068
        %v2353 = vsub.f32 %v1788, %v2105
        %v2354 = vsub.f32 %v1792, %v2068
        %v2355 = vsub.f32 %v1794, %v2105
        %v2356 = vsub.f32 %v1796, %v2068
        %v2357 = vsub.f32 %v1798, %v2105
        %v2358 = vsub.f32 %v1802, %v2068
        %v2359 = vsub.f32 %v1804, %v2105
        %v2360 = vsub.f32 %v1806, %v2068
        %v2361 = vsub.f32 %v1808, %v2105
        %v2362 = vmul.f32 %v2106, 1.442695
        %v2363 = vpow.pop %v2362
        %v2364 = vmul.f32 %v2107, 1.442695
        %v2365 = vpow.pop %v2364
        %v2366 = vmul.f32 %v2108, 1.442695
        %v2367 = vpow.pop %v2366
        %v2368 = vmul.f32 %v2109, 1.442695
        %v2369 = vpow.pop %v2368
        %v2370 = vmul.f32 %v2110, 1.442695
        %v2371 = vpow.pop %v2370
        %v2372 = vmul.f32 %v2111, 1.442695
        %v2373 = vpow.pop %v2372
        %v2374 = vmul.f32 %v2112, 1.442695
        %v2375 = vpow.pop %v2374
        %v2376 = vmul.f32 %v2113, 1.442695
        %v2377 = vpow.pop %v2376
        %v2378 = vmul.f32 %v2114, 1.442695
        %v2379 = vpow.pop %v2378
        %v2380 = vmul.f32 %v2115, 1.442695
        %v2381 = vpow.pop %v2380
        %v2382 = vmul.f32 %v2116, 1.442695
        %v2383 = vpow.pop %v2382
        %v2384 = vmul.f32 %v2117, 1.442695
        %v2385 = vpow.pop %v2384
        %v2386 = vmul.f32 %v2118, 1.442695
        %v2387 = vpow.pop %v2386
        %v2388 = vmul.f32 %v2119, 1.442695
        %v2389 = vpow.pop %v2388
        %v2390 = vmul.f32 %v2120, 1.442695
        %v2391 = vpow.pop %v2390
        %v2392 = vmul.f32 %v2121, 1.442695
        %v2393 = vpow.pop %v2392
        %v2394 = vmul.f32 %v2122, 1.442695
        %v2395 = vpow.pop %v2394
        %v2396 = vmul.f32 %v2123, 1.442695
        %v2397 = vpow.pop %v2396
        %v2398 = vmul.f32 %v2124, 1.442695
        %v2399 = vpow.pop %v2398
        %v2400 = vmul.f32 %v2125, 1.442695
        %v2401 = vpow.pop %v2400
        %v2402 = vmul.f32 %v2126, 1.442695
        %v2403 = vpow.pop %v2402
        %v2404 = vmul.f32 %v2127, 1.442695
        %v2405 = vpow.pop %v2404
        %v2406 = vmul.f32 %v2128, 1.442695
        %v2407 = vpow.pop %v2406
        %v2408 = vmul.f32 %v2129, 1.442695
        %v2409 = vpow.pop %v2408
        %v2410 = vmul.f32 %v2130, 1.442695
        %v2411 = vpow.pop %v2410
        %v2412 = vmul.f32 %v2131, 1.442695
        %v2413 = vpow.pop %v2412
        %v2414 = vmul.f32 %v2132, 1.442695
        %v2415 = vpow.pop %v2414
        %v2416 = vmul.f32 %v2133, 1.442695
        %v2417 = vpow.pop %v2416
        %v2418 = vmul.f32 %v2134, 1.442695
        %v2419 = vpow.pop %v2418
        %v2420 = vmul.f32 %v2135, 1.442695
        %v2421 = vpow.pop %v2420
        %v2422 = vmul.f32 %v2136, 1.442695
        %v2423 = vpow.pop %v2422
        %v2424 = vmul.f32 %v2137, 1.442695
        %v2425 = vpow.pop %v2424
        %v2426 = vmul.f32 %v2138, 1.442695
        %v2427 = vpow.pop %v2426
        %v2428 = vmul.f32 %v2139, 1.442695
        %v2429 = vpow.pop %v2428
        %v2430 = vmul.f32 %v2140, 1.442695
        %v2431 = vpow.pop %v2430
        %v2432 = vmul.f32 %v2141, 1.442695
        %v2433 = vpow.pop %v2432
        %v2434 = vmul.f32 %v2142, 1.442695
        %v2435 = vpow.pop %v2434
        %v2436 = vmul.f32 %v2143, 1.442695
        %v2437 = vpow.pop %v2436
        %v2438 = vmul.f32 %v2144, 1.442695
        %v2439 = vpow.pop %v2438
        %v2440 = vmul.f32 %v2145, 1.442695
        %v2441 = vpow.pop %v2440
        %v2442 = vmul.f32 %v2146, 1.442695
        %v2443 = vpow.pop %v2442
        %v2444 = vmul.f32 %v2147, 1.442695
        %v2445 = vpow.pop %v2444
        %v2446 = vmul.f32 %v2148, 1.442695
        %v2447 = vpow.pop %v2446
        %v2448 = vmul.f32 %v2149, 1.442695
        %v2449 = vpow.pop %v2448
        %v2450 = vmul.f32 %v2150, 1.442695
        %v2451 = vpow.pop %v2450
        %v2452 = vmul.f32 %v2151, 1.442695
        %v2453 = vpow.pop %v2452
        %v2454 = vmul.f32 %v2152, 1.442695
        %v2455 = vpow.pop %v2454
        %v2456 = vmul.f32 %v2153, 1.442695
        %v2457 = vpow.pop %v2456
        %v2458 = vmul.f32 %v2154, 1.442695
        %v2459 = vpow.pop %v2458
        %v2460 = vmul.f32 %v2155, 1.442695
        %v2461 = vpow.pop %v2460
        %v2462 = vmul.f32 %v2156, 1.442695
        %v2463 = vpow.pop %v2462
        %v2464 = vmul.f32 %v2157, 1.442695
        %v2465 = vpow.pop %v2464
        %v2466 = vmul.f32 %v2158, 1.442695
        %v2467 = vpow.pop %v2466
        %v2468 = vmul.f32 %v2159, 1.442695
        %v2469 = vpow.pop %v2468
        %v2470 = vmul.f32 %v2160, 1.442695
        %v2471 = vpow.pop %v2470
        %v2472 = vmul.f32 %v2161, 1.442695
        %v2473 = vpow.pop %v2472
        %v2474 = vmul.f32 %v2162, 1.442695
        %v2475 = vpow.pop %v2474
        %v2476 = vmul.f32 %v2163, 1.442695
        %v2477 = vpow.pop %v2476
        %v2478 = vmul.f32 %v2164, 1.442695
        %v2479 = vpow.pop %v2478
        %v2480 = vmul.f32 %v2165, 1.442695
        %v2481 = vpow.pop %v2480
        %v2482 = vmul.f32 %v2166, 1.442695
        %v2483 = vpow.pop %v2482
        %v2484 = vmul.f32 %v2167, 1.442695
        %v2485 = vpow.pop %v2484
        %v2486 = vmul.f32 %v2168, 1.442695
        %v2487 = vpow.pop %v2486
        %v2488 = vmul.f32 %v2169, 1.442695
        %v2489 = vpow.pop %v2488
        %v2490 = vmul.f32 %v2170, 1.442695
        %v2491 = vpow.pop %v2490
        %v2492 = vmul.f32 %v2171, 1.442695
        %v2493 = vpow.pop %v2492
        %v2494 = vmul.f32 %v2172, 1.442695
        %v2495 = vpow.pop %v2494
        %v2496 = vmul.f32 %v2173, 1.442695
        %v2497 = vpow.pop %v2496
        %v2498 = vmul.f32 %v2174, 1.442695
        %v2499 = vpow.pop %v2498
        %v2500 = vmul.f32 %v2175, 1.442695
        %v2501 = vpow.pop %v2500
        %v2502 = vmul.f32 %v2176, 1.442695
        %v2503 = vpow.pop %v2502
        %v2504 = vmul.f32 %v2177, 1.442695
        %v2505 = vpow.pop %v2504
        %v2506 = vmul.f32 %v2178, 1.442695
        %v2507 = vpow.pop %v2506
        %v2508 = vmul.f32 %v2179, 1.442695
        %v2509 = vpow.pop %v2508
        %v2510 = vmul.f32 %v2180, 1.442695
        %v2511 = vpow.pop %v2510
        %v2512 = vmul.f32 %v2181, 1.442695
        %v2513 = vpow.pop %v2512
        %v2514 = vmul.f32 %v2182, 1.442695
        %v2515 = vpow.pop %v2514
        %v2516 = vmul.f32 %v2183, 1.442695
        %v2517 = vpow.pop %v2516
        %v2518 = vmul.f32 %v2184, 1.442695
        %v2519 = vpow.pop %v2518
        %v2520 = vmul.f32 %v2185, 1.442695
        %v2521 = vpow.pop %v2520
        %v2522 = vmul.f32 %v2186, 1.442695
        %v2523 = vpow.pop %v2522
        %v2524 = vmul.f32 %v2187, 1.442695
        %v2525 = vpow.pop %v2524
        %v2526 = vmul.f32 %v2188, 1.442695
        %v2527 = vpow.pop %v2526
        %v2528 = vmul.f32 %v2189, 1.442695
        %v2529 = vpow.pop %v2528
        %v2530 = vmul.f32 %v2190, 1.442695
        %v2531 = vpow.pop %v2530
        %v2532 = vmul.f32 %v2191, 1.442695
        %v2533 = vpow.pop %v2532
        %v2534 = vmul.f32 %v2192, 1.442695
        %v2535 = vpow.pop %v2534
        %v2536 = vmul.f32 %v2193, 1.442695
        %v2537 = vpow.pop %v2536
        %v2538 = vmul.f32 %v2194, 1.442695
        %v2539 = vpow.pop %v2538
        %v2540 = vmul.f32 %v2195, 1.442695
        %v2541 = vpow.pop %v2540
        %v2542 = vmul.f32 %v2196, 1.442695
        %v2543 = vpow.pop %v2542
        %v2544 = vmul.f32 %v2197, 1.442695
        %v2545 = vpow.pop %v2544
        %v2546 = vmul.f32 %v2198, 1.442695
        %v2547 = vpow.pop %v2546
        %v2548 = vmul.f32 %v2199, 1.442695
        %v2549 = vpow.pop %v2548
        %v2550 = vmul.f32 %v2200, 1.442695
        %v2551 = vpow.pop %v2550
        %v2552 = vmul.f32 %v2201, 1.442695
        %v2553 = vpow.pop %v2552
        %v2554 = vmul.f32 %v2202, 1.442695
        %v2555 = vpow.pop %v2554
        %v2556 = vmul.f32 %v2203, 1.442695
        %v2557 = vpow.pop %v2556
        %v2558 = vmul.f32 %v2204, 1.442695
        %v2559 = vpow.pop %v2558
        %v2560 = vmul.f32 %v2205, 1.442695
        %v2561 = vpow.pop %v2560
        %v2562 = vmul.f32 %v2206, 1.442695
        %v2563 = vpow.pop %v2562
        %v2564 = vmul.f32 %v2207, 1.442695
        %v2565 = vpow.pop %v2564
        %v2566 = vmul.f32 %v2208, 1.442695
        %v2567 = vpow.pop %v2566
        %v2568 = vmul.f32 %v2209, 1.442695
        %v2569 = vpow.pop %v2568
        %v2570 = vmul.f32 %v2210, 1.442695
        %v2571 = vpow.pop %v2570
        %v2572 = vmul.f32 %v2211, 1.442695
        %v2573 = vpow.pop %v2572
        %v2574 = vmul.f32 %v2212, 1.442695
        %v2575 = vpow.pop %v2574
        %v2576 = vmul.f32 %v2213, 1.442695
        %v2577 = vpow.pop %v2576
        %v2578 = vmul.f32 %v2214, 1.442695
        %v2579 = vpow.pop %v2578
        %v2580 = vmul.f32 %v2215, 1.442695
        %v2581 = vpow.pop %v2580
        %v2582 = vmul.f32 %v2216, 1.442695
        %v2583 = vpow.pop %v2582
        %v2584 = vmul.f32 %v2217, 1.442695
        %v2585 = vpow.pop %v2584
        %v2586 = vmul.f32 %v2218, 1.442695
        %v2587 = vpow.pop %v2586
        %v2588 = vmul.f32 %v2219, 1.442695
        %v2589 = vpow.pop %v2588
        %v2590 = vmul.f32 %v2220, 1.442695
        %v2591 = vpow.pop %v2590
        %v2592 = vmul.f32 %v2221, 1.442695
        %v2593 = vpow.pop %v2592
        %v2594 = vmul.f32 %v2222, 1.442695
        %v2595 = vpow.pop %v2594
        %v2596 = vmul.f32 %v2223, 1.442695
        %v2597 = vpow.pop %v2596
        %v2598 = vmul.f32 %v2224, 1.442695
        %v2599 = vpow.pop %v2598
        %v2600 = vmul.f32 %v2225, 1.442695
        %v2601 = vpow.pop %v2600
        %v2602 = vmul.f32 %v2226, 1.442695
        %v2603 = vpow.pop %v2602
        %v2604 = vmul.f32 %v2227, 1.442695
        %v2605 = vpow.pop %v2604
        %v2606 = vmul.f32 %v2228, 1.442695
        %v2607 = vpow.pop %v2606
        %v2608 = vmul.f32 %v2229, 1.442695
        %v2609 = vpow.pop %v2608
        %v2610 = vmul.f32 %v2230, 1.442695
        %v2611 = vpow.pop %v2610
        %v2612 = vmul.f32 %v2231, 1.442695
        %v2613 = vpow.pop %v2612
        %v2614 = vmul.f32 %v2232, 1.442695
        %v2615 = vpow.pop %v2614
        %v2616 = vmul.f32 %v2233, 1.442695
        %v2617 = vpow.pop %v2616
        %v2618 = vmul.f32 %v2234, 1.442695
        %v2619 = vpow.pop %v2618
        %v2620 = vmul.f32 %v2235, 1.442695
        %v2621 = vpow.pop %v2620
        %v2622 = vmul.f32 %v2236, 1.442695
        %v2623 = vpow.pop %v2622
        %v2624 = vmul.f32 %v2237, 1.442695
        %v2625 = vpow.pop %v2624
        %v2626 = vmul.f32 %v2238, 1.442695
        %v2627 = vpow.pop %v2626
        %v2628 = vmul.f32 %v2239, 1.442695
        %v2629 = vpow.pop %v2628
        %v2630 = vmul.f32 %v2240, 1.442695
        %v2631 = vpow.pop %v2630
        %v2632 = vmul.f32 %v2241, 1.442695
        %v2633 = vpow.pop %v2632
        %v2634 = vmul.f32 %v2242, 1.442695
        %v2635 = vpow.pop %v2634
        %v2636 = vmul.f32 %v2243, 1.442695
        %v2637 = vpow.pop %v2636
        %v2638 = vmul.f32 %v2244, 1.442695
        %v2639 = vpow.pop %v2638
        %v2640 = vmul.f32 %v2245, 1.442695
        %v2641 = vpow.pop %v2640
        %v2642 = vmul.f32 %v2246, 1.442695
        %v2643 = vpow.pop %v2642
        %v2644 = vmul.f32 %v2247, 1.442695
        %v2645 = vpow.pop %v2644
        %v2646 = vmul.f32 %v2248, 1.442695
        %v2647 = vpow.pop %v2646
        %v2648 = vmul.f32 %v2249, 1.442695
        %v2649 = vpow.pop %v2648
        %v2650 = vmul.f32 %v2250, 1.442695
        %v2651 = vpow.pop %v2650
        %v2652 = vmul.f32 %v2251, 1.442695
        %v2653 = vpow.pop %v2652
        %v2654 = vmul.f32 %v2252, 1.442695
        %v2655 = vpow.pop %v2654
        %v2656 = vmul.f32 %v2253, 1.442695
        %v2657 = vpow.pop %v2656
        %v2658 = vmul.f32 %v2254, 1.442695
        %v2659 = vpow.pop %v2658
        %v2660 = vmul.f32 %v2255, 1.442695
        %v2661 = vpow.pop %v2660
        %v2662 = vmul.f32 %v2256, 1.442695
        %v2663 = vpow.pop %v2662
        %v2664 = vmul.f32 %v2257, 1.442695
        %v2665 = vpow.pop %v2664
        %v2666 = vmul.f32 %v2258, 1.442695
        %v2667 = vpow.pop %v2666
        %v2668 = vmul.f32 %v2259, 1.442695
        %v2669 = vpow.pop %v2668
        %v2670 = vmul.f32 %v2260, 1.442695
        %v2671 = vpow.pop %v2670
        %v2672 = vmul.f32 %v2261, 1.442695
        %v2673 = vpow.pop %v2672
        %v2674 = vmul.f32 %v2262, 1.442695
        %v2675 = vpow.pop %v2674
        %v2676 = vmul.f32 %v2263, 1.442695
        %v2677 = vpow.pop %v2676
        %v2678 = vmul.f32 %v2264, 1.442695
        %v2679 = vpow.pop %v2678
        %v2680 = vmul.f32 %v2265, 1.442695
        %v2681 = vpow.pop %v2680
        %v2682 = vmul.f32 %v2266, 1.442695
        %v2683 = vpow.pop %v2682
        %v2684 = vmul.f32 %v2267, 1.442695
        %v2685 = vpow.pop %v2684
        %v2686 = vmul.f32 %v2268, 1.442695
        %v2687 = vpow.pop %v2686
        %v2688 = vmul.f32 %v2269, 1.442695
        %v2689 = vpow.pop %v2688
        %v2690 = vmul.f32 %v2270, 1.442695
        %v2691 = vpow.pop %v2690
        %v2692 = vmul.f32 %v2271, 1.442695
        %v2693 = vpow.pop %v2692
        %v2694 = vmul.f32 %v2272, 1.442695
        %v2695 = vpow.pop %v2694
        %v2696 = vmul.f32 %v2273, 1.442695
        %v2697 = vpow.pop %v2696
        %v2698 = vmul.f32 %v2274, 1.442695
        %v2699 = vpow.pop %v2698
        %v2700 = vmul.f32 %v2275, 1.442695
        %v2701 = vpow.pop %v2700
        %v2702 = vmul.f32 %v2276, 1.442695
        %v2703 = vpow.pop %v2702
        %v2704 = vmul.f32 %v2277, 1.442695
        %v2705 = vpow.pop %v2704
        %v2706 = vmul.f32 %v2278, 1.442695
        %v2707 = vpow.pop %v2706
        %v2708 = vmul.f32 %v2279, 1.442695
        %v2709 = vpow.pop %v2708
        %v2710 = vmul.f32 %v2280, 1.442695
        %v2711 = vpow.pop %v2710
        %v2712 = vmul.f32 %v2281, 1.442695
        %v2713 = vpow.pop %v2712
        %v2714 = vmul.f32 %v2282, 1.442695
        %v2715 = vpow.pop %v2714
        %v2716 = vmul.f32 %v2283, 1.442695
        %v2717 = vpow.pop %v2716
        %v2718 = vmul.f32 %v2284, 1.442695
        %v2719 = vpow.pop %v2718
        %v2720 = vmul.f32 %v2285, 1.442695
        %v2721 = vpow.pop %v2720
        %v2722 = vmul.f32 %v2286, 1.442695
        %v2723 = vpow.pop %v2722
        %v2724 = vmul.f32 %v2287, 1.442695
        %v2725 = vpow.pop %v2724
        %v2726 = vmul.f32 %v2288, 1.442695
        %v2727 = vpow.pop %v2726
        %v2728 = vmul.f32 %v2289, 1.442695
        %v2729 = vpow.pop %v2728
        %v2730 = vmul.f32 %v2290, 1.442695
        %v2731 = vpow.pop %v2730
        %v2732 = vmul.f32 %v2291, 1.442695
        %v2733 = vpow.pop %v2732
        %v2734 = vmul.f32 %v2292, 1.442695
        %v2735 = vpow.pop %v2734
        %v2736 = vmul.f32 %v2293, 1.442695
        %v2737 = vpow.pop %v2736
        %v2738 = vmul.f32 %v2294, 1.442695
        %v2739 = vpow.pop %v2738
        %v2740 = vmul.f32 %v2295, 1.442695
        %v2741 = vpow.pop %v2740
        %v2742 = vmul.f32 %v2296, 1.442695
        %v2743 = vpow.pop %v2742
        %v2744 = vmul.f32 %v2297, 1.442695
        %v2745 = vpow.pop %v2744
        %v2746 = vmul.f32 %v2298, 1.442695
        %v2747 = vpow.pop %v2746
        %v2748 = vmul.f32 %v2299, 1.442695
        %v2749 = vpow.pop %v2748
        %v2750 = vmul.f32 %v2300, 1.442695
        %v2751 = vpow.pop %v2750
        %v2752 = vmul.f32 %v2301, 1.442695
        %v2753 = vpow.pop %v2752
        %v2754 = vmul.f32 %v2302, 1.442695
        %v2755 = vpow.pop %v2754
        %v2756 = vmul.f32 %v2303, 1.442695
        %v2757 = vpow.pop %v2756
        %v2758 = vmul.f32 %v2304, 1.442695
        %v2759 = vpow.pop %v2758
        %v2760 = vmul.f32 %v2305, 1.442695
        %v2761 = vpow.pop %v2760
        %v2762 = vmul.f32 %v2306, 1.442695
        %v2763 = vpow.pop %v2762
        %v2764 = vmul.f32 %v2307, 1.442695
        %v2765 = vpow.pop %v2764
        %v2766 = vmul.f32 %v2308, 1.442695
        %v2767 = vpow.pop %v2766
        %v2768 = vmul.f32 %v2309, 1.442695
        %v2769 = vpow.pop %v2768
        %v2770 = vmul.f32 %v2310, 1.442695
        %v2771 = vpow.pop %v2770
        %v2772 = vmul.f32 %v2311, 1.442695
        %v2773 = vpow.pop %v2772
        %v2774 = vmul.f32 %v2312, 1.442695
        %v2775 = vpow.pop %v2774
        %v2776 = vmul.f32 %v2313, 1.442695
        %v2777 = vpow.pop %v2776
        %v2778 = vmul.f32 %v2314, 1.442695
        %v2779 = vpow.pop %v2778
        %v2780 = vmul.f32 %v2315, 1.442695
        %v2781 = vpow.pop %v2780
        %v2782 = vmul.f32 %v2316, 1.442695
        %v2783 = vpow.pop %v2782
        %v2784 = vmul.f32 %v2317, 1.442695
        %v2785 = vpow.pop %v2784
        %v2786 = vmul.f32 %v2318, 1.442695
        %v2787 = vpow.pop %v2786
        %v2788 = vmul.f32 %v2319, 1.442695
        %v2789 = vpow.pop %v2788
        %v2790 = vmul.f32 %v2320, 1.442695
        %v2791 = vpow.pop %v2790
        %v2792 = vmul.f32 %v2321, 1.442695
        %v2793 = vpow.pop %v2792
        %v2794 = vmul.f32 %v2322, 1.442695
        %v2795 = vpow.pop %v2794
        %v2796 = vmul.f32 %v2323, 1.442695
        %v2797 = vpow.pop %v2796
        %v2798 = vmul.f32 %v2324, 1.442695
        %v2799 = vpow.pop %v2798
        %v2800 = vmul.f32 %v2325, 1.442695
        %v2801 = vpow.pop %v2800
        %v2802 = vmul.f32 %v2326, 1.442695
        %v2803 = vpow.pop %v2802
        %v2804 = vmul.f32 %v2327, 1.442695
        %v2805 = vpow.pop %v2804
        %v2806 = vmul.f32 %v2328, 1.442695
        %v2807 = vpow.pop %v2806
        %v2808 = vmul.f32 %v2329, 1.442695
        %v2809 = vpow.pop %v2808
        %v2810 = vmul.f32 %v2330, 1.442695
        %v2811 = vpow.pop %v2810
        %v2812 = vmul.f32 %v2331, 1.442695
        %v2813 = vpow.pop %v2812
        %v2814 = vmul.f32 %v2332, 1.442695
        %v2815 = vpow.pop %v2814
        %v2816 = vmul.f32 %v2333, 1.442695
        %v2817 = vpow.pop %v2816
        %v2818 = vmul.f32 %v2334, 1.442695
        %v2819 = vpow.pop %v2818
        %v2820 = vmul.f32 %v2335, 1.442695
        %v2821 = vpow.pop %v2820
        %v2822 = vmul.f32 %v2336, 1.442695
        %v2823 = vpow.pop %v2822
        %v2824 = vmul.f32 %v2337, 1.442695
        %v2825 = vpow.pop %v2824
        %v2826 = vmul.f32 %v2338, 1.442695
        %v2827 = vpow.pop %v2826
        %v2828 = vmul.f32 %v2339, 1.442695
        %v2829 = vpow.pop %v2828
        %v2830 = vmul.f32 %v2340, 1.442695
        %v2831 = vpow.pop %v2830
        %v2832 = vmul.f32 %v2341, 1.442695
        %v2833 = vpow.pop %v2832
        %v2834 = vmul.f32 %v2342, 1.442695
        %v2835 = vpow.pop %v2834
        %v2836 = vmul.f32 %v2343, 1.442695
        %v2837 = vpow.pop %v2836
        %v2838 = vmul.f32 %v2344, 1.442695
        %v2839 = vpow.pop %v2838
        %v2840 = vmul.f32 %v2345, 1.442695
        %v2841 = vpow.pop %v2840
        %v2842 = vmul.f32 %v2346, 1.442695
        %v2843 = vpow.pop %v2842
        %v2844 = vmul.f32 %v2347, 1.442695
        %v2845 = vpow.pop %v2844
        %v2846 = vmul.f32 %v2348, 1.442695
        %v2847 = vpow.pop %v2846
        %v2848 = vmul.f32 %v2349, 1.442695
        %v2849 = vpow.pop %v2848
        %v2850 = vmul.f32 %v2350, 1.442695
        %v2851 = vpow.pop %v2850
        %v2852 = vmul.f32 %v2351, 1.442695
        %v2853 = vpow.pop %v2852
        %v2854 = vmul.f32 %v2352, 1.442695
        %v2855 = vpow.pop %v2854
        %v2856 = vmul.f32 %v2353, 1.442695
        %v2857 = vpow.pop %v2856
        %v2858 = vmul.f32 %v2354, 1.442695
        %v2859 = vpow.pop %v2858
        %v2860 = vmul.f32 %v2355, 1.442695
        %v2861 = vpow.pop %v2860
        %v2862 = vmul.f32 %v2356, 1.442695
        %v2863 = vpow.pop %v2862
        %v2864 = vmul.f32 %v2357, 1.442695
        %v2865 = vpow.pop %v2864
        %v2866 = vmul.f32 %v2358, 1.442695
        %v2867 = vpow.pop %v2866
        %v2868 = vmul.f32 %v2359, 1.442695
        %v2869 = vpow.pop %v2868
        %v2870 = vmul.f32 %v2360, 1.442695
        %v2871 = vpow.pop %v2870
        %v2872 = vmul.f32 %v2361, 1.442695
        %v2873 = vpow.pop %v2872
        %v2874 = vadd.f32 %v2363, %v2367
        %v2875 = vadd.f32 %v2874, %v2371
        %v2876 = vadd.f32 %v2875, %v2375
        %v2877 = vadd.f32 %v2876, %v2379
        %v2878 = vadd.f32 %v2877, %v2383
        %v2879 = vadd.f32 %v2878, %v2387
        %v2880 = vadd.f32 %v2879, %v2391
        %v2881 = vadd.f32 %v2880, %v2395
        %v2882 = vadd.f32 %v2881, %v2399
        %v2883 = vadd.f32 %v2882, %v2403
        %v2884 = vadd.f32 %v2883, %v2407
        %v2885 = vadd.f32 %v2884, %v2411
        %v2886 = vadd.f32 %v2885, %v2415
        %v2887 = vadd.f32 %v2886, %v2419
        %v2888 = vadd.f32 %v2887, %v2423
        %v2889 = vadd.f32 %v2888, %v2427
        %v2890 = vadd.f32 %v2889, %v2431
        %v2891 = vadd.f32 %v2890, %v2435
        %v2892 = vadd.f32 %v2891, %v2439
        %v2893 = vadd.f32 %v2892, %v2443
        %v2894 = vadd.f32 %v2893, %v2447
        %v2895 = vadd.f32 %v2894, %v2451
        %v2896 = vadd.f32 %v2895, %v2455
        %v2897 = vadd.f32 %v2896, %v2459
        %v2898 = vadd.f32 %v2897, %v2463
        %v2899 = vadd.f32 %v2898, %v2467
        %v2900 = vadd.f32 %v2899, %v2471
        %v2901 = vadd.f32 %v2900, %v2475
        %v2902 = vadd.f32 %v2901, %v2479
        %v2903 = vadd.f32 %v2902, %v2483
        %v2904 = vadd.f32 %v2903, %v2487
        %v2905 = vrot.slane %v2904, 4
        %v2906 = vadd.f32 %v2904, %v2905
        %v2907 = vrot.slane %v2906, 2
        %v2908 = vadd.f32 %v2906, %v2907
        %v2909 = vrot.slane %v2908, 1
        %v2910 = vadd.f32 %v2908, %v2909
        %v2911 = vadd.f32 %v2365, %v2369
        %v2912 = vadd.f32 %v2911, %v2373
        %v2913 = vadd.f32 %v2912, %v2377
        %v2914 = vadd.f32 %v2913, %v2381
        %v2915 = vadd.f32 %v2914, %v2385
        %v2916 = vadd.f32 %v2915, %v2389
        %v2917 = vadd.f32 %v2916, %v2393
        %v2918 = vadd.f32 %v2917, %v2397
        %v2919 = vadd.f32 %v2918, %v2401
        %v2920 = vadd.f32 %v2919, %v2405
        %v2921 = vadd.f32 %v2920, %v2409
        %v2922 = vadd.f32 %v2921, %v2413
        %v2923 = vadd.f32 %v2922, %v2417
        %v2924 = vadd.f32 %v2923, %v2421
        %v2925 = vadd.f32 %v2924, %v2425
        %v2926 = vadd.f32 %v2925, %v2429
        %v2927 = vadd.f32 %v2926, %v2433
        %v2928 = vadd.f32 %v2927, %v2437
        %v2929 = vadd.f32 %v2928, %v2441
        %v2930 = vadd.f32 %v2929, %v2445
        %v2931 = vadd.f32 %v2930, %v2449
        %v2932 = vadd.f32 %v2931, %v2453
        %v2933 = vadd.f32 %v2932, %v2457
        %v2934 = vadd.f32 %v2933, %v2461
        %v2935 = vadd.f32 %v2934, %v2465
        %v2936 = vadd.f32 %v2935, %v2469
        %v2937 = vadd.f32 %v2936, %v2473
        %v2938 = vadd.f32 %v2937, %v2477
        %v2939 = vadd.f32 %v2938, %v2481
        %v2940 = vadd.f32 %v2939, %v2485
        %v2941 = vadd.f32 %v2940, %v2489
        %v2942 = vrot.slane %v2941, 4
        %v2943 = vadd.f32 %v2941, %v2942
        %v2944 = vrot.slane %v2943, 2
        %v2945 = vadd.f32 %v2943, %v2944
        %v2946 = vrot.slane %v2945, 1
        %v2947 = vadd.f32 %v2945, %v2946
        %v2948 = vadd.f32 %v2491, %v2495
        %v2949 = vadd.f32 %v2948, %v2499
        %v2950 = vadd.f32 %v2949, %v2503
        %v2951 = vadd.f32 %v2950, %v2507
        %v2952 = vadd.f32 %v2951, %v2511
        %v2953 = vadd.f32 %v2952, %v2515
        %v2954 = vadd.f32 %v2953, %v2519
        %v2955 = vadd.f32 %v2954, %v2523
        %v2956 = vadd.f32 %v2955, %v2527
        %v2957 = vadd.f32 %v2956, %v2531
        %v2958 = vadd.f32 %v2957, %v2535
        %v2959 = vadd.f32 %v2958, %v2539
        %v2960 = vadd.f32 %v2959, %v2543
        %v2961 = vadd.f32 %v2960, %v2547
        %v2962 = vadd.f32 %v2961, %v2551
        %v2963 = vadd.f32 %v2962, %v2555
        %v2964 = vadd.f32 %v2963, %v2559
        %v2965 = vadd.f32 %v2964, %v2563
        %v2966 = vadd.f32 %v2965, %v2567
        %v2967 = vadd.f32 %v2966, %v2571
        %v2968 = vadd.f32 %v2967, %v2575
        %v2969 = vadd.f32 %v2968, %v2579
        %v2970 = vadd.f32 %v2969, %v2583
        %v2971 = vadd.f32 %v2970, %v2587
        %v2972 = vadd.f32 %v2971, %v2591
        %v2973 = vadd.f32 %v2972, %v2595
        %v2974 = vadd.f32 %v2973, %v2599
        %v2975 = vadd.f32 %v2974, %v2603
        %v2976 = vadd.f32 %v2975, %v2607
        %v2977 = vadd.f32 %v2976, %v2611
        %v2978 = vadd.f32 %v2977, %v2615
        %v2979 = vrot.slane %v2978, 4
        %v2980 = vadd.f32 %v2978, %v2979
        %v2981 = vrot.slane %v2980, 2
        %v2982 = vadd.f32 %v2980, %v2981
        %v2983 = vrot.slane %v2982, 1
        %v2984 = vadd.f32 %v2982, %v2983
        %v2985 = vadd.f32 %v2493, %v2497
        %v2986 = vadd.f32 %v2985, %v2501
        %v2987 = vadd.f32 %v2986, %v2505
        %v2988 = vadd.f32 %v2987, %v2509
        %v2989 = vadd.f32 %v2988, %v2513
        %v2990 = vadd.f32 %v2989, %v2517
        %v2991 = vadd.f32 %v2990, %v2521
        %v2992 = vadd.f32 %v2991, %v2525
        %v2993 = vadd.f32 %v2992, %v2529
        %v2994 = vadd.f32 %v2993, %v2533
        %v2995 = vadd.f32 %v2994, %v2537
        %v2996 = vadd.f32 %v2995, %v2541
        %v2997 = vadd.f32 %v2996, %v2545
        %v2998 = vadd.f32 %v2997, %v2549
        %v2999 = vadd.f32 %v2998, %v2553
        %v3000 = vadd.f32 %v2999, %v2557
        %v3001 = vadd.f32 %v3000, %v2561
        %v3002 = vadd.f32 %v3001, %v2565
        %v3003 = vadd.f32 %v3002, %v2569
        %v3004 = vadd.f32 %v3003, %v2573
        %v3005 = vadd.f32 %v3004, %v2577
        %v3006 = vadd.f32 %v3005, %v2581
        %v3007 = vadd.f32 %v3006, %v2585
        %v3008 = vadd.f32 %v3007, %v2589
        %v3009 = vadd.f32 %v3008, %v2593
        %v3010 = vadd.f32 %v3009, %v2597
        %v3011 = vadd.f32 %v3010, %v2601
        %v3012 = vadd.f32 %v3011, %v2605
        %v3013 = vadd.f32 %v3012, %v2609
        %v3014 = vadd.f32 %v3013, %v2613
        %v3015 = vadd.f32 %v3014, %v2617
        %v3016 = vrot.slane %v3015, 4
        %v3017 = vadd.f32 %v3015, %v3016
        %v3018 = vrot.slane %v3017, 2
        %v3019 = vadd.f32 %v3017, %v3018
        %v3020 = vrot.slane %v3019, 1
        %v3021 = vadd.f32 %v3019, %v3020
        %v3022 = vadd.f32 %v2619, %v2623
        %v3023 = vadd.f32 %v3022, %v2627
        %v3024 = vadd.f32 %v3023, %v2631
        %v3025 = vadd.f32 %v3024, %v2635
        %v3026 = vadd.f32 %v3025, %v2639
        %v3027 = vadd.f32 %v3026, %v2643
        %v3028 = vadd.f32 %v3027, %v2647
        %v3029 = vadd.f32 %v3028, %v2651
        %v3030 = vadd.f32 %v3029, %v2655
        %v3031 = vadd.f32 %v3030, %v2659
        %v3032 = vadd.f32 %v3031, %v2663
        %v3033 = vadd.f32 %v3032, %v2667
        %v3034 = vadd.f32 %v3033, %v2671
        %v3035 = vadd.f32 %v3034, %v2675
        %v3036 = vadd.f32 %v3035, %v2679
        %v3037 = vadd.f32 %v3036, %v2683
        %v3038 = vadd.f32 %v3037, %v2687
        %v3039 = vadd.f32 %v3038, %v2691
        %v3040 = vadd.f32 %v3039, %v2695
        %v3041 = vadd.f32 %v3040, %v2699
        %v3042 = vadd.f32 %v3041, %v2703
        %v3043 = vadd.f32 %v3042, %v2707
        %v3044 = vadd.f32 %v3043, %v2711
        %v3045 = vadd.f32 %v3044, %v2715
        %v3046 = vadd.f32 %v3045, %v2719
        %v3047 = vadd.f32 %v3046, %v2723
        %v3048 = vadd.f32 %v3047, %v2727
        %v3049 = vadd.f32 %v3048, %v2731
        %v3050 = vadd.f32 %v3049, %v2735
        %v3051 = vadd.f32 %v3050, %v2739
        %v3052 = vadd.f32 %v3051, %v2743
        %v3053 = vrot.slane %v3052, 4
        %v3054 = vadd.f32 %v3052, %v3053
        %v3055 = vrot.slane %v3054, 2
        %v3056 = vadd.f32 %v3054, %v3055
        %v3057 = vrot.slane %v3056, 1
        %v3058 = vadd.f32 %v3056, %v3057
        %v3059 = vadd.f32 %v2621, %v2625
        %v3060 = vadd.f32 %v3059, %v2629
        %v3061 = vadd.f32 %v3060, %v2633
        %v3062 = vadd.f32 %v3061, %v2637
        %v3063 = vadd.f32 %v3062, %v2641
        %v3064 = vadd.f32 %v3063, %v2645
        %v3065 = vadd.f32 %v3064, %v2649
        %v3066 = vadd.f32 %v3065, %v2653
        %v3067 = vadd.f32 %v3066, %v2657
        %v3068 = vadd.f32 %v3067, %v2661
        %v3069 = vadd.f32 %v3068, %v2665
        %v3070 = vadd.f32 %v3069, %v2669
        %v3071 = vadd.f32 %v3070, %v2673
        %v3072 = vadd.f32 %v3071, %v2677
        %v3073 = vadd.f32 %v3072, %v2681
        %v3074 = vadd.f32 %v3073, %v2685
        %v3075 = vadd.f32 %v3074, %v2689
        %v3076 = vadd.f32 %v3075, %v2693
        %v3077 = vadd.f32 %v3076, %v2697
        %v3078 = vadd.f32 %v3077, %v2701
        %v3079 = vadd.f32 %v3078, %v2705
        %v3080 = vadd.f32 %v3079, %v2709
        %v3081 = vadd.f32 %v3080, %v2713
        %v3082 = vadd.f32 %v3081, %v2717
        %v3083 = vadd.f32 %v3082, %v2721
        %v3084 = vadd.f32 %v3083, %v2725
        %v3085 = vadd.f32 %v3084, %v2729
        %v3086 = vadd.f32 %v3085, %v2733
        %v3087 = vadd.f32 %v3086, %v2737
        %v3088 = vadd.f32 %v3087, %v2741
        %v3089 = vadd.f32 %v3088, %v2745
        %v3090 = vrot.slane %v3089, 4
        %v3091 = vadd.f32 %v3089, %v3090
        %v3092 = vrot.slane %v3091, 2
        %v3093 = vadd.f32 %v3091, %v3092
        %v3094 = vrot.slane %v3093, 1
        %v3095 = vadd.f32 %v3093, %v3094
        %v3096 = vadd.f32 %v2747, %v2751
        %v3097 = vadd.f32 %v3096, %v2755
        %v3098 = vadd.f32 %v3097, %v2759
        %v3099 = vadd.f32 %v3098, %v2763
        %v3100 = vadd.f32 %v3099, %v2767
        %v3101 = vadd.f32 %v3100, %v2771
        %v3102 = vadd.f32 %v3101, %v2775
        %v3103 = vadd.f32 %v3102, %v2779
        %v3104 = vadd.f32 %v3103, %v2783
        %v3105 = vadd.f32 %v3104, %v2787
        %v3106 = vadd.f32 %v3105, %v2791
        %v3107 = vadd.f32 %v3106, %v2795
        %v3108 = vadd.f32 %v3107, %v2799
        %v3109 = vadd.f32 %v3108, %v2803
        %v3110 = vadd.f32 %v3109, %v2807
        %v3111 = vadd.f32 %v3110, %v2811
        %v3112 = vadd.f32 %v3111, %v2815
        %v3113 = vadd.f32 %v3112, %v2819
        %v3114 = vadd.f32 %v3113, %v2823
        %v3115 = vadd.f32 %v3114, %v2827
        %v3116 = vadd.f32 %v3115, %v2831
        %v3117 = vadd.f32 %v3116, %v2835
        %v3118 = vadd.f32 %v3117, %v2839
        %v3119 = vadd.f32 %v3118, %v2843
        %v3120 = vadd.f32 %v3119, %v2847
        %v3121 = vadd.f32 %v3120, %v2851
        %v3122 = vadd.f32 %v3121, %v2855
        %v3123 = vadd.f32 %v3122, %v2859
        %v3124 = vadd.f32 %v3123, %v2863
        %v3125 = vadd.f32 %v3124, %v2867
        %v3126 = vadd.f32 %v3125, %v2871
        %v3127 = vrot.slane %v3126, 4
        %v3128 = vadd.f32 %v3126, %v3127
        %v3129 = vrot.slane %v3128, 2
        %v3130 = vadd.f32 %v3128, %v3129
        %v3131 = vrot.slane %v3130, 1
        %v3132 = vadd.f32 %v3130, %v3131
        %v3133 = vadd.f32 %v2749, %v2753
        %v3134 = vadd.f32 %v3133, %v2757
        %v3135 = vadd.f32 %v3134, %v2761
        %v3136 = vadd.f32 %v3135, %v2765
        %v3137 = vadd.f32 %v3136, %v2769
        %v3138 = vadd.f32 %v3137, %v2773
        %v3139 = vadd.f32 %v3138, %v2777
        %v3140 = vadd.f32 %v3139, %v2781
        %v3141 = vadd.f32 %v3140, %v2785
        %v3142 = vadd.f32 %v3141, %v2789
        %v3143 = vadd.f32 %v3142, %v2793
        %v3144 = vadd.f32 %v3143, %v2797
        %v3145 = vadd.f32 %v3144, %v2801
        %v3146 = vadd.f32 %v3145, %v2805
        %v3147 = vadd.f32 %v3146, %v2809
        %v3148 = vadd.f32 %v3147, %v2813
        %v3149 = vadd.f32 %v3148, %v2817
        %v3150 = vadd.f32 %v3149, %v2821
        %v3151 = vadd.f32 %v3150, %v2825
        %v3152 = vadd.f32 %v3151, %v2829
        %v3153 = vadd.f32 %v3152, %v2833
        %v3154 = vadd.f32 %v3153, %v2837
        %v3155 = vadd.f32 %v3154, %v2841
        %v3156 = vadd.f32 %v3155, %v2845
        %v3157 = vadd.f32 %v3156, %v2849
        %v3158 = vadd.f32 %v3157, %v2853
        %v3159 = vadd.f32 %v3158, %v2857
        %v3160 = vadd.f32 %v3159, %v2861
        %v3161 = vadd.f32 %v3160, %v2865
        %v3162 = vadd.f32 %v3161, %v2869
        %v3163 = vadd.f32 %v3162, %v2873
        %v3164 = vrot.slane %v3163, 4
        %v3165 = vadd.f32 %v3163, %v3164
        %v3166 = vrot.slane %v3165, 2
        %v3167 = vadd.f32 %v3165, %v3166
        %v3168 = vrot.slane %v3167, 1
        %v3169 = vadd.f32 %v3167, %v3168
        %v3170 = vpack.c.bf16 %v2367, %v2363
        %v3171 = vpack.c.bf16 %v2369, %v2365
        %v3172 = vpack.c.bf16 %v2375, %v2371
        %v3173 = vpack.c.bf16 %v2377, %v2373
        %v3174 = vpack.c.bf16 %v2383, %v2379
        %v3175 = vpack.c.bf16 %v2385, %v2381
        %v3176 = vpack.c.bf16 %v2391, %v2387
        %v3177 = vpack.c.bf16 %v2393, %v2389
        %v3178 = vpack.c.bf16 %v2399, %v2395
        %v3179 = vpack.c.bf16 %v2401, %v2397
        %v3180 = vpack.c.bf16 %v2407, %v2403
        %v3181 = vpack.c.bf16 %v2409, %v2405
        %v3182 = vpack.c.bf16 %v2415, %v2411
        %v3183 = vpack.c.bf16 %v2417, %v2413
        %v3184 = vpack.c.bf16 %v2423, %v2419
        %v3185 = vpack.c.bf16 %v2425, %v2421
        %v3186 = vpack.c.bf16 %v2431, %v2427
        %v3187 = vpack.c.bf16 %v2433, %v2429
        %v3188 = vpack.c.bf16 %v2439, %v2435
        %v3189 = vpack.c.bf16 %v2441, %v2437
        %v3190 = vpack.c.bf16 %v2447, %v2443
        %v3191 = vpack.c.bf16 %v2449, %v2445
        %v3192 = vpack.c.bf16 %v2455, %v2451
        %v3193 = vpack.c.bf16 %v2457, %v2453
        %v3194 = vpack.c.bf16 %v2463, %v2459
        %v3195 = vpack.c.bf16 %v2465, %v2461
        %v3196 = vpack.c.bf16 %v2471, %v2467
        %v3197 = vpack.c.bf16 %v2473, %v2469
        %v3198 = vpack.c.bf16 %v2479, %v2475
        %v3199 = vpack.c.bf16 %v2481, %v2477
        %v3200 = vpack.c.bf16 %v2487, %v2483
        %v3201 = vpack.c.bf16 %v2489, %v2485
        %v3202 = vpack.c.bf16 %v2495, %v2491
        %v3203 = vpack.c.bf16 %v2497, %v2493
        %v3204 = vpack.c.bf16 %v2503, %v2499
        %v3205 = vpack.c.bf16 %v2505, %v2501
        %v3206 = vpack.c.bf16 %v2511, %v2507
        %v3207 = vpack.c.bf16 %v2513, %v2509
        %v3208 = vpack.c.bf16 %v2519, %v2515
        %v3209 = vpack.c.bf16 %v2521, %v2517
        %v3210 = vpack.c.bf16 %v2527, %v2523
        %v3211 = vpack.c.bf16 %v2529, %v2525
        %v3212 = vpack.c.bf16 %v2535, %v2531
        %v3213 = vpack.c.bf16 %v2537, %v2533
        %v3214 = vpack.c.bf16 %v2543, %v2539
        %v3215 = vpack.c.bf16 %v2545, %v2541
        %v3216 = vpack.c.bf16 %v2551, %v2547
        %v3217 = vpack.c.bf16 %v2553, %v2549
        %v3218 = vpack.c.bf16 %v2559, %v2555
        %v3219 = vpack.c.bf16 %v2561, %v2557
        %v3220 = vpack.c.bf16 %v2567, %v2563
        %v3221 = vpack.c.bf16 %v2569, %v2565
        %v3222 = vpack.c.bf16 %v2575, %v2571
        %v3223 = vpack.c.bf16 %v2577, %v2573
        %v3224 = vpack.c.bf16 %v2583, %v2579
        %v3225 = vpack.c.bf16 %v2585, %v2581
        %v3226 = vpack.c.bf16 %v2591, %v2587
        %v3227 = vpack.c.bf16 %v2593, %v2589
        %v3228 = vpack.c.bf16 %v2599, %v2595
        %v3229 = vpack.c.bf16 %v2601, %v2597
        %v3230 = vpack.c.bf16 %v2607, %v2603
        %v3231 = vpack.c.bf16 %v2609, %v2605
        %v3232 = vpack.c.bf16 %v2615, %v2611
        %v3233 = vpack.c.bf16 %v2617, %v2613
        %v3234 = vpack.c.bf16 %v2623, %v2619
        %v3235 = vpack.c.bf16 %v2625, %v2621
        %v3236 = vpack.c.bf16 %v2631, %v2627
        %v3237 = vpack.c.bf16 %v2633, %v2629
        %v3238 = vpack.c.bf16 %v2639, %v2635
        %v3239 = vpack.c.bf16 %v2641, %v2637
        %v3240 = vpack.c.bf16 %v2647, %v2643
        %v3241 = vpack.c.bf16 %v2649, %v2645
        %v3242 = vpack.c.bf16 %v2655, %v2651
        %v3243 = vpack.c.bf16 %v2657, %v2653
        %v3244 = vpack.c.bf16 %v2663, %v2659
        %v3245 = vpack.c.bf16 %v2665, %v2661
        %v3246 = vpack.c.bf16 %v2671, %v2667
        %v3247 = vpack.c.bf16 %v2673, %v2669
        %v3248 = vpack.c.bf16 %v2679, %v2675
        %v3249 = vpack.c.bf16 %v2681, %v2677
        %v3250 = vpack.c.bf16 %v2687, %v2683
        %v3251 = vpack.c.bf16 %v2689, %v2685
        %v3252 = vpack.c.bf16 %v2695, %v2691
        %v3253 = vpack.c.bf16 %v2697, %v2693
        %v3254 = vpack.c.bf16 %v2703, %v2699
        %v3255 = vpack.c.bf16 %v2705, %v2701
        %v3256 = vpack.c.bf16 %v2711, %v2707
        %v3257 = vpack.c.bf16 %v2713, %v2709
        %v3258 = vpack.c.bf16 %v2719, %v2715
        %v3259 = vpack.c.bf16 %v2721, %v2717
        %v3260 = vpack.c.bf16 %v2727, %v2723
        %v3261 = vpack.c.bf16 %v2729, %v2725
        %v3262 = vpack.c.bf16 %v2735, %v2731
        %v3263 = vpack.c.bf16 %v2737, %v2733
        %v3264 = vpack.c.bf16 %v2743, %v2739
        %v3265 = vpack.c.bf16 %v2745, %v2741
        %v3266 = vpack.c.bf16 %v2751, %v2747
        %v3267 = vpack.c.bf16 %v2753, %v2749
        %v3268 = vpack.c.bf16 %v2759, %v2755
        %v3269 = vpack.c.bf16 %v2761, %v2757
        %v3270 = vpack.c.bf16 %v2767, %v2763
        %v3271 = vpack.c.bf16 %v2769, %v2765
        %v3272 = vpack.c.bf16 %v2775, %v2771
        %v3273 = vpack.c.bf16 %v2777, %v2773
        %v3274 = vpack.c.bf16 %v2783, %v2779
        %v3275 = vpack.c.bf16 %v2785, %v2781
        %v3276 = vpack.c.bf16 %v2791, %v2787
        %v3277 = vpack.c.bf16 %v2793, %v2789
        %v3278 = vpack.c.bf16 %v2799, %v2795
        %v3279 = vpack.c.bf16 %v2801, %v2797
        %v3280 = vpack.c.bf16 %v2807, %v2803
        %v3281 = vpack.c.bf16 %v2809, %v2805
        %v3282 = vpack.c.bf16 %v2815, %v2811
        %v3283 = vpack.c.bf16 %v2817, %v2813
        %v3284 = vpack.c.bf16 %v2823, %v2819
        %v3285 = vpack.c.bf16 %v2825, %v2821
        %v3286 = vpack.c.bf16 %v2831, %v2827
        %v3287 = vpack.c.bf16 %v2833, %v2829
        %v3288 = vpack.c.bf16 %v2839, %v2835
        %v3289 = vpack.c.bf16 %v2841, %v2837
        %v3290 = vpack.c.bf16 %v2847, %v2843
        %v3291 = vpack.c.bf16 %v2849, %v2845
        %v3292 = vpack.c.bf16 %v2855, %v2851
        %v3293 = vpack.c.bf16 %v2857, %v2853
        %v3294 = vpack.c.bf16 %v2863, %v2859
        %v3295 = vpack.c.bf16 %v2865, %v2861
        %v3296 = vpack.c.bf16 %v2871, %v2867
        %v3297 = vpack.c.bf16 %v2873, %v2869
        %3298 = vmatprep.subr.bf16.mxu0 %v3171
        %3299 = vmatpush1.bf16.msra.mxu0 %v3170
        %3300 = vmatprep.subr.bf16.mxu0 %v3173
        %3301 = vmatpush1.bf16.msra.mxu0 %v3172
        %3302 = vmatprep.subr.bf16.mxu0 %v3175
        %3303 = vmatpush1.bf16.msra.mxu0 %v3174
        %3304 = vmatprep.subr.bf16.mxu0 %v3177
        %3305 = vmatpush1.bf16.msra.mxu0 %v3176
        %3306 = vmatprep.subr.bf16.mxu0 %v3179
        %3307 = vmatpush1.bf16.msra.mxu0 %v3178
        %3308 = vmatprep.subr.bf16.mxu0 %v3181
        %3309 = vmatpush1.bf16.msra.mxu0 %v3180
        %3310 = vmatprep.subr.bf16.mxu0 %v3183
        %3311 = vmatpush1.bf16.msra.mxu0 %v3182
        %3312 = vmatprep.subr.bf16.mxu0 %v3185
        %3313 = vmatpush1.bf16.msra.mxu0 %v3184
        %3314 = vmatprep.subr.bf16.mxu0 %v3187
        %3315 = vmatpush1.bf16.msra.mxu0 %v3186
        %3316 = vmatprep.subr.bf16.mxu0 %v3189
        %3317 = vmatpush1.bf16.msra.mxu0 %v3188
        %3318 = vmatprep.subr.bf16.mxu0 %v3191
        %3319 = vmatpush1.bf16.msra.mxu0 %v3190
        %3320 = vmatprep.subr.bf16.mxu0 %v3193
        %3321 = vmatpush1.bf16.msra.mxu0 %v3192
        %3322 = vmatprep.subr.bf16.mxu0 %v3195
        %3323 = vmatpush1.bf16.msra.mxu0 %v3194
        %3324 = vmatprep.subr.bf16.mxu0 %v3197
        %3325 = vmatpush1.bf16.msra.mxu0 %v3196
        %3326 = vmatprep.subr.bf16.mxu0 %v3199
        %3327 = vmatpush1.bf16.msra.mxu0 %v3198
        %3328 = vmatprep.subr.bf16.mxu0 %v3201
        %3329 = vmatpush1.bf16.msra.mxu0 %v3200
        %3330 = vmatprep.mubr.bf16.mxu0 %v685
        %3331 = vmatmul.mubr.bf16.gmra.mrb[0].mxu0 %v684
        %v3332 = vpop.f32.mrb[0].mxu0
        %v3333 = vadd.f32 0.0, %v3332
        %v3334 = vpop.f32.mrb[0].mxu0
        %v3335 = vadd.f32 0.0, %v3334
        %v3336 = vpop.f32.mrb[0].mxu0
        %v3337 = vpop.f32.mrb[0].mxu0
        %3338 = vdwg.mxu0
        %3339 = vmatprep.subr.bf16.mxu0 %v3203
        %3340 = vmatpush1.bf16.msra.mxu0 %v3202
        %3341 = vmatprep.subr.bf16.mxu0 %v3205
        %3342 = vmatpush1.bf16.msra.mxu0 %v3204
        %3343 = vmatprep.subr.bf16.mxu0 %v3207
        %3344 = vmatpush1.bf16.msra.mxu0 %v3206
        %3345 = vmatprep.subr.bf16.mxu0 %v3209
        %3346 = vmatpush1.bf16.msra.mxu0 %v3208
        %3347 = vmatprep.subr.bf16.mxu0 %v3211
        %3348 = vmatpush1.bf16.msra.mxu0 %v3210
        %3349 = vmatprep.subr.bf16.mxu0 %v3213
        %3350 = vmatpush1.bf16.msra.mxu0 %v3212
        %3351 = vmatprep.subr.bf16.mxu0 %v3215
        %3352 = vmatpush1.bf16.msra.mxu0 %v3214
        %3353 = vmatprep.subr.bf16.mxu0 %v3217
        %3354 = vmatpush1.bf16.msra.mxu0 %v3216
        %3355 = vmatprep.subr.bf16.mxu0 %v3219
        %3356 = vmatpush1.bf16.msra.mxu0 %v3218
        %3357 = vmatprep.subr.bf16.mxu0 %v3221
        %3358 = vmatpush1.bf16.msra.mxu0 %v3220
        %3359 = vmatprep.subr.bf16.mxu0 %v3223
        %3360 = vmatpush1.bf16.msra.mxu0 %v3222
        %3361 = vmatprep.subr.bf16.mxu0 %v3225
        %3362 = vmatpush1.bf16.msra.mxu0 %v3224
        %3363 = vmatprep.subr.bf16.mxu0 %v3227
        %3364 = vmatpush1.bf16.msra.mxu0 %v3226
        %3365 = vmatprep.subr.bf16.mxu0 %v3229
        %3366 = vmatpush1.bf16.msra.mxu0 %v3228
        %3367 = vmatprep.subr.bf16.mxu0 %v3231
        %3368 = vmatpush1.bf16.msra.mxu0 %v3230
        %3369 = vmatprep.subr.bf16.mxu0 %v3233
        %3370 = vmatpush1.bf16.msra.mxu0 %v3232
        %3371 = vmatprep.mubr.bf16.mxu0 %v687
        %3372 = vmatmul.mubr.bf16.gmra.mrb[0].mxu0 %v686
        %v3373 = vpop.f32.mrb[0].mxu0
        %v3374 = vadd.f32 0.0, %v3373
        %v3375 = vpop.f32.mrb[0].mxu0
        %v3376 = vadd.f32 0.0, %v3375
        %v3377 = vpop.f32.mrb[0].mxu0
        %v3378 = vpop.f32.mrb[0].mxu0
        %3379 = vdwg.mxu0
        %3380 = vmatprep.subr.bf16.mxu0 %v3235
        %3381 = vmatpush1.bf16.msra.mxu0 %v3234
        %3382 = vmatprep.subr.bf16.mxu0 %v3237
        %3383 = vmatpush1.bf16.msra.mxu0 %v3236
        %3384 = vmatprep.subr.bf16.mxu0 %v3239
        %3385 = vmatpush1.bf16.msra.mxu0 %v3238
        %3386 = vmatprep.subr.bf16.mxu0 %v3241
        %3387 = vmatpush1.bf16.msra.mxu0 %v3240
        %3388 = vmatprep.subr.bf16.mxu0 %v3243
        %3389 = vmatpush1.bf16.msra.mxu0 %v3242
        %3390 = vmatprep.subr.bf16.mxu0 %v3245
        %3391 = vmatpush1.bf16.msra.mxu0 %v3244
        %3392 = vmatprep.subr.bf16.mxu0 %v3247
        %3393 = vmatpush1.bf16.msra.mxu0 %v3246
        %3394 = vmatprep.subr.bf16.mxu0 %v3249
        %3395 = vmatpush1.bf16.msra.mxu0 %v3248
        %3396 = vmatprep.subr.bf16.mxu0 %v3251
        %3397 = vmatpush1.bf16.msra.mxu0 %v3250
        %3398 = vmatprep.subr.bf16.mxu0 %v3253
        %3399 = vmatpush1.bf16.msra.mxu0 %v3252
        %3400 = vmatprep.subr.bf16.mxu0 %v3255
        %3401 = vmatpush1.bf16.msra.mxu0 %v3254
        %3402 = vmatprep.subr.bf16.mxu0 %v3257
        %3403 = vmatpush1.bf16.msra.mxu0 %v3256
        %3404 = vmatprep.subr.bf16.mxu0 %v3259
        %3405 = vmatpush1.bf16.msra.mxu0 %v3258
        %3406 = vmatprep.subr.bf16.mxu0 %v3261
        %3407 = vmatpush1.bf16.msra.mxu0 %v3260
        %3408 = vmatprep.subr.bf16.mxu0 %v3263
        %3409 = vmatpush1.bf16.msra.mxu0 %v3262
        %3410 = vmatprep.subr.bf16.mxu0 %v3265
        %3411 = vmatpush1.bf16.msra.mxu0 %v3264
        %3412 = vmatprep.mubr.bf16.mxu0 %v689
        %3413 = vmatmul.mubr.bf16.gmra.mrb[0].mxu0 %v688
        %v3414 = vpop.f32.mrb[0].mxu0
        %v3415 = vadd.f32 0.0, %v3414
        %v3416 = vpop.f32.mrb[0].mxu0
        %v3417 = vadd.f32 0.0, %v3416
        %v3418 = vpop.f32.mrb[0].mxu0
        %v3419 = vpop.f32.mrb[0].mxu0
        %3420 = vdwg.mxu0
        %3421 = vmatprep.subr.bf16.mxu0 %v3267
        %3422 = vmatpush1.bf16.msra.mxu0 %v3266
        %3423 = vmatprep.subr.bf16.mxu0 %v3269
        %3424 = vmatpush1.bf16.msra.mxu0 %v3268
        %3425 = vmatprep.subr.bf16.mxu0 %v3271
        %3426 = vmatpush1.bf16.msra.mxu0 %v3270
        %3427 = vmatprep.subr.bf16.mxu0 %v3273
        %3428 = vmatpush1.bf16.msra.mxu0 %v3272
        %3429 = vmatprep.subr.bf16.mxu0 %v3275
        %3430 = vmatpush1.bf16.msra.mxu0 %v3274
        %3431 = vmatprep.subr.bf16.mxu0 %v3277
        %3432 = vmatpush1.bf16.msra.mxu0 %v3276
        %3433 = vmatprep.subr.bf16.mxu0 %v3279
        %3434 = vmatpush1.bf16.msra.mxu0 %v3278
        %3435 = vmatprep.subr.bf16.mxu0 %v3281
        %3436 = vmatpush1.bf16.msra.mxu0 %v3280
        %3437 = vmatprep.subr.bf16.mxu0 %v3283
        %3438 = vmatpush1.bf16.msra.mxu0 %v3282
        %3439 = vmatprep.subr.bf16.mxu0 %v3285
        %3440 = vmatpush1.bf16.msra.mxu0 %v3284
        %3441 = vmatprep.subr.bf16.mxu0 %v3287
        %3442 = vmatpush1.bf16.msra.mxu0 %v3286
        %3443 = vmatprep.subr.bf16.mxu0 %v3289
        %3444 = vmatpush1.bf16.msra.mxu0 %v3288
        %3445 = vmatprep.subr.bf16.mxu0 %v3291
        %3446 = vmatpush1.bf16.msra.mxu0 %v3290
        %3447 = vmatprep.subr.bf16.mxu0 %v3293
        %3448 = vmatpush1.bf16.msra.mxu0 %v3292
        %3449 = vmatprep.subr.bf16.mxu0 %v3295
        %3450 = vmatpush1.bf16.msra.mxu0 %v3294
        %3451 = vmatprep.subr.bf16.mxu0 %v3297
        %3452 = vmatpush1.bf16.msra.mxu0 %v3296
        %3453 = vmatprep.mubr.bf16.mxu0 %v691
        %3454 = vmatmul.mubr.bf16.gmra.mrb[0].mxu0 %v690
        %v3455 = vpop.f32.mrb[0].mxu0
        %v3456 = vadd.f32 0.0, %v3455
        %v3457 = vpop.f32.mrb[0].mxu0
        %v3458 = vadd.f32 0.0, %v3457
        %v3459 = vpop.f32.mrb[0].mxu0
        %v3460 = vpop.f32.mrb[0].mxu0
        %3461 = vdwg.mxu0
        %v3462 = vrcp.pop %v2910
        %v3463 = vrcp.pop %v2947
        %v3464 = vrcp.pop %v2984
        %v3465 = vrcp.pop %v3021
        %v3466 = vrcp.pop %v3058
        %v3467 = vrcp.pop %v3095
        %v3468 = vrcp.pop %v3132
        %v3469 = vrcp.pop %v3169
        %v3470 = vmul.f32 %v3333, %v3462
        %v3471 = vmul.f32 %v3335, %v3463
        %v3472 = vmul.f32 %v3374, %v3464
        %v3473 = vmul.f32 %v3376, %v3465
        %v3474 = vmul.f32 %v3415, %v3466
        %v3475 = vmul.f32 %v3417, %v3467
        %v3476 = vmul.f32 %v3456, %v3468
        %v3477 = vmul.f32 %v3458, %v3469
        %v3478 = vpack.c.bf16 %v3472, %v3470
        %v3479 = vpack.c.bf16 %v3473, %v3471
        %v3480 = vpack.c.bf16 %v3476, %v3474
        %v3481 = vpack.c.bf16 %v3477, %v3475
        %3483 = vset.pattern.permute.xlu0 0
        %3484 = vperm.xlu0 %3483, %v314
        %v3485 = vpop.permute.xlu0 %3484
        %3488 = vset.pattern.permute.xlu0 0
        %3489 = vperm.xlu0 %3488, %v315
        %v3490 = vpop.permute.xlu0 %3489
        %3493 = vset.pattern.permute.xlu0 0
        %3494 = vperm.xlu0 %3493, %v316
        %v3495 = vpop.permute.xlu0 %3494
        %3498 = vset.pattern.permute.xlu0 0
        %3499 = vperm.xlu0 %3498, %v317
        %v3500 = vpop.permute.xlu0 %3499
        %v3506 = vunpack.c.l.b16 %v310
        %v3507 = vunpack.c.l.b16 %v311
        %v3508 = vunpack.c.l.b16 %v312
        %v3509 = vunpack.c.l.b16 %v313
        %v3510 = vpack.c.b16 %v3507, %v3506
        %v3511 = vpack.c.b16 %v3509, %v3508
        %v3513 = vsel %vm556, %v3510, 0
        %v3516 = vsel %vm556, %v3511, 0
        %3518 = vmatprep.subr.bf16.mxu0 %v3479
        %3519 = vmatpush1.bf16.msra.mxu0 %v3478
        %3520 = vmatprep.subr.bf16.mxu0 %v3481
        %3521 = vmatpush1.bf16.msra.mxu0 %v3480
        %3522 = vmatprep.subr.bf16.mxu0 0
        %3523 = vmatpush1.bf16.msra.mxu0 0
        %3524 = vmatprep.subr.bf16.mxu0 0
        %3525 = vmatpush1.bf16.msra.mxu0 0
        %3526 = vmatprep.subr.bf16.mxu0 0
        %3527 = vmatpush1.bf16.msra.mxu0 0
        %3528 = vmatprep.subr.bf16.mxu0 0
        %3529 = vmatpush1.bf16.msra.mxu0 0
        %3530 = vmatprep.subr.bf16.mxu0 0
        %3531 = vmatpush1.bf16.msra.mxu0 0
        %3532 = vmatprep.subr.bf16.mxu0 0
        %3533 = vmatpush1.bf16.msra.mxu0 0
        %3534 = vmatprep.subr.bf16.mxu0 0
        %3535 = vmatpush1.bf16.msra.mxu0 0
        %3536 = vmatprep.subr.bf16.mxu0 0
        %3537 = vmatpush1.bf16.msra.mxu0 0
        %3538 = vmatprep.subr.bf16.mxu0 0
        %3539 = vmatpush1.bf16.msra.mxu0 0
        %3540 = vmatprep.subr.bf16.mxu0 0
        %3541 = vmatpush1.bf16.msra.mxu0 0
        %3542 = vmatprep.subr.bf16.mxu0 0
        %3543 = vmatpush1.bf16.msra.mxu0 0
        %3544 = vmatprep.subr.bf16.mxu0 0
        %3545 = vmatpush1.bf16.msra.mxu0 0
        %3546 = vmatprep.subr.bf16.mxu0 0
        %3547 = vmatpush1.bf16.msra.mxu0 0
        %3548 = vmatprep.subr.bf16.mxu0 0
        %3549 = vmatpush1.bf16.msra.mxu0 0
        %3550 = vmatprep.mubr.bf16.mxu0 0
        %3551 = vmatmul.mubr.bf16.gmra.mrb[0].mxu0 %v3513
        %v3552 = vpop.f32.mrb[0].mxu0
        %v3553 = vadd.f32 %v3485, %v3552
        %v3554 = vpop.f32.mrb[0].mxu0
        %v3555 = vadd.f32 %v3485, %v3554
        %v3556 = vpop.f32.mrb[0].mxu0
        %v3557 = vadd.f32 %v3490, %v3556
        %v3558 = vpop.f32.mrb[0].mxu0
        %v3559 = vadd.f32 %v3490, %v3558
        %3560 = vmatprep.mubr.bf16.mxu0 0
        %3561 = vmatmul.mubr.bf16.gmra.mrb[0].mxu0 %v3516
        %v3562 = vpop.f32.mrb[0].mxu0
        %v3563 = vadd.f32 %v3495, %v3562
        %v3564 = vpop.f32.mrb[0].mxu0
        %v3565 = vadd.f32 %v3495, %v3564
        %v3566 = vpop.f32.mrb[0].mxu0
        %v3567 = vadd.f32 %v3500, %v3566
        %v3568 = vpop.f32.mrb[0].mxu0
        %v3569 = vadd.f32 %v3500, %v3568
        %3570 = vdwg.mxu0
        %v3571 = vadd.f32 %v318, %v3553
        %v3572 = vadd.f32 %v319, %v3555
        %v3573 = vadd.f32 %v320, %v3557
        %v3574 = vadd.f32 %v321, %v3559
        %v3575 = vadd.f32 %v322, %v3563
        %v3576 = vadd.f32 %v323, %v3565
        %v3577 = vadd.f32 %v324, %v3567
        %v3578 = vadd.f32 %v325, %v3569
        %3579 = vst [vmem:[%s271] sm:$0xff] %v3571
        %3580 = vst [vmem:[%s271 + $0x8] sm:$0xff] %v3572
        %3581 = vst [vmem:[%s271 + $0x10] sm:$0xff] %v3573
        %3582 = vst [vmem:[%s271 + $0x18] sm:$0xff] %v3574
        %3583 = vst [vmem:[%s271 + $0x20] sm:$0xff] %v3575
        %3584 = vst [vmem:[%s271 + $0x28] sm:$0xff] %v3576
        %3585 = vst [vmem:[%s271 + $0x30] sm:$0xff] %v3577
        %3586 = vst [vmem:[%s271 + $0x38] sm:$0xff] %v3578
        %s3587 = sand.u32 %s181, 1
        %s3588 = scalar_lea.sflag [#allocation3], %s3587
        %s3589 = sand.u32 %s181, 1
        %s3590 = smul.addr %s3589, 64
        %s3591 = scalar_lea.vmem [#allocation2], %s3590
        // Predicated region
        $region49: #{tpu_custom_call.1} parent=47 // pred_check
          %p3592 = pneg %p191
        $region50: #{tpu_custom_call.1} parent=47 // pred_check_branch
          %3594 = sbr.rel (%p3592) target = $region52
        $region51: #{tpu_custom_call.1} parent=47 // pred_region
          %s3596 = ssub.s32 1024, 1024
          %3597 = vsyncadd %s3588, %s3596
          %s3598 = smul.addr %s21, 8
          %s3599 = smul.addr %s3598, 128
          %s3600 = scalar_lea.hbm %s7, %s3599
          %s3601 = sshll.u32 %s3591, 4
          %s3602 = int_to_ptr.vmem [resolvable:$true] %s3601
          %3607 = dma.vmem_to_hbm [thread:$0]  %s3602, 1024, %s3600, %s3588, 256, 256, 16
        $region52: #{tpu_custom_call.1} parent=47 // pred_fallthru
          _
      $region48: #{tpu_custom_call.1} parent=5 // pred_fallthru
        _
      %p3608 = scmp.le.s32.totalorder 2, %s16
      // Predicated region
      $region53: #{tpu_custom_call.1} parent=5 // pred_check
        %p3609 = pneg %p3608
      $region54: #{tpu_custom_call.1} parent=5 // pred_check_branch
        %3611 = sbr.rel (%p3609) target = $region56
      $region55: #{tpu_custom_call.1} parent=5 // pred_region
        %s3612 = ssub.s32 %s16, 2
        // Predicated region
        $region57: #{tpu_custom_call.1} parent=55 // pred_check
          %p3613 = pneg %p197
        $region58: #{tpu_custom_call.1} parent=55 // pred_check_branch
          %3615 = sbr.rel (%p3613) target = $region60
        $region59: #{tpu_custom_call.1} parent=55 // pred_region
          %s3616 = sand.u32 %s182, 1
          %s3617 = scalar_lea.sflag [#allocation3], %s3616
          %s3618 = sand.u32 %s182, 1
          %s3619 = smul.addr %s3618, 64
          %s3620 = scalar_lea.vmem [#allocation2], %s3619
          %3621 = dma.done %s3617, 1024
        $region60: #{tpu_custom_call.1} parent=55 // pred_fallthru
          _
      $region56: #{tpu_custom_call.1} parent=5 // pred_fallthru
        _
    $region6: #{tpu_custom_call.1} parent=1 // loop_footer
      %s20 = sadd.s32 1, %s16
    $region7: #{tpu_custom_call.1} parent=1 // loop_footer_branch
      %15 = sbr.rel target = $region3
    $region8: #{tpu_custom_call.1} parent=1 // loop_exit
      _
    %3622 = vsyncpa [#allocation3], 1
    %s3623 = scalar_lea.sflag [#allocation3], 1
    %3624 = vsyncpa %s3623, 1

// kernel: tpu_custom_call.1
$region0: #{tpu_custom_call.1}
  #allocation0 [shape = 'u32[]', space=smem, size = 0x4, offset = 0x4, fixed_abs, tag = 'smem constant byte address 0x4 - core index']
  #allocation1 [shape = 'u32[144,128]{1,0:T(1,128)}', space=vmem, size = 0x12000, scoped, tag = 'internal scratch']
  %s0 = inlined_call_operand.vmem [shape: f32[2,32,256], index: 0, kind: input, shape index: {}]
  %s1 = inlined_call_operand.vmem [shape: f32[32,1], index: 1, kind: input, shape index: {}]
  %s2 = inlined_call_operand.vmem [shape: f32[32,1], index: 2, kind: input, shape index: {}]
  %s3 = inlined_call_operand.vmem [shape: bf16[96,32], index: 3, kind: input, shape index: {}]
  %s4 = inlined_call_operand.vmem [shape: f32[96,1], index: 4, kind: input, shape index: {}]
  %s5 = inlined_call_operand.vmem [shape: bf16[32,32], index: 5, kind: input, shape index: {}]
  %s6 = inlined_call_operand.vmem [shape: f32[32,1], index: 6, kind: input, shape index: {}]
  %s7 = inlined_call_operand.hbm [shape: f32[2,32,256], index: 7, kind: output, shape index: {}]
  %s8 = sld [smem:[#allocation0]]
  $region61: #{tpu_custom_call.1} parent=0
    _
  %s10 = ssub.s32 1, %s8
  %s11 = scalar_select 0, %s10, %s8
  $region1: #{tpu_custom_call.1} parent=0
    #allocation2 [shape = 'u8[65536]{0}', space=vmem, size = 0x10000, scoped, tag = 'output window, operand 0']
    #allocation3 [shape = 's32[2]{0}', space=sflag, size = 0x8, scoped, tag = 'scoped memory for tpu_custom_call.1']
    %12 = vsyncpa [#allocation3], 0
    %s13 = scalar_lea.sflag [#allocation3], 1
    %14 = vsyncpa %s13, 0
    loop: start=0, step=1, limit=4
    $region2: #{tpu_custom_call.1} parent=1 // loop_pre_header
      _
    $region3: #{tpu_custom_call.1} parent=1 // loop_header
      %s16 = sphi 0, %s20
      %p17 = scmp.ge.s32.totalorder %s16, 4
      %s26 = sphi 0, %s28
      %s29 = sphi 0, %s26
      %s30 = sphi 0, %s29
      %s46 = sphi 0, %s30
      %s50 = sphi 0, %s50
      %s52 = sphi 0, %s50
      %s53 = sphi 0, %s52
      %s67 = sphi 0, %s53
      %s71 = sphi 0, %s71
      %s73 = sphi 0, %s71
      %s74 = sphi 0, %s73
      %s88 = sphi 0, %s74
      %s92 = sphi 0, %s92
      %s94 = sphi 0, %s92
      %s95 = sphi 0, %s94
      %s109 = sphi 0, %s95
      %s113 = sphi 0, %s113
      %s115 = sphi 0, %s113
      %s116 = sphi 0, %s115
      %s130 = sphi 0, %s116
      %s134 = sphi 0, %s134
      %s136 = sphi 0, %s134
      %s137 = sphi 0, %s136
      %s151 = sphi 0, %s137
      %s155 = sphi 0, %s155
      %s157 = sphi 0, %s155
      %s158 = sphi 0, %s157
      %s172 = sphi 0, %s158
      %s178 = sphi 0, %s180
      %s181 = sphi 0, %s178
      %s182 = sphi 0, %s181
      %s198 = sphi 0, %s182
    $region4: #{tpu_custom_call.1} parent=1 // loop_header_branch
      %19 = sbr.rel (%p17) target = $region8
    $region5: #{tpu_custom_call.1} parent=1 // loop_body
      %s21 = ssub.s32 %s16, 1
      %s22 = ssub.s32 %s16, 2
      %s23 = sadd.s32 %s16, 1
      %s24 = ssub.s32 %s16, %s23
      %p25 = scmp.eq.s32.totalorder %s24, 0
      %s27 = sadd.s32 %s26, 1
      %s28 = scalar_select %p25, %s26, %s27
      %p31 = pneg %p25
      %p32 = scmp.eq.s32.totalorder %s16, 1
      %p33 = por %p31, %p32
      %p34 = scmp.ne.s32.totalorder %s26, %s29
      %p35 = scmp.eq.s32.totalorder %s16, 0
      %p36 = por %p34, %p35
      %p37 = scmp.ne.s32.totalorder %s26, %s29
      %p38 = scmp.eq.s32.totalorder %s21, 1
      %p39 = por %p37, %p38
      %p40 = scmp.ne.s32.totalorder %s29, %s30
      %p41 = scmp.eq.s32.totalorder %s21, 0
      %p42 = por %p40, %p41
      %p43 = scmp.ne.s32.totalorder %s29, %s30
      %p44 = scmp.eq.s32.totalorder %s22, 1
      %p45 = por %p43, %p44
      %p47 = scmp.ne.s32.totalorder %s30, %s46
      %p48 = scmp.eq.s32.totalorder %s22, 0
      %p49 = por %p47, %p48
      %s51 = sadd.s32 %s50, 1
      %p54 = scmp.eq.s32.totalorder %s16, 1
      %p55 = scmp.ne.s32.totalorder %s50, %s52
      %p56 = scmp.eq.s32.totalorder %s16, 0
      %p57 = por %p55, %p56
      %p58 = scmp.ne.s32.totalorder %s50, %s52
      %p59 = scmp.eq.s32.totalorder %s21, 1
      %p60 = por %p58, %p59
      %p61 = scmp.ne.s32.totalorder %s52, %s53
      %p62 = scmp.eq.s32.totalorder %s21, 0
      %p63 = por %p61, %p62
      %p64 = scmp.ne.s32.totalorder %s52, %s53
      %p65 = scmp.eq.s32.totalorder %s22, 1
      %p66 = por %p64, %p65
      %p68 = scmp.ne.s32.totalorder %s53, %s67
      %p69 = scmp.eq.s32.totalorder %s22, 0
      %p70 = por %p68, %p69
      %s72 = sadd.s32 %s71, 1
      %p75 = scmp.eq.s32.totalorder %s16, 1
      %p76 = scmp.ne.s32.totalorder %s71, %s73
      %p77 = scmp.eq.s32.totalorder %s16, 0
      %p78 = por %p76, %p77
      %p79 = scmp.ne.s32.totalorder %s71, %s73
      %p80 = scmp.eq.s32.totalorder %s21, 1
      %p81 = por %p79, %p80
      %p82 = scmp.ne.s32.totalorder %s73, %s74
      %p83 = scmp.eq.s32.totalorder %s21, 0
      %p84 = por %p82, %p83
      %p85 = scmp.ne.s32.totalorder %s73, %s74
      %p86 = scmp.eq.s32.totalorder %s22, 1
      %p87 = por %p85, %p86
      %p89 = scmp.ne.s32.totalorder %s74, %s88
      %p90 = scmp.eq.s32.totalorder %s22, 0
      %p91 = por %p89, %p90
      %s93 = sadd.s32 %s92, 1
      %p96 = scmp.eq.s32.totalorder %s16, 1
      %p97 = scmp.ne.s32.totalorder %s92, %s94
      %p98 = scmp.eq.s32.totalorder %s16, 0
      %p99 = por %p97, %p98
      %p100 = scmp.ne.s32.totalorder %s92, %s94
      %p101 = scmp.eq.s32.totalorder %s21, 1
      %p102 = por %p100, %p101
      %p103 = scmp.ne.s32.totalorder %s94, %s95
      %p104 = scmp.eq.s32.totalorder %s21, 0
      %p105 = por %p103, %p104
      %p106 = scmp.ne.s32.totalorder %s94, %s95
      %p107 = scmp.eq.s32.totalorder %s22, 1
      %p108 = por %p106, %p107
      %p110 = scmp.ne.s32.totalorder %s95, %s109
      %p111 = scmp.eq.s32.totalorder %s22, 0
      %p112 = por %p110, %p111
      %s114 = sadd.s32 %s113, 1
      %p117 = scmp.eq.s32.totalorder %s16, 1
      %p118 = scmp.ne.s32.totalorder %s113, %s115
      %p119 = scmp.eq.s32.totalorder %s16, 0
      %p120 = por %p118, %p119
      %p121 = scmp.ne.s32.totalorder %s113, %s115
      %p122 = scmp.eq.s32.totalorder %s21, 1
      %p123 = por %p121, %p122
      %p124 = scmp.ne.s32.totalorder %s115, %s116
      %p125 = scmp.eq.s32.totalorder %s21, 0
      %p126 = por %p124, %p125
      %p127 = scmp.ne.s32.totalorder %s115, %s116
      %p128 = scmp.eq.s32.totalorder %s22, 1
      %p129 = por %p127, %p128
      %p131 = scmp.ne.s32.totalorder %s116, %s130
      %p132 = scmp.eq.s32.totalorder %s22, 0
      %p133 = por %p131, %p132
      %s135 = sadd.s32 %s134, 1
      %p138 = scmp.eq.s32.totalorder %s16, 1
      %p139 = scmp.ne.s32.totalorder %s134, %s136
      %p140 = scmp.eq.s32.totalorder %s16, 0
      %p141 = por %p139, %p140
      %p142 = scmp.ne.s32.totalorder %s134, %s136
      %p143 = scmp.eq.s32.totalorder %s21, 1
      %p144 = por %p142, %p143
      %p145 = scmp.ne.s32.totalorder %s136, %s137
      %p146 = scmp.eq.s32.totalorder %s21, 0
      %p147 = por %p145, %p146
      %p148 = scmp.ne.s32.totalorder %s136, %s137
      %p149 = scmp.eq.s32.totalorder %s22, 1
      %p150 = por %p148, %p149
      %p152 = scmp.ne.s32.totalorder %s137, %s151
      %p153 = scmp.eq.s32.totalorder %s22, 0
      %p154 = por %p152, %p153
      %s156 = sadd.s32 %s155, 1
      %p159 = scmp.eq.s32.totalorder %s16, 1
      %p160 = scmp.ne.s32.totalorder %s155, %s157
      %p161 = scmp.eq.s32.totalorder %s16, 0
      %p162 = por %p160, %p161
      %p163 = scmp.ne.s32.totalorder %s155, %s157
      %p164 = scmp.eq.s32.totalorder %s21, 1
      %p165 = por %p163, %p164
      %p166 = scmp.ne.s32.totalorder %s157, %s158
      %p167 = scmp.eq.s32.totalorder %s21, 0
      %p168 = por %p166, %p167
      %p169 = scmp.ne.s32.totalorder %s157, %s158
      %p170 = scmp.eq.s32.totalorder %s22, 1
      %p171 = por %p169, %p170
      %p173 = scmp.ne.s32.totalorder %s158, %s172
      %p174 = scmp.eq.s32.totalorder %s22, 0
      %p175 = por %p173, %p174
      %s176 = ssub.s32 %s16, %s23
      %p177 = scmp.eq.s32.totalorder %s176, 0
      %s179 = sadd.s32 %s178, 1
      %s180 = scalar_select %p177, %s178, %s179
      %p183 = pneg %p177
      %p184 = scmp.eq.s32.totalorder %s16, 1
      %p185 = por %p183, %p184
      %p186 = scmp.ne.s32.totalorder %s178, %s181
      %p187 = scmp.eq.s32.totalorder %s16, 0
      %p188 = por %p186, %p187
      %p189 = scmp.ne.s32.totalorder %s178, %s181
      %p190 = scmp.eq.s32.totalorder %s21, 1
      %p191 = por %p189, %p190
      %p192 = scmp.ne.s32.totalorder %s181, %s182
      %p193 = scmp.eq.s32.totalorder %s21, 0
      %p194 = por %p192, %p193
      %p195 = scmp.ne.s32.totalorder %s181, %s182
      %p196 = scmp.eq.s32.totalorder %s22, 1
      %p197 = por %p195, %p196
      %p199 = scmp.ne.s32.totalorder %s182, %s198
      %p200 = scmp.eq.s32.totalorder %s22, 0
      %p201 = por %p199, %p200
      %p202 = scmp.le.s32.totalorder 1, %s16
      %p203 = scmp.lt.s32.totalorder %s16, 3
      %p204 = pnand %p202, %p203
      %p205 = pneg %p204
      // Predicated region
      $region9: #{tpu_custom_call.1} parent=5 // pred_check
        _
      $region10: #{tpu_custom_call.1} parent=5 // pred_check_branch
        %207 = sbr.rel (%p204) target = $region12
      $region11: #{tpu_custom_call.1} parent=5 // pred_region
        %s208 = ssub.s32 %s16, 1
        // Predicated region
        $region13: #{tpu_custom_call.1} parent=11 // pred_check
          %p209 = pneg %p63
        $region14: #{tpu_custom_call.1} parent=11 // pred_check_branch
          %211 = sbr.rel (%p209) target = $region16
        $region15: #{tpu_custom_call.1} parent=11 // pred_region
          _
        $region16: #{tpu_custom_call.1} parent=11 // pred_fallthru
          _
        // Predicated region
        $region17: #{tpu_custom_call.1} parent=11 // pred_check
          %p212 = pneg %p84
        $region18: #{tpu_custom_call.1} parent=11 // pred_check_branch
          %214 = sbr.rel (%p212) target = $region20
        $region19: #{tpu_custom_call.1} parent=11 // pred_region
          _
        $region20: #{tpu_custom_call.1} parent=11 // pred_fallthru
          _
        // Predicated region
        $region21: #{tpu_custom_call.1} parent=11 // pred_check
          %p215 = pneg %p105
        $region22: #{tpu_custom_call.1} parent=11 // pred_check_branch
          %217 = sbr.rel (%p215) target = $region24
        $region23: #{tpu_custom_call.1} parent=11 // pred_region
          _
        $region24: #{tpu_custom_call.1} parent=11 // pred_fallthru
          _
        // Predicated region
        $region25: #{tpu_custom_call.1} parent=11 // pred_check
          %p218 = pneg %p126
        $region26: #{tpu_custom_call.1} parent=11 // pred_check_branch
          %220 = sbr.rel (%p218) target = $region28
        $region27: #{tpu_custom_call.1} parent=11 // pred_region
          _
        $region28: #{tpu_custom_call.1} parent=11 // pred_fallthru
          _
        // Predicated region
        $region29: #{tpu_custom_call.1} parent=11 // pred_check
          %p221 = pneg %p147
        $region30: #{tpu_custom_call.1} parent=11 // pred_check_branch
          %223 = sbr.rel (%p221) target = $region32
        $region31: #{tpu_custom_call.1} parent=11 // pred_region
          _
        $region32: #{tpu_custom_call.1} parent=11 // pred_fallthru
          _
        // Predicated region
        $region33: #{tpu_custom_call.1} parent=11 // pred_check
          %p224 = pneg %p168
        $region34: #{tpu_custom_call.1} parent=11 // pred_check_branch
          %226 = sbr.rel (%p224) target = $region36
        $region35: #{tpu_custom_call.1} parent=11 // pred_region
          _
        $region36: #{tpu_custom_call.1} parent=11 // pred_fallthru
          _
      $region12: #{tpu_custom_call.1} parent=5 // pred_fallthru
        _
      %p227 = scmp.lt.s32.totalorder %s16, 2
      // Predicated region
      $region37: #{tpu_custom_call.1} parent=5 // pred_check
        %p228 = pneg %p227
      $region38: #{tpu_custom_call.1} parent=5 // pred_check_branch
        %230 = sbr.rel (%p228) target = $region40
      $region39: #{tpu_custom_call.1} parent=5 // pred_region
        // Predicated region
        $region41: #{tpu_custom_call.1} parent=39 // pred_check
          %p231 = pneg %p36
        $region42: #{tpu_custom_call.1} parent=39 // pred_check_branch
          %233 = sbr.rel (%p231) target = $region44
        $region43: #{tpu_custom_call.1} parent=39 // pred_region
          %p234 = scmp.lt.s32.totalorder %s16, 1
          %s235 = scalar_select %p234, %s16, 1
          %s236 = smul.addr %s235, 8
          %s237 = smul.addr %s236, 8
          %s238 = scalar_lea.vmem %s0, %s237
        $region44: #{tpu_custom_call.1} parent=39 // pred_fallthru
          _
      $region40: #{tpu_custom_call.1} parent=5 // pred_fallthru
        _
      %p239 = scmp.le.s32.totalorder 1, %s16
      %p240 = scmp.lt.s32.totalorder %s16, 3
      %p241 = pnand %p239, %p240
      %p242 = pneg %p241
      // Predicated region
      $region45: #{tpu_custom_call.1} parent=5 // pred_check
        _
      $region46: #{tpu_custom_call.1} parent=5 // pred_check_branch
        %244 = sbr.rel (%p241) target = $region48
      $region47: #{tpu_custom_call.1} parent=5 // pred_region
        %s245 = ssub.s32 %s16, 1
        %p246 = scmp.lt.s32.totalorder %s21, 1
        %s247 = scalar_select %p246, %s21, 1
        %s248 = smul.addr %s247, 8
        %s249 = smul.addr %s248, 8
        %s250 = scalar_lea.vmem %s0, %s249
        %p251 = pneg %p42
        %p252 = pneg %p39
        %p253 = pneg %p63
        %p254 = pneg %p60
        %p255 = pneg %p84
        %p256 = pneg %p81
        %p257 = pneg %p105
        %p258 = pneg %p102
        %p259 = pneg %p126
        %p260 = pneg %p123
        %p261 = pneg %p147
        %p262 = pneg %p144
        %p263 = pneg %p168
        %p264 = pneg %p165
        %p265 = pneg %p194
        %p266 = pneg %p191
        %s267 = sand.u32 %s181, 1
        %s268 = scalar_lea.sflag [#allocation3], %s267
        %s269 = sand.u32 %s181, 1
        %s270 = smul.addr %s269, 64
        %s271 = scalar_lea.vmem [#allocation2], %s270
        %p272 = scmp.lt.s32.totalorder %s21, 1
        %s273 = scalar_select %p272, %s21, 1
        %s274 = smul.addr %s273, 8
        %s275 = smul.addr %s274, 8
        %s276 = scalar_lea.vmem %s0, %s275
        %v278 = vld [vmem:[%s1] sm:$0xff]
        %v279 = vld [vmem:[%s1 + $0x8] sm:$0xff]
        %v280 = vld [vmem:[%s1 + $0x10] sm:$0xff]
        %v281 = vld [vmem:[%s1 + $0x18] sm:$0xff]
        %v282 = vld [vmem:[%s2] sm:$0xff]
        %v283 = vld [vmem:[%s2 + $0x8] sm:$0xff]
        %v284 = vld [vmem:[%s2 + $0x10] sm:$0xff]
        %v285 = vld [vmem:[%s2 + $0x18] sm:$0xff]
        %v286 = vld [vmem:[%s3] sm:$0xf]
        %v287 = vld [vmem:[%s3 + $0x4] sm:$0xf]
        %v288 = vld [vmem:[%s3 + $0x8] sm:$0xf]
        %v289 = vld [vmem:[%s3 + $0xc] sm:$0xf]
        %v290 = vld [vmem:[%s3 + $0x10] sm:$0xf]
        %v291 = vld [vmem:[%s3 + $0x14] sm:$0xf]
        %v292 = vld [vmem:[%s3 + $0x18] sm:$0xf]
        %v293 = vld [vmem:[%s3 + $0x1c] sm:$0xf]
        %v294 = vld [vmem:[%s3 + $0x20] sm:$0xf]
        %v295 = vld [vmem:[%s3 + $0x24] sm:$0xf]
        %v296 = vld [vmem:[%s3 + $0x28] sm:$0xf]
        %v297 = vld [vmem:[%s3 + $0x2c] sm:$0xf]
        %v298 = vld [vmem:[%s4] sm:$0xff]
        %v299 = vld [vmem:[%s4 + $0x8] sm:$0xff]
        %v300 = vld [vmem:[%s4 + $0x10] sm:$0xff]
        %v301 = vld [vmem:[%s4 + $0x18] sm:$0xff]
        %v302 = vld [vmem:[%s4 + $0x20] sm:$0xff]
        %v303 = vld [vmem:[%s4 + $0x28] sm:$0xff]
        %v304 = vld [vmem:[%s4 + $0x30] sm:$0xff]
        %v305 = vld [vmem:[%s4 + $0x38] sm:$0xff]
        %v306 = vld [vmem:[%s4 + $0x40] sm:$0xff]
        %v307 = vld [vmem:[%s4 + $0x48] sm:$0xff]
        %v308 = vld [vmem:[%s4 + $0x50] sm:$0xff]
        %v309 = vld [vmem:[%s4 + $0x58] sm:$0xff]
        %v310 = vld [vmem:[%s5] sm:$0xf]
        %v311 = vld [vmem:[%s5 + $0x4] sm:$0xf]
        %v312 = vld [vmem:[%s5 + $0x8] sm:$0xf]
        %v313 = vld [vmem:[%s5 + $0xc] sm:$0xf]
        %v314 = vld [vmem:[%s6] sm:$0xff]
        %v315 = vld [vmem:[%s6 + $0x8] sm:$0xff]
        %v316 = vld [vmem:[%s6 + $0x10] sm:$0xff]
        %v317 = vld [vmem:[%s6 + $0x18] sm:$0xff]
        %v318 = vld [vmem:[%s276] sm:$0xff]
        %v319 = vld [vmem:[%s276 + $0x8] sm:$0xff]
        %v320 = vld [vmem:[%s276 + $0x10] sm:$0xff]
        %v321 = vld [vmem:[%s276 + $0x18] sm:$0xff]
        %v322 = vld [vmem:[%s276 + $0x20] sm:$0xff]
        %v323 = vld [vmem:[%s276 + $0x28] sm:$0xff]
        %v324 = vld [vmem:[%s276 + $0x30] sm:$0xff]
        %v325 = vld [vmem:[%s276 + $0x38] sm:$0xff]
        %v326 = vadd.f32 %v318, %v319
        %327 = vadd.xlane.f32.xlu0 %v326
        %v328 = vpop.xlane.xlu0 %327
        %v329 = vadd.f32 %v320, %v321
        %330 = vadd.xlane.f32.xlu0 %v329
        %v331 = vpop.xlane.xlu0 %330
        %v332 = vadd.f32 %v322, %v323
        %333 = vadd.xlane.f32.xlu0 %v332
        %v334 = vpop.xlane.xlu0 %333
        %v335 = vadd.f32 %v324, %v325
        %336 = vadd.xlane.f32.xlu0 %v335
        %v337 = vpop.xlane.xlu0 %336
        %v338 = vmul.f32 %v318, %v318
        %v339 = vmul.f32 %v319, %v319
        %v340 = vmul.f32 %v320, %v320
        %v341 = vmul.f32 %v321, %v321
        %v342 = vmul.f32 %v322, %v322
        %v343 = vmul.f32 %v323, %v323
        %v344 = vmul.f32 %v324, %v324
        %v345 = vmul.f32 %v325, %v325
        %v346 = vadd.f32 %v338, %v339
        %347 = vadd.xlane.f32.xlu0 %v346
        %v348 = vpop.xlane.xlu0 %347
        %v349 = vadd.f32 %v340, %v341
        %350 = vadd.xlane.f32.xlu0 %v349
        %v351 = vpop.xlane.xlu0 %350
        %v352 = vadd.f32 %v342, %v343
        %353 = vadd.xlane.f32.xlu0 %v352
        %v354 = vpop.xlane.xlu0 %353
        %v355 = vadd.f32 %v344, %v345
        %356 = vadd.xlane.f32.xlu0 %v355
        %v357 = vpop.xlane.xlu0 %356
        %v358 = vadd.f32 %v328, 0.0
        %v359 = vadd.f32 %v331, 0.0
        %v360 = vadd.f32 %v334, 0.0
        %v361 = vadd.f32 %v337, 0.0
        %v362 = vadd.f32 %v348, 0.0
        %v363 = vadd.f32 %v351, 0.0
        %v364 = vadd.f32 %v354, 0.0
        %v365 = vadd.f32 %v357, 0.0
        %v366 = vmul.f32 %v358, 0.00390625
        %v367 = vmul.f32 %v359, 0.00390625
        %v368 = vmul.f32 %v360, 0.00390625
        %v369 = vmul.f32 %v361, 0.00390625
        %v370 = vmul.f32 %v362, 0.00390625
        %v371 = vmul.f32 %v363, 0.00390625
        %v372 = vmul.f32 %v364, 0.00390625
        %v373 = vmul.f32 %v365, 0.00390625
        %v374 = vmul.f32 %v366, %v366
        %v375 = vmul.f32 %v367, %v367
        %v376 = vmul.f32 %v368, %v368
        %v377 = vmul.f32 %v369, %v369
        %v378 = vsub.f32 %v370, %v374
        %v379 = vsub.f32 %v371, %v375
        %v380 = vsub.f32 %v372, %v376
        %v381 = vsub.f32 %v373, %v377
        %v382 = vmax.f32 %v378, 0.0
        %v383 = vmax.f32 %v379, 0.0
        %v384 = vmax.f32 %v380, 0.0
        %v385 = vmax.f32 %v381, 0.0
        %v386 = vadd.f32 %v382, 1e-05
        %v387 = vadd.f32 %v383, 1e-05
        %v388 = vadd.f32 %v384, 1e-05
        %v389 = vadd.f32 %v385, 1e-05
        %v390 = vrsqrt.pop %v386
        %v391 = vrsqrt.pop %v387
        %v392 = vrsqrt.pop %v388
        %v393 = vrsqrt.pop %v389
        %v394 = vmul.f32 %v390, %v278
        %v395 = vmul.f32 %v391, %v279
        %v396 = vmul.f32 %v392, %v280
        %v397 = vmul.f32 %v393, %v281
        %v398 = vmul.f32 %v366, %v394
        %v399 = vmul.f32 %v367, %v395
        %v400 = vmul.f32 %v368, %v396
        %v401 = vmul.f32 %v369, %v397
        %v402 = vsub.f32 %v282, %v398
        %v403 = vsub.f32 %v283, %v399
        %v404 = vsub.f32 %v284, %v400
        %v405 = vsub.f32 %v285, %v401
        %407 = vset.pattern.permute.xlu0 0
        %408 = vperm.xlu0 %407, %v394
        %v409 = vpop.permute.xlu0 %408
        %412 = vset.pattern.permute.xlu0 0
        %413 = vperm.xlu0 %412, %v395
        %v414 = vpop.permute.xlu0 %413
        %417 = vset.pattern.permute.xlu0 0
        %418 = vperm.xlu0 %417, %v396
        %v419 = vpop.permute.xlu0 %418
        %422 = vset.pattern.permute.xlu0 0
        %423 = vperm.xlu0 %422, %v397
        %v424 = vpop.permute.xlu0 %423
        %v426 = vmul.f32 %v318, %v409
        %v427 = vmul.f32 %v319, %v409
        %v428 = vmul.f32 %v320, %v414
        %v429 = vmul.f32 %v321, %v414
        %v430 = vmul.f32 %v322, %v419
        %v431 = vmul.f32 %v323, %v419
        %v432 = vmul.f32 %v324, %v424
        %v433 = vmul.f32 %v325, %v424
        %435 = vset.pattern.permute.xlu0 0
        %436 = vperm.xlu0 %435, %v402
        %v437 = vpop.permute.xlu0 %436
        %440 = vset.pattern.permute.xlu0 0
        %441 = vperm.xlu0 %440, %v403
        %v442 = vpop.permute.xlu0 %441
        %445 = vset.pattern.permute.xlu0 0
        %446 = vperm.xlu0 %445, %v404
        %v447 = vpop.permute.xlu0 %446
        %450 = vset.pattern.permute.xlu0 0
        %451 = vperm.xlu0 %450, %v405
        %v452 = vpop.permute.xlu0 %451
        %v454 = vadd.f32 %v426, %v437
        %v455 = vadd.f32 %v427, %v437
        %v456 = vadd.f32 %v428, %v442
        %v457 = vadd.f32 %v429, %v442
        %v458 = vadd.f32 %v430, %v447
        %v459 = vadd.f32 %v431, %v447
        %v460 = vadd.f32 %v432, %v452
        %v461 = vadd.f32 %v433, %v452
        %v462 = vpack.c.bf16 %v456, %v454
        %v463 = vpack.c.bf16 %v457, %v455
        %v464 = vpack.c.bf16 %v460, %v458
        %v465 = vpack.c.bf16 %v461, %v459
        %467 = vset.pattern.permute.xlu0 0
        %468 = vperm.xlu0 %467, %v298
        %v469 = vpop.permute.xlu0 %468
        %472 = vset.pattern.permute.xlu0 0
        %473 = vperm.xlu0 %472, %v299
        %v474 = vpop.permute.xlu0 %473
        %477 = vset.pattern.permute.xlu0 0
        %478 = vperm.xlu0 %477, %v300
        %v479 = vpop.permute.xlu0 %478
        %482 = vset.pattern.permute.xlu0 0
        %483 = vperm.xlu0 %482, %v301
        %v484 = vpop.permute.xlu0 %483
        %487 = vset.pattern.permute.xlu0 0
        %488 = vperm.xlu0 %487, %v302
        %v489 = vpop.permute.xlu0 %488
        %492 = vset.pattern.permute.xlu0 0
        %493 = vperm.xlu0 %492, %v303
        %v494 = vpop.permute.xlu0 %493
        %497 = vset.pattern.permute.xlu0 0
        %498 = vperm.xlu0 %497, %v304
        %v499 = vpop.permute.xlu0 %498
        %502 = vset.pattern.permute.xlu0 0
        %503 = vperm.xlu0 %502, %v305
        %v504 = vpop.permute.xlu0 %503
        %507 = vset.pattern.permute.xlu0 0
        %508 = vperm.xlu0 %507, %v306
        %v509 = vpop.permute.xlu0 %508
        %512 = vset.pattern.permute.xlu0 0
        %513 = vperm.xlu0 %512, %v307
        %v514 = vpop.permute.xlu0 %513
        %517 = vset.pattern.permute.xlu0 0
        %518 = vperm.xlu0 %517, %v308
        %v519 = vpop.permute.xlu0 %518
        %522 = vset.pattern.permute.xlu0 0
        %523 = vperm.xlu0 %522, %v309
        %v524 = vpop.permute.xlu0 %523
        %v538 = vunpack.c.l.b16 %v286
        %v539 = vunpack.c.l.b16 %v287
        %v540 = vunpack.c.l.b16 %v288
        %v541 = vunpack.c.l.b16 %v289
        %v542 = vunpack.c.l.b16 %v290
        %v543 = vunpack.c.l.b16 %v291
        %v544 = vunpack.c.l.b16 %v292
        %v545 = vunpack.c.l.b16 %v293
        %v546 = vunpack.c.l.b16 %v294
        %v547 = vunpack.c.l.b16 %v295
        %v548 = vunpack.c.l.b16 %v296
        %v549 = vunpack.c.l.b16 %v297
        %v550 = vpack.c.b16 %v539, %v538
        %v551 = vpack.c.b16 %v541, %v540
        %v552 = vpack.c.b16 %v543, %v542
        %v553 = vpack.c.b16 %v545, %v544
        %v554 = vpack.c.b16 %v547, %v546
        %v555 = vpack.c.b16 %v549, %v548
        %vm556 = vcmask 261120
        %v558 = vsel %vm556, %v550, 0
        %v561 = vsel %vm556, %v551, 0
        %v564 = vsel %vm556, %v552, 0
        %v567 = vsel %vm556, %v553, 0
        %v570 = vsel %vm556, %v554, 0
        %v573 = vsel %vm556, %v555, 0
        %575 = vmatprep.subr.bf16.mxu0 %v463
        %576 = vmatpush1.bf16.msra.mxu0 %v462
        %577 = vmatprep.subr.bf16.mxu0 %v465
        %578 = vmatpush1.bf16.msra.mxu0 %v464
        %579 = vmatprep.subr.bf16.mxu0 0
        %580 = vmatpush1.bf16.msra.mxu0 0
        %581 = vmatprep.subr.bf16.mxu0 0
        %582 = vmatpush1.bf16.msra.mxu0 0
        %583 = vmatprep.subr.bf16.mxu0 0
        %584 = vmatpush1.bf16.msra.mxu0 0
        %585 = vmatprep.subr.bf16.mxu0 0
        %586 = vmatpush1.bf16.msra.mxu0 0
        %587 = vmatprep.subr.bf16.mxu0 0
        %588 = vmatpush1.bf16.msra.mxu0 0
        %589 = vmatprep.subr.bf16.mxu0 0
        %590 = vmatpush1.bf16.msra.mxu0 0
        %591 = vmatprep.subr.bf16.mxu0 0
        %592 = vmatpush1.bf16.msra.mxu0 0
        %593 = vmatprep.subr.bf16.mxu0 0
        %594 = vmatpush1.bf16.msra.mxu0 0
        %595 = vmatprep.subr.bf16.mxu0 0
        %596 = vmatpush1.bf16.msra.mxu0 0
        %597 = vmatprep.subr.bf16.mxu0 0
        %598 = vmatpush1.bf16.msra.mxu0 0
        %599 = vmatprep.subr.bf16.mxu0 0
        %600 = vmatpush1.bf16.msra.mxu0 0
        %601 = vmatprep.subr.bf16.mxu0 0
        %602 = vmatpush1.bf16.msra.mxu0 0
        %603 = vmatprep.subr.bf16.mxu0 0
        %604 = vmatpush1.bf16.msra.mxu0 0
        %605 = vmatprep.subr.bf16.mxu0 0
        %606 = vmatpush1.bf16.msra.mxu0 0
        %607 = vmatprep.mubr.bf16.mxu0 0
        %608 = vmatmul.mubr.bf16.gmra.mrb[0].mxu0 %v558
        %v609 = vpop.f32.mrb[0].mxu0
        %v610 = vadd.f32 %v469, %v609
        %v611 = vpop.f32.mrb[0].mxu0
        %v612 = vadd.f32 %v469, %v611
        %v613 = vpop.f32.mrb[0].mxu0
        %v614 = vadd.f32 %v474, %v613
        %v615 = vpop.f32.mrb[0].mxu0
        %v616 = vadd.f32 %v474, %v615
        %617 = vmatprep.mubr.bf16.mxu0 0
        %618 = vmatmul.mubr.bf16.gmra.mrb[0].mxu0 %v561
        %v619 = vpop.f32.mrb[0].mxu0
        %v620 = vadd.f32 %v479, %v619
        %v621 = vpop.f32.mrb[0].mxu0
        %v622 = vadd.f32 %v479, %v621
        %v623 = vpop.f32.mrb[0].mxu0
        %v624 = vadd.f32 %v484, %v623
        %v625 = vpop.f32.mrb[0].mxu0
        %v626 = vadd.f32 %v484, %v625
        %627 = vmatprep.mubr.bf16.mxu0 0
        %628 = vmatmul.mubr.bf16.gmra.mrb[0].mxu0 %v564
        %v629 = vpop.f32.mrb[0].mxu0
        %v630 = vadd.f32 %v489, %v629
        %v631 = vpop.f32.mrb[0].mxu0
        %v632 = vadd.f32 %v489, %v631
        %v633 = vpop.f32.mrb[0].mxu0
        %v634 = vadd.f32 %v494, %v633
        %v635 = vpop.f32.mrb[0].mxu0
        %v636 = vadd.f32 %v494, %v635
        %637 = vmatprep.mubr.bf16.mxu0 0
        %638 = vmatmul.mubr.bf16.gmra.mrb[0].mxu0 %v567
        %v639 = vpop.f32.mrb[0].mxu0
        %v640 = vadd.f32 %v499, %v639
        %v641 = vpop.f32.mrb[0].mxu0
        %v642 = vadd.f32 %v499, %v641
        %v643 = vpop.f32.mrb[0].mxu0
        %v644 = vadd.f32 %v504, %v643
        %v645 = vpop.f32.mrb[0].mxu0
        %v646 = vadd.f32 %v504, %v645
        %647 = vmatprep.mubr.bf16.mxu0 0
        %648 = vmatmul.mubr.bf16.gmra.mrb[0].mxu0 %v570
        %v649 = vpop.f32.mrb[0].mxu0
        %v650 = vadd.f32 %v509, %v649
        %v651 = vpop.f32.mrb[0].mxu0
        %v652 = vadd.f32 %v509, %v651
        %v653 = vpop.f32.mrb[0].mxu0
        %v654 = vadd.f32 %v514, %v653
        %v655 = vpop.f32.mrb[0].mxu0
        %v656 = vadd.f32 %v514, %v655
        %657 = vmatprep.mubr.bf16.mxu0 0
        %658 = vmatmul.mubr.bf16.gmra.mrb[0].mxu0 %v573
        %v659 = vpop.f32.mrb[0].mxu0
        %v660 = vadd.f32 %v519, %v659
        %v661 = vpop.f32.mrb[0].mxu0
        %v662 = vadd.f32 %v519, %v661
        %v663 = vpop.f32.mrb[0].mxu0
        %v664 = vadd.f32 %v524, %v663
        %v665 = vpop.f32.mrb[0].mxu0
        %v666 = vadd.f32 %v524, %v665
        %667 = vdwg.mxu0
        %v668 = vpack.c.bf16 %v610, %v610
        %v669 = vpack.c.bf16 %v612, %v612
        %v670 = vpack.c.bf16 %v614, %v614
        %v671 = vpack.c.bf16 %v616, %v616
        %v672 = vpack.c.bf16 %v620, %v620
        %v673 = vpack.c.bf16 %v622, %v622
        %v674 = vpack.c.bf16 %v624, %v624
        %v675 = vpack.c.bf16 %v626, %v626
        %v676 = vpack.c.bf16 %v630, %v630
        %v677 = vpack.c.bf16 %v632, %v632
        %v678 = vpack.c.bf16 %v634, %v634
        %v679 = vpack.c.bf16 %v636, %v636
        %v680 = vpack.c.bf16 %v640, %v640
        %v681 = vpack.c.bf16 %v642, %v642
        %v682 = vpack.c.bf16 %v644, %v644
        %v683 = vpack.c.bf16 %v646, %v646
        %v684 = vpack.c.bf16 %v650, %v650
        %v685 = vpack.c.bf16 %v652, %v652
        %v686 = vpack.c.bf16 %v654, %v654
        %v687 = vpack.c.bf16 %v656, %v656
        %v688 = vpack.c.bf16 %v660, %v660
        %v689 = vpack.c.bf16 %v662, %v662
        %v690 = vpack.c.bf16 %v664, %v664
        %v691 = vpack.c.bf16 %v666, %v666
        %692 = vxpose.xlu0.c.b16.start [1/8] %v676, 128
        %693 = vxpose.xlu0.c.b16.cont [2/8] 0, 128
        %694 = vxpose.xlu0.c.b16.cont [3/8] 0, 128
        %695 = vxpose.xlu0.c.b16.cont [4/8] 0, 128
        %696 = vxpose.xlu0.c.b16.cont [5/8] 0, 128
        %697 = vxpose.xlu0.c.b16.cont [6/8] 0, 128
        %698 = vxpose.xlu0.c.b16.cont [7/8] 0, 128
        %699 = vxpose.xlu0.c.b16.end [8/8] 0, 128
        %v700 = vpop.trf.xlu0
        %v701 = vpop.trf.xlu0
        %v702 = vpop.trf.xlu0
        %v703 = vpop.trf.xlu0
        %v704 = vpop.trf.xlu0
        %v705 = vpop.trf.xlu0
        %v706 = vpop.trf.xlu0
        %v707 = vpop.trf.xlu0
        %708 = vxpose.xlu0.c.b16.start [1/8] %v677, 128
        %709 = vxpose.xlu0.c.b16.cont [2/8] 0, 128
        %710 = vxpose.xlu0.c.b16.cont [3/8] 0, 128
        %711 = vxpose.xlu0.c.b16.cont [4/8] 0, 128
        %712 = vxpose.xlu0.c.b16.cont [5/8] 0, 128
        %713 = vxpose.xlu0.c.b16.cont [6/8] 0, 128
        %714 = vxpose.xlu0.c.b16.cont [7/8] 0, 128
        %715 = vxpose.xlu0.c.b16.end [8/8] 0, 128
        %v716 = vpop.trf.xlu0
        %v717 = vpop.trf.xlu0
        %v718 = vpop.trf.xlu0
        %v719 = vpop.trf.xlu0
        %v720 = vpop.trf.xlu0
        %v721 = vpop.trf.xlu0
        %v722 = vpop.trf.xlu0
        %v723 = vpop.trf.xlu0
        %vm724 = vcmask 64512
        %v726 = vsel %vm724, %v700, 0
        %v729 = vsel %vm724, %v701, 0
        %v732 = vsel %vm724, %v702, 0
        %v735 = vsel %vm724, %v703, 0
        %v738 = vsel %vm724, %v704, 0
        %v741 = vsel %vm724, %v705, 0
        %v744 = vsel %vm724, %v706, 0
        %v747 = vsel %vm724, %v707, 0
        %v750 = vsel %vm724, %v716, 0
        %v753 = vsel %vm724, %v717, 0
        %v756 = vsel %vm724, %v718, 0
        %v759 = vsel %vm724, %v719, 0
        %v762 = vsel %vm724, %v720, 0
        %v765 = vsel %vm724, %v721, 0
        %v768 = vsel %vm724, %v722, 0
        %v771 = vsel %vm724, %v723, 0
        %vm773 = vcmask 1043456
        %v775 = vsel %vm773, %v668, 0
        %v778 = vsel %vm773, %v669, 0
        %780 = vmatprep.subr.bf16.mxu0 %v778
        %781 = vmatpush1.bf16.msra.mxu0 %v775
        %782 = vmatprep.subr.bf16.mxu0 0
        %783 = vmatpush1.bf16.msra.mxu0 0
        %784 = vmatprep.subr.bf16.mxu0 0
        %785 = vmatpush1.bf16.msra.mxu0 0
        %786 = vmatprep.subr.bf16.mxu0 0
        %787 = vmatpush1.bf16.msra.mxu0 0
        %788 = vmatprep.subr.bf16.mxu0 0
        %789 = vmatpush1.bf16.msra.mxu0 0
        %790 = vmatprep.subr.bf16.mxu0 0
        %791 = vmatpush1.bf16.msra.mxu0 0
        %792 = vmatprep.subr.bf16.mxu0 0
        %793 = vmatpush1.bf16.msra.mxu0 0
        %794 = vmatprep.subr.bf16.mxu0 0
        %795 = vmatpush1.bf16.msra.mxu0 0
        %796 = vmatprep.subr.bf16.mxu0 0
        %797 = vmatpush1.bf16.msra.mxu0 0
        %798 = vmatprep.subr.bf16.mxu0 0
        %799 = vmatpush1.bf16.msra.mxu0 0
        %800 = vmatprep.subr.bf16.mxu0 0
        %801 = vmatpush1.bf16.msra.mxu0 0
        %802 = vmatprep.subr.bf16.mxu0 0
        %803 = vmatpush1.bf16.msra.mxu0 0
        %804 = vmatprep.subr.bf16.mxu0 0
        %805 = vmatpush1.bf16.msra.mxu0 0
        %806 = vmatprep.subr.bf16.mxu0 0
        %807 = vmatpush1.bf16.msra.mxu0 0
        %808 = vmatprep.subr.bf16.mxu0 0
        %809 = vmatpush1.bf16.msra.mxu0 0
        %810 = vmatprep.subr.bf16.mxu0 0
        %811 = vmatpush1.bf16.msra.mxu0 0
        %812 = vmatprep.mubr.bf16.mxu0 0
        %813 = vmatmul.mubr.bf16.gmra.mrb[0].mxu0 %v726
        %v814 = vpop.f32.mrb[0].mxu0
        %v815 = vadd.f32 0.0, %v814
        %v816 = vpop.f32.mrb[0].mxu0
        %v817 = vadd.f32 0.0, %v816
        %v818 = vpop.f32.mrb[0].mxu0
        %v819 = vadd.f32 0.0, %v818
        %v820 = vpop.f32.mrb[0].mxu0
        %v821 = vadd.f32 0.0, %v820
        %822 = vmatprep.mubr.bf16.mxu0 0
        %823 = vmatmul.mubr.bf16.gmra.mrb[0].mxu0 %v729
        %v824 = vpop.f32.mrb[0].mxu0
        %v825 = vadd.f32 0.0, %v824
        %v826 = vpop.f32.mrb[0].mxu0
        %v827 = vadd.f32 0.0, %v826
        %v828 = vpop.f32.mrb[0].mxu0
        %v829 = vadd.f32 0.0, %v828
        %v830 = vpop.f32.mrb[0].mxu0
        %v831 = vadd.f32 0.0, %v830
        %832 = vmatprep.mubr.bf16.mxu0 0
        %833 = vmatmul.mubr.bf16.gmra.mrb[0].mxu0 %v732
        %v834 = vpop.f32.mrb[0].mxu0
        %v835 = vadd.f32 0.0, %v834
        %v836 = vpop.f32.mrb[0].mxu0
        %v837 = vadd.f32 0.0, %v836
        %v838 = vpop.f32.mrb[0].mxu0
        %v839 = vadd.f32 0.0, %v838
        %v840 = vpop.f32.mrb[0].mxu0
        %v841 = vadd.f32 0.0, %v840
        %842 = vmatprep.mubr.bf16.mxu0 0
        %843 = vmatmul.mubr.bf16.gmra.mrb[0].mxu0 %v735
        %v844 = vpop.f32.mrb[0].mxu0
        %v845 = vadd.f32 0.0, %v844
        %v846 = vpop.f32.mrb[0].mxu0
        %v847 = vadd.f32 0.0, %v846
        %v848 = vpop.f32.mrb[0].mxu0
        %v849 = vadd.f32 0.0, %v848
        %v850 = vpop.f32.mrb[0].mxu0
        %v851 = vadd.f32 0.0, %v850
        %852 = vmatprep.mubr.bf16.mxu0 0
        %853 = vmatmul.mubr.bf16.gmra.mrb[0].mxu0 %v738
        %v854 = vpop.f32.mrb[0].mxu0
        %v855 = vadd.f32 0.0, %v854
        %v856 = vpop.f32.mrb[0].mxu0
        %v857 = vadd.f32 0.0, %v856
        %v858 = vpop.f32.mrb[0].mxu0
        %v859 = vadd.f32 0.0, %v858
        %v860 = vpop.f32.mrb[0].mxu0
        %v861 = vadd.f32 0.0, %v860
        %862 = vmatprep.mubr.bf16.mxu0 0
        %863 = vmatmul.mubr.bf16.gmra.mrb[0].mxu0 %v741
        %v864 = vpop.f32.mrb[0].mxu0
        %v865 = vadd.f32 0.0, %v864
        %v866 = vpop.f32.mrb[0].mxu0
        %v867 = vadd.f32 0.0, %v866
        %v868 = vpop.f32.mrb[0].mxu0
        %v869 = vadd.f32 0.0, %v868
        %v870 = vpop.f32.mrb[0].mxu0
        %v871 = vadd.f32 0.0, %v870
        %872 = vmatprep.mubr.bf16.mxu0 0
        %873 = vmatmul.mubr.bf16.gmra.mrb[0].mxu0 %v744
        %v874 = vpop.f32.mrb[0].mxu0
        %v875 = vadd.f32 0.0, %v874
        %v876 = vpop.f32.mrb[0].mxu0
        %v877 = vadd.f32 0.0, %v876
        %v878 = vpop.f32.mrb[0].mxu0
        %v879 = vadd.f32 0.0, %v878
        %v880 = vpop.f32.mrb[0].mxu0
        %v881 = vadd.f32 0.0, %v880
        %882 = vmatprep.mubr.bf16.mxu0 0
        %883 = vmatmul.mubr.bf16.gmra.mrb[0].mxu0 %v747
        %v884 = vpop.f32.mrb[0].mxu0
        %v885 = vadd.f32 0.0, %v884
        %v886 = vpop.f32.mrb[0].mxu0
        %v887 = vadd.f32 0.0, %v886
        %v888 = vpop.f32.mrb[0].mxu0
        %v889 = vadd.f32 0.0, %v888
        %v890 = vpop.f32.mrb[0].mxu0
        %v891 = vadd.f32 0.0, %v890
        %892 = vmatprep.mubr.bf16.mxu0 0
        %893 = vmatmul.mubr.bf16.gmra.mrb[0].mxu0 %v750
        %v894 = vpop.f32.mrb[0].mxu0
        %v895 = vadd.f32 0.0, %v894
        %v896 = vpop.f32.mrb[0].mxu0
        %v897 = vadd.f32 0.0, %v896
        %v898 = vpop.f32.mrb[0].mxu0
        %v899 = vadd.f32 0.0, %v898
        %v900 = vpop.f32.mrb[0].mxu0
        %v901 = vadd.f32 0.0, %v900
        %902 = vmatprep.mubr.bf16.mxu0 0
        %903 = vmatmul.mubr.bf16.gmra.mrb[0].mxu0 %v753
        %v904 = vpop.f32.mrb[0].mxu0
        %v905 = vadd.f32 0.0, %v904
        %v906 = vpop.f32.mrb[0].mxu0
        %v907 = vadd.f32 0.0, %v906
        %v908 = vpop.f32.mrb[0].mxu0
        %v909 = vadd.f32 0.0, %v908
        %v910 = vpop.f32.mrb[0].mxu0
        %v911 = vadd.f32 0.0, %v910
        %912 = vmatprep.mubr.bf16.mxu0 0
        %913 = vmatmul.mubr.bf16.gmra.mrb[0].mxu0 %v756
        %v914 = vpop.f32.mrb[0].mxu0
        %v915 = vadd.f32 0.0, %v914
        %v916 = vpop.f32.mrb[0].mxu0
        %v917 = vadd.f32 0.0, %v916
        %v918 = vpop.f32.mrb[0].mxu0
        %v919 = vadd.f32 0.0, %v918
        %v920 = vpop.f32.mrb[0].mxu0
        %v921 = vadd.f32 0.0, %v920
        %922 = vmatprep.mubr.bf16.mxu0 0
        %923 = vmatmul.mubr.bf16.gmra.mrb[0].mxu0 %v759
        %v924 = vpop.f32.mrb[0].mxu0
        %v925 = vadd.f32 0.0, %v924
        %v926 = vpop.f32.mrb[0].mxu0
        %v927 = vadd.f32 0.0, %v926
        %v928 = vpop.f32.mrb[0].mxu0
        %v929 = vadd.f32 0.0, %v928
        %v930 = vpop.f32.mrb[0].mxu0
        %v931 = vadd.f32 0.0, %v930
        %932 = vmatprep.mubr.bf16.mxu0 0
        %933 = vmatmul.mubr.bf16.gmra.mrb[0].mxu0 %v762
        %v934 = vpop.f32.mrb[0].mxu0
        %v935 = vadd.f32 0.0, %v934
        %v936 = vpop.f32.mrb[0].mxu0
        %v937 = vadd.f32 0.0, %v936
        %v938 = vpop.f32.mrb[0].mxu0
        %v939 = vadd.f32 0.0, %v938
        %v940 = vpop.f32.mrb[0].mxu0
        %v941 = vadd.f32 0.0, %v940
        %942 = vmatprep.mubr.bf16.mxu0 0
        %943 = vmatmul.mubr.bf16.gmra.mrb[0].mxu0 %v765
        %v944 = vpop.f32.mrb[0].mxu0
        %v945 = vadd.f32 0.0, %v944
        %v946 = vpop.f32.mrb[0].mxu0
        %v947 = vadd.f32 0.0, %v946
        %v948 = vpop.f32.mrb[0].mxu0
        %v949 = vadd.f32 0.0, %v948
        %v950 = vpop.f32.mrb[0].mxu0
        %v951 = vadd.f32 0.0, %v950
        %952 = vmatprep.mubr.bf16.mxu0 0
        %953 = vmatmul.mubr.bf16.gmra.mrb[0].mxu0 %v768
        %v954 = vpop.f32.mrb[0].mxu0
        %v955 = vadd.f32 0.0, %v954
        %v956 = vpop.f32.mrb[0].mxu0
        %v957 = vadd.f32 0.0, %v956
        %v958 = vpop.f32.mrb[0].mxu0
        %v959 = vadd.f32 0.0, %v958
        %v960 = vpop.f32.mrb[0].mxu0
        %v961 = vadd.f32 0.0, %v960
        %962 = vmatprep.mubr.bf16.mxu0 0
        %963 = vmatmul.mubr.bf16.gmra.mrb[0].mxu0 %v771
        %v964 = vpop.f32.mrb[0].mxu0
        %v965 = vadd.f32 0.0, %v964
        %v966 = vpop.f32.mrb[0].mxu0
        %v967 = vadd.f32 0.0, %v966
        %v968 = vpop.f32.mrb[0].mxu0
        %v969 = vadd.f32 0.0, %v968
        %v970 = vpop.f32.mrb[0].mxu0
        %v971 = vadd.f32 0.0, %v970
        %972 = vdwg.mxu0
        %973 = vxpose.xlu0.c.b16.start [1/8] %v678, 128
        %974 = vxpose.xlu0.c.b16.cont [2/8] 0, 128
        %975 = vxpose.xlu0.c.b16.cont [3/8] 0, 128
        %976 = vxpose.xlu0.c.b16.cont [4/8] 0, 128
        %977 = vxpose.xlu0.c.b16.cont [5/8] 0, 128
        %978 = vxpose.xlu0.c.b16.cont [6/8] 0, 128
        %979 = vxpose.xlu0.c.b16.cont [7/8] 0, 128
        %980 = vxpose.xlu0.c.b16.end [8/8] 0, 128
        %v981 = vpop.trf.xlu0
        %v982 = vpop.trf.xlu0
        %v983 = vpop.trf.xlu0
        %v984 = vpop.trf.xlu0
        %v985 = vpop.trf.xlu0
        %v986 = vpop.trf.xlu0
        %v987 = vpop.trf.xlu0
        %v988 = vpop.trf.xlu0
        %989 = vxpose.xlu0.c.b16.start [1/8] %v679, 128
        %990 = vxpose.xlu0.c.b16.cont [2/8] 0, 128
        %991 = vxpose.xlu0.c.b16.cont [3/8] 0, 128
        %992 = vxpose.xlu0.c.b16.cont [4/8] 0, 128
        %993 = vxpose.xlu0.c.b16.cont [5/8] 0, 128
        %994 = vxpose.xlu0.c.b16.cont [6/8] 0, 128
        %995 = vxpose.xlu0.c.b16.cont [7/8] 0, 128
        %996 = vxpose.xlu0.c.b16.end [8/8] 0, 128
        %v997 = vpop.trf.xlu0
        %v998 = vpop.trf.xlu0
        %v999 = vpop.trf.xlu0
        %v1000 = vpop.trf.xlu0
        %v1001 = vpop.trf.xlu0
        %v1002 = vpop.trf.xlu0
        %v1003 = vpop.trf.xlu0
        %v1004 = vpop.trf.xlu0
        %v1006 = vsel %vm724, %v981, 0
        %v1009 = vsel %vm724, %v982, 0
        %v1012 = vsel %vm724, %v983, 0
        %v1015 = vsel %vm724, %v984, 0
        %v1018 = vsel %vm724, %v985, 0
        %v1021 = vsel %vm724, %v986, 0
        %v1024 = vsel %vm724, %v987, 0
        %v1027 = vsel %vm724, %v988, 0
        %v1030 = vsel %vm724, %v997, 0
        %v1033 = vsel %vm724, %v998, 0
        %v1036 = vsel %vm724, %v999, 0
        %v1039 = vsel %vm724, %v1000, 0
        %v1042 = vsel %vm724, %v1001, 0
        %v1045 = vsel %vm724, %v1002, 0
        %v1048 = vsel %vm724, %v1003, 0
        %v1051 = vsel %vm724, %v1004, 0
        %v1054 = vsel %vm773, %v670, 0
        %v1057 = vsel %vm773, %v671, 0
        %1059 = vmatprep.subr.bf16.mxu0 %v1057
        %1060 = vmatpush1.bf16.msra.mxu0 %v1054
        %1061 = vmatprep.subr.bf16.mxu0 0
        %1062 = vmatpush1.bf16.msra.mxu0 0
        %1063 = vmatprep.subr.bf16.mxu0 0
        %1064 = vmatpush1.bf16.msra.mxu0 0
        %1065 = vmatprep.subr.bf16.mxu0 0
        %1066 = vmatpush1.bf16.msra.mxu0 0
        %1067 = vmatprep.subr.bf16.mxu0 0
        %1068 = vmatpush1.bf16.msra.mxu0 0
        %1069 = vmatprep.subr.bf16.mxu0 0
        %1070 = vmatpush1.bf16.msra.mxu0 0
        %1071 = vmatprep.subr.bf16.mxu0 0
        %1072 = vmatpush1.bf16.msra.mxu0 0
        %1073 = vmatprep.subr.bf16.mxu0 0
        %1074 = vmatpush1.bf16.msra.mxu0 0
        %1075 = vmatprep.subr.bf16.mxu0 0
        %1076 = vmatpush1.bf16.msra.mxu0 0
        %1077 = vmatprep.subr.bf16.mxu0 0
        %1078 = vmatpush1.bf16.msra.mxu0 0
        %1079 = vmatprep.subr.bf16.mxu0 0
        %1080 = vmatpush1.bf16.msra.mxu0 0
        %1081 = vmatprep.subr.bf16.mxu0 0
        %1082 = vmatpush1.bf16.msra.mxu0 0
        %1083 = vmatprep.subr.bf16.mxu0 0
        %1084 = vmatpush1.bf16.msra.mxu0 0
        %1085 = vmatprep.subr.bf16.mxu0 0
        %1086 = vmatpush1.bf16.msra.mxu0 0
        %1087 = vmatprep.subr.bf16.mxu0 0
        %1088 = vmatpush1.bf16.msra.mxu0 0
        %1089 = vmatprep.subr.bf16.mxu0 0
        %1090 = vmatpush1.bf16.msra.mxu0 0
        %1091 = vmatprep.mubr.bf16.mxu0 0
        %1092 = vmatmul.mubr.bf16.gmra.mrb[0].mxu0 %v1006
        %v1093 = vpop.f32.mrb[0].mxu0
        %v1094 = vadd.f32 0.0, %v1093
        %v1095 = vpop.f32.mrb[0].mxu0
        %v1096 = vadd.f32 0.0, %v1095
        %v1097 = vpop.f32.mrb[0].mxu0
        %v1098 = vadd.f32 0.0, %v1097
        %v1099 = vpop.f32.mrb[0].mxu0
        %v1100 = vadd.f32 0.0, %v1099
        %1101 = vmatprep.mubr.bf16.mxu0 0
        %1102 = vmatmul.mubr.bf16.gmra.mrb[0].mxu0 %v1009
        %v1103 = vpop.f32.mrb[0].mxu0
        %v1104 = vadd.f32 0.0, %v1103
        %v1105 = vpop.f32.mrb[0].mxu0
        %v1106 = vadd.f32 0.0, %v1105
        %v1107 = vpop.f32.mrb[0].mxu0
        %v1108 = vadd.f32 0.0, %v1107
        %v1109 = vpop.f32.mrb[0].mxu0
        %v1110 = vadd.f32 0.0, %v1109
        %1111 = vmatprep.mubr.bf16.mxu0 0
        %1112 = vmatmul.mubr.bf16.gmra.mrb[0].mxu0 %v1012
        %v1113 = vpop.f32.mrb[0].mxu0
        %v1114 = vadd.f32 0.0, %v1113
        %v1115 = vpop.f32.mrb[0].mxu0
        %v1116 = vadd.f32 0.0, %v1115
        %v1117 = vpop.f32.mrb[0].mxu0
        %v1118 = vadd.f32 0.0, %v1117
        %v1119 = vpop.f32.mrb[0].mxu0
        %v1120 = vadd.f32 0.0, %v1119
        %1121 = vmatprep.mubr.bf16.mxu0 0
        %1122 = vmatmul.mubr.bf16.gmra.mrb[0].mxu0 %v1015
        %v1123 = vpop.f32.mrb[0].mxu0
        %v1124 = vadd.f32 0.0, %v1123
        %v1125 = vpop.f32.mrb[0].mxu0
        %v1126 = vadd.f32 0.0, %v1125
        %v1127 = vpop.f32.mrb[0].mxu0
        %v1128 = vadd.f32 0.0, %v1127
        %v1129 = vpop.f32.mrb[0].mxu0
        %v1130 = vadd.f32 0.0, %v1129
        %1131 = vmatprep.mubr.bf16.mxu0 0
        %1132 = vmatmul.mubr.bf16.gmra.mrb[0].mxu0 %v1018
        %v1133 = vpop.f32.mrb[0].mxu0
        %v1134 = vadd.f32 0.0, %v1133
        %v1135 = vpop.f32.mrb[0].mxu0
        %v1136 = vadd.f32 0.0, %v1135
        %v1137 = vpop.f32.mrb[0].mxu0
        %v1138 = vadd.f32 0.0, %v1137
        %v1139 = vpop.f32.mrb[0].mxu0
        %v1140 = vadd.f32 0.0, %v1139
        %1141 = vmatprep.mubr.bf16.mxu0 0
        %1142 = vmatmul.mubr.bf16.gmra.mrb[0].mxu0 %v1021
        %v1143 = vpop.f32.mrb[0].mxu0
        %v1144 = vadd.f32 0.0, %v1143
        %v1145 = vpop.f32.mrb[0].mxu0
        %v1146 = vadd.f32 0.0, %v1145
        %v1147 = vpop.f32.mrb[0].mxu0
        %v1148 = vadd.f32 0.0, %v1147
        %v1149 = vpop.f32.mrb[0].mxu0
        %v1150 = vadd.f32 0.0, %v1149
        %1151 = vmatprep.mubr.bf16.mxu0 0
        %1152 = vmatmul.mubr.bf16.gmra.mrb[0].mxu0 %v1024
        %v1153 = vpop.f32.mrb[0].mxu0
        %v1154 = vadd.f32 0.0, %v1153
        %v1155 = vpop.f32.mrb[0].mxu0
        %v1156 = vadd.f32 0.0, %v1155
        %v1157 = vpop.f32.mrb[0].mxu0
        %v1158 = vadd.f32 0.0, %v1157
        %v1159 = vpop.f32.mrb[0].mxu0
        %v1160 = vadd.f32 0.0, %v1159
        %1161 = vmatprep.mubr.bf16.mxu0 0
        %1162 = vmatmul.mubr.bf16.gmra.mrb[0].mxu0 %v1027
        %v1163 = vpop.f32.mrb[0].mxu0
        %v1164 = vadd.f32 0.0, %v1163
        %v1165 = vpop.f32.mrb[0].mxu0
        %v1166 = vadd.f32 0.0, %v1165
        %v1167 = vpop.f32.mrb[0].mxu0
        %v1168 = vadd.f32 0.0, %v1167
        %v1169 = vpop.f32.mrb[0].mxu0
        %v1170 = vadd.f32 0.0, %v1169
        %1171 = vmatprep.mubr.bf16.mxu0 0
        %1172 = vmatmul.mubr.bf16.gmra.mrb[0].mxu0 %v1030
        %v1173 = vpop.f32.mrb[0].mxu0
        %v1174 = vadd.f32 0.0, %v1173
        %v1175 = vpop.f32.mrb[0].mxu0
        %v1176 = vadd.f32 0.0, %v1175
        %v1177 = vpop.f32.mrb[0].mxu0
        %v1178 = vadd.f32 0.0, %v1177
        %v1179 = vpop.f32.mrb[0].mxu0
        %v1180 = vadd.f32 0.0, %v1179
        %1181 = vmatprep.mubr.bf16.mxu0 0
        %1182 = vmatmul.mubr.bf16.gmra.mrb[0].mxu0 %v1033
        %v1183 = vpop.f32.mrb[0].mxu0
        %v1184 = vadd.f32 0.0, %v1183
        %v1185 = vpop.f32.mrb[0].mxu0
        %v1186 = vadd.f32 0.0, %v1185
        %v1187 = vpop.f32.mrb[0].mxu0
        %v1188 = vadd.f32 0.0, %v1187
        %v1189 = vpop.f32.mrb[0].mxu0
        %v1190 = vadd.f32 0.0, %v1189
        %1191 = vmatprep.mubr.bf16.mxu0 0
        %1192 = vmatmul.mubr.bf16.gmra.mrb[0].mxu0 %v1036
        %v1193 = vpop.f32.mrb[0].mxu0
        %v1194 = vadd.f32 0.0, %v1193
        %v1195 = vpop.f32.mrb[0].mxu0
        %v1196 = vadd.f32 0.0, %v1195
        %v1197 = vpop.f32.mrb[0].mxu0
        %v1198 = vadd.f32 0.0, %v1197
        %v1199 = vpop.f32.mrb[0].mxu0
        %v1200 = vadd.f32 0.0, %v1199
        %1201 = vmatprep.mubr.bf16.mxu0 0
        %1202 = vmatmul.mubr.bf16.gmra.mrb[0].mxu0 %v1039
        %v1203 = vpop.f32.mrb[0].mxu0
        %v1204 = vadd.f32 0.0, %v1203
        %v1205 = vpop.f32.mrb[0].mxu0
        %v1206 = vadd.f32 0.0, %v1205
        %v1207 = vpop.f32.mrb[0].mxu0
        %v1208 = vadd.f32 0.0, %v1207
        %v1209 = vpop.f32.mrb[0].mxu0
        %v1210 = vadd.f32 0.0, %v1209
        %1211 = vmatprep.mubr.bf16.mxu0 0
        %1212 = vmatmul.mubr.bf16.gmra.mrb[0].mxu0 %v1042
        %v1213 = vpop.f32.mrb[0].mxu0
        %v1214 = vadd.f32 0.0, %v1213
        %v1215 = vpop.f32.mrb[0].mxu0
        %v1216 = vadd.f32 0.0, %v1215
        %v1217 = vpop.f32.mrb[0].mxu0
        %v1218 = vadd.f32 0.0, %v1217
        %v1219 = vpop.f32.mrb[0].mxu0
        %v1220 = vadd.f32 0.0, %v1219
        %1221 = vmatprep.mubr.bf16.mxu0 0
        %1222 = vmatmul.mubr.bf16.gmra.mrb[0].mxu0 %v1045
        %v1223 = vpop.f32.mrb[0].mxu0
        %v1224 = vadd.f32 0.0, %v1223
        %v1225 = vpop.f32.mrb[0].mxu0
        %v1226 = vadd.f32 0.0, %v1225
        %v1227 = vpop.f32.mrb[0].mxu0
        %v1228 = vadd.f32 0.0, %v1227
        %v1229 = vpop.f32.mrb[0].mxu0
        %v1230 = vadd.f32 0.0, %v1229
        %1231 = vmatprep.mubr.bf16.mxu0 0
        %1232 = vmatmul.mubr.bf16.gmra.mrb[0].mxu0 %v1048
        %v1233 = vpop.f32.mrb[0].mxu0
        %v1234 = vadd.f32 0.0, %v1233
        %v1235 = vpop.f32.mrb[0].mxu0
        %v1236 = vadd.f32 0.0, %v1235
        %v1237 = vpop.f32.mrb[0].mxu0
        %v1238 = vadd.f32 0.0, %v1237
        %v1239 = vpop.f32.mrb[0].mxu0
        %v1240 = vadd.f32 0.0, %v1239
        %1241 = vmatprep.mubr.bf16.mxu0 0
        %1242 = vmatmul.mubr.bf16.gmra.mrb[0].mxu0 %v1051
        %v1243 = vpop.f32.mrb[0].mxu0
        %v1244 = vadd.f32 0.0, %v1243
        %v1245 = vpop.f32.mrb[0].mxu0
        %v1246 = vadd.f32 0.0, %v1245
        %v1247 = vpop.f32.mrb[0].mxu0
        %v1248 = vadd.f32 0.0, %v1247
        %v1249 = vpop.f32.mrb[0].mxu0
        %v1250 = vadd.f32 0.0, %v1249
        %1251 = vdwg.mxu0
        %1252 = vxpose.xlu0.c.b16.start [1/8] %v680, 128
        %1253 = vxpose.xlu0.c.b16.cont [2/8] 0, 128
        %1254 = vxpose.xlu0.c.b16.cont [3/8] 0, 128
        %1255 = vxpose.xlu0.c.b16.cont [4/8] 0, 128
        %1256 = vxpose.xlu0.c.b16.cont [5/8] 0, 128
        %1257 = vxpose.xlu0.c.b16.cont [6/8] 0, 128
        %1258 = vxpose.xlu0.c.b16.cont [7/8] 0, 128
        %1259 = vxpose.xlu0.c.b16.end [8/8] 0, 128
        %v1260 = vpop.trf.xlu0
        %v1261 = vpop.trf.xlu0
        %v1262 = vpop.trf.xlu0
        %v1263 = vpop.trf.xlu0
        %v1264 = vpop.trf.xlu0
        %v1265 = vpop.trf.xlu0
        %v1266 = vpop.trf.xlu0
        %v1267 = vpop.trf.xlu0
        %1268 = vxpose.xlu0.c.b16.start [1/8] %v681, 128
        %1269 = vxpose.xlu0.c.b16.cont [2/8] 0, 128
        %1270 = vxpose.xlu0.c.b16.cont [3/8] 0, 128
        %1271 = vxpose.xlu0.c.b16.cont [4/8] 0, 128
        %1272 = vxpose.xlu0.c.b16.cont [5/8] 0, 128
        %1273 = vxpose.xlu0.c.b16.cont [6/8] 0, 128
        %1274 = vxpose.xlu0.c.b16.cont [7/8] 0, 128
        %1275 = vxpose.xlu0.c.b16.end [8/8] 0, 128
        %v1276 = vpop.trf.xlu0
        %v1277 = vpop.trf.xlu0
        %v1278 = vpop.trf.xlu0
        %v1279 = vpop.trf.xlu0
        %v1280 = vpop.trf.xlu0
        %v1281 = vpop.trf.xlu0
        %v1282 = vpop.trf.xlu0
        %v1283 = vpop.trf.xlu0
        %v1285 = vsel %vm724, %v1260, 0
        %v1288 = vsel %vm724, %v1261, 0
        %v1291 = vsel %vm724, %v1262, 0
        %v1294 = vsel %vm724, %v1263, 0
        %v1297 = vsel %vm724, %v1264, 0
        %v1300 = vsel %vm724, %v1265, 0
        %v1303 = vsel %vm724, %v1266, 0
        %v1306 = vsel %vm724, %v1267, 0
        %v1309 = vsel %vm724, %v1276, 0
        %v1312 = vsel %vm724, %v1277, 0
        %v1315 = vsel %vm724, %v1278, 0
        %v1318 = vsel %vm724, %v1279, 0
        %v1321 = vsel %vm724, %v1280, 0
        %v1324 = vsel %vm724, %v1281, 0
        %v1327 = vsel %vm724, %v1282, 0
        %v1330 = vsel %vm724, %v1283, 0
        %v1333 = vsel %vm773, %v672, 0
        %v1336 = vsel %vm773, %v673, 0
        %1338 = vmatprep.subr.bf16.mxu0 %v1336
        %1339 = vmatpush1.bf16.msra.mxu0 %v1333
        %1340 = vmatprep.subr.bf16.mxu0 0
        %1341 = vmatpush1.bf16.msra.mxu0 0
        %1342 = vmatprep.subr.bf16.mxu0 0
        %1343 = vmatpush1.bf16.msra.mxu0 0
        %1344 = vmatprep.subr.bf16.mxu0 0
        %1345 = vmatpush1.bf16.msra.mxu0 0
        %1346 = vmatprep.subr.bf16.mxu0 0
        %1347 = vmatpush1.bf16.msra.mxu0 0
        %1348 = vmatprep.subr.bf16.mxu0 0
        %1349 = vmatpush1.bf16.msra.mxu0 0
        %1350 = vmatprep.subr.bf16.mxu0 0
        %1351 = vmatpush1.bf16.msra.mxu0 0
        %1352 = vmatprep.subr.bf16.mxu0 0
        %1353 = vmatpush1.bf16.msra.mxu0 0
        %1354 = vmatprep.subr.bf16.mxu0 0
        %1355 = vmatpush1.bf16.msra.mxu0 0
        %1356 = vmatprep.subr.bf16.mxu0 0
        %1357 = vmatpush1.bf16.msra.mxu0 0
        %1358 = vmatprep.subr.bf16.mxu0 0
        %1359 = vmatpush1.bf16.msra.mxu0 0
        %1360 = vmatprep.subr.bf16.mxu0 0
        %1361 = vmatpush1.bf16.msra.mxu0 0
        %1362 = vmatprep.subr.bf16.mxu0 0
        %1363 = vmatpush1.bf16.msra.mxu0 0
        %1364 = vmatprep.subr.bf16.mxu0 0
        %1365 = vmatpush1.bf16.msra.mxu0 0
        %1366 = vmatprep.subr.bf16.mxu0 0
        %1367 = vmatpush1.bf16.msra.mxu0 0
        %1368 = vmatprep.subr.bf16.mxu0 0
        %1369 = vmatpush1.bf16.msra.mxu0 0
        %1370 = vmatprep.mubr.bf16.mxu0 0
        %1371 = vmatmul.mubr.bf16.gmra.mrb[0].mxu0 %v1285
        %v1372 = vpop.f32.mrb[0].mxu0
        %v1373 = vadd.f32 0.0, %v1372
        %v1374 = vpop.f32.mrb[0].mxu0
        %v1375 = vadd.f32 0.0, %v1374
        %v1376 = vpop.f32.mrb[0].mxu0
        %v1377 = vadd.f32 0.0, %v1376
        %v1378 = vpop.f32.mrb[0].mxu0
        %v1379 = vadd.f32 0.0, %v1378
        %1380 = vmatprep.mubr.bf16.mxu0 0
        %1381 = vmatmul.mubr.bf16.gmra.mrb[0].mxu0 %v1288
        %v1382 = vpop.f32.mrb[0].mxu0
        %v1383 = vadd.f32 0.0, %v1382
        %v1384 = vpop.f32.mrb[0].mxu0
        %v1385 = vadd.f32 0.0, %v1384
        %v1386 = vpop.f32.mrb[0].mxu0
        %v1387 = vadd.f32 0.0, %v1386
        %v1388 = vpop.f32.mrb[0].mxu0
        %v1389 = vadd.f32 0.0, %v1388
        %1390 = vmatprep.mubr.bf16.mxu0 0
        %1391 = vmatmul.mubr.bf16.gmra.mrb[0].mxu0 %v1291
        %v1392 = vpop.f32.mrb[0].mxu0
        %v1393 = vadd.f32 0.0, %v1392
        %v1394 = vpop.f32.mrb[0].mxu0
        %v1395 = vadd.f32 0.0, %v1394
        %v1396 = vpop.f32.mrb[0].mxu0
        %v1397 = vadd.f32 0.0, %v1396
        %v1398 = vpop.f32.mrb[0].mxu0
        %v1399 = vadd.f32 0.0, %v1398
        %1400 = vmatprep.mubr.bf16.mxu0 0
        %1401 = vmatmul.mubr.bf16.gmra.mrb[0].mxu0 %v1294
        %v1402 = vpop.f32.mrb[0].mxu0
        %v1403 = vadd.f32 0.0, %v1402
        %v1404 = vpop.f32.mrb[0].mxu0
        %v1405 = vadd.f32 0.0, %v1404
        %v1406 = vpop.f32.mrb[0].mxu0
        %v1407 = vadd.f32 0.0, %v1406
        %v1408 = vpop.f32.mrb[0].mxu0
        %v1409 = vadd.f32 0.0, %v1408
        %1410 = vmatprep.mubr.bf16.mxu0 0
        %1411 = vmatmul.mubr.bf16.gmra.mrb[0].mxu0 %v1297
        %v1412 = vpop.f32.mrb[0].mxu0
        %v1413 = vadd.f32 0.0, %v1412
        %v1414 = vpop.f32.mrb[0].mxu0
        %v1415 = vadd.f32 0.0, %v1414
        %v1416 = vpop.f32.mrb[0].mxu0
        %v1417 = vadd.f32 0.0, %v1416
        %v1418 = vpop.f32.mrb[0].mxu0
        %v1419 = vadd.f32 0.0, %v1418
        %1420 = vmatprep.mubr.bf16.mxu0 0
        %1421 = vmatmul.mubr.bf16.gmra.mrb[0].mxu0 %v1300
        %v1422 = vpop.f32.mrb[0].mxu0
        %v1423 = vadd.f32 0.0, %v1422
        %v1424 = vpop.f32.mrb[0].mxu0
        %v1425 = vadd.f32 0.0, %v1424
        %v1426 = vpop.f32.mrb[0].mxu0
        %v1427 = vadd.f32 0.0, %v1426
        %v1428 = vpop.f32.mrb[0].mxu0
        %v1429 = vadd.f32 0.0, %v1428
        %1430 = vmatprep.mubr.bf16.mxu0 0
        %1431 = vmatmul.mubr.bf16.gmra.mrb[0].mxu0 %v1303
        %v1432 = vpop.f32.mrb[0].mxu0
        %v1433 = vadd.f32 0.0, %v1432
        %v1434 = vpop.f32.mrb[0].mxu0
        %v1435 = vadd.f32 0.0, %v1434
        %v1436 = vpop.f32.mrb[0].mxu0
        %v1437 = vadd.f32 0.0, %v1436
        %v1438 = vpop.f32.mrb[0].mxu0
        %v1439 = vadd.f32 0.0, %v1438
        %1440 = vmatprep.mubr.bf16.mxu0 0
        %1441 = vmatmul.mubr.bf16.gmra.mrb[0].mxu0 %v1306
        %v1442 = vpop.f32.mrb[0].mxu0
        %v1443 = vadd.f32 0.0, %v1442
        %v1444 = vpop.f32.mrb[0].mxu0
        %v1445 = vadd.f32 0.0, %v1444
        %v1446 = vpop.f32.mrb[0].mxu0
        %v1447 = vadd.f32 0.0, %v1446
        %v1448 = vpop.f32.mrb[0].mxu0
        %v1449 = vadd.f32 0.0, %v1448
        %1450 = vmatprep.mubr.bf16.mxu0 0
        %1451 = vmatmul.mubr.bf16.gmra.mrb[0].mxu0 %v1309
        %v1452 = vpop.f32.mrb[0].mxu0
        %v1453 = vadd.f32 0.0, %v1452
        %v1454 = vpop.f32.mrb[0].mxu0
        %v1455 = vadd.f32 0.0, %v1454
        %v1456 = vpop.f32.mrb[0].mxu0
        %v1457 = vadd.f32 0.0, %v1456
        %v1458 = vpop.f32.mrb[0].mxu0
        %v1459 = vadd.f32 0.0, %v1458
        %1460 = vmatprep.mubr.bf16.mxu0 0
        %1461 = vmatmul.mubr.bf16.gmra.mrb[0].mxu0 %v1312
        %v1462 = vpop.f32.mrb[0].mxu0
        %v1463 = vadd.f32 0.0, %v1462
        %v1464 = vpop.f32.mrb[0].mxu0
        %v1465 = vadd.f32 0.0, %v1464
        %v1466 = vpop.f32.mrb[0].mxu0
        %v1467 = vadd.f32 0.0, %v1466
        %v1468 = vpop.f32.mrb[0].mxu0
        %v1469 = vadd.f32 0.0, %v1468
        %1470 = vmatprep.mubr.bf16.mxu0 0
        %1471 = vmatmul.mubr.bf16.gmra.mrb[0].mxu0 %v1315
        %v1472 = vpop.f32.mrb[0].mxu0
        %v1473 = vadd.f32 0.0, %v1472
        %v1474 = vpop.f32.mrb[0].mxu0
        %v1475 = vadd.f32 0.0, %v1474
        %v1476 = vpop.f32.mrb[0].mxu0
        %v1477 = vadd.f32 0.0, %v1476
        %v1478 = vpop.f32.mrb[0].mxu0
        %v1479 = vadd.f32 0.0, %v1478
        %1480 = vmatprep.mubr.bf16.mxu0 0
        %1481 = vmatmul.mubr.bf16.gmra.mrb[0].mxu0 %v1318
        %v1482 = vpop.f32.mrb[0].mxu0
        %v1483 = vadd.f32 0.0, %v1482
        %v1484 = vpop.f32.mrb[0].mxu0
        %v1485 = vadd.f32 0.0, %v1484
        %v1486 = vpop.f32.mrb[0].mxu0
        %v1487 = vadd.f32 0.0, %v1486
        %v1488 = vpop.f32.mrb[0].mxu0
        %v1489 = vadd.f32 0.0, %v1488
        %1490 = vmatprep.mubr.bf16.mxu0 0
        %1491 = vmatmul.mubr.bf16.gmra.mrb[0].mxu0 %v1321
        %v1492 = vpop.f32.mrb[0].mxu0
        %v1493 = vadd.f32 0.0, %v1492
        %v1494 = vpop.f32.mrb[0].mxu0
        %v1495 = vadd.f32 0.0, %v1494
        %v1496 = vpop.f32.mrb[0].mxu0
        %v1497 = vadd.f32 0.0, %v1496
        %v1498 = vpop.f32.mrb[0].mxu0
        %v1499 = vadd.f32 0.0, %v1498
        %1500 = vmatprep.mubr.bf16.mxu0 0
        %1501 = vmatmul.mubr.bf16.gmra.mrb[0].mxu0 %v1324
        %v1502 = vpop.f32.mrb[0].mxu0
        %v1503 = vadd.f32 0.0, %v1502
        %v1504 = vpop.f32.mrb[0].mxu0
        %v1505 = vadd.f32 0.0, %v1504
        %v1506 = vpop.f32.mrb[0].mxu0
        %v1507 = vadd.f32 0.0, %v1506
        %v1508 = vpop.f32.mrb[0].mxu0
        %v1509 = vadd.f32 0.0, %v1508
        %1510 = vmatprep.mubr.bf16.mxu0 0
        %1511 = vmatmul.mubr.bf16.gmra.mrb[0].mxu0 %v1327
        %v1512 = vpop.f32.mrb[0].mxu0
        %v1513 = vadd.f32 0.0, %v1512
        %v1514 = vpop.f32.mrb[0].mxu0
        %v1515 = vadd.f32 0.0, %v1514
        %v1516 = vpop.f32.mrb[0].mxu0
        %v1517 = vadd.f32 0.0, %v1516
        %v1518 = vpop.f32.mrb[0].mxu0
        %v1519 = vadd.f32 0.0, %v1518
        %1520 = vmatprep.mubr.bf16.mxu0 0
        %1521 = vmatmul.mubr.bf16.gmra.mrb[0].mxu0 %v1330
        %v1522 = vpop.f32.mrb[0].mxu0
        %v1523 = vadd.f32 0.0, %v1522
        %v1524 = vpop.f32.mrb[0].mxu0
        %v1525 = vadd.f32 0.0, %v1524
        %v1526 = vpop.f32.mrb[0].mxu0
        %v1527 = vadd.f32 0.0, %v1526
        %v1528 = vpop.f32.mrb[0].mxu0
        %v1529 = vadd.f32 0.0, %v1528
        %1530 = vdwg.mxu0
        %1531 = vxpose.xlu0.c.b16.start [1/8] %v682, 128
        %1532 = vxpose.xlu0.c.b16.cont [2/8] 0, 128
        %1533 = vxpose.xlu0.c.b16.cont [3/8] 0, 128
        %1534 = vxpose.xlu0.c.b16.cont [4/8] 0, 128
        %1535 = vxpose.xlu0.c.b16.cont [5/8] 0, 128
        %1536 = vxpose.xlu0.c.b16.cont [6/8] 0, 128
        %1537 = vxpose.xlu0.c.b16.cont [7/8] 0, 128
        %1538 = vxpose.xlu0.c.b16.end [8/8] 0, 128
        %v1539 = vpop.trf.xlu0
        %v1540 = vpop.trf.xlu0
        %v1541 = vpop.trf.xlu0
        %v1542 = vpop.trf.xlu0
        %v1543 = vpop.trf.xlu0
        %v1544 = vpop.trf.xlu0
        %v1545 = vpop.trf.xlu0
        %v1546 = vpop.trf.xlu0
        %1547 = vxpose.xlu0.c.b16.start [1/8] %v683, 128
        %1548 = vxpose.xlu0.c.b16.cont [2/8] 0, 128
        %1549 = vxpose.xlu0.c.b16.cont [3/8] 0, 128
        %1550 = vxpose.xlu0.c.b16.cont [4/8] 0, 128
        %1551 = vxpose.xlu0.c.b16.cont [5/8] 0, 128
        %1552 = vxpose.xlu0.c.b16.cont [6/8] 0, 128
        %1553 = vxpose.xlu0.c.b16.cont [7/8] 0, 128
        %1554 = vxpose.xlu0.c.b16.end [8/8] 0, 128
        %v1555 = vpop.trf.xlu0
        %v1556 = vpop.trf.xlu0
        %v1557 = vpop.trf.xlu0
        %v1558 = vpop.trf.xlu0
        %v1559 = vpop.trf.xlu0
        %v1560 = vpop.trf.xlu0
        %v1561 = vpop.trf.xlu0
        %v1562 = vpop.trf.xlu0
        %v1564 = vsel %vm724, %v1539, 0
        %v1567 = vsel %vm724, %v1540, 0
        %v1570 = vsel %vm724, %v1541, 0
        %v1573 = vsel %vm724, %v1542, 0
        %v1576 = vsel %vm724, %v1543, 0
        %v1579 = vsel %vm724, %v1544, 0
        %v1582 = vsel %vm724, %v1545, 0
        %v1585 = vsel %vm724, %v1546, 0
        %v1588 = vsel %vm724, %v1555, 0
        %v1591 = vsel %vm724, %v1556, 0
        %v1594 = vsel %vm724, %v1557, 0
        %v1597 = vsel %vm724, %v1558, 0
        %v1600 = vsel %vm724, %v1559, 0
        %v1603 = vsel %vm724, %v1560, 0
        %v1606 = vsel %vm724, %v1561, 0
        %v1609 = vsel %vm724, %v1562, 0
        %v1612 = vsel %vm773, %v674, 0
        %v1615 = vsel %vm773, %v675, 0
        %1617 = vmatprep.subr.bf16.mxu0 %v1615
        %1618 = vmatpush1.bf16.msra.mxu0 %v1612
        %1619 = vmatprep.subr.bf16.mxu0 0
        %1620 = vmatpush1.bf16.msra.mxu0 0
        %1621 = vmatprep.subr.bf16.mxu0 0
        %1622 = vmatpush1.bf16.msra.mxu0 0
        %1623 = vmatprep.subr.bf16.mxu0 0
        %1624 = vmatpush1.bf16.msra.mxu0 0
        %1625 = vmatprep.subr.bf16.mxu0 0
        %1626 = vmatpush1.bf16.msra.mxu0 0
        %1627 = vmatprep.subr.bf16.mxu0 0
        %1628 = vmatpush1.bf16.msra.mxu0 0
        %1629 = vmatprep.subr.bf16.mxu0 0
        %1630 = vmatpush1.bf16.msra.mxu0 0
        %1631 = vmatprep.subr.bf16.mxu0 0
        %1632 = vmatpush1.bf16.msra.mxu0 0
        %1633 = vmatprep.subr.bf16.mxu0 0
        %1634 = vmatpush1.bf16.msra.mxu0 0
        %1635 = vmatprep.subr.bf16.mxu0 0
        %1636 = vmatpush1.bf16.msra.mxu0 0
        %1637 = vmatprep.subr.bf16.mxu0 0
        %1638 = vmatpush1.bf16.msra.mxu0 0
        %1639 = vmatprep.subr.bf16.mxu0 0
        %1640 = vmatpush1.bf16.msra.mxu0 0
        %1641 = vmatprep.subr.bf16.mxu0 0
        %1642 = vmatpush1.bf16.msra.mxu0 0
        %1643 = vmatprep.subr.bf16.mxu0 0
        %1644 = vmatpush1.bf16.msra.mxu0 0
        %1645 = vmatprep.subr.bf16.mxu0 0
        %1646 = vmatpush1.bf16.msra.mxu0 0
        %1647 = vmatprep.subr.bf16.mxu0 0
        %1648 = vmatpush1.bf16.msra.mxu0 0
        %1649 = vmatprep.mubr.bf16.mxu0 0
        %1650 = vmatmul.mubr.bf16.gmra.mrb[0].mxu0 %v1564
        %v1651 = vpop.f32.mrb[0].mxu0
        %v1652 = vadd.f32 0.0, %v1651
        %v1653 = vpop.f32.mrb[0].mxu0
        %v1654 = vadd.f32 0.0, %v1653
        %v1655 = vpop.f32.mrb[0].mxu0
        %v1656 = vadd.f32 0.0, %v1655
        %v1657 = vpop.f32.mrb[0].mxu0
        %v1658 = vadd.f32 0.0, %v1657
        %1659 = vmatprep.mubr.bf16.mxu0 0
        %1660 = vmatmul.mubr.bf16.gmra.mrb[0].mxu0 %v1567
        %v1661 = vpop.f32.mrb[0].mxu0
        %v1662 = vadd.f32 0.0, %v1661
        %v1663 = vpop.f32.mrb[0].mxu0
        %v1664 = vadd.f32 0.0, %v1663
        %v1665 = vpop.f32.mrb[0].mxu0
        %v1666 = vadd.f32 0.0, %v1665
        %v1667 = vpop.f32.mrb[0].mxu0
        %v1668 = vadd.f32 0.0, %v1667
        %1669 = vmatprep.mubr.bf16.mxu0 0
        %1670 = vmatmul.mubr.bf16.gmra.mrb[0].mxu0 %v1570
        %v1671 = vpop.f32.mrb[0].mxu0
        %v1672 = vadd.f32 0.0, %v1671
        %v1673 = vpop.f32.mrb[0].mxu0
        %v1674 = vadd.f32 0.0, %v1673
        %v1675 = vpop.f32.mrb[0].mxu0
        %v1676 = vadd.f32 0.0, %v1675
        %v1677 = vpop.f32.mrb[0].mxu0
        %v1678 = vadd.f32 0.0, %v1677
        %1679 = vmatprep.mubr.bf16.mxu0 0
        %1680 = vmatmul.mubr.bf16.gmra.mrb[0].mxu0 %v1573
        %v1681 = vpop.f32.mrb[0].mxu0
        %v1682 = vadd.f32 0.0, %v1681
        %v1683 = vpop.f32.mrb[0].mxu0
        %v1684 = vadd.f32 0.0, %v1683
        %v1685 = vpop.f32.mrb[0].mxu0
        %v1686 = vadd.f32 0.0, %v1685
        %v1687 = vpop.f32.mrb[0].mxu0
        %v1688 = vadd.f32 0.0, %v1687
        %1689 = vmatprep.mubr.bf16.mxu0 0
        %1690 = vmatmul.mubr.bf16.gmra.mrb[0].mxu0 %v1576
        %v1691 = vpop.f32.mrb[0].mxu0
        %v1692 = vadd.f32 0.0, %v1691
        %v1693 = vpop.f32.mrb[0].mxu0
        %v1694 = vadd.f32 0.0, %v1693
        %v1695 = vpop.f32.mrb[0].mxu0
        %v1696 = vadd.f32 0.0, %v1695
        %v1697 = vpop.f32.mrb[0].mxu0
        %v1698 = vadd.f32 0.0, %v1697
        %1699 = vmatprep.mubr.bf16.mxu0 0
        %1700 = vmatmul.mubr.bf16.gmra.mrb[0].mxu0 %v1579
        %v1701 = vpop.f32.mrb[0].mxu0
        %v1702 = vadd.f32 0.0, %v1701
        %v1703 = vpop.f32.mrb[0].mxu0
        %v1704 = vadd.f32 0.0, %v1703
        %v1705 = vpop.f32.mrb[0].mxu0
        %v1706 = vadd.f32 0.0, %v1705
        %v1707 = vpop.f32.mrb[0].mxu0
        %v1708 = vadd.f32 0.0, %v1707
        %1709 = vmatprep.mubr.bf16.mxu0 0
        %1710 = vmatmul.mubr.bf16.gmra.mrb[0].mxu0 %v1582
        %v1711 = vpop.f32.mrb[0].mxu0
        %v1712 = vadd.f32 0.0, %v1711
        %v1713 = vpop.f32.mrb[0].mxu0
        %v1714 = vadd.f32 0.0, %v1713
        %v1715 = vpop.f32.mrb[0].mxu0
        %v1716 = vadd.f32 0.0, %v1715
        %v1717 = vpop.f32.mrb[0].mxu0
        %v1718 = vadd.f32 0.0, %v1717
        %1719 = vmatprep.mubr.bf16.mxu0 0
        %1720 = vmatmul.mubr.bf16.gmra.mrb[0].mxu0 %v1585
        %v1721 = vpop.f32.mrb[0].mxu0
        %v1722 = vadd.f32 0.0, %v1721
        %v1723 = vpop.f32.mrb[0].mxu0
        %v1724 = vadd.f32 0.0, %v1723
        %v1725 = vpop.f32.mrb[0].mxu0
        %v1726 = vadd.f32 0.0, %v1725
        %v1727 = vpop.f32.mrb[0].mxu0
        %v1728 = vadd.f32 0.0, %v1727
        %1729 = vmatprep.mubr.bf16.mxu0 0
        %1730 = vmatmul.mubr.bf16.gmra.mrb[0].mxu0 %v1588
        %v1731 = vpop.f32.mrb[0].mxu0
        %v1732 = vadd.f32 0.0, %v1731
        %v1733 = vpop.f32.mrb[0].mxu0
        %v1734 = vadd.f32 0.0, %v1733
        %v1735 = vpop.f32.mrb[0].mxu0
        %v1736 = vadd.f32 0.0, %v1735
        %v1737 = vpop.f32.mrb[0].mxu0
        %v1738 = vadd.f32 0.0, %v1737
        %1739 = vmatprep.mubr.bf16.mxu0 0
        %1740 = vmatmul.mubr.bf16.gmra.mrb[0].mxu0 %v1591
        %v1741 = vpop.f32.mrb[0].mxu0
        %v1742 = vadd.f32 0.0, %v1741
        %v1743 = vpop.f32.mrb[0].mxu0
        %v1744 = vadd.f32 0.0, %v1743
        %v1745 = vpop.f32.mrb[0].mxu0
        %v1746 = vadd.f32 0.0, %v1745
        %v1747 = vpop.f32.mrb[0].mxu0
        %v1748 = vadd.f32 0.0, %v1747
        %1749 = vmatprep.mubr.bf16.mxu0 0
        %1750 = vmatmul.mubr.bf16.gmra.mrb[0].mxu0 %v1594
        %v1751 = vpop.f32.mrb[0].mxu0
        %v1752 = vadd.f32 0.0, %v1751
        %v1753 = vpop.f32.mrb[0].mxu0
        %v1754 = vadd.f32 0.0, %v1753
        %v1755 = vpop.f32.mrb[0].mxu0
        %v1756 = vadd.f32 0.0, %v1755
        %v1757 = vpop.f32.mrb[0].mxu0
        %v1758 = vadd.f32 0.0, %v1757
        %1759 = vmatprep.mubr.bf16.mxu0 0
        %1760 = vmatmul.mubr.bf16.gmra.mrb[0].mxu0 %v1597
        %v1761 = vpop.f32.mrb[0].mxu0
        %v1762 = vadd.f32 0.0, %v1761
        %v1763 = vpop.f32.mrb[0].mxu0
        %v1764 = vadd.f32 0.0, %v1763
        %v1765 = vpop.f32.mrb[0].mxu0
        %v1766 = vadd.f32 0.0, %v1765
        %v1767 = vpop.f32.mrb[0].mxu0
        %v1768 = vadd.f32 0.0, %v1767
        %1769 = vmatprep.mubr.bf16.mxu0 0
        %1770 = vmatmul.mubr.bf16.gmra.mrb[0].mxu0 %v1600
        %v1771 = vpop.f32.mrb[0].mxu0
        %v1772 = vadd.f32 0.0, %v1771
        %v1773 = vpop.f32.mrb[0].mxu0
        %v1774 = vadd.f32 0.0, %v1773
        %v1775 = vpop.f32.mrb[0].mxu0
        %v1776 = vadd.f32 0.0, %v1775
        %v1777 = vpop.f32.mrb[0].mxu0
        %v1778 = vadd.f32 0.0, %v1777
        %1779 = vmatprep.mubr.bf16.mxu0 0
        %1780 = vmatmul.mubr.bf16.gmra.mrb[0].mxu0 %v1603
        %v1781 = vpop.f32.mrb[0].mxu0
        %v1782 = vadd.f32 0.0, %v1781
        %v1783 = vpop.f32.mrb[0].mxu0
        %v1784 = vadd.f32 0.0, %v1783
        %v1785 = vpop.f32.mrb[0].mxu0
        %v1786 = vadd.f32 0.0, %v1785
        %v1787 = vpop.f32.mrb[0].mxu0
        %v1788 = vadd.f32 0.0, %v1787
        %1789 = vmatprep.mubr.bf16.mxu0 0
        %1790 = vmatmul.mubr.bf16.gmra.mrb[0].mxu0 %v1606
        %v1791 = vpop.f32.mrb[0].mxu0
        %v1792 = vadd.f32 0.0, %v1791
        %v1793 = vpop.f32.mrb[0].mxu0
        %v1794 = vadd.f32 0.0, %v1793
        %v1795 = vpop.f32.mrb[0].mxu0
        %v1796 = vadd.f32 0.0, %v1795
        %v1797 = vpop.f32.mrb[0].mxu0
        %v1798 = vadd.f32 0.0, %v1797
        %1799 = vmatprep.mubr.bf16.mxu0 0
        %1800 = vmatmul.mubr.bf16.gmra.mrb[0].mxu0 %v1609
        %v1801 = vpop.f32.mrb[0].mxu0
        %v1802 = vadd.f32 0.0, %v1801
        %v1803 = vpop.f32.mrb[0].mxu0
        %v1804 = vadd.f32 0.0, %v1803
        %v1805 = vpop.f32.mrb[0].mxu0
        %v1806 = vadd.f32 0.0, %v1805
        %v1807 = vpop.f32.mrb[0].mxu0
        %v1808 = vadd.f32 0.0, %v1807
        %1809 = vdwg.mxu0
        %v1810 = vmax.f32 %v815, %v819
        %v1811 = vmax.f32 %v1810, %v825
        %v1812 = vmax.f32 %v1811, %v829
        %v1813 = vmax.f32 %v1812, %v835
        %v1814 = vmax.f32 %v1813, %v839
        %v1815 = vmax.f32 %v1814, %v845
        %v1816 = vmax.f32 %v1815, %v849
        %v1817 = vmax.f32 %v1816, %v855
        %v1818 = vmax.f32 %v1817, %v859
        %v1819 = vmax.f32 %v1818, %v865
        %v1820 = vmax.f32 %v1819, %v869
        %v1821 = vmax.f32 %v1820, %v875
        %v1822 = vmax.f32 %v1821, %v879
        %v1823 = vmax.f32 %v1822, %v885
        %v1824 = vmax.f32 %v1823, %v889
        %v1825 = vmax.f32 %v1824, %v895
        %v1826 = vmax.f32 %v1825, %v899
        %v1827 = vmax.f32 %v1826, %v905
        %v1828 = vmax.f32 %v1827, %v909
        %v1829 = vmax.f32 %v1828, %v915
        %v1830 = vmax.f32 %v1829, %v919
        %v1831 = vmax.f32 %v1830, %v925
        %v1832 = vmax.f32 %v1831, %v929
        %v1833 = vmax.f32 %v1832, %v935
        %v1834 = vmax.f32 %v1833, %v939
        %v1835 = vmax.f32 %v1834, %v945
        %v1836 = vmax.f32 %v1835, %v949
        %v1837 = vmax.f32 %v1836, %v955
        %v1838 = vmax.f32 %v1837, %v959
        %v1839 = vmax.f32 %v1838, %v965
        %v1840 = vmax.f32 %v1839, %v969
        %v1841 = vrot.slane %v1840, 4
        %v1842 = vmax.f32 %v1840, %v1841
        %v1843 = vrot.slane %v1842, 2
        %v1844 = vmax.f32 %v1842, %v1843
        %v1845 = vrot.slane %v1844, 1
        %v1846 = vmax.f32 %v1844, %v1845
        %v1847 = vmax.f32 %v817, %v821
        %v1848 = vmax.f32 %v1847, %v827
        %v1849 = vmax.f32 %v1848, %v831
        %v1850 = vmax.f32 %v1849, %v837
        %v1851 = vmax.f32 %v1850, %v841
        %v1852 = vmax.f32 %v1851, %v847
        %v1853 = vmax.f32 %v1852, %v851
        %v1854 = vmax.f32 %v1853, %v857
        %v1855 = vmax.f32 %v1854, %v861
        %v1856 = vmax.f32 %v1855, %v867
        %v1857 = vmax.f32 %v1856, %v871
        %v1858 = vmax.f32 %v1857, %v877
        %v1859 = vmax.f32 %v1858, %v881
        %v1860 = vmax.f32 %v1859, %v887
        %v1861 = vmax.f32 %v1860, %v891
        %v1862 = vmax.f32 %v1861, %v897
        %v1863 = vmax.f32 %v1862, %v901
        %v1864 = vmax.f32 %v1863, %v907
        %v1865 = vmax.f32 %v1864, %v911
        %v1866 = vmax.f32 %v1865, %v917
        %v1867 = vmax.f32 %v1866, %v921
        %v1868 = vmax.f32 %v1867, %v927
        %v1869 = vmax.f32 %v1868, %v931
        %v1870 = vmax.f32 %v1869, %v937
        %v1871 = vmax.f32 %v1870, %v941
        %v1872 = vmax.f32 %v1871, %v947
        %v1873 = vmax.f32 %v1872, %v951
        %v1874 = vmax.f32 %v1873, %v957
        %v1875 = vmax.f32 %v1874, %v961
        %v1876 = vmax.f32 %v1875, %v967
        %v1877 = vmax.f32 %v1876, %v971
        %v1878 = vrot.slane %v1877, 4
        %v1879 = vmax.f32 %v1877, %v1878
        %v1880 = vrot.slane %v1879, 2
        %v1881 = vmax.f32 %v1879, %v1880
        %v1882 = vrot.slane %v1881, 1
        %v1883 = vmax.f32 %v1881, %v1882
        %v1884 = vmax.f32 %v1094, %v1098
        %v1885 = vmax.f32 %v1884, %v1104
        %v1886 = vmax.f32 %v1885, %v1108
        %v1887 = vmax.f32 %v1886, %v1114
        %v1888 = vmax.f32 %v1887, %v1118
        %v1889 = vmax.f32 %v1888, %v1124
        %v1890 = vmax.f32 %v1889, %v1128
        %v1891 = vmax.f32 %v1890, %v1134
        %v1892 = vmax.f32 %v1891, %v1138
        %v1893 = vmax.f32 %v1892, %v1144
        %v1894 = vmax.f32 %v1893, %v1148
        %v1895 = vmax.f32 %v1894, %v1154
        %v1896 = vmax.f32 %v1895, %v1158
        %v1897 = vmax.f32 %v1896, %v1164
        %v1898 = vmax.f32 %v1897, %v1168
        %v1899 = vmax.f32 %v1898, %v1174
        %v1900 = vmax.f32 %v1899, %v1178
        %v1901 = vmax.f32 %v1900, %v1184
        %v1902 = vmax.f32 %v1901, %v1188
        %v1903 = vmax.f32 %v1902, %v1194
        %v1904 = vmax.f32 %v1903, %v1198
        %v1905 = vmax.f32 %v1904, %v1204
        %v1906 = vmax.f32 %v1905, %v1208
        %v1907 = vmax.f32 %v1906, %v1214
        %v1908 = vmax.f32 %v1907, %v1218
        %v1909 = vmax.f32 %v1908, %v1224
        %v1910 = vmax.f32 %v1909, %v1228
        %v1911 = vmax.f32 %v1910, %v1234
        %v1912 = vmax.f32 %v1911, %v1238
        %v1913 = vmax.f32 %v1912, %v1244
        %v1914 = vmax.f32 %v1913, %v1248
        %v1915 = vrot.slane %v1914, 4
        %v1916 = vmax.f32 %v1914, %v1915
        %v1917 = vrot.slane %v1916, 2
        %v1918 = vmax.f32 %v1916, %v1917
        %v1919 = vrot.slane %v1918, 1
        %v1920 = vmax.f32 %v1918, %v1919
        %v1921 = vmax.f32 %v1096, %v1100
        %v1922 = vmax.f32 %v1921, %v1106
        %v1923 = vmax.f32 %v1922, %v1110
        %v1924 = vmax.f32 %v1923, %v1116
        %v1925 = vmax.f32 %v1924, %v1120
        %v1926 = vmax.f32 %v1925, %v1126
        %v1927 = vmax.f32 %v1926, %v1130
        %v1928 = vmax.f32 %v1927, %v1136
        %v1929 = vmax.f32 %v1928, %v1140
        %v1930 = vmax.f32 %v1929, %v1146
        %v1931 = vmax.f32 %v1930, %v1150
        %v1932 = vmax.f32 %v1931, %v1156
        %v1933 = vmax.f32 %v1932, %v1160
        %v1934 = vmax.f32 %v1933, %v1166
        %v1935 = vmax.f32 %v1934, %v1170
        %v1936 = vmax.f32 %v1935, %v1176
        %v1937 = vmax.f32 %v1936, %v1180
        %v1938 = vmax.f32 %v1937, %v1186
        %v1939 = vmax.f32 %v1938, %v1190
        %v1940 = vmax.f32 %v1939, %v1196
        %v1941 = vmax.f32 %v1940, %v1200
        %v1942 = vmax.f32 %v1941, %v1206
        %v1943 = vmax.f32 %v1942, %v1210
        %v1944 = vmax.f32 %v1943, %v1216
        %v1945 = vmax.f32 %v1944, %v1220
        %v1946 = vmax.f32 %v1945, %v1226
        %v1947 = vmax.f32 %v1946, %v1230
        %v1948 = vmax.f32 %v1947, %v1236
        %v1949 = vmax.f32 %v1948, %v1240
        %v1950 = vmax.f32 %v1949, %v1246
        %v1951 = vmax.f32 %v1950, %v1250
        %v1952 = vrot.slane %v1951, 4
        %v1953 = vmax.f32 %v1951, %v1952
        %v1954 = vrot.slane %v1953, 2
        %v1955 = vmax.f32 %v1953, %v1954
        %v1956 = vrot.slane %v1955, 1
        %v1957 = vmax.f32 %v1955, %v1956
        %v1958 = vmax.f32 %v1373, %v1377
        %v1959 = vmax.f32 %v1958, %v1383
        %v1960 = vmax.f32 %v1959, %v1387
        %v1961 = vmax.f32 %v1960, %v1393
        %v1962 = vmax.f32 %v1961, %v1397
        %v1963 = vmax.f32 %v1962, %v1403
        %v1964 = vmax.f32 %v1963, %v1407
        %v1965 = vmax.f32 %v1964, %v1413
        %v1966 = vmax.f32 %v1965, %v1417
        %v1967 = vmax.f32 %v1966, %v1423
        %v1968 = vmax.f32 %v1967, %v1427
        %v1969 = vmax.f32 %v1968, %v1433
        %v1970 = vmax.f32 %v1969, %v1437
        %v1971 = vmax.f32 %v1970, %v1443
        %v1972 = vmax.f32 %v1971, %v1447
        %v1973 = vmax.f32 %v1972, %v1453
        %v1974 = vmax.f32 %v1973, %v1457
        %v1975 = vmax.f32 %v1974, %v1463
        %v1976 = vmax.f32 %v1975, %v1467
        %v1977 = vmax.f32 %v1976, %v1473
        %v1978 = vmax.f32 %v1977, %v1477
        %v1979 = vmax.f32 %v1978, %v1483
        %v1980 = vmax.f32 %v1979, %v1487
        %v1981 = vmax.f32 %v1980, %v1493
        %v1982 = vmax.f32 %v1981, %v1497
        %v1983 = vmax.f32 %v1982, %v1503
        %v1984 = vmax.f32 %v1983, %v1507
        %v1985 = vmax.f32 %v1984, %v1513
        %v1986 = vmax.f32 %v1985, %v1517
        %v1987 = vmax.f32 %v1986, %v1523
        %v1988 = vmax.f32 %v1987, %v1527
        %v1989 = vrot.slane %v1988, 4
        %v1990 = vmax.f32 %v1988, %v1989
        %v1991 = vrot.slane %v1990, 2
        %v1992 = vmax.f32 %v1990, %v1991
        %v1993 = vrot.slane %v1992, 1
        %v1994 = vmax.f32 %v1992, %v1993
        %v1995 = vmax.f32 %v1375, %v1379
        %v1996 = vmax.f32 %v1995, %v1385
        %v1997 = vmax.f32 %v1996, %v1389
        %v1998 = vmax.f32 %v1997, %v1395
        %v1999 = vmax.f32 %v1998, %v1399
        %v2000 = vmax.f32 %v1999, %v1405
        %v2001 = vmax.f32 %v2000, %v1409
        %v2002 = vmax.f32 %v2001, %v1415
        %v2003 = vmax.f32 %v2002, %v1419
        %v2004 = vmax.f32 %v2003, %v1425
        %v2005 = vmax.f32 %v2004, %v1429
        %v2006 = vmax.f32 %v2005, %v1435
        %v2007 = vmax.f32 %v2006, %v1439
        %v2008 = vmax.f32 %v2007, %v1445
        %v2009 = vmax.f32 %v2008, %v1449
        %v2010 = vmax.f32 %v2009, %v1455
        %v2011 = vmax.f32 %v2010, %v1459
        %v2012 = vmax.f32 %v2011, %v1465
        %v2013 = vmax.f32 %v2012, %v1469
        %v2014 = vmax.f32 %v2013, %v1475
        %v2015 = vmax.f32 %v2014, %v1479
        %v2016 = vmax.f32 %v2015, %v1485
        %v2017 = vmax.f32 %v2016, %v1489
        %v2018 = vmax.f32 %v2017, %v1495
        %v2019 = vmax.f32 %v2018, %v1499
        %v2020 = vmax.f32 %v2019, %v1505
        %v2021 = vmax.f32 %v2020, %v1509
        %v2022 = vmax.f32 %v2021, %v1515
        %v2023 = vmax.f32 %v2022, %v1519
        %v2024 = vmax.f32 %v2023, %v1525
        %v2025 = vmax.f32 %v2024, %v1529
        %v2026 = vrot.slane %v2025, 4
        %v2027 = vmax.f32 %v2025, %v2026
        %v2028 = vrot.slane %v2027, 2
        %v2029 = vmax.f32 %v2027, %v2028
        %v2030 = vrot.slane %v2029, 1
        %v2031 = vmax.f32 %v2029, %v2030
        %v2032 = vmax.f32 %v1652, %v1656
        %v2033 = vmax.f32 %v2032, %v1662
        %v2034 = vmax.f32 %v2033, %v1666
        %v2035 = vmax.f32 %v2034, %v1672
        %v2036 = vmax.f32 %v2035, %v1676
        %v2037 = vmax.f32 %v2036, %v1682
        %v2038 = vmax.f32 %v2037, %v1686
        %v2039 = vmax.f32 %v2038, %v1692
        %v2040 = vmax.f32 %v2039, %v1696
        %v2041 = vmax.f32 %v2040, %v1702
        %v2042 = vmax.f32 %v2041, %v1706
        %v2043 = vmax.f32 %v2042, %v1712
        %v2044 = vmax.f32 %v2043, %v1716
        %v2045 = vmax.f32 %v2044, %v1722
        %v2046 = vmax.f32 %v2045, %v1726
        %v2047 = vmax.f32 %v2046, %v1732
        %v2048 = vmax.f32 %v2047, %v1736
        %v2049 = vmax.f32 %v2048, %v1742
        %v2050 = vmax.f32 %v2049, %v1746
        %v2051 = vmax.f32 %v2050, %v1752
        %v2052 = vmax.f32 %v2051, %v1756
        %v2053 = vmax.f32 %v2052, %v1762
        %v2054 = vmax.f32 %v2053, %v1766
        %v2055 = vmax.f32 %v2054, %v1772
        %v2056 = vmax.f32 %v2055, %v1776
        %v2057 = vmax.f32 %v2056, %v1782
        %v2058 = vmax.f32 %v2057, %v1786
        %v2059 = vmax.f32 %v2058, %v1792
        %v2060 = vmax.f32 %v2059, %v1796
        %v2061 = vmax.f32 %v2060, %v1802
        %v2062 = vmax.f32 %v2061, %v1806
        %v2063 = vrot.slane %v2062, 4
        %v2064 = vmax.f32 %v2062, %v2063
        %v2065 = vrot.slane %v2064, 2
        %v2066 = vmax.f32 %v2064, %v2065
        %v2067 = vrot.slane %v2066, 1
        %v2068 = vmax.f32 %v2066, %v2067
        %v2069 = vmax.f32 %v1654, %v1658
        %v2070 = vmax.f32 %v2069, %v1664
        %v2071 = vmax.f32 %v2070, %v1668
        %v2072 = vmax.f32 %v2071, %v1674
        %v2073 = vmax.f32 %v2072, %v1678
        %v2074 = vmax.f32 %v2073, %v1684
        %v2075 = vmax.f32 %v2074, %v1688
        %v2076 = vmax.f32 %v2075, %v1694
        %v2077 = vmax.f32 %v2076, %v1698
        %v2078 = vmax.f32 %v2077, %v1704
        %v2079 = vmax.f32 %v2078, %v1708
        %v2080 = vmax.f32 %v2079, %v1714
        %v2081 = vmax.f32 %v2080, %v1718
        %v2082 = vmax.f32 %v2081, %v1724
        %v2083 = vmax.f32 %v2082, %v1728
        %v2084 = vmax.f32 %v2083, %v1734
        %v2085 = vmax.f32 %v2084, %v1738
        %v2086 = vmax.f32 %v2085, %v1744
        %v2087 = vmax.f32 %v2086, %v1748
        %v2088 = vmax.f32 %v2087, %v1754
        %v2089 = vmax.f32 %v2088, %v1758
        %v2090 = vmax.f32 %v2089, %v1764
        %v2091 = vmax.f32 %v2090, %v1768
        %v2092 = vmax.f32 %v2091, %v1774
        %v2093 = vmax.f32 %v2092, %v1778
        %v2094 = vmax.f32 %v2093, %v1784
        %v2095 = vmax.f32 %v2094, %v1788
        %v2096 = vmax.f32 %v2095, %v1794
        %v2097 = vmax.f32 %v2096, %v1798
        %v2098 = vmax.f32 %v2097, %v1804
        %v2099 = vmax.f32 %v2098, %v1808
        %v2100 = vrot.slane %v2099, 4
        %v2101 = vmax.f32 %v2099, %v2100
        %v2102 = vrot.slane %v2101, 2
        %v2103 = vmax.f32 %v2101, %v2102
        %v2104 = vrot.slane %v2103, 1
        %v2105 = vmax.f32 %v2103, %v2104
        %v2106 = vsub.f32 %v815, %v1846
        %v2107 = vsub.f32 %v817, %v1883
        %v2108 = vsub.f32 %v819, %v1846
        %v2109 = vsub.f32 %v821, %v1883
        %v2110 = vsub.f32 %v825, %v1846
        %v2111 = vsub.f32 %v827, %v1883
        %v2112 = vsub.f32 %v829, %v1846
        %v2113 = vsub.f32 %v831, %v1883
        %v2114 = vsub.f32 %v835, %v1846
        %v2115 = vsub.f32 %v837, %v1883
        %v2116 = vsub.f32 %v839, %v1846
        %v2117 = vsub.f32 %v841, %v1883
        %v2118 = vsub.f32 %v845, %v1846
        %v2119 = vsub.f32 %v847, %v1883
        %v2120 = vsub.f32 %v849, %v1846
        %v2121 = vsub.f32 %v851, %v1883
        %v2122 = vsub.f32 %v855, %v1846
        %v2123 = vsub.f32 %v857, %v1883
        %v2124 = vsub.f32 %v859, %v1846
        %v2125 = vsub.f32 %v861, %v1883
        %v2126 = vsub.f32 %v865, %v1846
        %v2127 = vsub.f32 %v867, %v1883
        %v2128 = vsub.f32 %v869, %v1846
        %v2129 = vsub.f32 %v871, %v1883
        %v2130 = vsub.f32 %v875, %v1846
        %v2131 = vsub.f32 %v877, %v1883
        %v2132 = vsub.f32 %v879, %v1846
        %v2133 = vsub.f32 %v881, %v1883
        %v2134 = vsub.f32 %v885, %v1846
        %v2135 = vsub.f32 %v887, %v1883
        %v2136 = vsub.f32 %v889, %v1846
        %v2137 = vsub.f32 %v891, %v1883
        %v2138 = vsub.f32 %v895, %v1846
        %v2139 = vsub.f32 %v897, %v1883
        %v2140 = vsub.f32 %v899, %v1846
        %v2141 = vsub.f32 %v901, %v1883
        %v2142 = vsub.f32 %v905, %v1846
        %v2143 = vsub.f32 %v907, %v1883
        %v2144 = vsub.f32 %v909, %v1846
        %v2145 = vsub.f32 %v911, %v1883
        %v2146 = vsub.f32 %v915, %v1846
        %v2147 = vsub.f32 %v917, %v1883
        %v2148 = vsub.f32 %v919, %v1846
        %v2149 = vsub.f32 %v921, %v1883
        %v2150 = vsub.f32 %v925, %v1846
        %v2151 = vsub.f32 %v927, %v1883
        %v2152 = vsub.f32 %v929, %v1846
        %v2153 = vsub.f32 %v931, %v1883
        %v2154 = vsub.f32 %v935, %v1846
        %v2155 = vsub.f32 %v937, %v1883
        %v2156 = vsub.f32 %v939, %v1846
        %v2157 = vsub.f32 %v941, %v1883
        %v2158 = vsub.f32 %v945, %v1846
        %v2159 = vsub.f32 %v947, %v1883
        %v2160 = vsub.f32 %v949, %v1846
        %v2161 = vsub.f32 %v951, %v1883
        %v2162 = vsub.f32 %v955, %v1846
        %v2163 = vsub.f32 %v957, %v1883
        %v2164 = vsub.f32 %v959, %v1846
        %v2165 = vsub.f32 %v961, %v1883
        %v2166 = vsub.f32 %v965, %v1846
        %v2167 = vsub.f32 %v967, %v1883
        %v2168 = vsub.f32 %v969, %v1846
        %v2169 = vsub.f32 %v971, %v1883
        %v2170 = vsub.f32 %v1094, %v1920
        %v2171 = vsub.f32 %v1096, %v1957
        %v2172 = vsub.f32 %v1098, %v1920
        %v2173 = vsub.f32 %v1100, %v1957
        %v2174 = vsub.f32 %v1104, %v1920
        %v2175 = vsub.f32 %v1106, %v1957
        %v2176 = vsub.f32 %v1108, %v1920
        %v2177 = vsub.f32 %v1110, %v1957
        %v2178 = vsub.f32 %v1114, %v1920
        %v2179 = vsub.f32 %v1116, %v1957
        %v2180 = vsub.f32 %v1118, %v1920
        %v2181 = vsub.f32 %v1120, %v1957
        %v2182 = vsub.f32 %v1124, %v1920
        %v2183 = vsub.f32 %v1126, %v1957
        %v2184 = vsub.f32 %v1128, %v1920
        %v2185 = vsub.f32 %v1130, %v1957
        %v2186 = vsub.f32 %v1134, %v1920
        %v2187 = vsub.f32 %v1136, %v1957
        %v2188 = vsub.f32 %v1138, %v1920
        %v2189 = vsub.f32 %v1140, %v1957
        %v2190 = vsub.f32 %v1144, %v1920
        %v2191 = vsub.f32 %v1146, %v1957
        %v2192 = vsub.f32 %v1148, %v1920
        %v2193 = vsub.f32 %v1150, %v1957
        %v2194 = vsub.f32 %v1154, %v1920
        %v2195 = vsub.f32 %v1156, %v1957
        %v2196 = vsub.f32 %v1158, %v1920
        %v2197 = vsub.f32 %v1160, %v1957
        %v2198 = vsub.f32 %v1164, %v1920
        %v2199 = vsub.f32 %v1166, %v1957
        %v2200 = vsub.f32 %v1168, %v1920
        %v2201 = vsub.f32 %v1170, %v1957
        %v2202 = vsub.f32 %v1174, %v1920
        %v2203 = vsub.f32 %v1176, %v1957
        %v2204 = vsub.f32 %v1178, %v1920
        %v2205 = vsub.f32 %v1180, %v1957
        %v2206 = vsub.f32 %v1184, %v1920
        %v2207 = vsub.f32 %v1186, %v1957
        %v2208 = vsub.f32 %v1188, %v1920
        %v2209 = vsub.f32 %v1190, %v1957
        %v2210 = vsub.f32 %v1194, %v1920
        %v2211 = vsub.f32 %v1196, %v1957
        %v2212 = vsub.f32 %v1198, %v1920
        %v2213 = vsub.f32 %v1200, %v1957
        %v2214 = vsub.f32 %v1204, %v1920
        %v2215 = vsub.f32 %v1206, %v1957
        %v2216 = vsub.f32 %v1208, %v1920
        %v2217 = vsub.f32 %v1210, %v1957
        %v2218 = vsub.f32 %v1214, %v1920
        %v2219 = vsub.f32 %v1216, %v1957
        %v2220 = vsub.f32 %v1218, %v1920
        %v2221 = vsub.f32 %v1220, %v1957
        %v2222 = vsub.f32 %v1224, %v1920
        %v2223 = vsub.f32 %v1226, %v1957
        %v2224 = vsub.f32 %v1228, %v1920
        %v2225 = vsub.f32 %v1230, %v1957
        %v2226 = vsub.f32 %v1234, %v1920
        %v2227 = vsub.f32 %v1236, %v1957
        %v2228 = vsub.f32 %v1238, %v1920
        %v2229 = vsub.f32 %v1240, %v1957
        %v2230 = vsub.f32 %v1244, %v1920
        %v2231 = vsub.f32 %v1246, %v1957
        %v2232 = vsub.f32 %v1248, %v1920
        %v2233 = vsub.f32 %v1250, %v1957
        %v2234 = vsub.f32 %v1373, %v1994
        %v2235 = vsub.f32 %v1375, %v2031
        %v2236 = vsub.f32 %v1377, %v1994
        %v2237 = vsub.f32 %v1379, %v2031
        %v2238 = vsub.f32 %v1383, %v1994
        %v2239 = vsub.f32 %v1385, %v2031
        %v2240 = vsub.f32 %v1387, %v1994
        %v2241 = vsub.f32 %v1389, %v2031
        %v2242 = vsub.f32 %v1393, %v1994
        %v2243 = vsub.f32 %v1395, %v2031
        %v2244 = vsub.f32 %v1397, %v1994
        %v2245 = vsub.f32 %v1399, %v2031
        %v2246 = vsub.f32 %v1403, %v1994
        %v2247 = vsub.f32 %v1405, %v2031
        %v2248 = vsub.f32 %v1407, %v1994
        %v2249 = vsub.f32 %v1409, %v2031
        %v2250 = vsub.f32 %v1413, %v1994
        %v2251 = vsub.f32 %v1415, %v2031
        %v2252 = vsub.f32 %v1417, %v1994
        %v2253 = vsub.f32 %v1419, %v2031
        %v2254 = vsub.f32 %v1423, %v1994
        %v2255 = vsub.f32 %v1425, %v2031
        %v2256 = vsub.f32 %v1427, %v1994
        %v2257 = vsub.f32 %v1429, %v2031
        %v2258 = vsub.f32 %v1433, %v1994
        %v2259 = vsub.f32 %v1435, %v2031
        %v2260 = vsub.f32 %v1437, %v1994
        %v2261 = vsub.f32 %v1439, %v2031
        %v2262 = vsub.f32 %v1443, %v1994
        %v2263 = vsub.f32 %v1445, %v2031
        %v2264 = vsub.f32 %v1447, %v1994
        %v2265 = vsub.f32 %v1449, %v2031
        %v2266 = vsub.f32 %v1453, %v1994
        %v2267 = vsub.f32 %v1455, %v2031
        %v2268 = vsub.f32 %v1457, %v1994
        %v2269 = vsub.f32 %v1459, %v2031
        %v2270 = vsub.f32 %v1463, %v1994
        %v2271 = vsub.f32 %v1465, %v2031
        %v2272 = vsub.f32 %v1467, %v1994
        %v2273 = vsub.f32 %v1469, %v2031
        %v2274 = vsub.f32 %v1473, %v1994
        %v2275 = vsub.f32 %v1475, %v2031
        %v2276 = vsub.f32 %v1477, %v1994
        %v2277 = vsub.f32 %v1479, %v2031
        %v2278 = vsub.f32 %v1483, %v1994
        %v2279 = vsub.f32 %v1485, %v2031
        %v2280 = vsub.f32 %v1487, %v1994
        %v2281 = vsub.f32 %v1489, %v2031
        %v2282 = vsub.f32 %v1493, %v1994
        %v2283 = vsub.f32 %v1495, %v2031
        %v2284 = vsub.f32 %v1497, %v1994
        %v2285 = vsub.f32 %v1499, %v2031
        %v2286 = vsub.f32 %v1503, %v1994
        %v2287 = vsub.f32 %v1505, %v2031
        %v2288 = vsub.f32 %v1507, %v1994
        %v2289 = vsub.f32 %v1509, %v2031
        %v2290 = vsub.f32 %v1513, %v1994
        %v2291 = vsub.f32 %v1515, %v2031
        %v2292 = vsub.f32 %v1517, %v1994
        %v2293 = vsub.f32 %v1519, %v2031
        %v2294 = vsub.f32 %v1523, %v1994
        %v2295 = vsub.f32 %v1525, %v2031
        %v2296 = vsub.f32 %v1527, %v1994
        %v2297 = vsub.f32 %v1529, %v2031
        %v2298 = vsub.f32 %v1652, %v2068
        %v2299 = vsub.f32 %v1654, %v2105
        %v2300 = vsub.f32 %v1656, %v2068
        %v2301 = vsub.f32 %v1658, %v2105
        %v2302 = vsub.f32 %v1662, %v2068
        %v2303 = vsub.f32 %v1664, %v2105
        %v2304 = vsub.f32 %v1666, %v2068
        %v2305 = vsub.f32 %v1668, %v2105
        %v2306 = vsub.f32 %v1672, %v2068
        %v2307 = vsub.f32 %v1674, %v2105
        %v2308 = vsub.f32 %v1676, %v2068
        %v2309 = vsub.f32 %v1678, %v2105
        %v2310 = vsub.f32 %v1682, %v2068
        %v2311 = vsub.f32 %v1684, %v2105
        %v2312 = vsub.f32 %v1686, %v2068
        %v2313 = vsub.f32 %v1688, %v2105
        %v2314 = vsub.f32 %v1692, %v2068
        %v2315 = vsub.f32 %v1694, %v2105
        %v2316 = vsub.f32 %v1696, %v2068
        %v2317 = vsub.f32 %v1698, %v2105
        %v2318 = vsub.f32 %v1702, %v2068
        %v2319 = vsub.f32 %v1704, %v2105
        %v2320 = vsub.f32 %v1706, %v2068
        %v2321 = vsub.f32 %v1708, %v2105
        %v2322 = vsub.f32 %v1712, %v2068
        %v2323 = vsub.f32 %v1714, %v2105
        %v2324 = vsub.f32 %v1716, %v2068
        %v2325 = vsub.f32 %v1718, %v2105
        %v2326 = vsub.f32 %v1722, %v2068
        %v2327 = vsub.f32 %v1724, %v2105
        %v2328 = vsub.f32 %v1726, %v2068
        %v2329 = vsub.f32 %v1728, %v2105
        %v2330 = vsub.f32 %v1732, %v2068
        %v2331 = vsub.f32 %v1734, %v2105
        %v2332 = vsub.f32 %v1736, %v2068
        %v2333 = vsub.f32 %v1738, %v2105
        %v2334 = vsub.f32 %v1742, %v2068
        %v2335 = vsub.f32 %v1744, %v2105
        %v2336 = vsub.f32 %v1746, %v2068
        %v2337 = vsub.f32 %v1748, %v2105
        %v2338 = vsub.f32 %v1752, %v2068
        %v2339 = vsub.f32 %v1754, %v2105
        %v2340 = vsub.f32 %v1756, %v2068
        %v2341 = vsub.f32 %v1758, %v2105
        %v2342 = vsub.f32 %v1762, %v2068
        %v2343 = vsub.f32 %v1764, %v2105
        %v2344 = vsub.f32 %v1766, %v2068
        %v2345 = vsub.f32 %v1768, %v2105
        %v2346 = vsub.f32 %v1772, %v2068
        %v2347 = vsub.f32 %v1774, %v2105
        %v2348 = vsub.f32 %v1776, %v2068
        %v2349 = vsub.f32 %v1778, %v2105
        %v2350 = vsub.f32 %v1782, %v2068
        %v2351 = vsub.f32 %v1784, %v2105
        %v2352 = vsub.f32 %v1786, %v2068
        %v2353 = vsub.f32 %v1788, %v2105
        %v2354 = vsub.f32 %v1792, %v2068
        %v2355 = vsub.f32 %v1794, %v2105
        %v2356 = vsub.f32 %v1796, %v2068
        %v2357 = vsub.f32 %v1798, %v2105
        %v2358 = vsub.f32 %v1802, %v2068
        %v2359 = vsub.f32 %v1804, %v2105
        %v2360 = vsub.f32 %v1806, %v2068
        %v2361 = vsub.f32 %v1808, %v2105
        %v2362 = vmul.f32 %v2106, 1.442695
        %v2363 = vpow.pop %v2362
        %v2364 = vmul.f32 %v2107, 1.442695
        %v2365 = vpow.pop %v2364
        %v2366 = vmul.f32 %v2108, 1.442695
        %v2367 = vpow.pop %v2366
        %v2368 = vmul.f32 %v2109, 1.442695
        %v2369 = vpow.pop %v2368
        %v2370 = vmul.f32 %v2110, 1.442695
        %v2371 = vpow.pop %v2370
        %v2372 = vmul.f32 %v2111, 1.442695
        %v2373 = vpow.pop %v2372
        %v2374 = vmul.f32 %v2112, 1.442695
        %v2375 = vpow.pop %v2374
        %v2376 = vmul.f32 %v2113, 1.442695
        %v2377 = vpow.pop %v2376
        %v2378 = vmul.f32 %v2114, 1.442695
        %v2379 = vpow.pop %v2378
        %v2380 = vmul.f32 %v2115, 1.442695
        %v2381 = vpow.pop %v2380
        %v2382 = vmul.f32 %v2116, 1.442695
        %v2383 = vpow.pop %v2382
        %v2384 = vmul.f32 %v2117, 1.442695
        %v2385 = vpow.pop %v2384
        %v2386 = vmul.f32 %v2118, 1.442695
        %v2387 = vpow.pop %v2386
        %v2388 = vmul.f32 %v2119, 1.442695
        %v2389 = vpow.pop %v2388
        %v2390 = vmul.f32 %v2120, 1.442695
        %v2391 = vpow.pop %v2390
        %v2392 = vmul.f32 %v2121, 1.442695
        %v2393 = vpow.pop %v2392
        %v2394 = vmul.f32 %v2122, 1.442695
        %v2395 = vpow.pop %v2394
        %v2396 = vmul.f32 %v2123, 1.442695
        %v2397 = vpow.pop %v2396
        %v2398 = vmul.f32 %v2124, 1.442695
        %v2399 = vpow.pop %v2398
        %v2400 = vmul.f32 %v2125, 1.442695
        %v2401 = vpow.pop %v2400
        %v2402 = vmul.f32 %v2126, 1.442695
        %v2403 = vpow.pop %v2402
        %v2404 = vmul.f32 %v2127, 1.442695
        %v2405 = vpow.pop %v2404
        %v2406 = vmul.f32 %v2128, 1.442695
        %v2407 = vpow.pop %v2406
        %v2408 = vmul.f32 %v2129, 1.442695
        %v2409 = vpow.pop %v2408
        %v2410 = vmul.f32 %v2130, 1.442695
        %v2411 = vpow.pop %v2410
        %v2412 = vmul.f32 %v2131, 1.442695
        %v2413 = vpow.pop %v2412
        %v2414 = vmul.f32 %v2132, 1.442695
        %v2415 = vpow.pop %v2414
        %v2416 = vmul.f32 %v2133, 1.442695
        %v2417 = vpow.pop %v2416
        %v2418 = vmul.f32 %v2134, 1.442695
        %v2419 = vpow.pop %v2418
        %v2420 = vmul.f32 %v2135, 1.442695
        %v2421 = vpow.pop %v2420
        %v2422 = vmul.f32 %v2136, 1.442695
        %v2423 = vpow.pop %v2422
        %v2424 = vmul.f32 %v2137, 1.442695
        %v2425 = vpow.pop %v2424
        %v2426 = vmul.f32 %v2138, 1.442695
        %v2427 = vpow.pop %v2426
        %v2428 = vmul.f32 %v2139, 1.442695
        %v2429 = vpow.pop %v2428
        %v2430 = vmul.f32 %v2140, 1.442695
        %v2431 = vpow.pop %v2430
        %v2432 = vmul.f32 %v2141, 1.442695
        %v2433 = vpow.pop %v2432
        %v2434 = vmul.f32 %v2142, 1.442695
        %v2435 = vpow.pop %v2434
        %v2436 = vmul.f32 %v2143, 1.442695
        %v2437 = vpow.pop %v2436
        %v2438 = vmul.f32 %v2144, 1.442695
        %v2439 = vpow.pop %v2438
        %v2440 = vmul.f32 %v2145, 1.442695
        %v2441 = vpow.pop %v2440
        %v2442 = vmul.f32 %v2146, 1.442695
        %v2443 = vpow.pop %v2442
        %v2444 = vmul.f32 %v2147, 1.442695
        %v2445 = vpow.pop %v2444
        %v2446 = vmul.f32 %v2148, 1.442695
        %v2447 = vpow.pop %v2446
        %v2448 = vmul.f32 %v2149, 1.442695
        %v2449 = vpow.pop %v2448
        %v2450 = vmul.f32 %v2150, 1.442695
        %v2451 = vpow.pop %v2450
        %v2452 = vmul.f32 %v2151, 1.442695
        %v2453 = vpow.pop %v2452
        %v2454 = vmul.f32 %v2152, 1.442695
        %v2455 = vpow.pop %v2454
        %v2456 = vmul.f32 %v2153, 1.442695
        %v2457 = vpow.pop %v2456
        %v2458 = vmul.f32 %v2154, 1.442695
        %v2459 = vpow.pop %v2458
        %v2460 = vmul.f32 %v2155, 1.442695
        %v2461 = vpow.pop %v2460
        %v2462 = vmul.f32 %v2156, 1.442695
        %v2463 = vpow.pop %v2462
        %v2464 = vmul.f32 %v2157, 1.442695
        %v2465 = vpow.pop %v2464
        %v2466 = vmul.f32 %v2158, 1.442695
        %v2467 = vpow.pop %v2466
        %v2468 = vmul.f32 %v2159, 1.442695
        %v2469 = vpow.pop %v2468
        %v2470 = vmul.f32 %v2160, 1.442695
        %v2471 = vpow.pop %v2470
        %v2472 = vmul.f32 %v2161, 1.442695
        %v2473 = vpow.pop %v2472
        %v2474 = vmul.f32 %v2162, 1.442695
        %v2475 = vpow.pop %v2474
        %v2476 = vmul.f32 %v2163, 1.442695
        %v2477 = vpow.pop %v2476
        %v2478 = vmul.f32 %v2164, 1.442695
        %v2479 = vpow.pop %v2478
        %v2480 = vmul.f32 %v2165, 1.442695
        %v2481 = vpow.pop %v2480
        %v2482 = vmul.f32 %v2166, 1.442695
        %v2483 = vpow.pop %v2482
        %v2484 = vmul.f32 %v2167, 1.442695
        %v2485 = vpow.pop %v2484
        %v2486 = vmul.f32 %v2168, 1.442695
        %v2487 = vpow.pop %v2486
        %v2488 = vmul.f32 %v2169, 1.442695
        %v2489 = vpow.pop %v2488
        %v2490 = vmul.f32 %v2170, 1.442695
        %v2491 = vpow.pop %v2490
        %v2492 = vmul.f32 %v2171, 1.442695
        %v2493 = vpow.pop %v2492
        %v2494 = vmul.f32 %v2172, 1.442695
        %v2495 = vpow.pop %v2494
        %v2496 = vmul.f32 %v2173, 1.442695
        %v2497 = vpow.pop %v2496
        %v2498 = vmul.f32 %v2174, 1.442695
        %v2499 = vpow.pop %v2498
        %v2500 = vmul.f32 %v2175, 1.442695
        %v2501 = vpow.pop %v2500
        %v2502 = vmul.f32 %v2176, 1.442695
        %v2503 = vpow.pop %v2502
        %v2504 = vmul.f32 %v2177, 1.442695
        %v2505 = vpow.pop %v2504
        %v2506 = vmul.f32 %v2178, 1.442695
        %v2507 = vpow.pop %v2506
        %v2508 = vmul.f32 %v2179, 1.442695
        %v2509 = vpow.pop %v2508
        %v2510 = vmul.f32 %v2180, 1.442695
        %v2511 = vpow.pop %v2510
        %v2512 = vmul.f32 %v2181, 1.442695
        %v2513 = vpow.pop %v2512
        %v2514 = vmul.f32 %v2182, 1.442695
        %v2515 = vpow.pop %v2514
        %v2516 = vmul.f32 %v2183, 1.442695
        %v2517 = vpow.pop %v2516
        %v2518 = vmul.f32 %v2184, 1.442695
        %v2519 = vpow.pop %v2518
        %v2520 = vmul.f32 %v2185, 1.442695
        %v2521 = vpow.pop %v2520
        %v2522 = vmul.f32 %v2186, 1.442695
        %v2523 = vpow.pop %v2522
        %v2524 = vmul.f32 %v2187, 1.442695
        %v2525 = vpow.pop %v2524
        %v2526 = vmul.f32 %v2188, 1.442695
        %v2527 = vpow.pop %v2526
        %v2528 = vmul.f32 %v2189, 1.442695
        %v2529 = vpow.pop %v2528
        %v2530 = vmul.f32 %v2190, 1.442695
        %v2531 = vpow.pop %v2530
        %v2532 = vmul.f32 %v2191, 1.442695
        %v2533 = vpow.pop %v2532
        %v2534 = vmul.f32 %v2192, 1.442695
        %v2535 = vpow.pop %v2534
        %v2536 = vmul.f32 %v2193, 1.442695
        %v2537 = vpow.pop %v2536
        %v2538 = vmul.f32 %v2194, 1.442695
        %v2539 = vpow.pop %v2538
        %v2540 = vmul.f32 %v2195, 1.442695
        %v2541 = vpow.pop %v2540
        %v2542 = vmul.f32 %v2196, 1.442695
        %v2543 = vpow.pop %v2542
        %v2544 = vmul.f32 %v2197, 1.442695
        %v2545 = vpow.pop %v2544
        %v2546 = vmul.f32 %v2198, 1.442695
        %v2547 = vpow.pop %v2546
        %v2548 = vmul.f32 %v2199, 1.442695
        %v2549 = vpow.pop %v2548
        %v2550 = vmul.f32 %v2200, 1.442695
        %v2551 = vpow.pop %v2550
        %v2552 = vmul.f32 %v2201, 1.442695
        %v2553 = vpow.pop %v2552
        %v2554 = vmul.f32 %v2202, 1.442695
        %v2555 = vpow.pop %v2554
        %v2556 = vmul.f32 %v2203, 1.442695
        %v2557 = vpow.pop %v2556
        %v2558 = vmul.f32 %v2204, 1.442695
        %v2559 = vpow.pop %v2558
        %v2560 = vmul.f32 %v2205, 1.442695
        %v2561 = vpow.pop %v2560
        %v2562 = vmul.f32 %v2206, 1.442695
        %v2563 = vpow.pop %v2562
        %v2564 = vmul.f32 %v2207, 1.442695
        %v2565 = vpow.pop %v2564
        %v2566 = vmul.f32 %v2208, 1.442695
        %v2567 = vpow.pop %v2566
        %v2568 = vmul.f32 %v2209, 1.442695
        %v2569 = vpow.pop %v2568
        %v2570 = vmul.f32 %v2210, 1.442695
        %v2571 = vpow.pop %v2570
        %v2572 = vmul.f32 %v2211, 1.442695
        %v2573 = vpow.pop %v2572
        %v2574 = vmul.f32 %v2212, 1.442695
        %v2575 = vpow.pop %v2574
        %v2576 = vmul.f32 %v2213, 1.442695
        %v2577 = vpow.pop %v2576
        %v2578 = vmul.f32 %v2214, 1.442695
        %v2579 = vpow.pop %v2578
        %v2580 = vmul.f32 %v2215, 1.442695
        %v2581 = vpow.pop %v2580
        %v2582 = vmul.f32 %v2216, 1.442695
        %v2583 = vpow.pop %v2582
        %v2584 = vmul.f32 %v2217, 1.442695
        %v2585 = vpow.pop %v2584
        %v2586 = vmul.f32 %v2218, 1.442695
        %v2587 = vpow.pop %v2586
        %v2588 = vmul.f32 %v2219, 1.442695
        %v2589 = vpow.pop %v2588
        %v2590 = vmul.f32 %v2220, 1.442695
        %v2591 = vpow.pop %v2590
        %v2592 = vmul.f32 %v2221, 1.442695
        %v2593 = vpow.pop %v2592
        %v2594 = vmul.f32 %v2222, 1.442695
        %v2595 = vpow.pop %v2594
        %v2596 = vmul.f32 %v2223, 1.442695
        %v2597 = vpow.pop %v2596
        %v2598 = vmul.f32 %v2224, 1.442695
        %v2599 = vpow.pop %v2598
        %v2600 = vmul.f32 %v2225, 1.442695
        %v2601 = vpow.pop %v2600
        %v2602 = vmul.f32 %v2226, 1.442695
        %v2603 = vpow.pop %v2602
        %v2604 = vmul.f32 %v2227, 1.442695
        %v2605 = vpow.pop %v2604
        %v2606 = vmul.f32 %v2228, 1.442695
        %v2607 = vpow.pop %v2606
        %v2608 = vmul.f32 %v2229, 1.442695
        %v2609 = vpow.pop %v2608
        %v2610 = vmul.f32 %v2230, 1.442695
        %v2611 = vpow.pop %v2610
        %v2612 = vmul.f32 %v2231, 1.442695
        %v2613 = vpow.pop %v2612
        %v2614 = vmul.f32 %v2232, 1.442695
        %v2615 = vpow.pop %v2614
        %v2616 = vmul.f32 %v2233, 1.442695
        %v2617 = vpow.pop %v2616
        %v2618 = vmul.f32 %v2234, 1.442695
        %v2619 = vpow.pop %v2618
        %v2620 = vmul.f32 %v2235, 1.442695
        %v2621 = vpow.pop %v2620
        %v2622 = vmul.f32 %v2236, 1.442695
        %v2623 = vpow.pop %v2622
        %v2624 = vmul.f32 %v2237, 1.442695
        %v2625 = vpow.pop %v2624
        %v2626 = vmul.f32 %v2238, 1.442695
        %v2627 = vpow.pop %v2626
        %v2628 = vmul.f32 %v2239, 1.442695
        %v2629 = vpow.pop %v2628
        %v2630 = vmul.f32 %v2240, 1.442695
        %v2631 = vpow.pop %v2630
        %v2632 = vmul.f32 %v2241, 1.442695
        %v2633 = vpow.pop %v2632
        %v2634 = vmul.f32 %v2242, 1.442695
        %v2635 = vpow.pop %v2634
        %v2636 = vmul.f32 %v2243, 1.442695
        %v2637 = vpow.pop %v2636
        %v2638 = vmul.f32 %v2244, 1.442695
        %v2639 = vpow.pop %v2638
        %v2640 = vmul.f32 %v2245, 1.442695
        %v2641 = vpow.pop %v2640
        %v2642 = vmul.f32 %v2246, 1.442695
        %v2643 = vpow.pop %v2642
        %v2644 = vmul.f32 %v2247, 1.442695
        %v2645 = vpow.pop %v2644
        %v2646 = vmul.f32 %v2248, 1.442695
        %v2647 = vpow.pop %v2646
        %v2648 = vmul.f32 %v2249, 1.442695
        %v2649 = vpow.pop %v2648
        %v2650 = vmul.f32 %v2250, 1.442695
        %v2651 = vpow.pop %v2650
        %v2652 = vmul.f32 %v2251, 1.442695
        %v2653 = vpow.pop %v2652
        %v2654 = vmul.f32 %v2252, 1.442695
        %v2655 = vpow.pop %v2654
        %v2656 = vmul.f32 %v2253, 1.442695
        %v2657 = vpow.pop %v2656
        %v2658 = vmul.f32 %v2254, 1.442695
        %v2659 = vpow.pop %v2658
        %v2660 = vmul.f32 %v2255, 1.442695
        %v2661 = vpow.pop %v2660
        %v2662 = vmul.f32 %v2256, 1.442695
        %v2663 = vpow.pop %v2662
        %v2664 = vmul.f32 %v2257, 1.442695
        %v2665 = vpow.pop %v2664
        %v2666 = vmul.f32 %v2258, 1.442695
        %v2667 = vpow.pop %v2666
        %v2668 = vmul.f32 %v2259, 1.442695
        %v2669 = vpow.pop %v2668
        %v2670 = vmul.f32 %v2260, 1.442695
        %v2671 = vpow.pop %v2670
        %v2672 = vmul.f32 %v2261, 1.442695
        %v2673 = vpow.pop %v2672
        %v2674 = vmul.f32 %v2262, 1.442695
        %v2675 = vpow.pop %v2674
        %v2676 = vmul.f32 %v2263, 1.442695
        %v2677 = vpow.pop %v2676
        %v2678 = vmul.f32 %v2264, 1.442695
        %v2679 = vpow.pop %v2678
        %v2680 = vmul.f32 %v2265, 1.442695
        %v2681 = vpow.pop %v2680
        %v2682 = vmul.f32 %v2266, 1.442695
        %v2683 = vpow.pop %v2682
        %v2684 = vmul.f32 %v2267, 1.442695
        %v2685 = vpow.pop %v2684
        %v2686 = vmul.f32 %v2268, 1.442695
        %v2687 = vpow.pop %v2686
        %v2688 = vmul.f32 %v2269, 1.442695
        %v2689 = vpow.pop %v2688
        %v2690 = vmul.f32 %v2270, 1.442695
        %v2691 = vpow.pop %v2690
        %v2692 = vmul.f32 %v2271, 1.442695
        %v2693 = vpow.pop %v2692
        %v2694 = vmul.f32 %v2272, 1.442695
        %v2695 = vpow.pop %v2694
        %v2696 = vmul.f32 %v2273, 1.442695
        %v2697 = vpow.pop %v2696
        %v2698 = vmul.f32 %v2274, 1.442695
        %v2699 = vpow.pop %v2698
        %v2700 = vmul.f32 %v2275, 1.442695
        %v2701 = vpow.pop %v2700
        %v2702 = vmul.f32 %v2276, 1.442695
        %v2703 = vpow.pop %v2702
        %v2704 = vmul.f32 %v2277, 1.442695
        %v2705 = vpow.pop %v2704
        %v2706 = vmul.f32 %v2278, 1.442695
        %v2707 = vpow.pop %v2706
        %v2708 = vmul.f32 %v2279, 1.442695
        %v2709 = vpow.pop %v2708
        %v2710 = vmul.f32 %v2280, 1.442695
        %v2711 = vpow.pop %v2710
        %v2712 = vmul.f32 %v2281, 1.442695
        %v2713 = vpow.pop %v2712
        %v2714 = vmul.f32 %v2282, 1.442695
        %v2715 = vpow.pop %v2714
        %v2716 = vmul.f32 %v2283, 1.442695
        %v2717 = vpow.pop %v2716
        %v2718 = vmul.f32 %v2284, 1.442695
        %v2719 = vpow.pop %v2718
        %v2720 = vmul.f32 %v2285, 1.442695
        %v2721 = vpow.pop %v2720
        %v2722 = vmul.f32 %v2286, 1.442695
        %v2723 = vpow.pop %v2722
        %v2724 = vmul.f32 %v2287, 1.442695
        %v2725 = vpow.pop %v2724
        %v2726 = vmul.f32 %v2288, 1.442695
        %v2727 = vpow.pop %v2726
        %v2728 = vmul.f32 %v2289, 1.442695
        %v2729 = vpow.pop %v2728
        %v2730 = vmul.f32 %v2290, 1.442695
        %v2731 = vpow.pop %v2730
        %v2732 = vmul.f32 %v2291, 1.442695
        %v2733 = vpow.pop %v2732
        %v2734 = vmul.f32 %v2292, 1.442695
        %v2735 = vpow.pop %v2734
        %v2736 = vmul.f32 %v2293, 1.442695
        %v2737 = vpow.pop %v2736
        %v2738 = vmul.f32 %v2294, 1.442695
        %v2739 = vpow.pop %v2738
        %v2740 = vmul.f32 %v2295, 1.442695
        %v2741 = vpow.pop %v2740
        %v2742 = vmul.f32 %v2296, 1.442695
        %v2743 = vpow.pop %v2742
        %v2744 = vmul.f32 %v2297, 1.442695
        %v2745 = vpow.pop %v2744
        %v2746 = vmul.f32 %v2298, 1.442695
        %v2747 = vpow.pop %v2746
        %v2748 = vmul.f32 %v2299, 1.442695
        %v2749 = vpow.pop %v2748
        %v2750 = vmul.f32 %v2300, 1.442695
        %v2751 = vpow.pop %v2750
        %v2752 = vmul.f32 %v2301, 1.442695
        %v2753 = vpow.pop %v2752
        %v2754 = vmul.f32 %v2302, 1.442695
        %v2755 = vpow.pop %v2754
        %v2756 = vmul.f32 %v2303, 1.442695
        %v2757 = vpow.pop %v2756
        %v2758 = vmul.f32 %v2304, 1.442695
        %v2759 = vpow.pop %v2758
        %v2760 = vmul.f32 %v2305, 1.442695
        %v2761 = vpow.pop %v2760
        %v2762 = vmul.f32 %v2306, 1.442695
        %v2763 = vpow.pop %v2762
        %v2764 = vmul.f32 %v2307, 1.442695
        %v2765 = vpow.pop %v2764
        %v2766 = vmul.f32 %v2308, 1.442695
        %v2767 = vpow.pop %v2766
        %v2768 = vmul.f32 %v2309, 1.442695
        %v2769 = vpow.pop %v2768
        %v2770 = vmul.f32 %v2310, 1.442695
        %v2771 = vpow.pop %v2770
        %v2772 = vmul.f32 %v2311, 1.442695
        %v2773 = vpow.pop %v2772
        %v2774 = vmul.f32 %v2312, 1.442695
        %v2775 = vpow.pop %v2774
        %v2776 = vmul.f32 %v2313, 1.442695
        %v2777 = vpow.pop %v2776
        %v2778 = vmul.f32 %v2314, 1.442695
        %v2779 = vpow.pop %v2778
        %v2780 = vmul.f32 %v2315, 1.442695
        %v2781 = vpow.pop %v2780
        %v2782 = vmul.f32 %v2316, 1.442695
        %v2783 = vpow.pop %v2782
        %v2784 = vmul.f32 %v2317, 1.442695
        %v2785 = vpow.pop %v2784
        %v2786 = vmul.f32 %v2318, 1.442695
        %v2787 = vpow.pop %v2786
        %v2788 = vmul.f32 %v2319, 1.442695
        %v2789 = vpow.pop %v2788
        %v2790 = vmul.f32 %v2320, 1.442695
        %v2791 = vpow.pop %v2790
        %v2792 = vmul.f32 %v2321, 1.442695
        %v2793 = vpow.pop %v2792
        %v2794 = vmul.f32 %v2322, 1.442695
        %v2795 = vpow.pop %v2794
        %v2796 = vmul.f32 %v2323, 1.442695
        %v2797 = vpow.pop %v2796
        %v2798 = vmul.f32 %v2324, 1.442695
        %v2799 = vpow.pop %v2798
        %v2800 = vmul.f32 %v2325, 1.442695
        %v2801 = vpow.pop %v2800
        %v2802 = vmul.f32 %v2326, 1.442695
        %v2803 = vpow.pop %v2802
        %v2804 = vmul.f32 %v2327, 1.442695
        %v2805 = vpow.pop %v2804
        %v2806 = vmul.f32 %v2328, 1.442695
        %v2807 = vpow.pop %v2806
        %v2808 = vmul.f32 %v2329, 1.442695
        %v2809 = vpow.pop %v2808
        %v2810 = vmul.f32 %v2330, 1.442695
        %v2811 = vpow.pop %v2810
        %v2812 = vmul.f32 %v2331, 1.442695
        %v2813 = vpow.pop %v2812
        %v2814 = vmul.f32 %v2332, 1.442695
        %v2815 = vpow.pop %v2814
        %v2816 = vmul.f32 %v2333, 1.442695
        %v2817 = vpow.pop %v2816
        %v2818 = vmul.f32 %v2334, 1.442695
        %v2819 = vpow.pop %v2818
        %v2820 = vmul.f32 %v2335, 1.442695
        %v2821 = vpow.pop %v2820
        %v2822 = vmul.f32 %v2336, 1.442695
        %v2823 = vpow.pop %v2822
        %v2824 = vmul.f32 %v2337, 1.442695
        %v2825 = vpow.pop %v2824
        %v2826 = vmul.f32 %v2338, 1.442695
        %v2827 = vpow.pop %v2826
        %v2828 = vmul.f32 %v2339, 1.442695
        %v2829 = vpow.pop %v2828
        %v2830 = vmul.f32 %v2340, 1.442695
        %v2831 = vpow.pop %v2830
        %v2832 = vmul.f32 %v2341, 1.442695
        %v2833 = vpow.pop %v2832
        %v2834 = vmul.f32 %v2342, 1.442695
        %v2835 = vpow.pop %v2834
        %v2836 = vmul.f32 %v2343, 1.442695
        %v2837 = vpow.pop %v2836
        %v2838 = vmul.f32 %v2344, 1.442695
        %v2839 = vpow.pop %v2838
        %v2840 = vmul.f32 %v2345, 1.442695
        %v2841 = vpow.pop %v2840
        %v2842 = vmul.f32 %v2346, 1.442695
        %v2843 = vpow.pop %v2842
        %v2844 = vmul.f32 %v2347, 1.442695
        %v2845 = vpow.pop %v2844
        %v2846 = vmul.f32 %v2348, 1.442695
        %v2847 = vpow.pop %v2846
        %v2848 = vmul.f32 %v2349, 1.442695
        %v2849 = vpow.pop %v2848
        %v2850 = vmul.f32 %v2350, 1.442695
        %v2851 = vpow.pop %v2850
        %v2852 = vmul.f32 %v2351, 1.442695
        %v2853 = vpow.pop %v2852
        %v2854 = vmul.f32 %v2352, 1.442695
        %v2855 = vpow.pop %v2854
        %v2856 = vmul.f32 %v2353, 1.442695
        %v2857 = vpow.pop %v2856
        %v2858 = vmul.f32 %v2354, 1.442695
        %v2859 = vpow.pop %v2858
        %v2860 = vmul.f32 %v2355, 1.442695
        %v2861 = vpow.pop %v2860
        %v2862 = vmul.f32 %v2356, 1.442695
        %v2863 = vpow.pop %v2862
        %v2864 = vmul.f32 %v2357, 1.442695
        %v2865 = vpow.pop %v2864
        %v2866 = vmul.f32 %v2358, 1.442695
        %v2867 = vpow.pop %v2866
        %v2868 = vmul.f32 %v2359, 1.442695
        %v2869 = vpow.pop %v2868
        %v2870 = vmul.f32 %v2360, 1.442695
        %v2871 = vpow.pop %v2870
        %v2872 = vmul.f32 %v2361, 1.442695
        %v2873 = vpow.pop %v2872
        %v2874 = vadd.f32 %v2363, %v2367
        %v2875 = vadd.f32 %v2874, %v2371
        %v2876 = vadd.f32 %v2875, %v2375
        %v2877 = vadd.f32 %v2876, %v2379
        %v2878 = vadd.f32 %v2877, %v2383
        %v2879 = vadd.f32 %v2878, %v2387
        %v2880 = vadd.f32 %v2879, %v2391
        %v2881 = vadd.f32 %v2880, %v2395
        %v2882 = vadd.f32 %v2881, %v2399
        %v2883 = vadd.f32 %v2882, %v2403
        %v2884 = vadd.f32 %v2883, %v2407
        %v2885 = vadd.f32 %v2884, %v2411
        %v2886 = vadd.f32 %v2885, %v2415
        %v2887 = vadd.f32 %v2886, %v2419
        %v2888 = vadd.f32 %v2887, %v2423
        %v2889 = vadd.f32 %v2888, %v2427
        %v2890 = vadd.f32 %v2889, %v2431
        %v2891 = vadd.f32 %v2890, %v2435
        %v2892 = vadd.f32 %v2891, %v2439
        %v2893 = vadd.f32 %v2892, %v2443
        %v2894 = vadd.f32 %v2893, %v2447
        %v2895 = vadd.f32 %v2894, %v2451
        %v2896 = vadd.f32 %v2895, %v2455
        %v2897 = vadd.f32 %v2896, %v2459
        %v2898 = vadd.f32 %v2897, %v2463
        %v2899 = vadd.f32 %v2898, %v2467
        %v2900 = vadd.f32 %v2899, %v2471
        %v2901 = vadd.f32 %v2900, %v2475
        %v2902 = vadd.f32 %v2901, %v2479
        %v2903 = vadd.f32 %v2902, %v2483
        %v2904 = vadd.f32 %v2903, %v2487
        %v2905 = vrot.slane %v2904, 4
        %v2906 = vadd.f32 %v2904, %v2905
        %v2907 = vrot.slane %v2906, 2
        %v2908 = vadd.f32 %v2906, %v2907
        %v2909 = vrot.slane %v2908, 1
        %v2910 = vadd.f32 %v2908, %v2909
        %v2911 = vadd.f32 %v2365, %v2369
        %v2912 = vadd.f32 %v2911, %v2373
        %v2913 = vadd.f32 %v2912, %v2377
        %v2914 = vadd.f32 %v2913, %v2381
        %v2915 = vadd.f32 %v2914, %v2385
        %v2916 = vadd.f32 %v2915, %v2389
        %v2917 = vadd.f32 %v2916, %v2393
        %v2918 = vadd.f32 %v2917, %v2397
        %v2919 = vadd.f32 %v2918, %v2401
        %v2920 = vadd.f32 %v2919, %v2405
        %v2921 = vadd.f32 %v2920, %v2409
        %v2922 = vadd.f32 %v2921, %v2413
        %v2923 = vadd.f32 %v2922, %v2417
        %v2924 = vadd.f32 %v2923, %v2421
        %v2925 = vadd.f32 %v2924, %v2425
        %v2926 = vadd.f32 %v2925, %v2429
        %v2927 = vadd.f32 %v2926, %v2433
        %v2928 = vadd.f32 %v2927, %v2437
        %v2929 = vadd.f32 %v2928, %v2441
        %v2930 = vadd.f32 %v2929, %v2445
        %v2931 = vadd.f32 %v2930, %v2449
        %v2932 = vadd.f32 %v2931, %v2453
        %v2933 = vadd.f32 %v2932, %v2457
        %v2934 = vadd.f32 %v2933, %v2461
        %v2935 = vadd.f32 %v2934, %v2465
        %v2936 = vadd.f32 %v2935, %v2469
        %v2937 = vadd.f32 %v2936, %v2473
        %v2938 = vadd.f32 %v2937, %v2477
        %v2939 = vadd.f32 %v2938, %v2481
        %v2940 = vadd.f32 %v2939, %v2485
        %v2941 = vadd.f32 %v2940, %v2489
        %v2942 = vrot.slane %v2941, 4
        %v2943 = vadd.f32 %v2941, %v2942
        %v2944 = vrot.slane %v2943, 2
        %v2945 = vadd.f32 %v2943, %v2944
        %v2946 = vrot.slane %v2945, 1
        %v2947 = vadd.f32 %v2945, %v2946
        %v2948 = vadd.f32 %v2491, %v2495
        %v2949 = vadd.f32 %v2948, %v2499
        %v2950 = vadd.f32 %v2949, %v2503
        %v2951 = vadd.f32 %v2950, %v2507
        %v2952 = vadd.f32 %v2951, %v2511
        %v2953 = vadd.f32 %v2952, %v2515
        %v2954 = vadd.f32 %v2953, %v2519
        %v2955 = vadd.f32 %v2954, %v2523
        %v2956 = vadd.f32 %v2955, %v2527
        %v2957 = vadd.f32 %v2956, %v2531
        %v2958 = vadd.f32 %v2957, %v2535
        %v2959 = vadd.f32 %v2958, %v2539
        %v2960 = vadd.f32 %v2959, %v2543
        %v2961 = vadd.f32 %v2960, %v2547
        %v2962 = vadd.f32 %v2961, %v2551
        %v2963 = vadd.f32 %v2962, %v2555
        %v2964 = vadd.f32 %v2963, %v2559
        %v2965 = vadd.f32 %v2964, %v2563
        %v2966 = vadd.f32 %v2965, %v2567
        %v2967 = vadd.f32 %v2966, %v2571
        %v2968 = vadd.f32 %v2967, %v2575
        %v2969 = vadd.f32 %v2968, %v2579
        %v2970 = vadd.f32 %v2969, %v2583
        %v2971 = vadd.f32 %v2970, %v2587
        %v2972 = vadd.f32 %v2971, %v2591
        %v2973 = vadd.f32 %v2972, %v2595
        %v2974 = vadd.f32 %v2973, %v2599
        %v2975 = vadd.f32 %v2974, %v2603
        %v2976 = vadd.f32 %v2975, %v2607
        %v2977 = vadd.f32 %v2976, %v2611
        %v2978 = vadd.f32 %v2977, %v2615
        %v2979 = vrot.slane %v2978, 4
        %v2980 = vadd.f32 %v2978, %v2979
        %v2981 = vrot.slane %v2980, 2
        %v2982 = vadd.f32 %v2980, %v2981
        %v2983 = vrot.slane %v2982, 1
        %v2984 = vadd.f32 %v2982, %v2983
        %v2985 = vadd.f32 %v2493, %v2497
        %v2986 = vadd.f32 %v2985, %v2501
        %v2987 = vadd.f32 %v2986, %v2505
        %v2988 = vadd.f32 %v2987, %v2509
        %v2989 = vadd.f32 %v2988, %v2513
        %v2990 = vadd.f32 %v2989, %v2517
        %v2991 = vadd.f32 %v2990, %v2521
        %v2992 = vadd.f32 %v2991, %v2525
        %v2993 = vadd.f32 %v2992, %v2529
        %v2994 = vadd.f32 %v2993, %v2533
        %v2995 = vadd.f32 %v2994, %v2537
        %v2996 = vadd.f32 %v2995, %v2541
        %v2997 = vadd.f32 %v2996, %v2545
        %v2998 = vadd.f32 %v2997, %v2549
        %v2999 = vadd.f32 %v2998, %v2553
        %v3000 = vadd.f32 %v2999, %v2557
        %v3001 = vadd.f32 %v3000, %v2561
        %v3002 = vadd.f32 %v3001, %v2565
        %v3003 = vadd.f32 %v3002, %v2569
        %v3004 = vadd.f32 %v3003, %v2573
        %v3005 = vadd.f32 %v3004, %v2577
        %v3006 = vadd.f32 %v3005, %v2581
        %v3007 = vadd.f32 %v3006, %v2585
        %v3008 = vadd.f32 %v3007, %v2589
        %v3009 = vadd.f32 %v3008, %v2593
        %v3010 = vadd.f32 %v3009, %v2597
        %v3011 = vadd.f32 %v3010, %v2601
        %v3012 = vadd.f32 %v3011, %v2605
        %v3013 = vadd.f32 %v3012, %v2609
        %v3014 = vadd.f32 %v3013, %v2613
        %v3015 = vadd.f32 %v3014, %v2617
        %v3016 = vrot.slane %v3015, 4
        %v3017 = vadd.f32 %v3015, %v3016
        %v3018 = vrot.slane %v3017, 2
        %v3019 = vadd.f32 %v3017, %v3018
        %v3020 = vrot.slane %v3019, 1
        %v3021 = vadd.f32 %v3019, %v3020
        %v3022 = vadd.f32 %v2619, %v2623
        %v3023 = vadd.f32 %v3022, %v2627
        %v3024 = vadd.f32 %v3023, %v2631
        %v3025 = vadd.f32 %v3024, %v2635
        %v3026 = vadd.f32 %v3025, %v2639
        %v3027 = vadd.f32 %v3026, %v2643
        %v3028 = vadd.f32 %v3027, %v2647
        %v3029 = vadd.f32 %v3028, %v2651
        %v3030 = vadd.f32 %v3029, %v2655
        %v3031 = vadd.f32 %v3030, %v2659
        %v3032 = vadd.f32 %v3031, %v2663
        %v3033 = vadd.f32 %v3032, %v2667
        %v3034 = vadd.f32 %v3033, %v2671
        %v3035 = vadd.f32 %v3034, %v2675
        %v3036 = vadd.f32 %v3035, %v2679
        %v3037 = vadd.f32 %v3036, %v2683
        %v3038 = vadd.f32 %v3037, %v2687
        %v3039 = vadd.f32 %v3038, %v2691
        %v3040 = vadd.f32 %v3039, %v2695
        %v3041 = vadd.f32 %v3040, %v2699
        %v3042 = vadd.f32 %v3041, %v2703
        %v3043 = vadd.f32 %v3042, %v2707
        %v3044 = vadd.f32 %v3043, %v2711
        %v3045 = vadd.f32 %v3044, %v2715
        %v3046 = vadd.f32 %v3045, %v2719
        %v3047 = vadd.f32 %v3046, %v2723
        %v3048 = vadd.f32 %v3047, %v2727
        %v3049 = vadd.f32 %v3048, %v2731
        %v3050 = vadd.f32 %v3049, %v2735
        %v3051 = vadd.f32 %v3050, %v2739
        %v3052 = vadd.f32 %v3051, %v2743
        %v3053 = vrot.slane %v3052, 4
        %v3054 = vadd.f32 %v3052, %v3053
        %v3055 = vrot.slane %v3054, 2
        %v3056 = vadd.f32 %v3054, %v3055
        %v3057 = vrot.slane %v3056, 1
        %v3058 = vadd.f32 %v3056, %v3057
        %v3059 = vadd.f32 %v2621, %v2625
        %v3060 = vadd.f32 %v3059, %v2629
        %v3061 = vadd.f32 %v3060, %v2633
        %v3062 = vadd.f32 %v3061, %v2637
        %v3063 = vadd.f32 %v3062, %v2641
        %v3064 = vadd.f32 %v3063, %v2645
        %v3065 = vadd.f32 %v3064, %v2649
        %v3066 = vadd.f32 %v3065, %v2653
        %v3067 = vadd.f32 %v3066, %v2657
        %v3068 = vadd.f32 %v3067, %v2661
        %v3069 = vadd.f32 %v3068, %v2665
        %v3070 = vadd.f32 %v3069, %v2669
        %v3071 = vadd.f32 %v3070, %v2673
        %v3072 = vadd.f32 %v3071, %v2677
        %v3073 = vadd.f32 %v3072, %v2681
        %v3074 = vadd.f32 %v3073, %v2685
        %v3075 = vadd.f32 %v3074, %v2689
        %v3076 = vadd.f32 %v3075, %v2693
        %v3077 = vadd.f32 %v3076, %v2697
        %v3078 = vadd.f32 %v3077, %v2701
        %v3079 = vadd.f32 %v3078, %v2705
        %v3080 = vadd.f32 %v3079, %v2709
        %v3081 = vadd.f32 %v3080, %v2713
        %v3082 = vadd.f32 %v3081, %v2717
        %v3083 = vadd.f32 %v3082, %v2721
        %v3084 = vadd.f32 %v3083, %v2725
        %v3085 = vadd.f32 %v3084, %v2729
        %v3086 = vadd.f32 %v3085, %v2733
        %v3087 = vadd.f32 %v3086, %v2737
        %v3088 = vadd.f32 %v3087, %v2741
        %v3089 = vadd.f32 %v3088, %v2745
        %v3090 = vrot.slane %v3089, 4
        %v3091 = vadd.f32 %v3089, %v3090
        %v3092 = vrot.slane %v3091, 2
        %v3093 = vadd.f32 %v3091, %v3092
        %v3094 = vrot.slane %v3093, 1
        %v3095 = vadd.f32 %v3093, %v3094
        %v3096 = vadd.f32 %v2747, %v2751
        %v3097 = vadd.f32 %v3096, %v2755
        %v3098 = vadd.f32 %v3097, %v2759
        %v3099 = vadd.f32 %v3098, %v2763
        %v3100 = vadd.f32 %v3099, %v2767
        %v3101 = vadd.f32 %v3100, %v2771
        %v3102 = vadd.f32 %v3101, %v2775
        %v3103 = vadd.f32 %v3102, %v2779
        %v3104 = vadd.f32 %v3103, %v2783
        %v3105 = vadd.f32 %v3104, %v2787
        %v3106 = vadd.f32 %v3105, %v2791
        %v3107 = vadd.f32 %v3106, %v2795
        %v3108 = vadd.f32 %v3107, %v2799
        %v3109 = vadd.f32 %v3108, %v2803
        %v3110 = vadd.f32 %v3109, %v2807
        %v3111 = vadd.f32 %v3110, %v2811
        %v3112 = vadd.f32 %v3111, %v2815
        %v3113 = vadd.f32 %v3112, %v2819
        %v3114 = vadd.f32 %v3113, %v2823
        %v3115 = vadd.f32 %v3114, %v2827
        %v3116 = vadd.f32 %v3115, %v2831
        %v3117 = vadd.f32 %v3116, %v2835
        %v3118 = vadd.f32 %v3117, %v2839
        %v3119 = vadd.f32 %v3118, %v2843
        %v3120 = vadd.f32 %v3119, %v2847
        %v3121 = vadd.f32 %v3120, %v2851
        %v3122 = vadd.f32 %v3121, %v2855
        %v3123 = vadd.f32 %v3122, %v2859
        %v3124 = vadd.f32 %v3123, %v2863
        %v3125 = vadd.f32 %v3124, %v2867
        %v3126 = vadd.f32 %v3125, %v2871
        %v3127 = vrot.slane %v3126, 4
        %v3128 = vadd.f32 %v3126, %v3127
        %v3129 = vrot.slane %v3128, 2
        %v3130 = vadd.f32 %v3128, %v3129
        %v3131 = vrot.slane %v3130, 1
        %v3132 = vadd.f32 %v3130, %v3131
        %v3133 = vadd.f32 %v2749, %v2753
        %v3134 = vadd.f32 %v3133, %v2757
        %v3135 = vadd.f32 %v3134, %v2761
        %v3136 = vadd.f32 %v3135, %v2765
        %v3137 = vadd.f32 %v3136, %v2769
        %v3138 = vadd.f32 %v3137, %v2773
        %v3139 = vadd.f32 %v3138, %v2777
        %v3140 = vadd.f32 %v3139, %v2781
        %v3141 = vadd.f32 %v3140, %v2785
        %v3142 = vadd.f32 %v3141, %v2789
        %v3143 = vadd.f32 %v3142, %v2793
        %v3144 = vadd.f32 %v3143, %v2797
        %v3145 = vadd.f32 %v3144, %v2801
        %v3146 = vadd.f32 %v3145, %v2805
        %v3147 = vadd.f32 %v3146, %v2809
        %v3148 = vadd.f32 %v3147, %v2813
        %v3149 = vadd.f32 %v3148, %v2817
        %v3150 = vadd.f32 %v3149, %v2821
        %v3151 = vadd.f32 %v3150, %v2825
        %v3152 = vadd.f32 %v3151, %v2829
        %v3153 = vadd.f32 %v3152, %v2833
        %v3154 = vadd.f32 %v3153, %v2837
        %v3155 = vadd.f32 %v3154, %v2841
        %v3156 = vadd.f32 %v3155, %v2845
        %v3157 = vadd.f32 %v3156, %v2849
        %v3158 = vadd.f32 %v3157, %v2853
        %v3159 = vadd.f32 %v3158, %v2857
        %v3160 = vadd.f32 %v3159, %v2861
        %v3161 = vadd.f32 %v3160, %v2865
        %v3162 = vadd.f32 %v3161, %v2869
        %v3163 = vadd.f32 %v3162, %v2873
        %v3164 = vrot.slane %v3163, 4
        %v3165 = vadd.f32 %v3163, %v3164
        %v3166 = vrot.slane %v3165, 2
        %v3167 = vadd.f32 %v3165, %v3166
        %v3168 = vrot.slane %v3167, 1
        %v3169 = vadd.f32 %v3167, %v3168
        %v3170 = vpack.c.bf16 %v2367, %v2363
        %v3171 = vpack.c.bf16 %v2369, %v2365
        %v3172 = vpack.c.bf16 %v2375, %v2371
        %v3173 = vpack.c.bf16 %v2377, %v2373
        %v3174 = vpack.c.bf16 %v2383, %v2379
        %v3175 = vpack.c.bf16 %v2385, %v2381
        %v3176 = vpack.c.bf16 %v2391, %v2387
        %v3177 = vpack.c.bf16 %v2393, %v2389
        %v3178 = vpack.c.bf16 %v2399, %v2395
        %v3179 = vpack.c.bf16 %v2401, %v2397
        %v3180 = vpack.c.bf16 %v2407, %v2403
        %v3181 = vpack.c.bf16 %v2409, %v2405
        %v3182 = vpack.c.bf16 %v2415, %v2411
        %v3183 = vpack.c.bf16 %v2417, %v2413
        %v3184 = vpack.c.bf16 %v2423, %v2419
        %v3185 = vpack.c.bf16 %v2425, %v2421
        %v3186 = vpack.c.bf16 %v2431, %v2427
        %v3187 = vpack.c.bf16 %v2433, %v2429
        %v3188 = vpack.c.bf16 %v2439, %v2435
        %v3189 = vpack.c.bf16 %v2441, %v2437
        %v3190 = vpack.c.bf16 %v2447, %v2443
        %v3191 = vpack.c.bf16 %v2449, %v2445
        %v3192 = vpack.c.bf16 %v2455, %v2451
        %v3193 = vpack.c.bf16 %v2457, %v2453
        %v3194 = vpack.c.bf16 %v2463, %v2459
        %v3195 = vpack.c.bf16 %v2465, %v2461
        %v3196 = vpack.c.bf16 %v2471, %v2467
        %v3197 = vpack.c.bf16 %v2473, %v2469
        %v3198 = vpack.c.bf16 %v2479, %v2475
        %v3199 = vpack.c.bf16 %v2481, %v2477
        %v3200 = vpack.c.bf16 %v2487, %v2483
        %v3201 = vpack.c.bf16 %v2489, %v2485
        %v3202 = vpack.c.bf16 %v2495, %v2491
        %v3203 = vpack.c.bf16 %v2497, %v2493
        %v3204 = vpack.c.bf16 %v2503, %v2499
        %v3205 = vpack.c.bf16 %v2505, %v2501
        %v3206 = vpack.c.bf16 %v2511, %v2507
        %v3207 = vpack.c.bf16 %v2513, %v2509
        %v3208 = vpack.c.bf16 %v2519, %v2515
        %v3209 = vpack.c.bf16 %v2521, %v2517
        %v3210 = vpack.c.bf16 %v2527, %v2523
        %v3211 = vpack.c.bf16 %v2529, %v2525
        %v3212 = vpack.c.bf16 %v2535, %v2531
        %v3213 = vpack.c.bf16 %v2537, %v2533
        %v3214 = vpack.c.bf16 %v2543, %v2539
        %v3215 = vpack.c.bf16 %v2545, %v2541
        %v3216 = vpack.c.bf16 %v2551, %v2547
        %v3217 = vpack.c.bf16 %v2553, %v2549
        %v3218 = vpack.c.bf16 %v2559, %v2555
        %v3219 = vpack.c.bf16 %v2561, %v2557
        %v3220 = vpack.c.bf16 %v2567, %v2563
        %v3221 = vpack.c.bf16 %v2569, %v2565
        %v3222 = vpack.c.bf16 %v2575, %v2571
        %v3223 = vpack.c.bf16 %v2577, %v2573
        %v3224 = vpack.c.bf16 %v2583, %v2579
        %v3225 = vpack.c.bf16 %v2585, %v2581
        %v3226 = vpack.c.bf16 %v2591, %v2587
        %v3227 = vpack.c.bf16 %v2593, %v2589
        %v3228 = vpack.c.bf16 %v2599, %v2595
        %v3229 = vpack.c.bf16 %v2601, %v2597
        %v3230 = vpack.c.bf16 %v2607, %v2603
        %v3231 = vpack.c.bf16 %v2609, %v2605
        %v3232 = vpack.c.bf16 %v2615, %v2611
        %v3233 = vpack.c.bf16 %v2617, %v2613
        %v3234 = vpack.c.bf16 %v2623, %v2619
        %v3235 = vpack.c.bf16 %v2625, %v2621
        %v3236 = vpack.c.bf16 %v2631, %v2627
        %v3237 = vpack.c.bf16 %v2633, %v2629
        %v3238 = vpack.c.bf16 %v2639, %v2635
        %v3239 = vpack.c.bf16 %v2641, %v2637
        %v3240 = vpack.c.bf16 %v2647, %v2643
        %v3241 = vpack.c.bf16 %v2649, %v2645
        %v3242 = vpack.c.bf16 %v2655, %v2651
        %v3243 = vpack.c.bf16 %v2657, %v2653
        %v3244 = vpack.c.bf16 %v2663, %v2659
        %v3245 = vpack.c.bf16 %v2665, %v2661
        %v3246 = vpack.c.bf16 %v2671, %v2667
        %v3247 = vpack.c.bf16 %v2673, %v2669
        %v3248 = vpack.c.bf16 %v2679, %v2675
        %v3249 = vpack.c.bf16 %v2681, %v2677
        %v3250 = vpack.c.bf16 %v2687, %v2683
        %v3251 = vpack.c.bf16 %v2689, %v2685
        %v3252 = vpack.c.bf16 %v2695, %v2691
        %v3253 = vpack.c.bf16 %v2697, %v2693
        %v3254 = vpack.c.bf16 %v2703, %v2699
        %v3255 = vpack.c.bf16 %v2705, %v2701
        %v3256 = vpack.c.bf16 %v2711, %v2707
        %v3257 = vpack.c.bf16 %v2713, %v2709
        %v3258 = vpack.c.bf16 %v2719, %v2715
        %v3259 = vpack.c.bf16 %v2721, %v2717
        %v3260 = vpack.c.bf16 %v2727, %v2723
        %v3261 = vpack.c.bf16 %v2729, %v2725
        %v3262 = vpack.c.bf16 %v2735, %v2731
        %v3263 = vpack.c.bf16 %v2737, %v2733
        %v3264 = vpack.c.bf16 %v2743, %v2739
        %v3265 = vpack.c.bf16 %v2745, %v2741
        %v3266 = vpack.c.bf16 %v2751, %v2747
        %v3267 = vpack.c.bf16 %v2753, %v2749
        %v3268 = vpack.c.bf16 %v2759, %v2755
        %v3269 = vpack.c.bf16 %v2761, %v2757
        %v3270 = vpack.c.bf16 %v2767, %v2763
        %v3271 = vpack.c.bf16 %v2769, %v2765
        %v3272 = vpack.c.bf16 %v2775, %v2771
        %v3273 = vpack.c.bf16 %v2777, %v2773
        %v3274 = vpack.c.bf16 %v2783, %v2779
        %v3275 = vpack.c.bf16 %v2785, %v2781
        %v3276 = vpack.c.bf16 %v2791, %v2787
        %v3277 = vpack.c.bf16 %v2793, %v2789
        %v3278 = vpack.c.bf16 %v2799, %v2795
        %v3279 = vpack.c.bf16 %v2801, %v2797
        %v3280 = vpack.c.bf16 %v2807, %v2803
        %v3281 = vpack.c.bf16 %v2809, %v2805
        %v3282 = vpack.c.bf16 %v2815, %v2811
        %v3283 = vpack.c.bf16 %v2817, %v2813
        %v3284 = vpack.c.bf16 %v2823, %v2819
        %v3285 = vpack.c.bf16 %v2825, %v2821
        %v3286 = vpack.c.bf16 %v2831, %v2827
        %v3287 = vpack.c.bf16 %v2833, %v2829
        %v3288 = vpack.c.bf16 %v2839, %v2835
        %v3289 = vpack.c.bf16 %v2841, %v2837
        %v3290 = vpack.c.bf16 %v2847, %v2843
        %v3291 = vpack.c.bf16 %v2849, %v2845
        %v3292 = vpack.c.bf16 %v2855, %v2851
        %v3293 = vpack.c.bf16 %v2857, %v2853
        %v3294 = vpack.c.bf16 %v2863, %v2859
        %v3295 = vpack.c.bf16 %v2865, %v2861
        %v3296 = vpack.c.bf16 %v2871, %v2867
        %v3297 = vpack.c.bf16 %v2873, %v2869
        %3298 = vmatprep.subr.bf16.mxu0 %v3171
        %3299 = vmatpush1.bf16.msra.mxu0 %v3170
        %3300 = vmatprep.subr.bf16.mxu0 %v3173
        %3301 = vmatpush1.bf16.msra.mxu0 %v3172
        %3302 = vmatprep.subr.bf16.mxu0 %v3175
        %3303 = vmatpush1.bf16.msra.mxu0 %v3174
        %3304 = vmatprep.subr.bf16.mxu0 %v3177
        %3305 = vmatpush1.bf16.msra.mxu0 %v3176
        %3306 = vmatprep.subr.bf16.mxu0 %v3179
        %3307 = vmatpush1.bf16.msra.mxu0 %v3178
        %3308 = vmatprep.subr.bf16.mxu0 %v3181
        %3309 = vmatpush1.bf16.msra.mxu0 %v3180
        %3310 = vmatprep.subr.bf16.mxu0 %v3183
        %3311 = vmatpush1.bf16.msra.mxu0 %v3182
        %3312 = vmatprep.subr.bf16.mxu0 %v3185
        %3313 = vmatpush1.bf16.msra.mxu0 %v3184
        %3314 = vmatprep.subr.bf16.mxu0 %v3187
        %3315 = vmatpush1.bf16.msra.mxu0 %v3186
        %3316 = vmatprep.subr.bf16.mxu0 %v3189
        %3317 = vmatpush1.bf16.msra.mxu0 %v3188
        %3318 = vmatprep.subr.bf16.mxu0 %v3191
        %3319 = vmatpush1.bf16.msra.mxu0 %v3190
        %3320 = vmatprep.subr.bf16.mxu0 %v3193
        %3321 = vmatpush1.bf16.msra.mxu0 %v3192
        %3322 = vmatprep.subr.bf16.mxu0 %v3195
        %3323 = vmatpush1.bf16.msra.mxu0 %v3194
        %3324 = vmatprep.subr.bf16.mxu0 %v3197
        %3325 = vmatpush1.bf16.msra.mxu0 %v3196
        %3326 = vmatprep.subr.bf16.mxu0 %v3199
        %3327 = vmatpush1.bf16.msra.mxu0 %v3198
        %3328 = vmatprep.subr.bf16.mxu0 %v3201
        %3329 = vmatpush1.bf16.msra.mxu0 %v3200
        %3330 = vmatprep.mubr.bf16.mxu0 %v685
        %3331 = vmatmul.mubr.bf16.gmra.mrb[0].mxu0 %v684
        %v3332 = vpop.f32.mrb[0].mxu0
        %v3333 = vadd.f32 0.0, %v3332
        %v3334 = vpop.f32.mrb[0].mxu0
        %v3335 = vadd.f32 0.0, %v3334
        %v3336 = vpop.f32.mrb[0].mxu0
        %v3337 = vpop.f32.mrb[0].mxu0
        %3338 = vdwg.mxu0
        %3339 = vmatprep.subr.bf16.mxu0 %v3203
        %3340 = vmatpush1.bf16.msra.mxu0 %v3202
        %3341 = vmatprep.subr.bf16.mxu0 %v3205
        %3342 = vmatpush1.bf16.msra.mxu0 %v3204
        %3343 = vmatprep.subr.bf16.mxu0 %v3207
        %3344 = vmatpush1.bf16.msra.mxu0 %v3206
        %3345 = vmatprep.subr.bf16.mxu0 %v3209
        %3346 = vmatpush1.bf16.msra.mxu0 %v3208
        %3347 = vmatprep.subr.bf16.mxu0 %v3211
        %3348 = vmatpush1.bf16.msra.mxu0 %v3210
        %3349 = vmatprep.subr.bf16.mxu0 %v3213
        %3350 = vmatpush1.bf16.msra.mxu0 %v3212
        %3351 = vmatprep.subr.bf16.mxu0 %v3215
        %3352 = vmatpush1.bf16.msra.mxu0 %v3214
        %3353 = vmatprep.subr.bf16.mxu0 %v3217
        %3354 = vmatpush1.bf16.msra.mxu0 %v3216
        %3355 = vmatprep.subr.bf16.mxu0 %v3219
        %3356 = vmatpush1.bf16.msra.mxu0 %v3218
        %3357 = vmatprep.subr.bf16.mxu0 %v3221
        %3358 = vmatpush1.bf16.msra.mxu0 %v3220
        %3359 = vmatprep.subr.bf16.mxu0 %v3223
        %3360 = vmatpush1.bf16.msra.mxu0 %v3222
        %3361 = vmatprep.subr.bf16.mxu0 %v3225
        %3362 = vmatpush1.bf16.msra.mxu0 %v3224
        %3363 = vmatprep.subr.bf16.mxu0 %v3227
        %3364 = vmatpush1.bf16.msra.mxu0 %v3226
        %3365 = vmatprep.subr.bf16.mxu0 %v3229
        %3366 = vmatpush1.bf16.msra.mxu0 %v3228
        %3367 = vmatprep.subr.bf16.mxu0 %v3231
        %3368 = vmatpush1.bf16.msra.mxu0 %v3230
        %3369 = vmatprep.subr.bf16.mxu0 %v3233
        %3370 = vmatpush1.bf16.msra.mxu0 %v3232
        %3371 = vmatprep.mubr.bf16.mxu0 %v687
        %3372 = vmatmul.mubr.bf16.gmra.mrb[0].mxu0 %v686
        %v3373 = vpop.f32.mrb[0].mxu0
        %v3374 = vadd.f32 0.0, %v3373
        %v3375 = vpop.f32.mrb[0].mxu0
        %v3376 = vadd.f32 0.0, %v3375
        %v3377 = vpop.f32.mrb[0].mxu0
        %v3378 = vpop.f32.mrb[0].mxu0
        %3379 = vdwg.mxu0
        %3380 = vmatprep.subr.bf16.mxu0 %v3235
        %3381 = vmatpush1.bf16.msra.mxu0 %v3234
        %3382 = vmatprep.subr.bf16.mxu0 %v3237
        %3383 = vmatpush1.bf16.msra.mxu0 %v3236
        %3384 = vmatprep.subr.bf16.mxu0 %v3239
        %3385 = vmatpush1.bf16.msra.mxu0 %v3238
        %3386 = vmatprep.subr.bf16.mxu0 %v3241
        %3387 = vmatpush1.bf16.msra.mxu0 %v3240
        %3388 = vmatprep.subr.bf16.mxu0 %v3243
        %3389 = vmatpush1.bf16.msra.mxu0 %v3242
        %3390 = vmatprep.subr.bf16.mxu0 %v3245
        %3391 = vmatpush1.bf16.msra.mxu0 %v3244
        %3392 = vmatprep.subr.bf16.mxu0 %v3247
        %3393 = vmatpush1.bf16.msra.mxu0 %v3246
        %3394 = vmatprep.subr.bf16.mxu0 %v3249
        %3395 = vmatpush1.bf16.msra.mxu0 %v3248
        %3396 = vmatprep.subr.bf16.mxu0 %v3251
        %3397 = vmatpush1.bf16.msra.mxu0 %v3250
        %3398 = vmatprep.subr.bf16.mxu0 %v3253
        %3399 = vmatpush1.bf16.msra.mxu0 %v3252
        %3400 = vmatprep.subr.bf16.mxu0 %v3255
        %3401 = vmatpush1.bf16.msra.mxu0 %v3254
        %3402 = vmatprep.subr.bf16.mxu0 %v3257
        %3403 = vmatpush1.bf16.msra.mxu0 %v3256
        %3404 = vmatprep.subr.bf16.mxu0 %v3259
        %3405 = vmatpush1.bf16.msra.mxu0 %v3258
        %3406 = vmatprep.subr.bf16.mxu0 %v3261
        %3407 = vmatpush1.bf16.msra.mxu0 %v3260
        %3408 = vmatprep.subr.bf16.mxu0 %v3263
        %3409 = vmatpush1.bf16.msra.mxu0 %v3262
        %3410 = vmatprep.subr.bf16.mxu0 %v3265
        %3411 = vmatpush1.bf16.msra.mxu0 %v3264
        %3412 = vmatprep.mubr.bf16.mxu0 %v689
        %3413 = vmatmul.mubr.bf16.gmra.mrb[0].mxu0 %v688
        %v3414 = vpop.f32.mrb[0].mxu0
        %v3415 = vadd.f32 0.0, %v3414
        %v3416 = vpop.f32.mrb[0].mxu0
        %v3417 = vadd.f32 0.0, %v3416
        %v3418 = vpop.f32.mrb[0].mxu0
        %v3419 = vpop.f32.mrb[0].mxu0
        %3420 = vdwg.mxu0
        %3421 = vmatprep.subr.bf16.mxu0 %v3267
        %3422 = vmatpush1.bf16.msra.mxu0 %v3266
        %3423 = vmatprep.subr.bf16.mxu0 %v3269
        %3424 = vmatpush1.bf16.msra.mxu0 %v3268
        %3425 = vmatprep.subr.bf16.mxu0 %v3271
        %3426 = vmatpush1.bf16.msra.mxu0 %v3270
        %3427 = vmatprep.subr.bf16.mxu0 %v3273
        %3428 = vmatpush1.bf16.msra.mxu0 %v3272
        %3429 = vmatprep.subr.bf16.mxu0 %v3275
        %3430 = vmatpush1.bf16.msra.mxu0 %v3274
        %3431 = vmatprep.subr.bf16.mxu0 %v3277
        %3432 = vmatpush1.bf16.msra.mxu0 %v3276
        %3433 = vmatprep.subr.bf16.mxu0 %v3279
        %3434 = vmatpush1.bf16.msra.mxu0 %v3278
        %3435 = vmatprep.subr.bf16.mxu0 %v3281
        %3436 = vmatpush1.bf16.msra.mxu0 %v3280
        %3437 = vmatprep.subr.bf16.mxu0 %v3283
        %3438 = vmatpush1.bf16.msra.mxu0 %v3282
        %3439 = vmatprep.subr.bf16.mxu0 %v3285
        %3440 = vmatpush1.bf16.msra.mxu0 %v3284
        %3441 = vmatprep.subr.bf16.mxu0 %v3287
        %3442 = vmatpush1.bf16.msra.mxu0 %v3286
        %3443 = vmatprep.subr.bf16.mxu0 %v3289
        %3444 = vmatpush1.bf16.msra.mxu0 %v3288
        %3445 = vmatprep.subr.bf16.mxu0 %v3291
        %3446 = vmatpush1.bf16.msra.mxu0 %v3290
        %3447 = vmatprep.subr.bf16.mxu0 %v3293
        %3448 = vmatpush1.bf16.msra.mxu0 %v3292
        %3449 = vmatprep.subr.bf16.mxu0 %v3295
        %3450 = vmatpush1.bf16.msra.mxu0 %v3294
        %3451 = vmatprep.subr.bf16.mxu0 %v3297
        %3452 = vmatpush1.bf16.msra.mxu0 %v3296
        %3453 = vmatprep.mubr.bf16.mxu0 %v691
        %3454 = vmatmul.mubr.bf16.gmra.mrb[0].mxu0 %v690
        %v3455 = vpop.f32.mrb[0].mxu0
        %v3456 = vadd.f32 0.0, %v3455
        %v3457 = vpop.f32.mrb[0].mxu0
        %v3458 = vadd.f32 0.0, %v3457
        %v3459 = vpop.f32.mrb[0].mxu0
        %v3460 = vpop.f32.mrb[0].mxu0
        %3461 = vdwg.mxu0
        %v3462 = vrcp.pop %v2910
        %v3463 = vrcp.pop %v2947
        %v3464 = vrcp.pop %v2984
        %v3465 = vrcp.pop %v3021
        %v3466 = vrcp.pop %v3058
        %v3467 = vrcp.pop %v3095
        %v3468 = vrcp.pop %v3132
        %v3469 = vrcp.pop %v3169
        %v3470 = vmul.f32 %v3333, %v3462
        %v3471 = vmul.f32 %v3335, %v3463
        %v3472 = vmul.f32 %v3374, %v3464
        %v3473 = vmul.f32 %v3376, %v3465
        %v3474 = vmul.f32 %v3415, %v3466
        %v3475 = vmul.f32 %v3417, %v3467
        %v3476 = vmul.f32 %v3456, %v3468
        %v3477 = vmul.f32 %v3458, %v3469
        %v3478 = vpack.c.bf16 %v3472, %v3470
        %v3479 = vpack.c.bf16 %v3473, %v3471
        %v3480 = vpack.c.bf16 %v3476, %v3474
        %v3481 = vpack.c.bf16 %v3477, %v3475
        %3483 = vset.pattern.permute.xlu0 0
        %3484 = vperm.xlu0 %3483, %v314
        %v3485 = vpop.permute.xlu0 %3484
        %3488 = vset.pattern.permute.xlu0 0
        %3489 = vperm.xlu0 %3488, %v315
        %v3490 = vpop.permute.xlu0 %3489
        %3493 = vset.pattern.permute.xlu0 0
        %3494 = vperm.xlu0 %3493, %v316
        %v3495 = vpop.permute.xlu0 %3494
        %3498 = vset.pattern.permute.xlu0 0
        %3499 = vperm.xlu0 %3498, %v317
        %v3500 = vpop.permute.xlu0 %3499
        %v3506 = vunpack.c.l.b16 %v310
        %v3507 = vunpack.c.l.b16 %v311
        %v3508 = vunpack.c.l.b16 %v312
        %v3509 = vunpack.c.l.b16 %v313
        %v3510 = vpack.c.b16 %v3507, %v3506
        %v3511 = vpack.c.b16 %v3509, %v3508
        %v3513 = vsel %vm556, %v3510, 0
        %v3516 = vsel %vm556, %v3511, 0
        %3518 = vmatprep.subr.bf16.mxu0 %v3479
        %3519 = vmatpush1.bf16.msra.mxu0 %v3478
        %3520 = vmatprep.subr.bf16.mxu0 %v3481
        %3521 = vmatpush1.bf16.msra.mxu0 %v3480
        %3522 = vmatprep.subr.bf16.mxu0 0
        %3523 = vmatpush1.bf16.msra.mxu0 0
        %3524 = vmatprep.subr.bf16.mxu0 0
        %3525 = vmatpush1.bf16.msra.mxu0 0
        %3526 = vmatprep.subr.bf16.mxu0 0
        %3527 = vmatpush1.bf16.msra.mxu0 0
        %3528 = vmatprep.subr.bf16.mxu0 0
        %3529 = vmatpush1.bf16.msra.mxu0 0
        %3530 = vmatprep.subr.bf16.mxu0 0
        %3531 = vmatpush1.bf16.msra.mxu0 0
        %3532 = vmatprep.subr.bf16.mxu0 0
        %3533 = vmatpush1.bf16.msra.mxu0 0
        %3534 = vmatprep.subr.bf16.mxu0 0
        %3535 = vmatpush1.bf16.msra.mxu0 0
        %3536 = vmatprep.subr.bf16.mxu0 0
        %3537 = vmatpush1.bf16.msra.mxu0 0
        %3538 = vmatprep.subr.bf16.mxu0 0
        %3539 = vmatpush1.bf16.msra.mxu0 0
        %3540 = vmatprep.subr.bf16.mxu0 0
        %3541 = vmatpush1.bf16.msra.mxu0 0
        %3542 = vmatprep.subr.bf16.mxu0 0
        %3543 = vmatpush1.bf16.msra.mxu0 0
        %3544 = vmatprep.subr.bf16.mxu0 0
        %3545 = vmatpush1.bf16.msra.mxu0 0
        %3546 = vmatprep.subr.bf16.mxu0 0
        %3547 = vmatpush1.bf16.msra.mxu0 0
        %3548 = vmatprep.subr.bf16.mxu0 0
        %3549 = vmatpush1.bf16.msra.mxu0 0
        %3550 = vmatprep.mubr.bf16.mxu0 0
        %3551 = vmatmul.mubr.bf16.gmra.mrb[0].mxu0 %v3513
        %v3552 = vpop.f32.mrb[0].mxu0
        %v3553 = vadd.f32 %v3485, %v3552
        %v3554 = vpop.f32.mrb[0].mxu0
        %v3555 = vadd.f32 %v3485, %v3554
        %v3556 = vpop.f32.mrb[0].mxu0
        %v3557 = vadd.f32 %v3490, %v3556
        %v3558 = vpop.f32.mrb[0].mxu0
        %v3559 = vadd.f32 %v3490, %v3558
        %3560 = vmatprep.mubr.bf16.mxu0 0
        %3561 = vmatmul.mubr.bf16.gmra.mrb[0].mxu0 %v3516
        %v3562 = vpop.f32.mrb[0].mxu0
        %v3563 = vadd.f32 %v3495, %v3562
        %v3564 = vpop.f32.mrb[0].mxu0
        %v3565 = vadd.f32 %v3495, %v3564
        %v3566 = vpop.f32.mrb[0].mxu0
        %v3567 = vadd.f32 %v3500, %v3566
        %v3568 = vpop.f32.mrb[0].mxu0
        %v3569 = vadd.f32 %v3500, %v3568
        %3570 = vdwg.mxu0
        %v3571 = vadd.f32 %v318, %v3553
        %v3572 = vadd.f32 %v319, %v3555
        %v3573 = vadd.f32 %v320, %v3557
        %v3574 = vadd.f32 %v321, %v3559
        %v3575 = vadd.f32 %v322, %v3563
        %v3576 = vadd.f32 %v323, %v3565
        %v3577 = vadd.f32 %v324, %v3567
        %v3578 = vadd.f32 %v325, %v3569
        %3579 = vst [vmem:[%s271] sm:$0xff] %v3571
        %3580 = vst [vmem:[%s271 + $0x8] sm:$0xff] %v3572
        %3581 = vst [vmem:[%s271 + $0x10] sm:$0xff] %v3573
        %3582 = vst [vmem:[%s271 + $0x18] sm:$0xff] %v3574
        %3583 = vst [vmem:[%s271 + $0x20] sm:$0xff] %v3575
        %3584 = vst [vmem:[%s271 + $0x28] sm:$0xff] %v3576
        %3585 = vst [vmem:[%s271 + $0x30] sm:$0xff] %v3577
        %3586 = vst [vmem:[%s271 + $0x38] sm:$0xff] %v3578
        %s3587 = sand.u32 %s181, 1
        %s3588 = scalar_lea.sflag [#allocation3], %s3587
        %s3589 = sand.u32 %s181, 1
        %s3590 = smul.addr %s3589, 64
        %s3591 = scalar_lea.vmem [#allocation2], %s3590
        // Predicated region
        $region49: #{tpu_custom_call.1} parent=47 // pred_check
          %p3592 = pneg %p191
        $region50: #{tpu_custom_call.1} parent=47 // pred_check_branch
          %3594 = sbr.rel (%p3592) target = $region52
        $region51: #{tpu_custom_call.1} parent=47 // pred_region
          %s3596 = ssub.s32 1024, 1024
          %3597 = vsyncadd %s3588, %s3596
          %s3598 = smul.addr %s21, 8
          %s3599 = smul.addr %s3598, 128
          %s3600 = scalar_lea.hbm %s7, %s3599
          %s3601 = sshll.u32 %s3591, 4
          %s3602 = int_to_ptr.vmem [resolvable:$true] %s3601
          %3607 = dma.vmem_to_hbm [thread:$0]  %s3602, 1024, %s3600, %s3588, 256, 256, 16
        $region52: #{tpu_custom_call.1} parent=47 // pred_fallthru
          _
      $region48: #{tpu_custom_call.1} parent=5 // pred_fallthru
        _
      %p3608 = scmp.le.s32.totalorder 2, %s16
      // Predicated region
      $region53: #{tpu_custom_call.1} parent=5 // pred_check
        %p3609 = pneg %p3608
      $region54: #{tpu_custom_call.1} parent=5 // pred_check_branch
        %3611 = sbr.rel (%p3609) target = $region56
      $region55: #{tpu_custom_call.1} parent=5 // pred_region
        %s3612 = ssub.s32 %s16, 2
        // Predicated region
        $region57: #{tpu_custom_call.1} parent=55 // pred_check
          %p3613 = pneg %p197
        $region58: #{tpu_custom_call.1} parent=55 // pred_check_branch
          %3615 = sbr.rel (%p3613) target = $region60
        $region59: #{tpu_custom_call.1} parent=55 // pred_region
          %s3616 = sand.u32 %s182, 1
          %s3617 = scalar_lea.sflag [#allocation3], %s3616
          %s3618 = sand.u32 %s182, 1
          %s3619 = smul.addr %s3618, 64
          %s3620 = scalar_lea.vmem [#allocation2], %s3619
          %3621 = dma.done %s3617, 1024
        $region60: #{tpu_custom_call.1} parent=55 // pred_fallthru
          _
      $region56: #{tpu_custom_call.1} parent=5 // pred_fallthru
        _
    $region6: #{tpu_custom_call.1} parent=1 // loop_footer
      %s20 = sadd.s32 1, %s16
    $region7: #{tpu_custom_call.1} parent=1 // loop_footer_branch
      %15 = sbr.rel target = $region3
    $region8: #{tpu_custom_call.1} parent=1 // loop_exit
      _
    %3622 = vsyncpa [#allocation3], 1
    %s3623 = scalar_lea.sflag [#allocation3], 1
    %3624 = vsyncpa %s3623, 1

</llo_original>
